<compile_context>
chip_gen: v7x
topology: tpu7x:2x2x1
jax: 0.10.0
libtpu: 0.0.40
codegen_flags: <defaults>
</compile_context>

<pallas_src>
import jax
import jax.numpy as jnp
from jax.experimental import pallas as pl
from jax.experimental.pallas import tpu as pltpu

_BN_EPS = 1e-5
N_ITEMS = 3706
N_ITEMS_PAD = 3712                    # next multiple of 128 -> lane-dense stores
_VMEM_LIMIT = 24 * 1024 * 1024        # resident set ~6 MB; well inside v7x 64 MiB

COMMON_L = (128, 128, 256, 256, 512, 512)
SEPARATE_L = (512, 256, 128, 64)
BN_PAD = 512                          # lane width of the packed BN-param slab

_COMMON_DIMS = tuple(zip(COMMON_L[:-1], COMMON_L[1:]))
_BRANCH_DIMS = tuple(zip(SEPARATE_L[:-1], SEPARATE_L[1:]))
BLOCK_DIMS = _COMMON_DIMS + _BRANCH_DIMS + _BRANCH_DIMS   # 5 common + 3 (a) + 3 (p)
N_COMMON = len(_COMMON_DIMS)
N_BRANCH = len(_BRANCH_DIMS)
N_BLOCKS = len(BLOCK_DIMS)            # 11
N_COPIES = 2 * N_BLOCKS + 2           # [wc, w2] per block + 2 head weights


# ---------------------------------------------------------------------------
# Fused kernel
# ---------------------------------------------------------------------------
def _make_g_kernel(batch):
    inv_n = 1.0 / float(batch)

    def bn_fold(h, g, b):
        # Single-pass training-mode BatchNorm1d (biased variance), folded affine.
        s = jnp.sum(h, axis=0, keepdims=True)
        ss = jnp.sum(h * h, axis=0, keepdims=True)
        mean = s * inv_n
        var = jnp.maximum(ss * inv_n - mean * mean, 0.0)
        scale = g * jax.lax.rsqrt(var + _BN_EPS)
        shift = b - mean * scale
        return h * scale + shift

    def kernel(x_ref, bn_ref, hb_ref, *rest):
        hbm = rest[:N_COPIES]                              # raw HBM weight refs
        out_a_ref = rest[N_COPIES]
        out_p_ref = rest[N_COPIES + 1]
        bufs = rest[N_COPIES + 2:N_COPIES + 2 + N_COPIES]  # VMEM weight buffers
        sem = rest[-1]                                     # DMA sems, shape (N_COPIES,)

        # Issue every weight DMA (HBM -> VMEM) up front; wait right before first
        # use so later blocks' weight loads overlap earlier blocks' compute.
        copies = []
        for i in range(N_COPIES):
            cp = pltpu.make_async_copy(hbm[i], bufs[i], sem.at[i])
            cp.start()
            copies.append(cp)

        def resblock(x, blk):
            d_in, d_out = BLOCK_DIMS[blk]
            has_scale = d_in != d_out
            copies[2 * blk].wait()
            copies[2 * blk + 1].wait()
            wc = bufs[2 * blk][...]          # (d_in, d_out) or (d_in, 2*d_out) bf16
            w2 = bufs[2 * blk + 1][...]      # (d_out, d_out) bf16
            bn = bn_ref[4 * blk:4 * blk + 4, 0:d_out]      # packed g1,b1,g2,b2
            g1, b1, g2, b2 = bn[0:1], bn[1:2], bn[2:3], bn[3:4]

            xb = x.astype(jnp.bfloat16)
            h_all = jnp.dot(xb, wc, preferred_element_type=jnp.float32)
            if has_scale:                    # one MXU op covers l1(x) and scale(x)
                h, identity = h_all[:, :d_out], h_all[:, d_out:]
            else:
                h, identity = h_all, x
            h = jnp.maximum(bn_fold(h, g1, b1), 0.0)       # relu(bn1(l1(x)))
            h = jnp.dot(h.astype(jnp.bfloat16), w2,
                        preferred_element_type=jnp.float32)
            h = bn_fold(h, g2, b2)                         # bn2(l2(out))
            return jnp.maximum(h + identity, 0.0)          # relu(out + identity)

        def head(x, idx):
            copies[2 * N_BLOCKS + idx].wait()
            wh = bufs[2 * N_BLOCKS + idx][...]             # (64, 3712) bf16
            bh = hb_ref[idx:idx + 1, :]                    # (1, 3712) fp32
            h = jnp.dot(x.astype(jnp.bfloat16), wh,
                        preferred_element_type=jnp.float32) + bh
            return jax.nn.sigmoid(h)

        # Common chain.
        x = x_ref[...]
        for blk in range(N_COMMON):
            x = resblock(x, blk)

        # Separate branches (same basic block -> scheduler interleaves them).
        xa = x
        for blk in range(N_COMMON, N_COMMON + N_BRANCH):
            xa = resblock(xa, blk)
        xp = x
        for blk in range(N_COMMON + N_BRANCH, N_BLOCKS):
            xp = resblock(xp, blk)

        out_a_ref[...] = head(xa, 0) * 4.0 + 1.0           # a = sigmoid(...) * 4 + 1
        out_p_ref[...] = head(xp, 1)                       # p = sigmoid(...)

    return kernel


# ---------------------------------------------------------------------------
# Wrapper
# ---------------------------------------------------------------------------
def g_forward(x, params):
    batch = x.shape[0]
    assert batch >= 2, "training-mode BatchNorm1d needs batch >= 2"
    weights = params["weights"]          # N_COPIES bf16 arrays, copy order

    vmem = pl.BlockSpec(memory_space=pltpu.MemorySpace.VMEM)
    hbm = pl.BlockSpec(memory_space=pl.ANY)

    a_pad, p_pad = pl.pallas_call(
        _make_g_kernel(batch),
        out_shape=(jax.ShapeDtypeStruct((batch, N_ITEMS_PAD), jnp.float32),
                   jax.ShapeDtypeStruct((batch, N_ITEMS_PAD), jnp.float32)),
        in_specs=[vmem, vmem, vmem] + [hbm] * len(weights),
        out_specs=(vmem, vmem),
        scratch_shapes=([pltpu.VMEM(w.shape, jnp.bfloat16) for w in weights]
                        + [pltpu.SemaphoreType.DMA((len(weights),))]),
        compiler_params=pltpu.CompilerParams(vmem_limit_bytes=_VMEM_LIMIT),
    )(x, params["bn_all"], params["head_b"], *weights)
    return a_pad[:, :N_ITEMS], p_pad[:, :N_ITEMS]


# ---------------------------------------------------------------------------
# Parameter init (random, stand-in for PyTorch-trained weights), pre-packed:
#   weights = [wc_0, w2_0, ..., wc_10, w2_10, wh_a, wh_p]   (bf16)
#   bn_all  = (4 * N_BLOCKS, 512) fp32   rows 4i..4i+3 = g1,b1,g2,b2 of block i
#   head_b  = (2, 3712) fp32             row 0 = a-head bias, row 1 = p-head bias
# ---------------------------------------------------------------------------
def init_g(key):
    keys = iter(jax.random.split(key, 7 * N_BLOCKS + 8))

    weights = []
    bn_rows = []
    for (d_in, d_out) in BLOCK_DIMS:
        w1 = jax.random.normal(next(keys), (d_in, d_out), jnp.float32) * 0.05
        if d_in != d_out:    # scale = Linear(d_in, d_out, bias=False); concat with l1
            ws = jax.random.normal(next(keys), (d_in, d_out), jnp.float32) * 0.05
            wc = jnp.concatenate([w1, ws], axis=1)
        else:
            wc = w1
        w2 = jax.random.normal(next(keys), (d_out, d_out), jnp.float32) * 0.05
        weights.append(wc.astype(jnp.bfloat16))
        weights.append(w2.astype(jnp.bfloat16))
        g1 = 1.0 + 0.1 * jax.random.normal(next(keys), (d_out,), jnp.float32)
        b1 = 0.01 * jax.random.normal(next(keys), (d_out,), jnp.float32)
        g2 = 1.0 + 0.1 * jax.random.normal(next(keys), (d_out,), jnp.float32)
        b2 = 0.01 * jax.random.normal(next(keys), (d_out,), jnp.float32)
        for v in (g1, b1, g2, b2):
            bn_rows.append(jnp.pad(v, (0, BN_PAD - d_out)))

    head_rows = []
    for _ in range(2):       # 0 = separate_a head, 1 = separate_p head
        w = jax.random.normal(next(keys), (SEPARATE_L[-1], N_ITEMS), jnp.float32) * 0.05
        b = 0.01 * jax.random.normal(next(keys), (N_ITEMS,), jnp.float32)
        weights.append(jnp.pad(w, ((0, 0), (0, N_ITEMS_PAD - N_ITEMS))
                               ).astype(jnp.bfloat16))
        head_rows.append(jnp.pad(b, (0, N_ITEMS_PAD - N_ITEMS)))

    return {"weights": weights,
            "bn_all": jnp.stack(bn_rows),       # (44, 512) fp32
            "head_b": jnp.stack(head_rows)}     # (2, 3712) fp32


if __name__ == "__main__":
    key = jax.random.PRNGKey(0)
    k_param, k_x = jax.random.split(key)
    params = init_g(k_param)

    batch = 8  # training-mode BatchNorm1d needs batch > 1
    x = jax.random.normal(k_x, (batch, COMMON_L[0]), jnp.float32)

    fwd = jax.jit(g_forward)
    a, p = fwd(x, params)
    jax.block_until_ready((a, p))

    assert a.shape == (batch, N_ITEMS) and p.shape == (batch, N_ITEMS)
    assert bool(jnp.all(jnp.isfinite(a)) & jnp.all(jnp.isfinite(p)))
    assert bool(jnp.all(p >= 0.0) & jnp.all(p <= 1.0))
    assert bool(jnp.all(a >= 1.0) & jnp.all(a <= 5.0))
    print("KERNEL_OK")
</pallas_src>

<mosaic_0001>
module attributes {stable_mosaic.version = 11 : i64} {
  func.func @kernel(%arg0: memref<8x128xf32, #tpu.memory_space<vmem>>, %arg1: memref<44x512xf32, #tpu.memory_space<vmem>>, %arg2: memref<2x3712xf32, #tpu.memory_space<vmem>>, %arg3: memref<128x128xbf16, #tpu.memory_space<any>>, %arg4: memref<128x128xbf16, #tpu.memory_space<any>>, %arg5: memref<128x512xbf16, #tpu.memory_space<any>>, %arg6: memref<256x256xbf16, #tpu.memory_space<any>>, %arg7: memref<256x256xbf16, #tpu.memory_space<any>>, %arg8: memref<256x256xbf16, #tpu.memory_space<any>>, %arg9: memref<256x1024xbf16, #tpu.memory_space<any>>, %arg10: memref<512x512xbf16, #tpu.memory_space<any>>, %arg11: memref<512x512xbf16, #tpu.memory_space<any>>, %arg12: memref<512x512xbf16, #tpu.memory_space<any>>, %arg13: memref<512x512xbf16, #tpu.memory_space<any>>, %arg14: memref<256x256xbf16, #tpu.memory_space<any>>, %arg15: memref<256x256xbf16, #tpu.memory_space<any>>, %arg16: memref<128x128xbf16, #tpu.memory_space<any>>, %arg17: memref<128x128xbf16, #tpu.memory_space<any>>, %arg18: memref<64x64xbf16, #tpu.memory_space<any>>, %arg19: memref<512x512xbf16, #tpu.memory_space<any>>, %arg20: memref<256x256xbf16, #tpu.memory_space<any>>, %arg21: memref<256x256xbf16, #tpu.memory_space<any>>, %arg22: memref<128x128xbf16, #tpu.memory_space<any>>, %arg23: memref<128x128xbf16, #tpu.memory_space<any>>, %arg24: memref<64x64xbf16, #tpu.memory_space<any>>, %arg25: memref<64x3712xbf16, #tpu.memory_space<any>>, %arg26: memref<64x3712xbf16, #tpu.memory_space<any>>, %arg27: memref<8x3712xf32, #tpu.memory_space<vmem>>, %arg28: memref<8x3712xf32, #tpu.memory_space<vmem>>, %arg29: memref<128x128xbf16, #tpu.memory_space<vmem>>, %arg30: memref<128x128xbf16, #tpu.memory_space<vmem>>, %arg31: memref<128x512xbf16, #tpu.memory_space<vmem>>, %arg32: memref<256x256xbf16, #tpu.memory_space<vmem>>, %arg33: memref<256x256xbf16, #tpu.memory_space<vmem>>, %arg34: memref<256x256xbf16, #tpu.memory_space<vmem>>, %arg35: memref<256x1024xbf16, #tpu.memory_space<vmem>>, %arg36: memref<512x512xbf16, #tpu.memory_space<vmem>>, %arg37: memref<512x512xbf16, #tpu.memory_space<vmem>>, %arg38: memref<512x512xbf16, #tpu.memory_space<vmem>>, %arg39: memref<512x512xbf16, #tpu.memory_space<vmem>>, %arg40: memref<256x256xbf16, #tpu.memory_space<vmem>>, %arg41: memref<256x256xbf16, #tpu.memory_space<vmem>>, %arg42: memref<128x128xbf16, #tpu.memory_space<vmem>>, %arg43: memref<128x128xbf16, #tpu.memory_space<vmem>>, %arg44: memref<64x64xbf16, #tpu.memory_space<vmem>>, %arg45: memref<512x512xbf16, #tpu.memory_space<vmem>>, %arg46: memref<256x256xbf16, #tpu.memory_space<vmem>>, %arg47: memref<256x256xbf16, #tpu.memory_space<vmem>>, %arg48: memref<128x128xbf16, #tpu.memory_space<vmem>>, %arg49: memref<128x128xbf16, #tpu.memory_space<vmem>>, %arg50: memref<64x64xbf16, #tpu.memory_space<vmem>>, %arg51: memref<64x3712xbf16, #tpu.memory_space<vmem>>, %arg52: memref<64x3712xbf16, #tpu.memory_space<vmem>>, %arg53: memref<24x!tpu.dma_semaphore, #tpu.memory_space<semaphore_mem>>) attributes {dimension_semantics = [], scalar_prefetch = 0 : i64, scratch_operands = 25 : i64, tpu.core_type = #tpu.core_type<tc>} {
    %c0_i32 = arith.constant 0 : i32
    %0 = tpu.memref_slice %arg53[%c0_i32] : memref<24x!tpu.dma_semaphore, #tpu.memory_space<semaphore_mem>> -> memref<1x!tpu.dma_semaphore, #tpu.memory_space<semaphore_mem>>
    %1 = tpu.memref_squeeze %0 : memref<1x!tpu.dma_semaphore, #tpu.memory_space<semaphore_mem>> -> memref<!tpu.dma_semaphore, #tpu.memory_space<semaphore_mem>>
    tpu.enqueue_dma source(%arg3 : memref<128x128xbf16, #tpu.memory_space<any>>) target(%arg29 : memref<128x128xbf16, #tpu.memory_space<vmem>>) target_semaphore(%1 : memref<!tpu.dma_semaphore, #tpu.memory_space<semaphore_mem>>)
    %c1_i32 = arith.constant 1 : i32
    %2 = tpu.memref_slice %arg53[%c1_i32] : memref<24x!tpu.dma_semaphore, #tpu.memory_space<semaphore_mem>> -> memref<1x!tpu.dma_semaphore, #tpu.memory_space<semaphore_mem>>
    %3 = tpu.memref_squeeze %2 : memref<1x!tpu.dma_semaphore, #tpu.memory_space<semaphore_mem>> -> memref<!tpu.dma_semaphore, #tpu.memory_space<semaphore_mem>>
    tpu.enqueue_dma source(%arg4 : memref<128x128xbf16, #tpu.memory_space<any>>) target(%arg30 : memref<128x128xbf16, #tpu.memory_space<vmem>>) target_semaphore(%3 : memref<!tpu.dma_semaphore, #tpu.memory_space<semaphore_mem>>)
    %c2_i32 = arith.constant 2 : i32
    %4 = tpu.memref_slice %arg53[%c2_i32] : memref<24x!tpu.dma_semaphore, #tpu.memory_space<semaphore_mem>> -> memref<1x!tpu.dma_semaphore, #tpu.memory_space<semaphore_mem>>
    %5 = tpu.memref_squeeze %4 : memref<1x!tpu.dma_semaphore, #tpu.memory_space<semaphore_mem>> -> memref<!tpu.dma_semaphore, #tpu.memory_space<semaphore_mem>>
    tpu.enqueue_dma source(%arg5 : memref<128x512xbf16, #tpu.memory_space<any>>) target(%arg31 : memref<128x512xbf16, #tpu.memory_space<vmem>>) target_semaphore(%5 : memref<!tpu.dma_semaphore, #tpu.memory_space<semaphore_mem>>)
    %c3_i32 = arith.constant 3 : i32
    %6 = tpu.memref_slice %arg53[%c3_i32] : memref<24x!tpu.dma_semaphore, #tpu.memory_space<semaphore_mem>> -> memref<1x!tpu.dma_semaphore, #tpu.memory_space<semaphore_mem>>
    %7 = tpu.memref_squeeze %6 : memref<1x!tpu.dma_semaphore, #tpu.memory_space<semaphore_mem>> -> memref<!tpu.dma_semaphore, #tpu.memory_space<semaphore_mem>>
    tpu.enqueue_dma source(%arg6 : memref<256x256xbf16, #tpu.memory_space<any>>) target(%arg32 : memref<256x256xbf16, #tpu.memory_space<vmem>>) target_semaphore(%7 : memref<!tpu.dma_semaphore, #tpu.memory_space<semaphore_mem>>)
    %c4_i32 = arith.constant 4 : i32
    %8 = tpu.memref_slice %arg53[%c4_i32] : memref<24x!tpu.dma_semaphore, #tpu.memory_space<semaphore_mem>> -> memref<1x!tpu.dma_semaphore, #tpu.memory_space<semaphore_mem>>
    %9 = tpu.memref_squeeze %8 : memref<1x!tpu.dma_semaphore, #tpu.memory_space<semaphore_mem>> -> memref<!tpu.dma_semaphore, #tpu.memory_space<semaphore_mem>>
    tpu.enqueue_dma source(%arg7 : memref<256x256xbf16, #tpu.memory_space<any>>) target(%arg33 : memref<256x256xbf16, #tpu.memory_space<vmem>>) target_semaphore(%9 : memref<!tpu.dma_semaphore, #tpu.memory_space<semaphore_mem>>)
    %c5_i32 = arith.constant 5 : i32
    %10 = tpu.memref_slice %arg53[%c5_i32] : memref<24x!tpu.dma_semaphore, #tpu.memory_space<semaphore_mem>> -> memref<1x!tpu.dma_semaphore, #tpu.memory_space<semaphore_mem>>
    %11 = tpu.memref_squeeze %10 : memref<1x!tpu.dma_semaphore, #tpu.memory_space<semaphore_mem>> -> memref<!tpu.dma_semaphore, #tpu.memory_space<semaphore_mem>>
    tpu.enqueue_dma source(%arg8 : memref<256x256xbf16, #tpu.memory_space<any>>) target(%arg34 : memref<256x256xbf16, #tpu.memory_space<vmem>>) target_semaphore(%11 : memref<!tpu.dma_semaphore, #tpu.memory_space<semaphore_mem>>)
    %c6_i32 = arith.constant 6 : i32
    %12 = tpu.memref_slice %arg53[%c6_i32] : memref<24x!tpu.dma_semaphore, #tpu.memory_space<semaphore_mem>> -> memref<1x!tpu.dma_semaphore, #tpu.memory_space<semaphore_mem>>
    %13 = tpu.memref_squeeze %12 : memref<1x!tpu.dma_semaphore, #tpu.memory_space<semaphore_mem>> -> memref<!tpu.dma_semaphore, #tpu.memory_space<semaphore_mem>>
    tpu.enqueue_dma source(%arg9 : memref<256x1024xbf16, #tpu.memory_space<any>>) target(%arg35 : memref<256x1024xbf16, #tpu.memory_space<vmem>>) target_semaphore(%13 : memref<!tpu.dma_semaphore, #tpu.memory_space<semaphore_mem>>)
    %c7_i32 = arith.constant 7 : i32
    %14 = tpu.memref_slice %arg53[%c7_i32] : memref<24x!tpu.dma_semaphore, #tpu.memory_space<semaphore_mem>> -> memref<1x!tpu.dma_semaphore, #tpu.memory_space<semaphore_mem>>
    %15 = tpu.memref_squeeze %14 : memref<1x!tpu.dma_semaphore, #tpu.memory_space<semaphore_mem>> -> memref<!tpu.dma_semaphore, #tpu.memory_space<semaphore_mem>>
    tpu.enqueue_dma source(%arg10 : memref<512x512xbf16, #tpu.memory_space<any>>) target(%arg36 : memref<512x512xbf16, #tpu.memory_space<vmem>>) target_semaphore(%15 : memref<!tpu.dma_semaphore, #tpu.memory_space<semaphore_mem>>)
    %c8_i32 = arith.constant 8 : i32
    %16 = tpu.memref_slice %arg53[%c8_i32] : memref<24x!tpu.dma_semaphore, #tpu.memory_space<semaphore_mem>> -> memref<1x!tpu.dma_semaphore, #tpu.memory_space<semaphore_mem>>
    %17 = tpu.memref_squeeze %16 : memref<1x!tpu.dma_semaphore, #tpu.memory_space<semaphore_mem>> -> memref<!tpu.dma_semaphore, #tpu.memory_space<semaphore_mem>>
    tpu.enqueue_dma source(%arg11 : memref<512x512xbf16, #tpu.memory_space<any>>) target(%arg37 : memref<512x512xbf16, #tpu.memory_space<vmem>>) target_semaphore(%17 : memref<!tpu.dma_semaphore, #tpu.memory_space<semaphore_mem>>)
    %c9_i32 = arith.constant 9 : i32
    %18 = tpu.memref_slice %arg53[%c9_i32] : memref<24x!tpu.dma_semaphore, #tpu.memory_space<semaphore_mem>> -> memref<1x!tpu.dma_semaphore, #tpu.memory_space<semaphore_mem>>
    %19 = tpu.memref_squeeze %18 : memref<1x!tpu.dma_semaphore, #tpu.memory_space<semaphore_mem>> -> memref<!tpu.dma_semaphore, #tpu.memory_space<semaphore_mem>>
    tpu.enqueue_dma source(%arg12 : memref<512x512xbf16, #tpu.memory_space<any>>) target(%arg38 : memref<512x512xbf16, #tpu.memory_space<vmem>>) target_semaphore(%19 : memref<!tpu.dma_semaphore, #tpu.memory_space<semaphore_mem>>)
    %c10_i32 = arith.constant 10 : i32
    %20 = tpu.memref_slice %arg53[%c10_i32] : memref<24x!tpu.dma_semaphore, #tpu.memory_space<semaphore_mem>> -> memref<1x!tpu.dma_semaphore, #tpu.memory_space<semaphore_mem>>
    %21 = tpu.memref_squeeze %20 : memref<1x!tpu.dma_semaphore, #tpu.memory_space<semaphore_mem>> -> memref<!tpu.dma_semaphore, #tpu.memory_space<semaphore_mem>>
    tpu.enqueue_dma source(%arg13 : memref<512x512xbf16, #tpu.memory_space<any>>) target(%arg39 : memref<512x512xbf16, #tpu.memory_space<vmem>>) target_semaphore(%21 : memref<!tpu.dma_semaphore, #tpu.memory_space<semaphore_mem>>)
    %c11_i32 = arith.constant 11 : i32
    %22 = tpu.memref_slice %arg53[%c11_i32] : memref<24x!tpu.dma_semaphore, #tpu.memory_space<semaphore_mem>> -> memref<1x!tpu.dma_semaphore, #tpu.memory_space<semaphore_mem>>
    %23 = tpu.memref_squeeze %22 : memref<1x!tpu.dma_semaphore, #tpu.memory_space<semaphore_mem>> -> memref<!tpu.dma_semaphore, #tpu.memory_space<semaphore_mem>>
    tpu.enqueue_dma source(%arg14 : memref<256x256xbf16, #tpu.memory_space<any>>) target(%arg40 : memref<256x256xbf16, #tpu.memory_space<vmem>>) target_semaphore(%23 : memref<!tpu.dma_semaphore, #tpu.memory_space<semaphore_mem>>)
    %c12_i32 = arith.constant 12 : i32
    %24 = tpu.memref_slice %arg53[%c12_i32] : memref<24x!tpu.dma_semaphore, #tpu.memory_space<semaphore_mem>> -> memref<1x!tpu.dma_semaphore, #tpu.memory_space<semaphore_mem>>
    %25 = tpu.memref_squeeze %24 : memref<1x!tpu.dma_semaphore, #tpu.memory_space<semaphore_mem>> -> memref<!tpu.dma_semaphore, #tpu.memory_space<semaphore_mem>>
    tpu.enqueue_dma source(%arg15 : memref<256x256xbf16, #tpu.memory_space<any>>) target(%arg41 : memref<256x256xbf16, #tpu.memory_space<vmem>>) target_semaphore(%25 : memref<!tpu.dma_semaphore, #tpu.memory_space<semaphore_mem>>)
    %c13_i32 = arith.constant 13 : i32
    %26 = tpu.memref_slice %arg53[%c13_i32] : memref<24x!tpu.dma_semaphore, #tpu.memory_space<semaphore_mem>> -> memref<1x!tpu.dma_semaphore, #tpu.memory_space<semaphore_mem>>
    %27 = tpu.memref_squeeze %26 : memref<1x!tpu.dma_semaphore, #tpu.memory_space<semaphore_mem>> -> memref<!tpu.dma_semaphore, #tpu.memory_space<semaphore_mem>>
    tpu.enqueue_dma source(%arg16 : memref<128x128xbf16, #tpu.memory_space<any>>) target(%arg42 : memref<128x128xbf16, #tpu.memory_space<vmem>>) target_semaphore(%27 : memref<!tpu.dma_semaphore, #tpu.memory_space<semaphore_mem>>)
    %c14_i32 = arith.constant 14 : i32
    %28 = tpu.memref_slice %arg53[%c14_i32] : memref<24x!tpu.dma_semaphore, #tpu.memory_space<semaphore_mem>> -> memref<1x!tpu.dma_semaphore, #tpu.memory_space<semaphore_mem>>
    %29 = tpu.memref_squeeze %28 : memref<1x!tpu.dma_semaphore, #tpu.memory_space<semaphore_mem>> -> memref<!tpu.dma_semaphore, #tpu.memory_space<semaphore_mem>>
    tpu.enqueue_dma source(%arg17 : memref<128x128xbf16, #tpu.memory_space<any>>) target(%arg43 : memref<128x128xbf16, #tpu.memory_space<vmem>>) target_semaphore(%29 : memref<!tpu.dma_semaphore, #tpu.memory_space<semaphore_mem>>)
    %c15_i32 = arith.constant 15 : i32
    %30 = tpu.memref_slice %arg53[%c15_i32] : memref<24x!tpu.dma_semaphore, #tpu.memory_space<semaphore_mem>> -> memref<1x!tpu.dma_semaphore, #tpu.memory_space<semaphore_mem>>
    %31 = tpu.memref_squeeze %30 : memref<1x!tpu.dma_semaphore, #tpu.memory_space<semaphore_mem>> -> memref<!tpu.dma_semaphore, #tpu.memory_space<semaphore_mem>>
    tpu.enqueue_dma source(%arg18 : memref<64x64xbf16, #tpu.memory_space<any>>) target(%arg44 : memref<64x64xbf16, #tpu.memory_space<vmem>>) target_semaphore(%31 : memref<!tpu.dma_semaphore, #tpu.memory_space<semaphore_mem>>)
    %c16_i32 = arith.constant 16 : i32
    %32 = tpu.memref_slice %arg53[%c16_i32] : memref<24x!tpu.dma_semaphore, #tpu.memory_space<semaphore_mem>> -> memref<1x!tpu.dma_semaphore, #tpu.memory_space<semaphore_mem>>
    %33 = tpu.memref_squeeze %32 : memref<1x!tpu.dma_semaphore, #tpu.memory_space<semaphore_mem>> -> memref<!tpu.dma_semaphore, #tpu.memory_space<semaphore_mem>>
    tpu.enqueue_dma source(%arg19 : memref<512x512xbf16, #tpu.memory_space<any>>) target(%arg45 : memref<512x512xbf16, #tpu.memory_space<vmem>>) target_semaphore(%33 : memref<!tpu.dma_semaphore, #tpu.memory_space<semaphore_mem>>)
    %c17_i32 = arith.constant 17 : i32
    %34 = tpu.memref_slice %arg53[%c17_i32] : memref<24x!tpu.dma_semaphore, #tpu.memory_space<semaphore_mem>> -> memref<1x!tpu.dma_semaphore, #tpu.memory_space<semaphore_mem>>
    %35 = tpu.memref_squeeze %34 : memref<1x!tpu.dma_semaphore, #tpu.memory_space<semaphore_mem>> -> memref<!tpu.dma_semaphore, #tpu.memory_space<semaphore_mem>>
    tpu.enqueue_dma source(%arg20 : memref<256x256xbf16, #tpu.memory_space<any>>) target(%arg46 : memref<256x256xbf16, #tpu.memory_space<vmem>>) target_semaphore(%35 : memref<!tpu.dma_semaphore, #tpu.memory_space<semaphore_mem>>)
    %c18_i32 = arith.constant 18 : i32
    %36 = tpu.memref_slice %arg53[%c18_i32] : memref<24x!tpu.dma_semaphore, #tpu.memory_space<semaphore_mem>> -> memref<1x!tpu.dma_semaphore, #tpu.memory_space<semaphore_mem>>
    %37 = tpu.memref_squeeze %36 : memref<1x!tpu.dma_semaphore, #tpu.memory_space<semaphore_mem>> -> memref<!tpu.dma_semaphore, #tpu.memory_space<semaphore_mem>>
    tpu.enqueue_dma source(%arg21 : memref<256x256xbf16, #tpu.memory_space<any>>) target(%arg47 : memref<256x256xbf16, #tpu.memory_space<vmem>>) target_semaphore(%37 : memref<!tpu.dma_semaphore, #tpu.memory_space<semaphore_mem>>)
    %c19_i32 = arith.constant 19 : i32
    %38 = tpu.memref_slice %arg53[%c19_i32] : memref<24x!tpu.dma_semaphore, #tpu.memory_space<semaphore_mem>> -> memref<1x!tpu.dma_semaphore, #tpu.memory_space<semaphore_mem>>
    %39 = tpu.memref_squeeze %38 : memref<1x!tpu.dma_semaphore, #tpu.memory_space<semaphore_mem>> -> memref<!tpu.dma_semaphore, #tpu.memory_space<semaphore_mem>>
    tpu.enqueue_dma source(%arg22 : memref<128x128xbf16, #tpu.memory_space<any>>) target(%arg48 : memref<128x128xbf16, #tpu.memory_space<vmem>>) target_semaphore(%39 : memref<!tpu.dma_semaphore, #tpu.memory_space<semaphore_mem>>)
    %c20_i32 = arith.constant 20 : i32
    %40 = tpu.memref_slice %arg53[%c20_i32] : memref<24x!tpu.dma_semaphore, #tpu.memory_space<semaphore_mem>> -> memref<1x!tpu.dma_semaphore, #tpu.memory_space<semaphore_mem>>
    %41 = tpu.memref_squeeze %40 : memref<1x!tpu.dma_semaphore, #tpu.memory_space<semaphore_mem>> -> memref<!tpu.dma_semaphore, #tpu.memory_space<semaphore_mem>>
    tpu.enqueue_dma source(%arg23 : memref<128x128xbf16, #tpu.memory_space<any>>) target(%arg49 : memref<128x128xbf16, #tpu.memory_space<vmem>>) target_semaphore(%41 : memref<!tpu.dma_semaphore, #tpu.memory_space<semaphore_mem>>)
    %c21_i32 = arith.constant 21 : i32
    %42 = tpu.memref_slice %arg53[%c21_i32] : memref<24x!tpu.dma_semaphore, #tpu.memory_space<semaphore_mem>> -> memref<1x!tpu.dma_semaphore, #tpu.memory_space<semaphore_mem>>
    %43 = tpu.memref_squeeze %42 : memref<1x!tpu.dma_semaphore, #tpu.memory_space<semaphore_mem>> -> memref<!tpu.dma_semaphore, #tpu.memory_space<semaphore_mem>>
    tpu.enqueue_dma source(%arg24 : memref<64x64xbf16, #tpu.memory_space<any>>) target(%arg50 : memref<64x64xbf16, #tpu.memory_space<vmem>>) target_semaphore(%43 : memref<!tpu.dma_semaphore, #tpu.memory_space<semaphore_mem>>)
    %c22_i32 = arith.constant 22 : i32
    %44 = tpu.memref_slice %arg53[%c22_i32] : memref<24x!tpu.dma_semaphore, #tpu.memory_space<semaphore_mem>> -> memref<1x!tpu.dma_semaphore, #tpu.memory_space<semaphore_mem>>
    %45 = tpu.memref_squeeze %44 : memref<1x!tpu.dma_semaphore, #tpu.memory_space<semaphore_mem>> -> memref<!tpu.dma_semaphore, #tpu.memory_space<semaphore_mem>>
    tpu.enqueue_dma source(%arg25 : memref<64x3712xbf16, #tpu.memory_space<any>>) target(%arg51 : memref<64x3712xbf16, #tpu.memory_space<vmem>>) target_semaphore(%45 : memref<!tpu.dma_semaphore, #tpu.memory_space<semaphore_mem>>)
    %c23_i32 = arith.constant 23 : i32
    %46 = tpu.memref_slice %arg53[%c23_i32] : memref<24x!tpu.dma_semaphore, #tpu.memory_space<semaphore_mem>> -> memref<1x!tpu.dma_semaphore, #tpu.memory_space<semaphore_mem>>
    %47 = tpu.memref_squeeze %46 : memref<1x!tpu.dma_semaphore, #tpu.memory_space<semaphore_mem>> -> memref<!tpu.dma_semaphore, #tpu.memory_space<semaphore_mem>>
    tpu.enqueue_dma source(%arg26 : memref<64x3712xbf16, #tpu.memory_space<any>>) target(%arg52 : memref<64x3712xbf16, #tpu.memory_space<vmem>>) target_semaphore(%47 : memref<!tpu.dma_semaphore, #tpu.memory_space<semaphore_mem>>)
    %c0 = arith.constant 0 : index
    %c0_0 = arith.constant 0 : index
    %48 = vector.load %arg0[%c0, %c0_0] : memref<8x128xf32, #tpu.memory_space<vmem>>, vector<8x128xf32>
    %c0_i32_1 = arith.constant 0 : i32
    %49 = tpu.memref_slice %arg53[%c0_i32_1] : memref<24x!tpu.dma_semaphore, #tpu.memory_space<semaphore_mem>> -> memref<1x!tpu.dma_semaphore, #tpu.memory_space<semaphore_mem>>
    %50 = tpu.memref_squeeze %49 : memref<1x!tpu.dma_semaphore, #tpu.memory_space<semaphore_mem>> -> memref<!tpu.dma_semaphore, #tpu.memory_space<semaphore_mem>>
    tpu.wait_dma2 semaphore(%50 : memref<!tpu.dma_semaphore, #tpu.memory_space<semaphore_mem>>) src(%arg3 : memref<128x128xbf16, #tpu.memory_space<any>>) dst(%arg29 : memref<128x128xbf16, #tpu.memory_space<vmem>>)
    %c1_i32_2 = arith.constant 1 : i32
    %51 = tpu.memref_slice %arg53[%c1_i32_2] : memref<24x!tpu.dma_semaphore, #tpu.memory_space<semaphore_mem>> -> memref<1x!tpu.dma_semaphore, #tpu.memory_space<semaphore_mem>>
    %52 = tpu.memref_squeeze %51 : memref<1x!tpu.dma_semaphore, #tpu.memory_space<semaphore_mem>> -> memref<!tpu.dma_semaphore, #tpu.memory_space<semaphore_mem>>
    tpu.wait_dma2 semaphore(%52 : memref<!tpu.dma_semaphore, #tpu.memory_space<semaphore_mem>>) src(%arg4 : memref<128x128xbf16, #tpu.memory_space<any>>) dst(%arg30 : memref<128x128xbf16, #tpu.memory_space<vmem>>)
    %c0_3 = arith.constant 0 : index
    %c0_4 = arith.constant 0 : index
    %53 = vector.load %arg29[%c0_3, %c0_4] : memref<128x128xbf16, #tpu.memory_space<vmem>>, vector<128x128xbf16>
    %c0_5 = arith.constant 0 : index
    %c0_6 = arith.constant 0 : index
    %54 = vector.load %arg30[%c0_5, %c0_6] : memref<128x128xbf16, #tpu.memory_space<vmem>>, vector<128x128xbf16>
    %c0_7 = arith.constant 0 : index
    %c0_8 = arith.constant 0 : index
    %55 = vector.load %arg1[%c0_7, %c0_8] : memref<44x512xf32, #tpu.memory_space<vmem>>, vector<4x128xf32>
    %56 = vector.extract_strided_slice %55 {offsets = [0, 0], sizes = [1, 128], strides = [1, 1]} : vector<4x128xf32> to vector<1x128xf32>
    %57 = vector.extract_strided_slice %55 {offsets = [1, 0], sizes = [1, 128], strides = [1, 1]} : vector<4x128xf32> to vector<1x128xf32>
    %58 = vector.extract_strided_slice %55 {offsets = [2, 0], sizes = [1, 128], strides = [1, 1]} : vector<4x128xf32> to vector<1x128xf32>
    %59 = vector.extract_strided_slice %55 {offsets = [3, 0], sizes = [1, 128], strides = [1, 1]} : vector<4x128xf32> to vector<1x128xf32>
    %60 = arith.truncf %48 : vector<8x128xf32> to vector<8x128xbf16>
    %cst = arith.constant dense<0.000000e+00> : vector<8x128xf32>
    %61 = tpu.matmul %60, %53, %cst {dimension_numbers = #tpu.dot_dimension_numbers<[1], [0], [0], [1], [0, 0, 1, 1], [], []>} : vector<8x128xbf16>, vector<128x128xbf16>, vector<8x128xf32> -> vector<8x128xf32>
    %cst_9 = arith.constant dense<0.000000e+00> : vector<128xf32>
    %62 = vector.multi_reduction <add>, %61, %cst_9 [0] : vector<8x128xf32> to vector<128xf32>
    %63 = vector.shape_cast %62 : vector<128xf32> to vector<1x128xf32>
    %64 = arith.mulf %61, %61 : vector<8x128xf32>
    %cst_10 = arith.constant dense<0.000000e+00> : vector<128xf32>
    %65 = vector.multi_reduction <add>, %64, %cst_10 [0] : vector<8x128xf32> to vector<128xf32>
    %66 = vector.shape_cast %65 : vector<128xf32> to vector<1x128xf32>
    %cst_11 = arith.constant 1.250000e-01 : f32
    %67 = vector.broadcast %cst_11 : f32 to vector<1x128xf32>
    %68 = arith.mulf %63, %67 : vector<1x128xf32>
    %cst_12 = arith.constant 1.250000e-01 : f32
    %69 = vector.broadcast %cst_12 : f32 to vector<1x128xf32>
    %70 = arith.mulf %66, %69 : vector<1x128xf32>
    %71 = arith.mulf %68, %68 : vector<1x128xf32>
    %72 = arith.subf %70, %71 : vector<1x128xf32>
    %cst_13 = arith.constant 0.000000e+00 : f32
    %73 = vector.broadcast %cst_13 : f32 to vector<1x128xf32>
    %74 = arith.maximumf %72, %73 : vector<1x128xf32>
    %cst_14 = arith.constant 9.99999974E-6 : f32
    %75 = vector.broadcast %cst_14 : f32 to vector<1x128xf32>
    %76 = arith.addf %74, %75 : vector<1x128xf32>
    %77 = math.rsqrt %76 : vector<1x128xf32>
    %78 = arith.mulf %56, %77 : vector<1x128xf32>
    %79 = arith.mulf %68, %78 : vector<1x128xf32>
    %80 = arith.subf %57, %79 : vector<1x128xf32>
    %81 = vector.broadcast %78 : vector<1x128xf32> to vector<8x128xf32>
    %82 = arith.mulf %61, %81 : vector<8x128xf32>
    %83 = vector.broadcast %80 : vector<1x128xf32> to vector<8x128xf32>
    %84 = arith.addf %82, %83 : vector<8x128xf32>
    %cst_15 = arith.constant 0.000000e+00 : f32
    %85 = vector.broadcast %cst_15 : f32 to vector<8x128xf32>
    %86 = arith.maximumf %84, %85 : vector<8x128xf32>
    %87 = arith.truncf %86 : vector<8x128xf32> to vector<8x128xbf16>
    %cst_16 = arith.constant dense<0.000000e+00> : vector<8x128xf32>
    %88 = tpu.matmul %87, %54, %cst_16 {dimension_numbers = #tpu.dot_dimension_numbers<[1], [0], [0], [1], [0, 0, 1, 1], [], []>} : vector<8x128xbf16>, vector<128x128xbf16>, vector<8x128xf32> -> vector<8x128xf32>
    %cst_17 = arith.constant dense<0.000000e+00> : vector<128xf32>
    %89 = vector.multi_reduction <add>, %88, %cst_17 [0] : vector<8x128xf32> to vector<128xf32>
    %90 = vector.shape_cast %89 : vector<128xf32> to vector<1x128xf32>
    %91 = arith.mulf %88, %88 : vector<8x128xf32>
    %cst_18 = arith.constant dense<0.000000e+00> : vector<128xf32>
    %92 = vector.multi_reduction <add>, %91, %cst_18 [0] : vector<8x128xf32> to vector<128xf32>
    %93 = vector.shape_cast %92 : vector<128xf32> to vector<1x128xf32>
    %cst_19 = arith.constant 1.250000e-01 : f32
    %94 = vector.broadcast %cst_19 : f32 to vector<1x128xf32>
    %95 = arith.mulf %90, %94 : vector<1x128xf32>
    %cst_20 = arith.constant 1.250000e-01 : f32
    %96 = vector.broadcast %cst_20 : f32 to vector<1x128xf32>
    %97 = arith.mulf %93, %96 : vector<1x128xf32>
    %98 = arith.mulf %95, %95 : vector<1x128xf32>
    %99 = arith.subf %97, %98 : vector<1x128xf32>
    %cst_21 = arith.constant 0.000000e+00 : f32
    %100 = vector.broadcast %cst_21 : f32 to vector<1x128xf32>
    %101 = arith.maximumf %99, %100 : vector<1x128xf32>
    %cst_22 = arith.constant 9.99999974E-6 : f32
    %102 = vector.broadcast %cst_22 : f32 to vector<1x128xf32>
    %103 = arith.addf %101, %102 : vector<1x128xf32>
    %104 = math.rsqrt %103 : vector<1x128xf32>
    %105 = arith.mulf %58, %104 : vector<1x128xf32>
    %106 = arith.mulf %95, %105 : vector<1x128xf32>
    %107 = arith.subf %59, %106 : vector<1x128xf32>
    %108 = vector.broadcast %105 : vector<1x128xf32> to vector<8x128xf32>
    %109 = arith.mulf %88, %108 : vector<8x128xf32>
    %110 = vector.broadcast %107 : vector<1x128xf32> to vector<8x128xf32>
    %111 = arith.addf %109, %110 : vector<8x128xf32>
    %112 = arith.addf %111, %48 : vector<8x128xf32>
    %cst_23 = arith.constant 0.000000e+00 : f32
    %113 = vector.broadcast %cst_23 : f32 to vector<8x128xf32>
    %114 = arith.maximumf %112, %113 : vector<8x128xf32>
    %c2_i32_24 = arith.constant 2 : i32
    %115 = tpu.memref_slice %arg53[%c2_i32_24] : memref<24x!tpu.dma_semaphore, #tpu.memory_space<semaphore_mem>> -> memref<1x!tpu.dma_semaphore, #tpu.memory_space<semaphore_mem>>
    %116 = tpu.memref_squeeze %115 : memref<1x!tpu.dma_semaphore, #tpu.memory_space<semaphore_mem>> -> memref<!tpu.dma_semaphore, #tpu.memory_space<semaphore_mem>>
    tpu.wait_dma2 semaphore(%116 : memref<!tpu.dma_semaphore, #tpu.memory_space<semaphore_mem>>) src(%arg5 : memref<128x512xbf16, #tpu.memory_space<any>>) dst(%arg31 : memref<128x512xbf16, #tpu.memory_space<vmem>>)
    %c3_i32_25 = arith.constant 3 : i32
    %117 = tpu.memref_slice %arg53[%c3_i32_25] : memref<24x!tpu.dma_semaphore, #tpu.memory_space<semaphore_mem>> -> memref<1x!tpu.dma_semaphore, #tpu.memory_space<semaphore_mem>>
    %118 = tpu.memref_squeeze %117 : memref<1x!tpu.dma_semaphore, #tpu.memory_space<semaphore_mem>> -> memref<!tpu.dma_semaphore, #tpu.memory_space<semaphore_mem>>
    tpu.wait_dma2 semaphore(%118 : memref<!tpu.dma_semaphore, #tpu.memory_space<semaphore_mem>>) src(%arg6 : memref<256x256xbf16, #tpu.memory_space<any>>) dst(%arg32 : memref<256x256xbf16, #tpu.memory_space<vmem>>)
    %c0_26 = arith.constant 0 : index
    %c0_27 = arith.constant 0 : index
    %119 = vector.load %arg31[%c0_26, %c0_27] : memref<128x512xbf16, #tpu.memory_space<vmem>>, vector<128x512xbf16>
    %c0_28 = arith.constant 0 : index
    %c0_29 = arith.constant 0 : index
    %120 = vector.load %arg32[%c0_28, %c0_29] : memref<256x256xbf16, #tpu.memory_space<vmem>>, vector<256x256xbf16>
    %c4 = arith.constant 4 : index
    %c0_30 = arith.constant 0 : index
    %121 = vector.load %arg1[%c4, %c0_30] : memref<44x512xf32, #tpu.memory_space<vmem>>, vector<4x256xf32>
    %122 = vector.extract_strided_slice %121 {offsets = [0, 0], sizes = [1, 256], strides = [1, 1]} : vector<4x256xf32> to vector<1x256xf32>
    %123 = vector.extract_strided_slice %121 {offsets = [1, 0], sizes = [1, 256], strides = [1, 1]} : vector<4x256xf32> to vector<1x256xf32>
    %124 = vector.extract_strided_slice %121 {offsets = [2, 0], sizes = [1, 256], strides = [1, 1]} : vector<4x256xf32> to vector<1x256xf32>
    %125 = vector.extract_strided_slice %121 {offsets = [3, 0], sizes = [1, 256], strides = [1, 1]} : vector<4x256xf32> to vector<1x256xf32>
    %126 = arith.truncf %114 : vector<8x128xf32> to vector<8x128xbf16>
    %cst_31 = arith.constant dense<0.000000e+00> : vector<8x512xf32>
    %127 = tpu.matmul %126, %119, %cst_31 {dimension_numbers = #tpu.dot_dimension_numbers<[1], [0], [0], [1], [0, 0, 1, 1], [], []>} : vector<8x128xbf16>, vector<128x512xbf16>, vector<8x512xf32> -> vector<8x512xf32>
    %128 = vector.extract_strided_slice %127 {offsets = [0, 0], sizes = [8, 256], strides = [1, 1]} : vector<8x512xf32> to vector<8x256xf32>
    %129 = vector.extract_strided_slice %127 {offsets = [0, 256], sizes = [8, 256], strides = [1, 1]} : vector<8x512xf32> to vector<8x256xf32>
    %cst_32 = arith.constant dense<0.000000e+00> : vector<256xf32>
    %130 = vector.multi_reduction <add>, %128, %cst_32 [0] : vector<8x256xf32> to vector<256xf32>
    %131 = vector.shape_cast %130 : vector<256xf32> to vector<1x256xf32>
    %132 = arith.mulf %128, %128 : vector<8x256xf32>
    %cst_33 = arith.constant dense<0.000000e+00> : vector<256xf32>
    %133 = vector.multi_reduction <add>, %132, %cst_33 [0] : vector<8x256xf32> to vector<256xf32>
    %134 = vector.shape_cast %133 : vector<256xf32> to vector<1x256xf32>
    %cst_34 = arith.constant 1.250000e-01 : f32
    %135 = vector.broadcast %cst_34 : f32 to vector<1x256xf32>
    %136 = arith.mulf %131, %135 : vector<1x256xf32>
    %cst_35 = arith.constant 1.250000e-01 : f32
    %137 = vector.broadcast %cst_35 : f32 to vector<1x256xf32>
    %138 = arith.mulf %134, %137 : vector<1x256xf32>
    %139 = arith.mulf %136, %136 : vector<1x256xf32>
    %140 = arith.subf %138, %139 : vector<1x256xf32>
    %cst_36 = arith.constant 0.000000e+00 : f32
    %141 = vector.broadcast %cst_36 : f32 to vector<1x256xf32>
    %142 = arith.maximumf %140, %141 : vector<1x256xf32>
    %cst_37 = arith.constant 9.99999974E-6 : f32
    %143 = vector.broadcast %cst_37 : f32 to vector<1x256xf32>
    %144 = arith.addf %142, %143 : vector<1x256xf32>
    %145 = math.rsqrt %144 : vector<1x256xf32>
    %146 = arith.mulf %122, %145 : vector<1x256xf32>
    %147 = arith.mulf %136, %146 : vector<1x256xf32>
    %148 = arith.subf %123, %147 : vector<1x256xf32>
    %149 = vector.broadcast %146 : vector<1x256xf32> to vector<8x256xf32>
    %150 = arith.mulf %128, %149 : vector<8x256xf32>
    %151 = vector.broadcast %148 : vector<1x256xf32> to vector<8x256xf32>
    %152 = arith.addf %150, %151 : vector<8x256xf32>
    %cst_38 = arith.constant 0.000000e+00 : f32
    %153 = vector.broadcast %cst_38 : f32 to vector<8x256xf32>
    %154 = arith.maximumf %152, %153 : vector<8x256xf32>
    %155 = arith.truncf %154 : vector<8x256xf32> to vector<8x256xbf16>
    %cst_39 = arith.constant dense<0.000000e+00> : vector<8x256xf32>
    %156 = tpu.matmul %155, %120, %cst_39 {dimension_numbers = #tpu.dot_dimension_numbers<[1], [0], [0], [1], [0, 0, 1, 1], [], []>} : vector<8x256xbf16>, vector<256x256xbf16>, vector<8x256xf32> -> vector<8x256xf32>
    %cst_40 = arith.constant dense<0.000000e+00> : vector<256xf32>
    %157 = vector.multi_reduction <add>, %156, %cst_40 [0] : vector<8x256xf32> to vector<256xf32>
    %158 = vector.shape_cast %157 : vector<256xf32> to vector<1x256xf32>
    %159 = arith.mulf %156, %156 : vector<8x256xf32>
    %cst_41 = arith.constant dense<0.000000e+00> : vector<256xf32>
    %160 = vector.multi_reduction <add>, %159, %cst_41 [0] : vector<8x256xf32> to vector<256xf32>
    %161 = vector.shape_cast %160 : vector<256xf32> to vector<1x256xf32>
    %cst_42 = arith.constant 1.250000e-01 : f32
    %162 = vector.broadcast %cst_42 : f32 to vector<1x256xf32>
    %163 = arith.mulf %158, %162 : vector<1x256xf32>
    %cst_43 = arith.constant 1.250000e-01 : f32
    %164 = vector.broadcast %cst_43 : f32 to vector<1x256xf32>
    %165 = arith.mulf %161, %164 : vector<1x256xf32>
    %166 = arith.mulf %163, %163 : vector<1x256xf32>
    %167 = arith.subf %165, %166 : vector<1x256xf32>
    %cst_44 = arith.constant 0.000000e+00 : f32
    %168 = vector.broadcast %cst_44 : f32 to vector<1x256xf32>
    %169 = arith.maximumf %167, %168 : vector<1x256xf32>
    %cst_45 = arith.constant 9.99999974E-6 : f32
    %170 = vector.broadcast %cst_45 : f32 to vector<1x256xf32>
    %171 = arith.addf %169, %170 : vector<1x256xf32>
    %172 = math.rsqrt %171 : vector<1x256xf32>
    %173 = arith.mulf %124, %172 : vector<1x256xf32>
    %174 = arith.mulf %163, %173 : vector<1x256xf32>
    %175 = arith.subf %125, %174 : vector<1x256xf32>
    %176 = vector.broadcast %173 : vector<1x256xf32> to vector<8x256xf32>
    %177 = arith.mulf %156, %176 : vector<8x256xf32>
    %178 = vector.broadcast %175 : vector<1x256xf32> to vector<8x256xf32>
    %179 = arith.addf %177, %178 : vector<8x256xf32>
    %180 = arith.addf %179, %129 : vector<8x256xf32>
    %cst_46 = arith.constant 0.000000e+00 : f32
    %181 = vector.broadcast %cst_46 : f32 to vector<8x256xf32>
    %182 = arith.maximumf %180, %181 : vector<8x256xf32>
    %c4_i32_47 = arith.constant 4 : i32
    %183 = tpu.memref_slice %arg53[%c4_i32_47] : memref<24x!tpu.dma_semaphore, #tpu.memory_space<semaphore_mem>> -> memref<1x!tpu.dma_semaphore, #tpu.memory_space<semaphore_mem>>
    %184 = tpu.memref_squeeze %183 : memref<1x!tpu.dma_semaphore, #tpu.memory_space<semaphore_mem>> -> memref<!tpu.dma_semaphore, #tpu.memory_space<semaphore_mem>>
    tpu.wait_dma2 semaphore(%184 : memref<!tpu.dma_semaphore, #tpu.memory_space<semaphore_mem>>) src(%arg7 : memref<256x256xbf16, #tpu.memory_space<any>>) dst(%arg33 : memref<256x256xbf16, #tpu.memory_space<vmem>>)
    %c5_i32_48 = arith.constant 5 : i32
    %185 = tpu.memref_slice %arg53[%c5_i32_48] : memref<24x!tpu.dma_semaphore, #tpu.memory_space<semaphore_mem>> -> memref<1x!tpu.dma_semaphore, #tpu.memory_space<semaphore_mem>>
    %186 = tpu.memref_squeeze %185 : memref<1x!tpu.dma_semaphore, #tpu.memory_space<semaphore_mem>> -> memref<!tpu.dma_semaphore, #tpu.memory_space<semaphore_mem>>
    tpu.wait_dma2 semaphore(%186 : memref<!tpu.dma_semaphore, #tpu.memory_space<semaphore_mem>>) src(%arg8 : memref<256x256xbf16, #tpu.memory_space<any>>) dst(%arg34 : memref<256x256xbf16, #tpu.memory_space<vmem>>)
    %c0_49 = arith.constant 0 : index
    %c0_50 = arith.constant 0 : index
    %187 = vector.load %arg33[%c0_49, %c0_50] : memref<256x256xbf16, #tpu.memory_space<vmem>>, vector<256x256xbf16>
    %c0_51 = arith.constant 0 : index
    %c0_52 = arith.constant 0 : index
    %188 = vector.load %arg34[%c0_51, %c0_52] : memref<256x256xbf16, #tpu.memory_space<vmem>>, vector<256x256xbf16>
    %c8 = arith.constant 8 : index
    %c0_53 = arith.constant 0 : index
    %189 = vector.load %arg1[%c8, %c0_53] : memref<44x512xf32, #tpu.memory_space<vmem>>, vector<4x256xf32>
    %190 = vector.extract_strided_slice %189 {offsets = [0, 0], sizes = [1, 256], strides = [1, 1]} : vector<4x256xf32> to vector<1x256xf32>
    %191 = vector.extract_strided_slice %189 {offsets = [1, 0], sizes = [1, 256], strides = [1, 1]} : vector<4x256xf32> to vector<1x256xf32>
    %192 = vector.extract_strided_slice %189 {offsets = [2, 0], sizes = [1, 256], strides = [1, 1]} : vector<4x256xf32> to vector<1x256xf32>
    %193 = vector.extract_strided_slice %189 {offsets = [3, 0], sizes = [1, 256], strides = [1, 1]} : vector<4x256xf32> to vector<1x256xf32>
    %194 = arith.truncf %182 : vector<8x256xf32> to vector<8x256xbf16>
    %cst_54 = arith.constant dense<0.000000e+00> : vector<8x256xf32>
    %195 = tpu.matmul %194, %187, %cst_54 {dimension_numbers = #tpu.dot_dimension_numbers<[1], [0], [0], [1], [0, 0, 1, 1], [], []>} : vector<8x256xbf16>, vector<256x256xbf16>, vector<8x256xf32> -> vector<8x256xf32>
    %cst_55 = arith.constant dense<0.000000e+00> : vector<256xf32>
    %196 = vector.multi_reduction <add>, %195, %cst_55 [0] : vector<8x256xf32> to vector<256xf32>
    %197 = vector.shape_cast %196 : vector<256xf32> to vector<1x256xf32>
    %198 = arith.mulf %195, %195 : vector<8x256xf32>
    %cst_56 = arith.constant dense<0.000000e+00> : vector<256xf32>
    %199 = vector.multi_reduction <add>, %198, %cst_56 [0] : vector<8x256xf32> to vector<256xf32>
    %200 = vector.shape_cast %199 : vector<256xf32> to vector<1x256xf32>
    %cst_57 = arith.constant 1.250000e-01 : f32
    %201 = vector.broadcast %cst_57 : f32 to vector<1x256xf32>
    %202 = arith.mulf %197, %201 : vector<1x256xf32>
    %cst_58 = arith.constant 1.250000e-01 : f32
    %203 = vector.broadcast %cst_58 : f32 to vector<1x256xf32>
    %204 = arith.mulf %200, %203 : vector<1x256xf32>
    %205 = arith.mulf %202, %202 : vector<1x256xf32>
    %206 = arith.subf %204, %205 : vector<1x256xf32>
    %cst_59 = arith.constant 0.000000e+00 : f32
    %207 = vector.broadcast %cst_59 : f32 to vector<1x256xf32>
    %208 = arith.maximumf %206, %207 : vector<1x256xf32>
    %cst_60 = arith.constant 9.99999974E-6 : f32
    %209 = vector.broadcast %cst_60 : f32 to vector<1x256xf32>
    %210 = arith.addf %208, %209 : vector<1x256xf32>
    %211 = math.rsqrt %210 : vector<1x256xf32>
    %212 = arith.mulf %190, %211 : vector<1x256xf32>
    %213 = arith.mulf %202, %212 : vector<1x256xf32>
    %214 = arith.subf %191, %213 : vector<1x256xf32>
    %215 = vector.broadcast %212 : vector<1x256xf32> to vector<8x256xf32>
    %216 = arith.mulf %195, %215 : vector<8x256xf32>
    %217 = vector.broadcast %214 : vector<1x256xf32> to vector<8x256xf32>
    %218 = arith.addf %216, %217 : vector<8x256xf32>
    %cst_61 = arith.constant 0.000000e+00 : f32
    %219 = vector.broadcast %cst_61 : f32 to vector<8x256xf32>
    %220 = arith.maximumf %218, %219 : vector<8x256xf32>
    %221 = arith.truncf %220 : vector<8x256xf32> to vector<8x256xbf16>
    %cst_62 = arith.constant dense<0.000000e+00> : vector<8x256xf32>
    %222 = tpu.matmul %221, %188, %cst_62 {dimension_numbers = #tpu.dot_dimension_numbers<[1], [0], [0], [1], [0, 0, 1, 1], [], []>} : vector<8x256xbf16>, vector<256x256xbf16>, vector<8x256xf32> -> vector<8x256xf32>
    %cst_63 = arith.constant dense<0.000000e+00> : vector<256xf32>
    %223 = vector.multi_reduction <add>, %222, %cst_63 [0] : vector<8x256xf32> to vector<256xf32>
    %224 = vector.shape_cast %223 : vector<256xf32> to vector<1x256xf32>
    %225 = arith.mulf %222, %222 : vector<8x256xf32>
    %cst_64 = arith.constant dense<0.000000e+00> : vector<256xf32>
    %226 = vector.multi_reduction <add>, %225, %cst_64 [0] : vector<8x256xf32> to vector<256xf32>
    %227 = vector.shape_cast %226 : vector<256xf32> to vector<1x256xf32>
    %cst_65 = arith.constant 1.250000e-01 : f32
    %228 = vector.broadcast %cst_65 : f32 to vector<1x256xf32>
    %229 = arith.mulf %224, %228 : vector<1x256xf32>
    %cst_66 = arith.constant 1.250000e-01 : f32
    %230 = vector.broadcast %cst_66 : f32 to vector<1x256xf32>
    %231 = arith.mulf %227, %230 : vector<1x256xf32>
    %232 = arith.mulf %229, %229 : vector<1x256xf32>
    %233 = arith.subf %231, %232 : vector<1x256xf32>
    %cst_67 = arith.constant 0.000000e+00 : f32
    %234 = vector.broadcast %cst_67 : f32 to vector<1x256xf32>
    %235 = arith.maximumf %233, %234 : vector<1x256xf32>
    %cst_68 = arith.constant 9.99999974E-6 : f32
    %236 = vector.broadcast %cst_68 : f32 to vector<1x256xf32>
    %237 = arith.addf %235, %236 : vector<1x256xf32>
    %238 = math.rsqrt %237 : vector<1x256xf32>
    %239 = arith.mulf %192, %238 : vector<1x256xf32>
    %240 = arith.mulf %229, %239 : vector<1x256xf32>
    %241 = arith.subf %193, %240 : vector<1x256xf32>
    %242 = vector.broadcast %239 : vector<1x256xf32> to vector<8x256xf32>
    %243 = arith.mulf %222, %242 : vector<8x256xf32>
    %244 = vector.broadcast %241 : vector<1x256xf32> to vector<8x256xf32>
    %245 = arith.addf %243, %244 : vector<8x256xf32>
    %246 = arith.addf %245, %182 : vector<8x256xf32>
    %cst_69 = arith.constant 0.000000e+00 : f32
    %247 = vector.broadcast %cst_69 : f32 to vector<8x256xf32>
    %248 = arith.maximumf %246, %247 : vector<8x256xf32>
    %c6_i32_70 = arith.constant 6 : i32
    %249 = tpu.memref_slice %arg53[%c6_i32_70] : memref<24x!tpu.dma_semaphore, #tpu.memory_space<semaphore_mem>> -> memref<1x!tpu.dma_semaphore, #tpu.memory_space<semaphore_mem>>
    %250 = tpu.memref_squeeze %249 : memref<1x!tpu.dma_semaphore, #tpu.memory_space<semaphore_mem>> -> memref<!tpu.dma_semaphore, #tpu.memory_space<semaphore_mem>>
    tpu.wait_dma2 semaphore(%250 : memref<!tpu.dma_semaphore, #tpu.memory_space<semaphore_mem>>) src(%arg9 : memref<256x1024xbf16, #tpu.memory_space<any>>) dst(%arg35 : memref<256x1024xbf16, #tpu.memory_space<vmem>>)
    %c7_i32_71 = arith.constant 7 : i32
    %251 = tpu.memref_slice %arg53[%c7_i32_71] : memref<24x!tpu.dma_semaphore, #tpu.memory_space<semaphore_mem>> -> memref<1x!tpu.dma_semaphore, #tpu.memory_space<semaphore_mem>>
    %252 = tpu.memref_squeeze %251 : memref<1x!tpu.dma_semaphore, #tpu.memory_space<semaphore_mem>> -> memref<!tpu.dma_semaphore, #tpu.memory_space<semaphore_mem>>
    tpu.wait_dma2 semaphore(%252 : memref<!tpu.dma_semaphore, #tpu.memory_space<semaphore_mem>>) src(%arg10 : memref<512x512xbf16, #tpu.memory_space<any>>) dst(%arg36 : memref<512x512xbf16, #tpu.memory_space<vmem>>)
    %c0_72 = arith.constant 0 : index
    %c0_73 = arith.constant 0 : index
    %253 = vector.load %arg35[%c0_72, %c0_73] : memref<256x1024xbf16, #tpu.memory_space<vmem>>, vector<256x1024xbf16>
    %c0_74 = arith.constant 0 : index
    %c0_75 = arith.constant 0 : index
    %254 = vector.load %arg36[%c0_74, %c0_75] : memref<512x512xbf16, #tpu.memory_space<vmem>>, vector<512x512xbf16>
    %c12 = arith.constant 12 : index
    %c0_76 = arith.constant 0 : index
    %255 = vector.load %arg1[%c12, %c0_76] : memref<44x512xf32, #tpu.memory_space<vmem>>, vector<4x512xf32>
    %256 = vector.extract_strided_slice %255 {offsets = [0, 0], sizes = [1, 512], strides = [1, 1]} : vector<4x512xf32> to vector<1x512xf32>
    %257 = vector.extract_strided_slice %255 {offsets = [1, 0], sizes = [1, 512], strides = [1, 1]} : vector<4x512xf32> to vector<1x512xf32>
    %258 = vector.extract_strided_slice %255 {offsets = [2, 0], sizes = [1, 512], strides = [1, 1]} : vector<4x512xf32> to vector<1x512xf32>
    %259 = vector.extract_strided_slice %255 {offsets = [3, 0], sizes = [1, 512], strides = [1, 1]} : vector<4x512xf32> to vector<1x512xf32>
    %260 = arith.truncf %248 : vector<8x256xf32> to vector<8x256xbf16>
    %cst_77 = arith.constant dense<0.000000e+00> : vector<8x1024xf32>
    %261 = tpu.matmul %260, %253, %cst_77 {dimension_numbers = #tpu.dot_dimension_numbers<[1], [0], [0], [1], [0, 0, 1, 1], [], []>} : vector<8x256xbf16>, vector<256x1024xbf16>, vector<8x1024xf32> -> vector<8x1024xf32>
    %262 = vector.extract_strided_slice %261 {offsets = [0, 0], sizes = [8, 512], strides = [1, 1]} : vector<8x1024xf32> to vector<8x512xf32>
    %263 = vector.extract_strided_slice %261 {offsets = [0, 512], sizes = [8, 512], strides = [1, 1]} : vector<8x1024xf32> to vector<8x512xf32>
    %cst_78 = arith.constant dense<0.000000e+00> : vector<512xf32>
    %264 = vector.multi_reduction <add>, %262, %cst_78 [0] : vector<8x512xf32> to vector<512xf32>
    %265 = vector.shape_cast %264 : vector<512xf32> to vector<1x512xf32>
    %266 = arith.mulf %262, %262 : vector<8x512xf32>
    %cst_79 = arith.constant dense<0.000000e+00> : vector<512xf32>
    %267 = vector.multi_reduction <add>, %266, %cst_79 [0] : vector<8x512xf32> to vector<512xf32>
    %268 = vector.shape_cast %267 : vector<512xf32> to vector<1x512xf32>
    %cst_80 = arith.constant 1.250000e-01 : f32
    %269 = vector.broadcast %cst_80 : f32 to vector<1x512xf32>
    %270 = arith.mulf %265, %269 : vector<1x512xf32>
    %cst_81 = arith.constant 1.250000e-01 : f32
    %271 = vector.broadcast %cst_81 : f32 to vector<1x512xf32>
    %272 = arith.mulf %268, %271 : vector<1x512xf32>
    %273 = arith.mulf %270, %270 : vector<1x512xf32>
    %274 = arith.subf %272, %273 : vector<1x512xf32>
    %cst_82 = arith.constant 0.000000e+00 : f32
    %275 = vector.broadcast %cst_82 : f32 to vector<1x512xf32>
    %276 = arith.maximumf %274, %275 : vector<1x512xf32>
    %cst_83 = arith.constant 9.99999974E-6 : f32
    %277 = vector.broadcast %cst_83 : f32 to vector<1x512xf32>
    %278 = arith.addf %276, %277 : vector<1x512xf32>
    %279 = math.rsqrt %278 : vector<1x512xf32>
    %280 = arith.mulf %256, %279 : vector<1x512xf32>
    %281 = arith.mulf %270, %280 : vector<1x512xf32>
    %282 = arith.subf %257, %281 : vector<1x512xf32>
    %283 = vector.broadcast %280 : vector<1x512xf32> to vector<8x512xf32>
    %284 = arith.mulf %262, %283 : vector<8x512xf32>
    %285 = vector.broadcast %282 : vector<1x512xf32> to vector<8x512xf32>
    %286 = arith.addf %284, %285 : vector<8x512xf32>
    %cst_84 = arith.constant 0.000000e+00 : f32
    %287 = vector.broadcast %cst_84 : f32 to vector<8x512xf32>
    %288 = arith.maximumf %286, %287 : vector<8x512xf32>
    %289 = arith.truncf %288 : vector<8x512xf32> to vector<8x512xbf16>
    %cst_85 = arith.constant dense<0.000000e+00> : vector<8x512xf32>
    %290 = tpu.matmul %289, %254, %cst_85 {dimension_numbers = #tpu.dot_dimension_numbers<[1], [0], [0], [1], [0, 0, 1, 1], [], []>} : vector<8x512xbf16>, vector<512x512xbf16>, vector<8x512xf32> -> vector<8x512xf32>
    %cst_86 = arith.constant dense<0.000000e+00> : vector<512xf32>
    %291 = vector.multi_reduction <add>, %290, %cst_86 [0] : vector<8x512xf32> to vector<512xf32>
    %292 = vector.shape_cast %291 : vector<512xf32> to vector<1x512xf32>
    %293 = arith.mulf %290, %290 : vector<8x512xf32>
    %cst_87 = arith.constant dense<0.000000e+00> : vector<512xf32>
    %294 = vector.multi_reduction <add>, %293, %cst_87 [0] : vector<8x512xf32> to vector<512xf32>
    %295 = vector.shape_cast %294 : vector<512xf32> to vector<1x512xf32>
    %cst_88 = arith.constant 1.250000e-01 : f32
    %296 = vector.broadcast %cst_88 : f32 to vector<1x512xf32>
    %297 = arith.mulf %292, %296 : vector<1x512xf32>
    %cst_89 = arith.constant 1.250000e-01 : f32
    %298 = vector.broadcast %cst_89 : f32 to vector<1x512xf32>
    %299 = arith.mulf %295, %298 : vector<1x512xf32>
    %300 = arith.mulf %297, %297 : vector<1x512xf32>
    %301 = arith.subf %299, %300 : vector<1x512xf32>
    %cst_90 = arith.constant 0.000000e+00 : f32
    %302 = vector.broadcast %cst_90 : f32 to vector<1x512xf32>
    %303 = arith.maximumf %301, %302 : vector<1x512xf32>
    %cst_91 = arith.constant 9.99999974E-6 : f32
    %304 = vector.broadcast %cst_91 : f32 to vector<1x512xf32>
    %305 = arith.addf %303, %304 : vector<1x512xf32>
    %306 = math.rsqrt %305 : vector<1x512xf32>
    %307 = arith.mulf %258, %306 : vector<1x512xf32>
    %308 = arith.mulf %297, %307 : vector<1x512xf32>
    %309 = arith.subf %259, %308 : vector<1x512xf32>
    %310 = vector.broadcast %307 : vector<1x512xf32> to vector<8x512xf32>
    %311 = arith.mulf %290, %310 : vector<8x512xf32>
    %312 = vector.broadcast %309 : vector<1x512xf32> to vector<8x512xf32>
    %313 = arith.addf %311, %312 : vector<8x512xf32>
    %314 = arith.addf %313, %263 : vector<8x512xf32>
    %cst_92 = arith.constant 0.000000e+00 : f32
    %315 = vector.broadcast %cst_92 : f32 to vector<8x512xf32>
    %316 = arith.maximumf %314, %315 : vector<8x512xf32>
    %c8_i32_93 = arith.constant 8 : i32
    %317 = tpu.memref_slice %arg53[%c8_i32_93] : memref<24x!tpu.dma_semaphore, #tpu.memory_space<semaphore_mem>> -> memref<1x!tpu.dma_semaphore, #tpu.memory_space<semaphore_mem>>
    %318 = tpu.memref_squeeze %317 : memref<1x!tpu.dma_semaphore, #tpu.memory_space<semaphore_mem>> -> memref<!tpu.dma_semaphore, #tpu.memory_space<semaphore_mem>>
    tpu.wait_dma2 semaphore(%318 : memref<!tpu.dma_semaphore, #tpu.memory_space<semaphore_mem>>) src(%arg11 : memref<512x512xbf16, #tpu.memory_space<any>>) dst(%arg37 : memref<512x512xbf16, #tpu.memory_space<vmem>>)
    %c9_i32_94 = arith.constant 9 : i32
    %319 = tpu.memref_slice %arg53[%c9_i32_94] : memref<24x!tpu.dma_semaphore, #tpu.memory_space<semaphore_mem>> -> memref<1x!tpu.dma_semaphore, #tpu.memory_space<semaphore_mem>>
    %320 = tpu.memref_squeeze %319 : memref<1x!tpu.dma_semaphore, #tpu.memory_space<semaphore_mem>> -> memref<!tpu.dma_semaphore, #tpu.memory_space<semaphore_mem>>
    tpu.wait_dma2 semaphore(%320 : memref<!tpu.dma_semaphore, #tpu.memory_space<semaphore_mem>>) src(%arg12 : memref<512x512xbf16, #tpu.memory_space<any>>) dst(%arg38 : memref<512x512xbf16, #tpu.memory_space<vmem>>)
    %c0_95 = arith.constant 0 : index
    %c0_96 = arith.constant 0 : index
    %321 = vector.load %arg37[%c0_95, %c0_96] : memref<512x512xbf16, #tpu.memory_space<vmem>>, vector<512x512xbf16>
    %c0_97 = arith.constant 0 : index
    %c0_98 = arith.constant 0 : index
    %322 = vector.load %arg38[%c0_97, %c0_98] : memref<512x512xbf16, #tpu.memory_space<vmem>>, vector<512x512xbf16>
    %c16 = arith.constant 16 : index
    %c0_99 = arith.constant 0 : index
    %323 = vector.load %arg1[%c16, %c0_99] : memref<44x512xf32, #tpu.memory_space<vmem>>, vector<4x512xf32>
    %324 = vector.extract_strided_slice %323 {offsets = [0, 0], sizes = [1, 512], strides = [1, 1]} : vector<4x512xf32> to vector<1x512xf32>
    %325 = vector.extract_strided_slice %323 {offsets = [1, 0], sizes = [1, 512], strides = [1, 1]} : vector<4x512xf32> to vector<1x512xf32>
    %326 = vector.extract_strided_slice %323 {offsets = [2, 0], sizes = [1, 512], strides = [1, 1]} : vector<4x512xf32> to vector<1x512xf32>
    %327 = vector.extract_strided_slice %323 {offsets = [3, 0], sizes = [1, 512], strides = [1, 1]} : vector<4x512xf32> to vector<1x512xf32>
    %328 = arith.truncf %316 : vector<8x512xf32> to vector<8x512xbf16>
    %cst_100 = arith.constant dense<0.000000e+00> : vector<8x512xf32>
    %329 = tpu.matmul %328, %321, %cst_100 {dimension_numbers = #tpu.dot_dimension_numbers<[1], [0], [0], [1], [0, 0, 1, 1], [], []>} : vector<8x512xbf16>, vector<512x512xbf16>, vector<8x512xf32> -> vector<8x512xf32>
    %cst_101 = arith.constant dense<0.000000e+00> : vector<512xf32>
    %330 = vector.multi_reduction <add>, %329, %cst_101 [0] : vector<8x512xf32> to vector<512xf32>
    %331 = vector.shape_cast %330 : vector<512xf32> to vector<1x512xf32>
    %332 = arith.mulf %329, %329 : vector<8x512xf32>
    %cst_102 = arith.constant dense<0.000000e+00> : vector<512xf32>
    %333 = vector.multi_reduction <add>, %332, %cst_102 [0] : vector<8x512xf32> to vector<512xf32>
    %334 = vector.shape_cast %333 : vector<512xf32> to vector<1x512xf32>
    %cst_103 = arith.constant 1.250000e-01 : f32
    %335 = vector.broadcast %cst_103 : f32 to vector<1x512xf32>
    %336 = arith.mulf %331, %335 : vector<1x512xf32>
    %cst_104 = arith.constant 1.250000e-01 : f32
    %337 = vector.broadcast %cst_104 : f32 to vector<1x512xf32>
    %338 = arith.mulf %334, %337 : vector<1x512xf32>
    %339 = arith.mulf %336, %336 : vector<1x512xf32>
    %340 = arith.subf %338, %339 : vector<1x512xf32>
    %cst_105 = arith.constant 0.000000e+00 : f32
    %341 = vector.broadcast %cst_105 : f32 to vector<1x512xf32>
    %342 = arith.maximumf %340, %341 : vector<1x512xf32>
    %cst_106 = arith.constant 9.99999974E-6 : f32
    %343 = vector.broadcast %cst_106 : f32 to vector<1x512xf32>
    %344 = arith.addf %342, %343 : vector<1x512xf32>
    %345 = math.rsqrt %344 : vector<1x512xf32>
    %346 = arith.mulf %324, %345 : vector<1x512xf32>
    %347 = arith.mulf %336, %346 : vector<1x512xf32>
    %348 = arith.subf %325, %347 : vector<1x512xf32>
    %349 = vector.broadcast %346 : vector<1x512xf32> to vector<8x512xf32>
    %350 = arith.mulf %329, %349 : vector<8x512xf32>
    %351 = vector.broadcast %348 : vector<1x512xf32> to vector<8x512xf32>
    %352 = arith.addf %350, %351 : vector<8x512xf32>
    %cst_107 = arith.constant 0.000000e+00 : f32
    %353 = vector.broadcast %cst_107 : f32 to vector<8x512xf32>
    %354 = arith.maximumf %352, %353 : vector<8x512xf32>
    %355 = arith.truncf %354 : vector<8x512xf32> to vector<8x512xbf16>
    %cst_108 = arith.constant dense<0.000000e+00> : vector<8x512xf32>
    %356 = tpu.matmul %355, %322, %cst_108 {dimension_numbers = #tpu.dot_dimension_numbers<[1], [0], [0], [1], [0, 0, 1, 1], [], []>} : vector<8x512xbf16>, vector<512x512xbf16>, vector<8x512xf32> -> vector<8x512xf32>
    %cst_109 = arith.constant dense<0.000000e+00> : vector<512xf32>
    %357 = vector.multi_reduction <add>, %356, %cst_109 [0] : vector<8x512xf32> to vector<512xf32>
    %358 = vector.shape_cast %357 : vector<512xf32> to vector<1x512xf32>
    %359 = arith.mulf %356, %356 : vector<8x512xf32>
    %cst_110 = arith.constant dense<0.000000e+00> : vector<512xf32>
    %360 = vector.multi_reduction <add>, %359, %cst_110 [0] : vector<8x512xf32> to vector<512xf32>
    %361 = vector.shape_cast %360 : vector<512xf32> to vector<1x512xf32>
    %cst_111 = arith.constant 1.250000e-01 : f32
    %362 = vector.broadcast %cst_111 : f32 to vector<1x512xf32>
    %363 = arith.mulf %358, %362 : vector<1x512xf32>
    %cst_112 = arith.constant 1.250000e-01 : f32
    %364 = vector.broadcast %cst_112 : f32 to vector<1x512xf32>
    %365 = arith.mulf %361, %364 : vector<1x512xf32>
    %366 = arith.mulf %363, %363 : vector<1x512xf32>
    %367 = arith.subf %365, %366 : vector<1x512xf32>
    %cst_113 = arith.constant 0.000000e+00 : f32
    %368 = vector.broadcast %cst_113 : f32 to vector<1x512xf32>
    %369 = arith.maximumf %367, %368 : vector<1x512xf32>
    %cst_114 = arith.constant 9.99999974E-6 : f32
    %370 = vector.broadcast %cst_114 : f32 to vector<1x512xf32>
    %371 = arith.addf %369, %370 : vector<1x512xf32>
    %372 = math.rsqrt %371 : vector<1x512xf32>
    %373 = arith.mulf %326, %372 : vector<1x512xf32>
    %374 = arith.mulf %363, %373 : vector<1x512xf32>
    %375 = arith.subf %327, %374 : vector<1x512xf32>
    %376 = vector.broadcast %373 : vector<1x512xf32> to vector<8x512xf32>
    %377 = arith.mulf %356, %376 : vector<8x512xf32>
    %378 = vector.broadcast %375 : vector<1x512xf32> to vector<8x512xf32>
    %379 = arith.addf %377, %378 : vector<8x512xf32>
    %380 = arith.addf %379, %316 : vector<8x512xf32>
    %cst_115 = arith.constant 0.000000e+00 : f32
    %381 = vector.broadcast %cst_115 : f32 to vector<8x512xf32>
    %382 = arith.maximumf %380, %381 : vector<8x512xf32>
    %c10_i32_116 = arith.constant 10 : i32
    %383 = tpu.memref_slice %arg53[%c10_i32_116] : memref<24x!tpu.dma_semaphore, #tpu.memory_space<semaphore_mem>> -> memref<1x!tpu.dma_semaphore, #tpu.memory_space<semaphore_mem>>
    %384 = tpu.memref_squeeze %383 : memref<1x!tpu.dma_semaphore, #tpu.memory_space<semaphore_mem>> -> memref<!tpu.dma_semaphore, #tpu.memory_space<semaphore_mem>>
    tpu.wait_dma2 semaphore(%384 : memref<!tpu.dma_semaphore, #tpu.memory_space<semaphore_mem>>) src(%arg13 : memref<512x512xbf16, #tpu.memory_space<any>>) dst(%arg39 : memref<512x512xbf16, #tpu.memory_space<vmem>>)
    %c11_i32_117 = arith.constant 11 : i32
    %385 = tpu.memref_slice %arg53[%c11_i32_117] : memref<24x!tpu.dma_semaphore, #tpu.memory_space<semaphore_mem>> -> memref<1x!tpu.dma_semaphore, #tpu.memory_space<semaphore_mem>>
    %386 = tpu.memref_squeeze %385 : memref<1x!tpu.dma_semaphore, #tpu.memory_space<semaphore_mem>> -> memref<!tpu.dma_semaphore, #tpu.memory_space<semaphore_mem>>
    tpu.wait_dma2 semaphore(%386 : memref<!tpu.dma_semaphore, #tpu.memory_space<semaphore_mem>>) src(%arg14 : memref<256x256xbf16, #tpu.memory_space<any>>) dst(%arg40 : memref<256x256xbf16, #tpu.memory_space<vmem>>)
    %c0_118 = arith.constant 0 : index
    %c0_119 = arith.constant 0 : index
    %387 = vector.load %arg39[%c0_118, %c0_119] : memref<512x512xbf16, #tpu.memory_space<vmem>>, vector<512x512xbf16>
    %c0_120 = arith.constant 0 : index
    %c0_121 = arith.constant 0 : index
    %388 = vector.load %arg40[%c0_120, %c0_121] : memref<256x256xbf16, #tpu.memory_space<vmem>>, vector<256x256xbf16>
    %c20 = arith.constant 20 : index
    %c0_122 = arith.constant 0 : index
    %389 = vector.load %arg1[%c20, %c0_122] : memref<44x512xf32, #tpu.memory_space<vmem>>, vector<4x256xf32>
    %390 = vector.extract_strided_slice %389 {offsets = [0, 0], sizes = [1, 256], strides = [1, 1]} : vector<4x256xf32> to vector<1x256xf32>
    %391 = vector.extract_strided_slice %389 {offsets = [1, 0], sizes = [1, 256], strides = [1, 1]} : vector<4x256xf32> to vector<1x256xf32>
    %392 = vector.extract_strided_slice %389 {offsets = [2, 0], sizes = [1, 256], strides = [1, 1]} : vector<4x256xf32> to vector<1x256xf32>
    %393 = vector.extract_strided_slice %389 {offsets = [3, 0], sizes = [1, 256], strides = [1, 1]} : vector<4x256xf32> to vector<1x256xf32>
    %394 = arith.truncf %382 : vector<8x512xf32> to vector<8x512xbf16>
    %cst_123 = arith.constant dense<0.000000e+00> : vector<8x512xf32>
    %395 = tpu.matmul %394, %387, %cst_123 {dimension_numbers = #tpu.dot_dimension_numbers<[1], [0], [0], [1], [0, 0, 1, 1], [], []>} : vector<8x512xbf16>, vector<512x512xbf16>, vector<8x512xf32> -> vector<8x512xf32>
    %396 = vector.extract_strided_slice %395 {offsets = [0, 0], sizes = [8, 256], strides = [1, 1]} : vector<8x512xf32> to vector<8x256xf32>
    %397 = vector.extract_strided_slice %395 {offsets = [0, 256], sizes = [8, 256], strides = [1, 1]} : vector<8x512xf32> to vector<8x256xf32>
    %cst_124 = arith.constant dense<0.000000e+00> : vector<256xf32>
    %398 = vector.multi_reduction <add>, %396, %cst_124 [0] : vector<8x256xf32> to vector<256xf32>
    %399 = vector.shape_cast %398 : vector<256xf32> to vector<1x256xf32>
    %400 = arith.mulf %396, %396 : vector<8x256xf32>
    %cst_125 = arith.constant dense<0.000000e+00> : vector<256xf32>
    %401 = vector.multi_reduction <add>, %400, %cst_125 [0] : vector<8x256xf32> to vector<256xf32>
    %402 = vector.shape_cast %401 : vector<256xf32> to vector<1x256xf32>
    %cst_126 = arith.constant 1.250000e-01 : f32
    %403 = vector.broadcast %cst_126 : f32 to vector<1x256xf32>
    %404 = arith.mulf %399, %403 : vector<1x256xf32>
    %cst_127 = arith.constant 1.250000e-01 : f32
    %405 = vector.broadcast %cst_127 : f32 to vector<1x256xf32>
    %406 = arith.mulf %402, %405 : vector<1x256xf32>
    %407 = arith.mulf %404, %404 : vector<1x256xf32>
    %408 = arith.subf %406, %407 : vector<1x256xf32>
    %cst_128 = arith.constant 0.000000e+00 : f32
    %409 = vector.broadcast %cst_128 : f32 to vector<1x256xf32>
    %410 = arith.maximumf %408, %409 : vector<1x256xf32>
    %cst_129 = arith.constant 9.99999974E-6 : f32
    %411 = vector.broadcast %cst_129 : f32 to vector<1x256xf32>
    %412 = arith.addf %410, %411 : vector<1x256xf32>
    %413 = math.rsqrt %412 : vector<1x256xf32>
    %414 = arith.mulf %390, %413 : vector<1x256xf32>
    %415 = arith.mulf %404, %414 : vector<1x256xf32>
    %416 = arith.subf %391, %415 : vector<1x256xf32>
    %417 = vector.broadcast %414 : vector<1x256xf32> to vector<8x256xf32>
    %418 = arith.mulf %396, %417 : vector<8x256xf32>
    %419 = vector.broadcast %416 : vector<1x256xf32> to vector<8x256xf32>
    %420 = arith.addf %418, %419 : vector<8x256xf32>
    %cst_130 = arith.constant 0.000000e+00 : f32
    %421 = vector.broadcast %cst_130 : f32 to vector<8x256xf32>
    %422 = arith.maximumf %420, %421 : vector<8x256xf32>
    %423 = arith.truncf %422 : vector<8x256xf32> to vector<8x256xbf16>
    %cst_131 = arith.constant dense<0.000000e+00> : vector<8x256xf32>
    %424 = tpu.matmul %423, %388, %cst_131 {dimension_numbers = #tpu.dot_dimension_numbers<[1], [0], [0], [1], [0, 0, 1, 1], [], []>} : vector<8x256xbf16>, vector<256x256xbf16>, vector<8x256xf32> -> vector<8x256xf32>
    %cst_132 = arith.constant dense<0.000000e+00> : vector<256xf32>
    %425 = vector.multi_reduction <add>, %424, %cst_132 [0] : vector<8x256xf32> to vector<256xf32>
    %426 = vector.shape_cast %425 : vector<256xf32> to vector<1x256xf32>
    %427 = arith.mulf %424, %424 : vector<8x256xf32>
    %cst_133 = arith.constant dense<0.000000e+00> : vector<256xf32>
    %428 = vector.multi_reduction <add>, %427, %cst_133 [0] : vector<8x256xf32> to vector<256xf32>
    %429 = vector.shape_cast %428 : vector<256xf32> to vector<1x256xf32>
    %cst_134 = arith.constant 1.250000e-01 : f32
    %430 = vector.broadcast %cst_134 : f32 to vector<1x256xf32>
    %431 = arith.mulf %426, %430 : vector<1x256xf32>
    %cst_135 = arith.constant 1.250000e-01 : f32
    %432 = vector.broadcast %cst_135 : f32 to vector<1x256xf32>
    %433 = arith.mulf %429, %432 : vector<1x256xf32>
    %434 = arith.mulf %431, %431 : vector<1x256xf32>
    %435 = arith.subf %433, %434 : vector<1x256xf32>
    %cst_136 = arith.constant 0.000000e+00 : f32
    %436 = vector.broadcast %cst_136 : f32 to vector<1x256xf32>
    %437 = arith.maximumf %435, %436 : vector<1x256xf32>
    %cst_137 = arith.constant 9.99999974E-6 : f32
    %438 = vector.broadcast %cst_137 : f32 to vector<1x256xf32>
    %439 = arith.addf %437, %438 : vector<1x256xf32>
    %440 = math.rsqrt %439 : vector<1x256xf32>
    %441 = arith.mulf %392, %440 : vector<1x256xf32>
    %442 = arith.mulf %431, %441 : vector<1x256xf32>
    %443 = arith.subf %393, %442 : vector<1x256xf32>
    %444 = vector.broadcast %441 : vector<1x256xf32> to vector<8x256xf32>
    %445 = arith.mulf %424, %444 : vector<8x256xf32>
    %446 = vector.broadcast %443 : vector<1x256xf32> to vector<8x256xf32>
    %447 = arith.addf %445, %446 : vector<8x256xf32>
    %448 = arith.addf %447, %397 : vector<8x256xf32>
    %cst_138 = arith.constant 0.000000e+00 : f32
    %449 = vector.broadcast %cst_138 : f32 to vector<8x256xf32>
    %450 = arith.maximumf %448, %449 : vector<8x256xf32>
    %c12_i32_139 = arith.constant 12 : i32
    %451 = tpu.memref_slice %arg53[%c12_i32_139] : memref<24x!tpu.dma_semaphore, #tpu.memory_space<semaphore_mem>> -> memref<1x!tpu.dma_semaphore, #tpu.memory_space<semaphore_mem>>
    %452 = tpu.memref_squeeze %451 : memref<1x!tpu.dma_semaphore, #tpu.memory_space<semaphore_mem>> -> memref<!tpu.dma_semaphore, #tpu.memory_space<semaphore_mem>>
    tpu.wait_dma2 semaphore(%452 : memref<!tpu.dma_semaphore, #tpu.memory_space<semaphore_mem>>) src(%arg15 : memref<256x256xbf16, #tpu.memory_space<any>>) dst(%arg41 : memref<256x256xbf16, #tpu.memory_space<vmem>>)
    %c13_i32_140 = arith.constant 13 : i32
    %453 = tpu.memref_slice %arg53[%c13_i32_140] : memref<24x!tpu.dma_semaphore, #tpu.memory_space<semaphore_mem>> -> memref<1x!tpu.dma_semaphore, #tpu.memory_space<semaphore_mem>>
    %454 = tpu.memref_squeeze %453 : memref<1x!tpu.dma_semaphore, #tpu.memory_space<semaphore_mem>> -> memref<!tpu.dma_semaphore, #tpu.memory_space<semaphore_mem>>
    tpu.wait_dma2 semaphore(%454 : memref<!tpu.dma_semaphore, #tpu.memory_space<semaphore_mem>>) src(%arg16 : memref<128x128xbf16, #tpu.memory_space<any>>) dst(%arg42 : memref<128x128xbf16, #tpu.memory_space<vmem>>)
    %c0_141 = arith.constant 0 : index
    %c0_142 = arith.constant 0 : index
    %455 = vector.load %arg41[%c0_141, %c0_142] : memref<256x256xbf16, #tpu.memory_space<vmem>>, vector<256x256xbf16>
    %c0_143 = arith.constant 0 : index
    %c0_144 = arith.constant 0 : index
    %456 = vector.load %arg42[%c0_143, %c0_144] : memref<128x128xbf16, #tpu.memory_space<vmem>>, vector<128x128xbf16>
    %c24 = arith.constant 24 : index
    %c0_145 = arith.constant 0 : index
    %457 = vector.load %arg1[%c24, %c0_145] : memref<44x512xf32, #tpu.memory_space<vmem>>, vector<4x128xf32>
    %458 = vector.extract_strided_slice %457 {offsets = [0, 0], sizes = [1, 128], strides = [1, 1]} : vector<4x128xf32> to vector<1x128xf32>
    %459 = vector.extract_strided_slice %457 {offsets = [1, 0], sizes = [1, 128], strides = [1, 1]} : vector<4x128xf32> to vector<1x128xf32>
    %460 = vector.extract_strided_slice %457 {offsets = [2, 0], sizes = [1, 128], strides = [1, 1]} : vector<4x128xf32> to vector<1x128xf32>
    %461 = vector.extract_strided_slice %457 {offsets = [3, 0], sizes = [1, 128], strides = [1, 1]} : vector<4x128xf32> to vector<1x128xf32>
    %462 = arith.truncf %450 : vector<8x256xf32> to vector<8x256xbf16>
    %cst_146 = arith.constant dense<0.000000e+00> : vector<8x256xf32>
    %463 = tpu.matmul %462, %455, %cst_146 {dimension_numbers = #tpu.dot_dimension_numbers<[1], [0], [0], [1], [0, 0, 1, 1], [], []>} : vector<8x256xbf16>, vector<256x256xbf16>, vector<8x256xf32> -> vector<8x256xf32>
    %464 = vector.extract_strided_slice %463 {offsets = [0, 0], sizes = [8, 128], strides = [1, 1]} : vector<8x256xf32> to vector<8x128xf32>
    %465 = vector.extract_strided_slice %463 {offsets = [0, 128], sizes = [8, 128], strides = [1, 1]} : vector<8x256xf32> to vector<8x128xf32>
    %cst_147 = arith.constant dense<0.000000e+00> : vector<128xf32>
    %466 = vector.multi_reduction <add>, %464, %cst_147 [0] : vector<8x128xf32> to vector<128xf32>
    %467 = vector.shape_cast %466 : vector<128xf32> to vector<1x128xf32>
    %468 = arith.mulf %464, %464 : vector<8x128xf32>
    %cst_148 = arith.constant dense<0.000000e+00> : vector<128xf32>
    %469 = vector.multi_reduction <add>, %468, %cst_148 [0] : vector<8x128xf32> to vector<128xf32>
    %470 = vector.shape_cast %469 : vector<128xf32> to vector<1x128xf32>
    %cst_149 = arith.constant 1.250000e-01 : f32
    %471 = vector.broadcast %cst_149 : f32 to vector<1x128xf32>
    %472 = arith.mulf %467, %471 : vector<1x128xf32>
    %cst_150 = arith.constant 1.250000e-01 : f32
    %473 = vector.broadcast %cst_150 : f32 to vector<1x128xf32>
    %474 = arith.mulf %470, %473 : vector<1x128xf32>
    %475 = arith.mulf %472, %472 : vector<1x128xf32>
    %476 = arith.subf %474, %475 : vector<1x128xf32>
    %cst_151 = arith.constant 0.000000e+00 : f32
    %477 = vector.broadcast %cst_151 : f32 to vector<1x128xf32>
    %478 = arith.maximumf %476, %477 : vector<1x128xf32>
    %cst_152 = arith.constant 9.99999974E-6 : f32
    %479 = vector.broadcast %cst_152 : f32 to vector<1x128xf32>
    %480 = arith.addf %478, %479 : vector<1x128xf32>
    %481 = math.rsqrt %480 : vector<1x128xf32>
    %482 = arith.mulf %458, %481 : vector<1x128xf32>
    %483 = arith.mulf %472, %482 : vector<1x128xf32>
    %484 = arith.subf %459, %483 : vector<1x128xf32>
    %485 = vector.broadcast %482 : vector<1x128xf32> to vector<8x128xf32>
    %486 = arith.mulf %464, %485 : vector<8x128xf32>
    %487 = vector.broadcast %484 : vector<1x128xf32> to vector<8x128xf32>
    %488 = arith.addf %486, %487 : vector<8x128xf32>
    %cst_153 = arith.constant 0.000000e+00 : f32
    %489 = vector.broadcast %cst_153 : f32 to vector<8x128xf32>
    %490 = arith.maximumf %488, %489 : vector<8x128xf32>
    %491 = arith.truncf %490 : vector<8x128xf32> to vector<8x128xbf16>
    %cst_154 = arith.constant dense<0.000000e+00> : vector<8x128xf32>
    %492 = tpu.matmul %491, %456, %cst_154 {dimension_numbers = #tpu.dot_dimension_numbers<[1], [0], [0], [1], [0, 0, 1, 1], [], []>} : vector<8x128xbf16>, vector<128x128xbf16>, vector<8x128xf32> -> vector<8x128xf32>
    %cst_155 = arith.constant dense<0.000000e+00> : vector<128xf32>
    %493 = vector.multi_reduction <add>, %492, %cst_155 [0] : vector<8x128xf32> to vector<128xf32>
    %494 = vector.shape_cast %493 : vector<128xf32> to vector<1x128xf32>
    %495 = arith.mulf %492, %492 : vector<8x128xf32>
    %cst_156 = arith.constant dense<0.000000e+00> : vector<128xf32>
    %496 = vector.multi_reduction <add>, %495, %cst_156 [0] : vector<8x128xf32> to vector<128xf32>
    %497 = vector.shape_cast %496 : vector<128xf32> to vector<1x128xf32>
    %cst_157 = arith.constant 1.250000e-01 : f32
    %498 = vector.broadcast %cst_157 : f32 to vector<1x128xf32>
    %499 = arith.mulf %494, %498 : vector<1x128xf32>
    %cst_158 = arith.constant 1.250000e-01 : f32
    %500 = vector.broadcast %cst_158 : f32 to vector<1x128xf32>
    %501 = arith.mulf %497, %500 : vector<1x128xf32>
    %502 = arith.mulf %499, %499 : vector<1x128xf32>
    %503 = arith.subf %501, %502 : vector<1x128xf32>
    %cst_159 = arith.constant 0.000000e+00 : f32
    %504 = vector.broadcast %cst_159 : f32 to vector<1x128xf32>
    %505 = arith.maximumf %503, %504 : vector<1x128xf32>
    %cst_160 = arith.constant 9.99999974E-6 : f32
    %506 = vector.broadcast %cst_160 : f32 to vector<1x128xf32>
    %507 = arith.addf %505, %506 : vector<1x128xf32>
    %508 = math.rsqrt %507 : vector<1x128xf32>
    %509 = arith.mulf %460, %508 : vector<1x128xf32>
    %510 = arith.mulf %499, %509 : vector<1x128xf32>
    %511 = arith.subf %461, %510 : vector<1x128xf32>
    %512 = vector.broadcast %509 : vector<1x128xf32> to vector<8x128xf32>
    %513 = arith.mulf %492, %512 : vector<8x128xf32>
    %514 = vector.broadcast %511 : vector<1x128xf32> to vector<8x128xf32>
    %515 = arith.addf %513, %514 : vector<8x128xf32>
    %516 = arith.addf %515, %465 : vector<8x128xf32>
    %cst_161 = arith.constant 0.000000e+00 : f32
    %517 = vector.broadcast %cst_161 : f32 to vector<8x128xf32>
    %518 = arith.maximumf %516, %517 : vector<8x128xf32>
    %c14_i32_162 = arith.constant 14 : i32
    %519 = tpu.memref_slice %arg53[%c14_i32_162] : memref<24x!tpu.dma_semaphore, #tpu.memory_space<semaphore_mem>> -> memref<1x!tpu.dma_semaphore, #tpu.memory_space<semaphore_mem>>
    %520 = tpu.memref_squeeze %519 : memref<1x!tpu.dma_semaphore, #tpu.memory_space<semaphore_mem>> -> memref<!tpu.dma_semaphore, #tpu.memory_space<semaphore_mem>>
    tpu.wait_dma2 semaphore(%520 : memref<!tpu.dma_semaphore, #tpu.memory_space<semaphore_mem>>) src(%arg17 : memref<128x128xbf16, #tpu.memory_space<any>>) dst(%arg43 : memref<128x128xbf16, #tpu.memory_space<vmem>>)
    %c15_i32_163 = arith.constant 15 : i32
    %521 = tpu.memref_slice %arg53[%c15_i32_163] : memref<24x!tpu.dma_semaphore, #tpu.memory_space<semaphore_mem>> -> memref<1x!tpu.dma_semaphore, #tpu.memory_space<semaphore_mem>>
    %522 = tpu.memref_squeeze %521 : memref<1x!tpu.dma_semaphore, #tpu.memory_space<semaphore_mem>> -> memref<!tpu.dma_semaphore, #tpu.memory_space<semaphore_mem>>
    tpu.wait_dma2 semaphore(%522 : memref<!tpu.dma_semaphore, #tpu.memory_space<semaphore_mem>>) src(%arg18 : memref<64x64xbf16, #tpu.memory_space<any>>) dst(%arg44 : memref<64x64xbf16, #tpu.memory_space<vmem>>)
    %c0_164 = arith.constant 0 : index
    %c0_165 = arith.constant 0 : index
    %523 = vector.load %arg43[%c0_164, %c0_165] : memref<128x128xbf16, #tpu.memory_space<vmem>>, vector<128x128xbf16>
    %c0_166 = arith.constant 0 : index
    %c0_167 = arith.constant 0 : index
    %524 = vector.load %arg44[%c0_166, %c0_167] : memref<64x64xbf16, #tpu.memory_space<vmem>>, vector<64x64xbf16>
    %c28 = arith.constant 28 : index
    %c0_168 = arith.constant 0 : index
    %525 = vector.load %arg1[%c28, %c0_168] : memref<44x512xf32, #tpu.memory_space<vmem>>, vector<4x64xf32>
    %526 = vector.extract_strided_slice %525 {offsets = [0, 0], sizes = [1, 64], strides = [1, 1]} : vector<4x64xf32> to vector<1x64xf32>
    %527 = vector.extract_strided_slice %525 {offsets = [1, 0], sizes = [1, 64], strides = [1, 1]} : vector<4x64xf32> to vector<1x64xf32>
    %528 = vector.extract_strided_slice %525 {offsets = [2, 0], sizes = [1, 64], strides = [1, 1]} : vector<4x64xf32> to vector<1x64xf32>
    %529 = vector.extract_strided_slice %525 {offsets = [3, 0], sizes = [1, 64], strides = [1, 1]} : vector<4x64xf32> to vector<1x64xf32>
    %530 = arith.truncf %518 : vector<8x128xf32> to vector<8x128xbf16>
    %cst_169 = arith.constant dense<0.000000e+00> : vector<8x128xf32>
    %531 = tpu.matmul %530, %523, %cst_169 {dimension_numbers = #tpu.dot_dimension_numbers<[1], [0], [0], [1], [0, 0, 1, 1], [], []>} : vector<8x128xbf16>, vector<128x128xbf16>, vector<8x128xf32> -> vector<8x128xf32>
    %532 = vector.extract_strided_slice %531 {offsets = [0, 0], sizes = [8, 64], strides = [1, 1]} : vector<8x128xf32> to vector<8x64xf32>
    %533 = vector.extract_strided_slice %531 {offsets = [0, 64], sizes = [8, 64], strides = [1, 1]} : vector<8x128xf32> to vector<8x64xf32>
    %cst_170 = arith.constant dense<0.000000e+00> : vector<64xf32>
    %534 = vector.multi_reduction <add>, %532, %cst_170 [0] : vector<8x64xf32> to vector<64xf32>
    %535 = vector.shape_cast %534 : vector<64xf32> to vector<1x64xf32>
    %536 = arith.mulf %532, %532 : vector<8x64xf32>
    %cst_171 = arith.constant dense<0.000000e+00> : vector<64xf32>
    %537 = vector.multi_reduction <add>, %536, %cst_171 [0] : vector<8x64xf32> to vector<64xf32>
    %538 = vector.shape_cast %537 : vector<64xf32> to vector<1x64xf32>
    %cst_172 = arith.constant 1.250000e-01 : f32
    %539 = vector.broadcast %cst_172 : f32 to vector<1x64xf32>
    %540 = arith.mulf %535, %539 : vector<1x64xf32>
    %cst_173 = arith.constant 1.250000e-01 : f32
    %541 = vector.broadcast %cst_173 : f32 to vector<1x64xf32>
    %542 = arith.mulf %538, %541 : vector<1x64xf32>
    %543 = arith.mulf %540, %540 : vector<1x64xf32>
    %544 = arith.subf %542, %543 : vector<1x64xf32>
    %cst_174 = arith.constant 0.000000e+00 : f32
    %545 = vector.broadcast %cst_174 : f32 to vector<1x64xf32>
    %546 = arith.maximumf %544, %545 : vector<1x64xf32>
    %cst_175 = arith.constant 9.99999974E-6 : f32
    %547 = vector.broadcast %cst_175 : f32 to vector<1x64xf32>
    %548 = arith.addf %546, %547 : vector<1x64xf32>
    %549 = math.rsqrt %548 : vector<1x64xf32>
    %550 = arith.mulf %526, %549 : vector<1x64xf32>
    %551 = arith.mulf %540, %550 : vector<1x64xf32>
    %552 = arith.subf %527, %551 : vector<1x64xf32>
    %553 = vector.broadcast %550 : vector<1x64xf32> to vector<8x64xf32>
    %554 = arith.mulf %532, %553 : vector<8x64xf32>
    %555 = vector.broadcast %552 : vector<1x64xf32> to vector<8x64xf32>
    %556 = arith.addf %554, %555 : vector<8x64xf32>
    %cst_176 = arith.constant 0.000000e+00 : f32
    %557 = vector.broadcast %cst_176 : f32 to vector<8x64xf32>
    %558 = arith.maximumf %556, %557 : vector<8x64xf32>
    %559 = arith.truncf %558 : vector<8x64xf32> to vector<8x64xbf16>
    %cst_177 = arith.constant dense<0.000000e+00> : vector<8x64xf32>
    %560 = tpu.matmul %559, %524, %cst_177 {dimension_numbers = #tpu.dot_dimension_numbers<[1], [0], [0], [1], [0, 0, 1, 1], [], []>} : vector<8x64xbf16>, vector<64x64xbf16>, vector<8x64xf32> -> vector<8x64xf32>
    %cst_178 = arith.constant dense<0.000000e+00> : vector<64xf32>
    %561 = vector.multi_reduction <add>, %560, %cst_178 [0] : vector<8x64xf32> to vector<64xf32>
    %562 = vector.shape_cast %561 : vector<64xf32> to vector<1x64xf32>
    %563 = arith.mulf %560, %560 : vector<8x64xf32>
    %cst_179 = arith.constant dense<0.000000e+00> : vector<64xf32>
    %564 = vector.multi_reduction <add>, %563, %cst_179 [0] : vector<8x64xf32> to vector<64xf32>
    %565 = vector.shape_cast %564 : vector<64xf32> to vector<1x64xf32>
    %cst_180 = arith.constant 1.250000e-01 : f32
    %566 = vector.broadcast %cst_180 : f32 to vector<1x64xf32>
    %567 = arith.mulf %562, %566 : vector<1x64xf32>
    %cst_181 = arith.constant 1.250000e-01 : f32
    %568 = vector.broadcast %cst_181 : f32 to vector<1x64xf32>
    %569 = arith.mulf %565, %568 : vector<1x64xf32>
    %570 = arith.mulf %567, %567 : vector<1x64xf32>
    %571 = arith.subf %569, %570 : vector<1x64xf32>
    %cst_182 = arith.constant 0.000000e+00 : f32
    %572 = vector.broadcast %cst_182 : f32 to vector<1x64xf32>
    %573 = arith.maximumf %571, %572 : vector<1x64xf32>
    %cst_183 = arith.constant 9.99999974E-6 : f32
    %574 = vector.broadcast %cst_183 : f32 to vector<1x64xf32>
    %575 = arith.addf %573, %574 : vector<1x64xf32>
    %576 = math.rsqrt %575 : vector<1x64xf32>
    %577 = arith.mulf %528, %576 : vector<1x64xf32>
    %578 = arith.mulf %567, %577 : vector<1x64xf32>
    %579 = arith.subf %529, %578 : vector<1x64xf32>
    %580 = vector.broadcast %577 : vector<1x64xf32> to vector<8x64xf32>
    %581 = arith.mulf %560, %580 : vector<8x64xf32>
    %582 = vector.broadcast %579 : vector<1x64xf32> to vector<8x64xf32>
    %583 = arith.addf %581, %582 : vector<8x64xf32>
    %584 = arith.addf %583, %533 : vector<8x64xf32>
    %cst_184 = arith.constant 0.000000e+00 : f32
    %585 = vector.broadcast %cst_184 : f32 to vector<8x64xf32>
    %586 = arith.maximumf %584, %585 : vector<8x64xf32>
    %c16_i32_185 = arith.constant 16 : i32
    %587 = tpu.memref_slice %arg53[%c16_i32_185] : memref<24x!tpu.dma_semaphore, #tpu.memory_space<semaphore_mem>> -> memref<1x!tpu.dma_semaphore, #tpu.memory_space<semaphore_mem>>
    %588 = tpu.memref_squeeze %587 : memref<1x!tpu.dma_semaphore, #tpu.memory_space<semaphore_mem>> -> memref<!tpu.dma_semaphore, #tpu.memory_space<semaphore_mem>>
    tpu.wait_dma2 semaphore(%588 : memref<!tpu.dma_semaphore, #tpu.memory_space<semaphore_mem>>) src(%arg19 : memref<512x512xbf16, #tpu.memory_space<any>>) dst(%arg45 : memref<512x512xbf16, #tpu.memory_space<vmem>>)
    %c17_i32_186 = arith.constant 17 : i32
    %589 = tpu.memref_slice %arg53[%c17_i32_186] : memref<24x!tpu.dma_semaphore, #tpu.memory_space<semaphore_mem>> -> memref<1x!tpu.dma_semaphore, #tpu.memory_space<semaphore_mem>>
    %590 = tpu.memref_squeeze %589 : memref<1x!tpu.dma_semaphore, #tpu.memory_space<semaphore_mem>> -> memref<!tpu.dma_semaphore, #tpu.memory_space<semaphore_mem>>
    tpu.wait_dma2 semaphore(%590 : memref<!tpu.dma_semaphore, #tpu.memory_space<semaphore_mem>>) src(%arg20 : memref<256x256xbf16, #tpu.memory_space<any>>) dst(%arg46 : memref<256x256xbf16, #tpu.memory_space<vmem>>)
    %c0_187 = arith.constant 0 : index
    %c0_188 = arith.constant 0 : index
    %591 = vector.load %arg45[%c0_187, %c0_188] : memref<512x512xbf16, #tpu.memory_space<vmem>>, vector<512x512xbf16>
    %c0_189 = arith.constant 0 : index
    %c0_190 = arith.constant 0 : index
    %592 = vector.load %arg46[%c0_189, %c0_190] : memref<256x256xbf16, #tpu.memory_space<vmem>>, vector<256x256xbf16>
    %c32 = arith.constant 32 : index
    %c0_191 = arith.constant 0 : index
    %593 = vector.load %arg1[%c32, %c0_191] : memref<44x512xf32, #tpu.memory_space<vmem>>, vector<4x256xf32>
    %594 = vector.extract_strided_slice %593 {offsets = [0, 0], sizes = [1, 256], strides = [1, 1]} : vector<4x256xf32> to vector<1x256xf32>
    %595 = vector.extract_strided_slice %593 {offsets = [1, 0], sizes = [1, 256], strides = [1, 1]} : vector<4x256xf32> to vector<1x256xf32>
    %596 = vector.extract_strided_slice %593 {offsets = [2, 0], sizes = [1, 256], strides = [1, 1]} : vector<4x256xf32> to vector<1x256xf32>
    %597 = vector.extract_strided_slice %593 {offsets = [3, 0], sizes = [1, 256], strides = [1, 1]} : vector<4x256xf32> to vector<1x256xf32>
    %598 = arith.truncf %382 : vector<8x512xf32> to vector<8x512xbf16>
    %cst_192 = arith.constant dense<0.000000e+00> : vector<8x512xf32>
    %599 = tpu.matmul %598, %591, %cst_192 {dimension_numbers = #tpu.dot_dimension_numbers<[1], [0], [0], [1], [0, 0, 1, 1], [], []>} : vector<8x512xbf16>, vector<512x512xbf16>, vector<8x512xf32> -> vector<8x512xf32>
    %600 = vector.extract_strided_slice %599 {offsets = [0, 0], sizes = [8, 256], strides = [1, 1]} : vector<8x512xf32> to vector<8x256xf32>
    %601 = vector.extract_strided_slice %599 {offsets = [0, 256], sizes = [8, 256], strides = [1, 1]} : vector<8x512xf32> to vector<8x256xf32>
    %cst_193 = arith.constant dense<0.000000e+00> : vector<256xf32>
    %602 = vector.multi_reduction <add>, %600, %cst_193 [0] : vector<8x256xf32> to vector<256xf32>
    %603 = vector.shape_cast %602 : vector<256xf32> to vector<1x256xf32>
    %604 = arith.mulf %600, %600 : vector<8x256xf32>
    %cst_194 = arith.constant dense<0.000000e+00> : vector<256xf32>
    %605 = vector.multi_reduction <add>, %604, %cst_194 [0] : vector<8x256xf32> to vector<256xf32>
    %606 = vector.shape_cast %605 : vector<256xf32> to vector<1x256xf32>
    %cst_195 = arith.constant 1.250000e-01 : f32
    %607 = vector.broadcast %cst_195 : f32 to vector<1x256xf32>
    %608 = arith.mulf %603, %607 : vector<1x256xf32>
    %cst_196 = arith.constant 1.250000e-01 : f32
    %609 = vector.broadcast %cst_196 : f32 to vector<1x256xf32>
    %610 = arith.mulf %606, %609 : vector<1x256xf32>
    %611 = arith.mulf %608, %608 : vector<1x256xf32>
    %612 = arith.subf %610, %611 : vector<1x256xf32>
    %cst_197 = arith.constant 0.000000e+00 : f32
    %613 = vector.broadcast %cst_197 : f32 to vector<1x256xf32>
    %614 = arith.maximumf %612, %613 : vector<1x256xf32>
    %cst_198 = arith.constant 9.99999974E-6 : f32
    %615 = vector.broadcast %cst_198 : f32 to vector<1x256xf32>
    %616 = arith.addf %614, %615 : vector<1x256xf32>
    %617 = math.rsqrt %616 : vector<1x256xf32>
    %618 = arith.mulf %594, %617 : vector<1x256xf32>
    %619 = arith.mulf %608, %618 : vector<1x256xf32>
    %620 = arith.subf %595, %619 : vector<1x256xf32>
    %621 = vector.broadcast %618 : vector<1x256xf32> to vector<8x256xf32>
    %622 = arith.mulf %600, %621 : vector<8x256xf32>
    %623 = vector.broadcast %620 : vector<1x256xf32> to vector<8x256xf32>
    %624 = arith.addf %622, %623 : vector<8x256xf32>
    %cst_199 = arith.constant 0.000000e+00 : f32
    %625 = vector.broadcast %cst_199 : f32 to vector<8x256xf32>
    %626 = arith.maximumf %624, %625 : vector<8x256xf32>
    %627 = arith.truncf %626 : vector<8x256xf32> to vector<8x256xbf16>
    %cst_200 = arith.constant dense<0.000000e+00> : vector<8x256xf32>
    %628 = tpu.matmul %627, %592, %cst_200 {dimension_numbers = #tpu.dot_dimension_numbers<[1], [0], [0], [1], [0, 0, 1, 1], [], []>} : vector<8x256xbf16>, vector<256x256xbf16>, vector<8x256xf32> -> vector<8x256xf32>
    %cst_201 = arith.constant dense<0.000000e+00> : vector<256xf32>
    %629 = vector.multi_reduction <add>, %628, %cst_201 [0] : vector<8x256xf32> to vector<256xf32>
    %630 = vector.shape_cast %629 : vector<256xf32> to vector<1x256xf32>
    %631 = arith.mulf %628, %628 : vector<8x256xf32>
    %cst_202 = arith.constant dense<0.000000e+00> : vector<256xf32>
    %632 = vector.multi_reduction <add>, %631, %cst_202 [0] : vector<8x256xf32> to vector<256xf32>
    %633 = vector.shape_cast %632 : vector<256xf32> to vector<1x256xf32>
    %cst_203 = arith.constant 1.250000e-01 : f32
    %634 = vector.broadcast %cst_203 : f32 to vector<1x256xf32>
    %635 = arith.mulf %630, %634 : vector<1x256xf32>
    %cst_204 = arith.constant 1.250000e-01 : f32
    %636 = vector.broadcast %cst_204 : f32 to vector<1x256xf32>
    %637 = arith.mulf %633, %636 : vector<1x256xf32>
    %638 = arith.mulf %635, %635 : vector<1x256xf32>
    %639 = arith.subf %637, %638 : vector<1x256xf32>
    %cst_205 = arith.constant 0.000000e+00 : f32
    %640 = vector.broadcast %cst_205 : f32 to vector<1x256xf32>
    %641 = arith.maximumf %639, %640 : vector<1x256xf32>
    %cst_206 = arith.constant 9.99999974E-6 : f32
    %642 = vector.broadcast %cst_206 : f32 to vector<1x256xf32>
    %643 = arith.addf %641, %642 : vector<1x256xf32>
    %644 = math.rsqrt %643 : vector<1x256xf32>
    %645 = arith.mulf %596, %644 : vector<1x256xf32>
    %646 = arith.mulf %635, %645 : vector<1x256xf32>
    %647 = arith.subf %597, %646 : vector<1x256xf32>
    %648 = vector.broadcast %645 : vector<1x256xf32> to vector<8x256xf32>
    %649 = arith.mulf %628, %648 : vector<8x256xf32>
    %650 = vector.broadcast %647 : vector<1x256xf32> to vector<8x256xf32>
    %651 = arith.addf %649, %650 : vector<8x256xf32>
    %652 = arith.addf %651, %601 : vector<8x256xf32>
    %cst_207 = arith.constant 0.000000e+00 : f32
    %653 = vector.broadcast %cst_207 : f32 to vector<8x256xf32>
    %654 = arith.maximumf %652, %653 : vector<8x256xf32>
    %c18_i32_208 = arith.constant 18 : i32
    %655 = tpu.memref_slice %arg53[%c18_i32_208] : memref<24x!tpu.dma_semaphore, #tpu.memory_space<semaphore_mem>> -> memref<1x!tpu.dma_semaphore, #tpu.memory_space<semaphore_mem>>
    %656 = tpu.memref_squeeze %655 : memref<1x!tpu.dma_semaphore, #tpu.memory_space<semaphore_mem>> -> memref<!tpu.dma_semaphore, #tpu.memory_space<semaphore_mem>>
    tpu.wait_dma2 semaphore(%656 : memref<!tpu.dma_semaphore, #tpu.memory_space<semaphore_mem>>) src(%arg21 : memref<256x256xbf16, #tpu.memory_space<any>>) dst(%arg47 : memref<256x256xbf16, #tpu.memory_space<vmem>>)
    %c19_i32_209 = arith.constant 19 : i32
    %657 = tpu.memref_slice %arg53[%c19_i32_209] : memref<24x!tpu.dma_semaphore, #tpu.memory_space<semaphore_mem>> -> memref<1x!tpu.dma_semaphore, #tpu.memory_space<semaphore_mem>>
    %658 = tpu.memref_squeeze %657 : memref<1x!tpu.dma_semaphore, #tpu.memory_space<semaphore_mem>> -> memref<!tpu.dma_semaphore, #tpu.memory_space<semaphore_mem>>
    tpu.wait_dma2 semaphore(%658 : memref<!tpu.dma_semaphore, #tpu.memory_space<semaphore_mem>>) src(%arg22 : memref<128x128xbf16, #tpu.memory_space<any>>) dst(%arg48 : memref<128x128xbf16, #tpu.memory_space<vmem>>)
    %c0_210 = arith.constant 0 : index
    %c0_211 = arith.constant 0 : index
    %659 = vector.load %arg47[%c0_210, %c0_211] : memref<256x256xbf16, #tpu.memory_space<vmem>>, vector<256x256xbf16>
    %c0_212 = arith.constant 0 : index
    %c0_213 = arith.constant 0 : index
    %660 = vector.load %arg48[%c0_212, %c0_213] : memref<128x128xbf16, #tpu.memory_space<vmem>>, vector<128x128xbf16>
    %c36 = arith.constant 36 : index
    %c0_214 = arith.constant 0 : index
    %661 = vector.load %arg1[%c36, %c0_214] : memref<44x512xf32, #tpu.memory_space<vmem>>, vector<4x128xf32>
    %662 = vector.extract_strided_slice %661 {offsets = [0, 0], sizes = [1, 128], strides = [1, 1]} : vector<4x128xf32> to vector<1x128xf32>
    %663 = vector.extract_strided_slice %661 {offsets = [1, 0], sizes = [1, 128], strides = [1, 1]} : vector<4x128xf32> to vector<1x128xf32>
    %664 = vector.extract_strided_slice %661 {offsets = [2, 0], sizes = [1, 128], strides = [1, 1]} : vector<4x128xf32> to vector<1x128xf32>
    %665 = vector.extract_strided_slice %661 {offsets = [3, 0], sizes = [1, 128], strides = [1, 1]} : vector<4x128xf32> to vector<1x128xf32>
    %666 = arith.truncf %654 : vector<8x256xf32> to vector<8x256xbf16>
    %cst_215 = arith.constant dense<0.000000e+00> : vector<8x256xf32>
    %667 = tpu.matmul %666, %659, %cst_215 {dimension_numbers = #tpu.dot_dimension_numbers<[1], [0], [0], [1], [0, 0, 1, 1], [], []>} : vector<8x256xbf16>, vector<256x256xbf16>, vector<8x256xf32> -> vector<8x256xf32>
    %668 = vector.extract_strided_slice %667 {offsets = [0, 0], sizes = [8, 128], strides = [1, 1]} : vector<8x256xf32> to vector<8x128xf32>
    %669 = vector.extract_strided_slice %667 {offsets = [0, 128], sizes = [8, 128], strides = [1, 1]} : vector<8x256xf32> to vector<8x128xf32>
    %cst_216 = arith.constant dense<0.000000e+00> : vector<128xf32>
    %670 = vector.multi_reduction <add>, %668, %cst_216 [0] : vector<8x128xf32> to vector<128xf32>
    %671 = vector.shape_cast %670 : vector<128xf32> to vector<1x128xf32>
    %672 = arith.mulf %668, %668 : vector<8x128xf32>
    %cst_217 = arith.constant dense<0.000000e+00> : vector<128xf32>
    %673 = vector.multi_reduction <add>, %672, %cst_217 [0] : vector<8x128xf32> to vector<128xf32>
    %674 = vector.shape_cast %673 : vector<128xf32> to vector<1x128xf32>
    %cst_218 = arith.constant 1.250000e-01 : f32
    %675 = vector.broadcast %cst_218 : f32 to vector<1x128xf32>
    %676 = arith.mulf %671, %675 : vector<1x128xf32>
    %cst_219 = arith.constant 1.250000e-01 : f32
    %677 = vector.broadcast %cst_219 : f32 to vector<1x128xf32>
    %678 = arith.mulf %674, %677 : vector<1x128xf32>
    %679 = arith.mulf %676, %676 : vector<1x128xf32>
    %680 = arith.subf %678, %679 : vector<1x128xf32>
    %cst_220 = arith.constant 0.000000e+00 : f32
    %681 = vector.broadcast %cst_220 : f32 to vector<1x128xf32>
    %682 = arith.maximumf %680, %681 : vector<1x128xf32>
    %cst_221 = arith.constant 9.99999974E-6 : f32
    %683 = vector.broadcast %cst_221 : f32 to vector<1x128xf32>
    %684 = arith.addf %682, %683 : vector<1x128xf32>
    %685 = math.rsqrt %684 : vector<1x128xf32>
    %686 = arith.mulf %662, %685 : vector<1x128xf32>
    %687 = arith.mulf %676, %686 : vector<1x128xf32>
    %688 = arith.subf %663, %687 : vector<1x128xf32>
    %689 = vector.broadcast %686 : vector<1x128xf32> to vector<8x128xf32>
    %690 = arith.mulf %668, %689 : vector<8x128xf32>
    %691 = vector.broadcast %688 : vector<1x128xf32> to vector<8x128xf32>
    %692 = arith.addf %690, %691 : vector<8x128xf32>
    %cst_222 = arith.constant 0.000000e+00 : f32
    %693 = vector.broadcast %cst_222 : f32 to vector<8x128xf32>
    %694 = arith.maximumf %692, %693 : vector<8x128xf32>
    %695 = arith.truncf %694 : vector<8x128xf32> to vector<8x128xbf16>
    %cst_223 = arith.constant dense<0.000000e+00> : vector<8x128xf32>
    %696 = tpu.matmul %695, %660, %cst_223 {dimension_numbers = #tpu.dot_dimension_numbers<[1], [0], [0], [1], [0, 0, 1, 1], [], []>} : vector<8x128xbf16>, vector<128x128xbf16>, vector<8x128xf32> -> vector<8x128xf32>
    %cst_224 = arith.constant dense<0.000000e+00> : vector<128xf32>
    %697 = vector.multi_reduction <add>, %696, %cst_224 [0] : vector<8x128xf32> to vector<128xf32>
    %698 = vector.shape_cast %697 : vector<128xf32> to vector<1x128xf32>
    %699 = arith.mulf %696, %696 : vector<8x128xf32>
    %cst_225 = arith.constant dense<0.000000e+00> : vector<128xf32>
    %700 = vector.multi_reduction <add>, %699, %cst_225 [0] : vector<8x128xf32> to vector<128xf32>
    %701 = vector.shape_cast %700 : vector<128xf32> to vector<1x128xf32>
    %cst_226 = arith.constant 1.250000e-01 : f32
    %702 = vector.broadcast %cst_226 : f32 to vector<1x128xf32>
    %703 = arith.mulf %698, %702 : vector<1x128xf32>
    %cst_227 = arith.constant 1.250000e-01 : f32
    %704 = vector.broadcast %cst_227 : f32 to vector<1x128xf32>
    %705 = arith.mulf %701, %704 : vector<1x128xf32>
    %706 = arith.mulf %703, %703 : vector<1x128xf32>
    %707 = arith.subf %705, %706 : vector<1x128xf32>
    %cst_228 = arith.constant 0.000000e+00 : f32
    %708 = vector.broadcast %cst_228 : f32 to vector<1x128xf32>
    %709 = arith.maximumf %707, %708 : vector<1x128xf32>
    %cst_229 = arith.constant 9.99999974E-6 : f32
    %710 = vector.broadcast %cst_229 : f32 to vector<1x128xf32>
    %711 = arith.addf %709, %710 : vector<1x128xf32>
    %712 = math.rsqrt %711 : vector<1x128xf32>
    %713 = arith.mulf %664, %712 : vector<1x128xf32>
    %714 = arith.mulf %703, %713 : vector<1x128xf32>
    %715 = arith.subf %665, %714 : vector<1x128xf32>
    %716 = vector.broadcast %713 : vector<1x128xf32> to vector<8x128xf32>
    %717 = arith.mulf %696, %716 : vector<8x128xf32>
    %718 = vector.broadcast %715 : vector<1x128xf32> to vector<8x128xf32>
    %719 = arith.addf %717, %718 : vector<8x128xf32>
    %720 = arith.addf %719, %669 : vector<8x128xf32>
    %cst_230 = arith.constant 0.000000e+00 : f32
    %721 = vector.broadcast %cst_230 : f32 to vector<8x128xf32>
    %722 = arith.maximumf %720, %721 : vector<8x128xf32>
    %c20_i32_231 = arith.constant 20 : i32
    %723 = tpu.memref_slice %arg53[%c20_i32_231] : memref<24x!tpu.dma_semaphore, #tpu.memory_space<semaphore_mem>> -> memref<1x!tpu.dma_semaphore, #tpu.memory_space<semaphore_mem>>
    %724 = tpu.memref_squeeze %723 : memref<1x!tpu.dma_semaphore, #tpu.memory_space<semaphore_mem>> -> memref<!tpu.dma_semaphore, #tpu.memory_space<semaphore_mem>>
    tpu.wait_dma2 semaphore(%724 : memref<!tpu.dma_semaphore, #tpu.memory_space<semaphore_mem>>) src(%arg23 : memref<128x128xbf16, #tpu.memory_space<any>>) dst(%arg49 : memref<128x128xbf16, #tpu.memory_space<vmem>>)
    %c21_i32_232 = arith.constant 21 : i32
    %725 = tpu.memref_slice %arg53[%c21_i32_232] : memref<24x!tpu.dma_semaphore, #tpu.memory_space<semaphore_mem>> -> memref<1x!tpu.dma_semaphore, #tpu.memory_space<semaphore_mem>>
    %726 = tpu.memref_squeeze %725 : memref<1x!tpu.dma_semaphore, #tpu.memory_space<semaphore_mem>> -> memref<!tpu.dma_semaphore, #tpu.memory_space<semaphore_mem>>
    tpu.wait_dma2 semaphore(%726 : memref<!tpu.dma_semaphore, #tpu.memory_space<semaphore_mem>>) src(%arg24 : memref<64x64xbf16, #tpu.memory_space<any>>) dst(%arg50 : memref<64x64xbf16, #tpu.memory_space<vmem>>)
    %c0_233 = arith.constant 0 : index
    %c0_234 = arith.constant 0 : index
    %727 = vector.load %arg49[%c0_233, %c0_234] : memref<128x128xbf16, #tpu.memory_space<vmem>>, vector<128x128xbf16>
    %c0_235 = arith.constant 0 : index
    %c0_236 = arith.constant 0 : index
    %728 = vector.load %arg50[%c0_235, %c0_236] : memref<64x64xbf16, #tpu.memory_space<vmem>>, vector<64x64xbf16>
    %c40 = arith.constant 40 : index
    %c0_237 = arith.constant 0 : index
    %729 = vector.load %arg1[%c40, %c0_237] : memref<44x512xf32, #tpu.memory_space<vmem>>, vector<4x64xf32>
    %730 = vector.extract_strided_slice %729 {offsets = [0, 0], sizes = [1, 64], strides = [1, 1]} : vector<4x64xf32> to vector<1x64xf32>
    %731 = vector.extract_strided_slice %729 {offsets = [1, 0], sizes = [1, 64], strides = [1, 1]} : vector<4x64xf32> to vector<1x64xf32>
    %732 = vector.extract_strided_slice %729 {offsets = [2, 0], sizes = [1, 64], strides = [1, 1]} : vector<4x64xf32> to vector<1x64xf32>
    %733 = vector.extract_strided_slice %729 {offsets = [3, 0], sizes = [1, 64], strides = [1, 1]} : vector<4x64xf32> to vector<1x64xf32>
    %734 = arith.truncf %722 : vector<8x128xf32> to vector<8x128xbf16>
    %cst_238 = arith.constant dense<0.000000e+00> : vector<8x128xf32>
    %735 = tpu.matmul %734, %727, %cst_238 {dimension_numbers = #tpu.dot_dimension_numbers<[1], [0], [0], [1], [0, 0, 1, 1], [], []>} : vector<8x128xbf16>, vector<128x128xbf16>, vector<8x128xf32> -> vector<8x128xf32>
    %736 = vector.extract_strided_slice %735 {offsets = [0, 0], sizes = [8, 64], strides = [1, 1]} : vector<8x128xf32> to vector<8x64xf32>
    %737 = vector.extract_strided_slice %735 {offsets = [0, 64], sizes = [8, 64], strides = [1, 1]} : vector<8x128xf32> to vector<8x64xf32>
    %cst_239 = arith.constant dense<0.000000e+00> : vector<64xf32>
    %738 = vector.multi_reduction <add>, %736, %cst_239 [0] : vector<8x64xf32> to vector<64xf32>
    %739 = vector.shape_cast %738 : vector<64xf32> to vector<1x64xf32>
    %740 = arith.mulf %736, %736 : vector<8x64xf32>
    %cst_240 = arith.constant dense<0.000000e+00> : vector<64xf32>
    %741 = vector.multi_reduction <add>, %740, %cst_240 [0] : vector<8x64xf32> to vector<64xf32>
    %742 = vector.shape_cast %741 : vector<64xf32> to vector<1x64xf32>
    %cst_241 = arith.constant 1.250000e-01 : f32
    %743 = vector.broadcast %cst_241 : f32 to vector<1x64xf32>
    %744 = arith.mulf %739, %743 : vector<1x64xf32>
    %cst_242 = arith.constant 1.250000e-01 : f32
    %745 = vector.broadcast %cst_242 : f32 to vector<1x64xf32>
    %746 = arith.mulf %742, %745 : vector<1x64xf32>
    %747 = arith.mulf %744, %744 : vector<1x64xf32>
    %748 = arith.subf %746, %747 : vector<1x64xf32>
    %cst_243 = arith.constant 0.000000e+00 : f32
    %749 = vector.broadcast %cst_243 : f32 to vector<1x64xf32>
    %750 = arith.maximumf %748, %749 : vector<1x64xf32>
    %cst_244 = arith.constant 9.99999974E-6 : f32
    %751 = vector.broadcast %cst_244 : f32 to vector<1x64xf32>
    %752 = arith.addf %750, %751 : vector<1x64xf32>
    %753 = math.rsqrt %752 : vector<1x64xf32>
    %754 = arith.mulf %730, %753 : vector<1x64xf32>
    %755 = arith.mulf %744, %754 : vector<1x64xf32>
    %756 = arith.subf %731, %755 : vector<1x64xf32>
    %757 = vector.broadcast %754 : vector<1x64xf32> to vector<8x64xf32>
    %758 = arith.mulf %736, %757 : vector<8x64xf32>
    %759 = vector.broadcast %756 : vector<1x64xf32> to vector<8x64xf32>
    %760 = arith.addf %758, %759 : vector<8x64xf32>
    %cst_245 = arith.constant 0.000000e+00 : f32
    %761 = vector.broadcast %cst_245 : f32 to vector<8x64xf32>
    %762 = arith.maximumf %760, %761 : vector<8x64xf32>
    %763 = arith.truncf %762 : vector<8x64xf32> to vector<8x64xbf16>
    %cst_246 = arith.constant dense<0.000000e+00> : vector<8x64xf32>
    %764 = tpu.matmul %763, %728, %cst_246 {dimension_numbers = #tpu.dot_dimension_numbers<[1], [0], [0], [1], [0, 0, 1, 1], [], []>} : vector<8x64xbf16>, vector<64x64xbf16>, vector<8x64xf32> -> vector<8x64xf32>
    %cst_247 = arith.constant dense<0.000000e+00> : vector<64xf32>
    %765 = vector.multi_reduction <add>, %764, %cst_247 [0] : vector<8x64xf32> to vector<64xf32>
    %766 = vector.shape_cast %765 : vector<64xf32> to vector<1x64xf32>
    %767 = arith.mulf %764, %764 : vector<8x64xf32>
    %cst_248 = arith.constant dense<0.000000e+00> : vector<64xf32>
    %768 = vector.multi_reduction <add>, %767, %cst_248 [0] : vector<8x64xf32> to vector<64xf32>
    %769 = vector.shape_cast %768 : vector<64xf32> to vector<1x64xf32>
    %cst_249 = arith.constant 1.250000e-01 : f32
    %770 = vector.broadcast %cst_249 : f32 to vector<1x64xf32>
    %771 = arith.mulf %766, %770 : vector<1x64xf32>
    %cst_250 = arith.constant 1.250000e-01 : f32
    %772 = vector.broadcast %cst_250 : f32 to vector<1x64xf32>
    %773 = arith.mulf %769, %772 : vector<1x64xf32>
    %774 = arith.mulf %771, %771 : vector<1x64xf32>
    %775 = arith.subf %773, %774 : vector<1x64xf32>
    %cst_251 = arith.constant 0.000000e+00 : f32
    %776 = vector.broadcast %cst_251 : f32 to vector<1x64xf32>
    %777 = arith.maximumf %775, %776 : vector<1x64xf32>
    %cst_252 = arith.constant 9.99999974E-6 : f32
    %778 = vector.broadcast %cst_252 : f32 to vector<1x64xf32>
    %779 = arith.addf %777, %778 : vector<1x64xf32>
    %780 = math.rsqrt %779 : vector<1x64xf32>
    %781 = arith.mulf %732, %780 : vector<1x64xf32>
    %782 = arith.mulf %771, %781 : vector<1x64xf32>
    %783 = arith.subf %733, %782 : vector<1x64xf32>
    %784 = vector.broadcast %781 : vector<1x64xf32> to vector<8x64xf32>
    %785 = arith.mulf %764, %784 : vector<8x64xf32>
    %786 = vector.broadcast %783 : vector<1x64xf32> to vector<8x64xf32>
    %787 = arith.addf %785, %786 : vector<8x64xf32>
    %788 = arith.addf %787, %737 : vector<8x64xf32>
    %cst_253 = arith.constant 0.000000e+00 : f32
    %789 = vector.broadcast %cst_253 : f32 to vector<8x64xf32>
    %790 = arith.maximumf %788, %789 : vector<8x64xf32>
    %c22_i32_254 = arith.constant 22 : i32
    %791 = tpu.memref_slice %arg53[%c22_i32_254] : memref<24x!tpu.dma_semaphore, #tpu.memory_space<semaphore_mem>> -> memref<1x!tpu.dma_semaphore, #tpu.memory_space<semaphore_mem>>
    %792 = tpu.memref_squeeze %791 : memref<1x!tpu.dma_semaphore, #tpu.memory_space<semaphore_mem>> -> memref<!tpu.dma_semaphore, #tpu.memory_space<semaphore_mem>>
    tpu.wait_dma2 semaphore(%792 : memref<!tpu.dma_semaphore, #tpu.memory_space<semaphore_mem>>) src(%arg25 : memref<64x3712xbf16, #tpu.memory_space<any>>) dst(%arg51 : memref<64x3712xbf16, #tpu.memory_space<vmem>>)
    %c0_255 = arith.constant 0 : index
    %c0_256 = arith.constant 0 : index
    %793 = vector.load %arg51[%c0_255, %c0_256] : memref<64x3712xbf16, #tpu.memory_space<vmem>>, vector<64x3712xbf16>
    %c0_257 = arith.constant 0 : index
    %c0_258 = arith.constant 0 : index
    %794 = vector.load %arg2[%c0_257, %c0_258] : memref<2x3712xf32, #tpu.memory_space<vmem>>, vector<1x3712xf32>
    %795 = arith.truncf %586 : vector<8x64xf32> to vector<8x64xbf16>
    %cst_259 = arith.constant dense<0.000000e+00> : vector<8x3712xf32>
    %796 = tpu.matmul %795, %793, %cst_259 {dimension_numbers = #tpu.dot_dimension_numbers<[1], [0], [0], [1], [0, 0, 1, 1], [], []>} : vector<8x64xbf16>, vector<64x3712xbf16>, vector<8x3712xf32> -> vector<8x3712xf32>
    %797 = vector.broadcast %794 : vector<1x3712xf32> to vector<8x3712xf32>
    %798 = arith.addf %796, %797 : vector<8x3712xf32>
    %799 = arith.negf %798 : vector<8x3712xf32>
    %800 = math.exp %799 : vector<8x3712xf32>
    %cst_260 = arith.constant 1.000000e+00 : f32
    %801 = vector.broadcast %cst_260 : f32 to vector<8x3712xf32>
    %802 = arith.addf %801, %800 : vector<8x3712xf32>
    %803 = arith.divf %801, %802 : vector<8x3712xf32>
    %cst_261 = arith.constant 4.000000e+00 : f32
    %804 = vector.broadcast %cst_261 : f32 to vector<8x3712xf32>
    %805 = arith.mulf %803, %804 : vector<8x3712xf32>
    %cst_262 = arith.constant 1.000000e+00 : f32
    %806 = vector.broadcast %cst_262 : f32 to vector<8x3712xf32>
    %807 = arith.addf %805, %806 : vector<8x3712xf32>
    %c0_263 = arith.constant 0 : index
    %c0_264 = arith.constant 0 : index
    %808 = vector.load %arg27[%c0_263, %c0_264] : memref<8x3712xf32, #tpu.memory_space<vmem>>, vector<8x3712xf32>
    tpu.vector_store %arg27[%c0_263, %c0_264], %807 {strides = array<i32>} : memref<8x3712xf32, #tpu.memory_space<vmem>>, vector<8x3712xf32>,
    %c23_i32_265 = arith.constant 23 : i32
    %809 = tpu.memref_slice %arg53[%c23_i32_265] : memref<24x!tpu.dma_semaphore, #tpu.memory_space<semaphore_mem>> -> memref<1x!tpu.dma_semaphore, #tpu.memory_space<semaphore_mem>>
    %810 = tpu.memref_squeeze %809 : memref<1x!tpu.dma_semaphore, #tpu.memory_space<semaphore_mem>> -> memref<!tpu.dma_semaphore, #tpu.memory_space<semaphore_mem>>
    tpu.wait_dma2 semaphore(%810 : memref<!tpu.dma_semaphore, #tpu.memory_space<semaphore_mem>>) src(%arg26 : memref<64x3712xbf16, #tpu.memory_space<any>>) dst(%arg52 : memref<64x3712xbf16, #tpu.memory_space<vmem>>)
    %c0_266 = arith.constant 0 : index
    %c0_267 = arith.constant 0 : index
    %811 = vector.load %arg52[%c0_266, %c0_267] : memref<64x3712xbf16, #tpu.memory_space<vmem>>, vector<64x3712xbf16>
    %c1 = arith.constant 1 : index
    %c0_268 = arith.constant 0 : index
    %812 = vector.load %arg2[%c1, %c0_268] : memref<2x3712xf32, #tpu.memory_space<vmem>>, vector<1x3712xf32>
    %813 = arith.truncf %790 : vector<8x64xf32> to vector<8x64xbf16>
    %cst_269 = arith.constant dense<0.000000e+00> : vector<8x3712xf32>
    %814 = tpu.matmul %813, %811, %cst_269 {dimension_numbers = #tpu.dot_dimension_numbers<[1], [0], [0], [1], [0, 0, 1, 1], [], []>} : vector<8x64xbf16>, vector<64x3712xbf16>, vector<8x3712xf32> -> vector<8x3712xf32>
    %815 = vector.broadcast %812 : vector<1x3712xf32> to vector<8x3712xf32>
    %816 = arith.addf %814, %815 : vector<8x3712xf32>
    %817 = arith.negf %816 : vector<8x3712xf32>
    %818 = math.exp %817 : vector<8x3712xf32>
    %cst_270 = arith.constant 1.000000e+00 : f32
    %819 = vector.broadcast %cst_270 : f32 to vector<8x3712xf32>
    %820 = arith.addf %819, %818 : vector<8x3712xf32>
    %821 = arith.divf %819, %820 : vector<8x3712xf32>
    %c0_271 = arith.constant 0 : index
    %c0_272 = arith.constant 0 : index
    %822 = vector.load %arg28[%c0_271, %c0_272] : memref<8x3712xf32, #tpu.memory_space<vmem>>, vector<8x3712xf32>
    tpu.vector_store %arg28[%c0_271, %c0_272], %821 {strides = array<i32>} : memref<8x3712xf32, #tpu.memory_space<vmem>>, vector<8x3712xf32>,
    return
  }
}

</mosaic_0001>

<llo_original>
// kernel: g_forward.1
$region0: #{g_forward.1}
  #allocation0 [shape = 'u32[]', space=smem, size = 0x4, offset = 0x4, fixed_abs, tag = 'smem constant byte address 0x4 - core index']
  #allocation1 [shape = 'u32[144,128]{1,0:T(1,128)}', space=vmem, size = 0x12000, scoped, tag = 'internal scratch']
  #allocation2 [shape = 'bf16[128,128]{1,0:T(16,128)(2,1)}', space=vmem, size = 0x8000, scoped, tag = 'scratch operand']
  #allocation3 [shape = 'bf16[128,128]{1,0:T(16,128)(2,1)}', space=vmem, size = 0x8000, scoped, tag = 'scratch operand']
  #allocation4 [shape = 'bf16[128,512]{1,0:T(16,128)(2,1)}', space=vmem, size = 0x20000, scoped, tag = 'scratch operand']
  #allocation5 [shape = 'bf16[256,256]{1,0:T(16,128)(2,1)}', space=vmem, size = 0x20000, scoped, tag = 'scratch operand']
  #allocation6 [shape = 'bf16[256,256]{1,0:T(16,128)(2,1)}', space=vmem, size = 0x20000, scoped, tag = 'scratch operand']
  #allocation7 [shape = 'bf16[256,256]{1,0:T(16,128)(2,1)}', space=vmem, size = 0x20000, scoped, tag = 'scratch operand']
  #allocation8 [shape = 'bf16[256,1024]{1,0:T(16,128)(2,1)}', space=vmem, size = 0x80000, scoped, tag = 'scratch operand']
  #allocation9 [shape = 'bf16[512,512]{1,0:T(16,128)(2,1)}', space=vmem, size = 0x80000, scoped, tag = 'scratch operand']
  #allocation10 [shape = 'bf16[512,512]{1,0:T(16,128)(2,1)}', space=vmem, size = 0x80000, scoped, tag = 'scratch operand']
  #allocation11 [shape = 'bf16[512,512]{1,0:T(16,128)(2,1)}', space=vmem, size = 0x80000, scoped, tag = 'scratch operand']
  #allocation12 [shape = 'bf16[512,512]{1,0:T(16,128)(2,1)}', space=vmem, size = 0x80000, scoped, tag = 'scratch operand']
  #allocation13 [shape = 'bf16[256,256]{1,0:T(16,128)(2,1)}', space=vmem, size = 0x20000, scoped, tag = 'scratch operand']
  #allocation14 [shape = 'bf16[256,256]{1,0:T(16,128)(2,1)}', space=vmem, size = 0x20000, scoped, tag = 'scratch operand']
  #allocation15 [shape = 'bf16[128,128]{1,0:T(16,128)(2,1)}', space=vmem, size = 0x8000, scoped, tag = 'scratch operand']
  #allocation16 [shape = 'bf16[128,128]{1,0:T(16,128)(2,1)}', space=vmem, size = 0x8000, scoped, tag = 'scratch operand']
  #allocation17 [shape = 'bf16[64,64]{1,0:T(16,128)(2,1)}', space=vmem, size = 0x4000, scoped, tag = 'scratch operand']
  #allocation18 [shape = 'bf16[512,512]{1,0:T(16,128)(2,1)}', space=vmem, size = 0x80000, scoped, tag = 'scratch operand']
  #allocation19 [shape = 'bf16[256,256]{1,0:T(16,128)(2,1)}', space=vmem, size = 0x20000, scoped, tag = 'scratch operand']
  #allocation20 [shape = 'bf16[256,256]{1,0:T(16,128)(2,1)}', space=vmem, size = 0x20000, scoped, tag = 'scratch operand']
  #allocation21 [shape = 'bf16[128,128]{1,0:T(16,128)(2,1)}', space=vmem, size = 0x8000, scoped, tag = 'scratch operand']
  #allocation22 [shape = 'bf16[128,128]{1,0:T(16,128)(2,1)}', space=vmem, size = 0x8000, scoped, tag = 'scratch operand']
  #allocation23 [shape = 'bf16[64,64]{1,0:T(16,128)(2,1)}', space=vmem, size = 0x4000, scoped, tag = 'scratch operand']
  #allocation24 [shape = 'bf16[64,3712]{1,0:T(16,128)(2,1)}', space=vmem, size = 0x74000, scoped, tag = 'scratch operand']
  #allocation25 [shape = 'bf16[64,3712]{1,0:T(16,128)(2,1)}', space=vmem, size = 0x74000, scoped, tag = 'scratch operand']
  #allocation26 [shape = 's32[24]{0}', space=sflag, size = 0x60, scoped, tag = 'scratch operand']
  #allocation36 [shape = 's32[]', space=sflag, size = 0x4, offset = 0, fixed_abs, tag = 'sflag constant byte address 0x0 - dummy sync flag']
  #allocation37 [shape = 's32[]', space=sflag, size = 0x4, offset = 0, fixed_abs, tag = 'sflag constant byte address 0x0 - dummy sync flag']
  #allocation38 [shape = 'u32[]', space=smem, size = 0x4, offset = 0x44, fixed_abs, tag = 'smem constant byte address 0x44 - assertion arg 0']
  #allocation39 [shape = 'u32[]', space=smem, size = 0x4, offset = 0x48, fixed_abs, tag = 'smem constant byte address 0x48 - assertion arg 1']
  #allocation40 [shape = 's32[]', space=sflag, size = 0x4, offset = 0, fixed_abs, tag = 'sflag constant byte address 0x0 - dummy sync flag']
  #allocation41 [shape = 's32[]', space=sflag, size = 0x4, offset = 0, fixed_abs, tag = 'sflag constant byte address 0x0 - dummy sync flag']
  #allocation42 [shape = 's32[]', space=sflag, size = 0x4, offset = 0, fixed_abs, tag = 'sflag constant byte address 0x0 - dummy sync flag']
  #allocation44 [shape = 's32[]', space=sflag, size = 0x4, offset = 0, fixed_abs, tag = 'sflag constant byte address 0x0 - dummy sync flag']
  #allocation46 [shape = 's32[]', space=sflag, size = 0x4, offset = 0, fixed_abs, tag = 'sflag constant byte address 0x0 - dummy sync flag']
  #allocation48 [shape = 's32[]', space=sflag, size = 0x4, offset = 0, fixed_abs, tag = 'sflag constant byte address 0x0 - dummy sync flag']
  #allocation50 [shape = 's32[]', space=sflag, size = 0x4, offset = 0, fixed_abs, tag = 'sflag constant byte address 0x0 - dummy sync flag']
  #allocation52 [shape = 's32[]', space=sflag, size = 0x4, offset = 0, fixed_abs, tag = 'sflag constant byte address 0x0 - dummy sync flag']
  #allocation54 [shape = 's32[]', space=sflag, size = 0x4, offset = 0, fixed_abs, tag = 'sflag constant byte address 0x0 - dummy sync flag']
  #allocation56 [shape = 's32[]', space=sflag, size = 0x4, offset = 0, fixed_abs, tag = 'sflag constant byte address 0x0 - dummy sync flag']
  #allocation58 [shape = 's32[]', space=sflag, size = 0x4, offset = 0, fixed_abs, tag = 'sflag constant byte address 0x0 - dummy sync flag']
  #allocation60 [shape = 's32[]', space=sflag, size = 0x4, offset = 0, fixed_abs, tag = 'sflag constant byte address 0x0 - dummy sync flag']
  #allocation62 [shape = 's32[]', space=sflag, size = 0x4, offset = 0, fixed_abs, tag = 'sflag constant byte address 0x0 - dummy sync flag']
  #allocation64 [shape = 's32[]', space=sflag, size = 0x4, offset = 0, fixed_abs, tag = 'sflag constant byte address 0x0 - dummy sync flag']
  #allocation65 [shape = 's32[]', space=sflag, size = 0x4, offset = 0, fixed_abs, tag = 'sflag constant byte address 0x0 - dummy sync flag']
  #allocation66 [shape = 's32[]', space=sflag, size = 0x4, offset = 0, fixed_abs, tag = 'sflag constant byte address 0x0 - dummy sync flag']
  #allocation67 [shape = 's32[]', space=sflag, size = 0x4, offset = 0, fixed_abs, tag = 'sflag constant byte address 0x0 - dummy sync flag']
  #allocation68 [shape = 's32[]', space=sflag, size = 0x4, offset = 0, fixed_abs, tag = 'sflag constant byte address 0x0 - dummy sync flag']
  #allocation69 [shape = 's32[]', space=sflag, size = 0x4, offset = 0, fixed_abs, tag = 'sflag constant byte address 0x0 - dummy sync flag']
  #allocation71 [shape = 's32[]', space=sflag, size = 0x4, offset = 0, fixed_abs, tag = 'sflag constant byte address 0x0 - dummy sync flag']
  #allocation73 [shape = 's32[]', space=sflag, size = 0x4, offset = 0, fixed_abs, tag = 'sflag constant byte address 0x0 - dummy sync flag']
  #allocation75 [shape = 's32[]', space=sflag, size = 0x4, offset = 0, fixed_abs, tag = 'sflag constant byte address 0x0 - dummy sync flag']
  #allocation76 [shape = 's32[]', space=sflag, size = 0x4, offset = 0, fixed_abs, tag = 'sflag constant byte address 0x0 - dummy sync flag']
  #allocation77 [shape = 's32[]', space=sflag, size = 0x4, offset = 0, fixed_abs, tag = 'sflag constant byte address 0x0 - dummy sync flag']
  #allocation78 [shape = 's32[]', space=sflag, size = 0x4, offset = 0, fixed_abs, tag = 'sflag constant byte address 0x0 - dummy sync flag']
  #allocation79 [shape = 's32[]', space=sflag, size = 0x4, offset = 0, fixed_abs, tag = 'sflag constant byte address 0x0 - dummy sync flag']
  #allocation80 [shape = 's32[]', space=sflag, size = 0x4, offset = 0, fixed_abs, tag = 'sflag constant byte address 0x0 - dummy sync flag']
  #allocation81 [shape = 's32[]', space=sflag, size = 0x4, offset = 0, fixed_abs, tag = 'sflag constant byte address 0x0 - dummy sync flag']
  #allocation83 [shape = 's32[]', space=sflag, size = 0x4, offset = 0, fixed_abs, tag = 'sflag constant byte address 0x0 - dummy sync flag']
  %s0 = inlined_call_operand.hbm [shape: f32[8,128], index: 0, kind: input, shape index: {}]
  %s1 = inlined_call_operand.hbm [shape: f32[44,512], index: 1, kind: input, shape index: {}]
  %s2 = inlined_call_operand.hbm [shape: f32[2,3712], index: 2, kind: input, shape index: {}]
  %s3 = inlined_call_operand.hbm [shape: bf16[128,128], index: 3, kind: input, shape index: {}]
  %s4 = inlined_call_operand.hbm [shape: bf16[128,128], index: 4, kind: input, shape index: {}]
  %s5 = inlined_call_operand.hbm [shape: bf16[128,512], index: 5, kind: input, shape index: {}]
  %s6 = inlined_call_operand.hbm [shape: bf16[256,256], index: 6, kind: input, shape index: {}]
  %s7 = inlined_call_operand.hbm [shape: bf16[256,256], index: 7, kind: input, shape index: {}]
  %s8 = inlined_call_operand.hbm [shape: bf16[256,256], index: 8, kind: input, shape index: {}]
  %s9 = inlined_call_operand.hbm [shape: bf16[256,1024], index: 9, kind: input, shape index: {}]
  %s10 = inlined_call_operand.hbm [shape: bf16[512,512], index: 10, kind: input, shape index: {}]
  %s11 = inlined_call_operand.hbm [shape: bf16[512,512], index: 11, kind: input, shape index: {}]
  %s12 = inlined_call_operand.hbm [shape: bf16[512,512], index: 12, kind: input, shape index: {}]
  %s13 = inlined_call_operand.hbm [shape: bf16[512,512], index: 13, kind: input, shape index: {}]
  %s14 = inlined_call_operand.hbm [shape: bf16[256,256], index: 14, kind: input, shape index: {}]
  %s15 = inlined_call_operand.hbm [shape: bf16[256,256], index: 15, kind: input, shape index: {}]
  %s16 = inlined_call_operand.hbm [shape: bf16[128,128], index: 16, kind: input, shape index: {}]
  %s17 = inlined_call_operand.vmem [shape: bf16[128,128], index: 17, kind: input, shape index: {}]
  %s18 = inlined_call_operand.hbm [shape: bf16[64,64], index: 18, kind: input, shape index: {}]
  %s19 = inlined_call_operand.hbm [shape: bf16[512,512], index: 19, kind: input, shape index: {}]
  %s20 = inlined_call_operand.hbm [shape: bf16[256,256], index: 20, kind: input, shape index: {}]
  %s21 = inlined_call_operand.hbm [shape: bf16[256,256], index: 21, kind: input, shape index: {}]
  %s22 = inlined_call_operand.hbm [shape: bf16[128,128], index: 22, kind: input, shape index: {}]
  %s23 = inlined_call_operand.hbm [shape: bf16[128,128], index: 23, kind: input, shape index: {}]
  %s24 = inlined_call_operand.hbm [shape: bf16[64,64], index: 24, kind: input, shape index: {}]
  %s25 = inlined_call_operand.hbm [shape: bf16[64,3712], index: 25, kind: input, shape index: {}]
  %s26 = inlined_call_operand.hbm [shape: bf16[64,3712], index: 26, kind: input, shape index: {}]
  %s27 = inlined_call_operand.hbm [shape: f32[8,3712], index: 27, kind: output, shape index: {0}]
  %s28 = inlined_call_operand.hbm [shape: f32[8,3712], index: 28, kind: output, shape index: {1}]
  %29 = xla_tuple %s27, %s28
  %s30 = sld [smem:[#allocation0]]
  $region104: #{g_forward.1} parent=0
    _
  %s32 = ssub.s32 1, %s30
  %s33 = scalar_select 0, %s32, %s30
  $region1: #{g_forward.1} parent=0
    #allocation27 [shape = 'u8[4096]{0}', space=vmem, size = 0x1000, scoped, tag = 'input window, operand 0, single buffered']
    #allocation28 [shape = 's32[1]{0}', space=sflag, size = 0x4, scoped, tag = 'scoped memory for g_forward.1']
    #allocation29 [shape = 's32[1]{0}', space=sflag, size = 0x4, scoped, tag = 'scoped memory for g_forward.1']
    #allocation30 [shape = 'u8[98304]{0}', space=vmem, size = 0x18000, scoped, tag = 'input window, operand 1, single buffered']
    #allocation31 [shape = 's32[1]{0}', space=sflag, size = 0x4, scoped, tag = 'scoped memory for g_forward.1']
    #allocation32 [shape = 'u8[29696]{0}', space=vmem, size = 0x7400, scoped, tag = 'input window, operand 2, single buffered']
    #allocation33 [shape = 'u8[118784]{0}', space=vmem, size = 0x1d000, scoped, tag = 'output window, operand 0, single buffered']
    #allocation34 [shape = 'u8[118784]{0}', space=vmem, size = 0x1d000, scoped, tag = 'output window, operand 1, single buffered']
    #allocation35 [shape = 's32[1]{0}', space=sflag, size = 0x4, scoped, tag = 'scoped memory for g_forward.1']
    #allocation43 [shape = 'u32[9]{0}', space=smem, size = 0x24, scoped, tag = 'DMA stride descriptor']
    #allocation45 [shape = 'u32[9]{0}', space=smem, size = 0x24, scoped, tag = 'DMA stride descriptor']
    #allocation47 [shape = 'u32[9]{0}', space=smem, size = 0x24, scoped, tag = 'DMA stride descriptor']
    #allocation49 [shape = 'u32[9]{0}', space=smem, size = 0x24, scoped, tag = 'DMA stride descriptor']
    #allocation51 [shape = 'u32[9]{0}', space=smem, size = 0x24, scoped, tag = 'DMA stride descriptor']
    #allocation53 [shape = 'u32[9]{0}', space=smem, size = 0x24, scoped, tag = 'DMA stride descriptor']
    #allocation55 [shape = 'u32[9]{0}', space=smem, size = 0x24, scoped, tag = 'DMA stride descriptor']
    #allocation57 [shape = 'u32[9]{0}', space=smem, size = 0x24, scoped, tag = 'DMA stride descriptor']
    #allocation59 [shape = 'u32[9]{0}', space=smem, size = 0x24, scoped, tag = 'DMA stride descriptor']
    #allocation61 [shape = 'u32[9]{0}', space=smem, size = 0x24, scoped, tag = 'DMA stride descriptor']
    #allocation63 [shape = 'u32[9]{0}', space=smem, size = 0x24, scoped, tag = 'DMA stride descriptor']
    #allocation70 [shape = 'u32[9]{0}', space=smem, size = 0x24, scoped, tag = 'DMA stride descriptor']
    #allocation72 [shape = 'u32[9]{0}', space=smem, size = 0x24, scoped, tag = 'DMA stride descriptor']
    #allocation74 [shape = 'u32[9]{0}', space=smem, size = 0x24, scoped, tag = 'DMA stride descriptor']
    #allocation82 [shape = 'u32[9]{0}', space=smem, size = 0x24, scoped, tag = 'DMA stride descriptor']
    #allocation84 [shape = 'u32[9]{0}', space=smem, size = 0x24, scoped, tag = 'DMA stride descriptor']
    %34 = vsyncpa [#allocation28], 0
    %35 = vsyncpa [#allocation31], 0
    %36 = vsyncpa [#allocation29], 0
    %37 = vsyncpa [#allocation35], 0
    // Predicated region
    $region2: #{g_forward.1} parent=1 // pred_check
      _
    $region3: #{g_forward.1} parent=1 // pred_check_branch
      %39 = sbr.rel (0) target = $region5
    $region4: #{g_forward.1} parent=1 // pred_region
      %s41 = ssub.s32 128, 128
      %42 = vsyncadd [#allocation28], %s41
      %s44 = sshll.u32 [#allocation27], 4
      %s45 = int_to_ptr.vmem [resolvable:$true] %s44
      %47 = dma.hbm_to_vmem [thread:$0]  %s0, 128, %s45, [#allocation28]
    $region5: #{g_forward.1} parent=1 // pred_fallthru
      _
    // Predicated region
    $region6: #{g_forward.1} parent=1 // pred_check
      _
    $region7: #{g_forward.1} parent=1 // pred_check_branch
      %49 = sbr.rel (0) target = $region9
    $region8: #{g_forward.1} parent=1 // pred_region
      %s51 = ssub.s32 3072, 3072
      %52 = vsyncadd [#allocation31], %s51
      %s53 = sshll.u32 [#allocation30], 4
      %s54 = int_to_ptr.vmem [resolvable:$true] %s53
      %59 = dma.hbm_to_vmem [thread:$0]  %s1, 3072, %s54, [#allocation31], 512, 512, 32
    $region9: #{g_forward.1} parent=1 // pred_fallthru
      _
    // Predicated region
    $region10: #{g_forward.1} parent=1 // pred_check
      _
    $region11: #{g_forward.1} parent=1 // pred_check_branch
      %61 = sbr.rel (0) target = $region13
    $region12: #{g_forward.1} parent=1 // pred_region
      %s63 = ssub.s32 928, 928
      %64 = vsyncadd [#allocation31], %s63
      %s66 = sshll.u32 [#allocation32], 4
      %s67 = int_to_ptr.vmem [resolvable:$true] %s66
      %69 = dma.hbm_to_vmem [thread:$0]  %s2, 928, %s67, [#allocation31]
    $region13: #{g_forward.1} parent=1 // pred_fallthru
      _
    // Predicated region
    $region14: #{g_forward.1} parent=1 // pred_check
      _
    $region15: #{g_forward.1} parent=1 // pred_check_branch
      %71 = sbr.rel (0) target = $region17
    $region16: #{g_forward.1} parent=1 // pred_region
      %72 = dma.done [#allocation28], 128
    $region17: #{g_forward.1} parent=1 // pred_fallthru
      _
    // Predicated region
    $region18: #{g_forward.1} parent=1 // pred_check
      _
    $region19: #{g_forward.1} parent=1 // pred_check_branch
      %74 = sbr.rel (0) target = $region21
    $region20: #{g_forward.1} parent=1 // pred_region
      %75 = dma.done [#allocation31], 3072
    $region21: #{g_forward.1} parent=1 // pred_fallthru
      _
    // Predicated region
    $region22: #{g_forward.1} parent=1 // pred_check
      _
    $region23: #{g_forward.1} parent=1 // pred_check_branch
      %77 = sbr.rel (0) target = $region25
    $region24: #{g_forward.1} parent=1 // pred_region
      %78 = dma.done [#allocation31], 928
    $region25: #{g_forward.1} parent=1 // pred_fallthru
      _
    // Predicated region
    $region26: #{g_forward.1} parent=1 // pred_check
      _
    $region27: #{g_forward.1} parent=1 // pred_check_branch
      %81 = sbr.rel target = $region29
    $region28: #{g_forward.1} parent=1 // pred_region
      %82 = sst [smem:[#allocation38]] [#allocation37]
      %83 = sst [smem:[#allocation39]] [#allocation36]
    $region29: #{g_forward.1} parent=1 // pred_fallthru
      _
    %85 = shalt.err (0)
    %s87 = sshll.u32 [#allocation2], 4
    %s88 = int_to_ptr.vmem [resolvable:$true] %s87
    %90 = dma.hbm_to_vmem [thread:$0]  %s3, 1024, %s88, [#allocation26]
    %s91 = scalar_lea.sflag [#allocation26], 1
    // Predicated region
    $region30: #{g_forward.1} parent=1 // pred_check
      _
    $region31: #{g_forward.1} parent=1 // pred_check_branch
      %93 = sbr.rel target = $region33
    $region32: #{g_forward.1} parent=1 // pred_region
      %94 = sst [smem:[#allocation38]] [#allocation41]
      %95 = sst [smem:[#allocation39]] [#allocation40]
    $region33: #{g_forward.1} parent=1 // pred_fallthru
      _
    %97 = shalt.err (0)
    %s99 = sshll.u32 [#allocation3], 4
    %s100 = int_to_ptr.vmem [resolvable:$true] %s99
    %102 = dma.hbm_to_vmem [thread:$0]  %s4, 1024, %s100, %s91
    %s103 = scalar_lea.sflag [#allocation26], 2
    %s105 = sshll.u32 1, 14
    %s106 = sxor.u32 4294967295, %s105
    %s108 = sld [smem:[#allocation0]]
    %s109 = sadd.s32 2, %s108
    %s111 = sshll.u32 7, 26
    %s112 = sxor.u32 4294967295, %s111
    %s113 = sand.u32 0, %s112
    %s114 = sshll.u32 %s109, 26
    %s115 = sor.u32 %s113, %s114
    %s116 = sshll.u32 [#allocation4], 4
    %s117 = int_to_ptr.vmem [resolvable:$true] %s116
    %120 = sst [smem:[#allocation43]] 512
    %s121 = scalar_lea.smem [#allocation43], 1
    %122 = sst [smem:[%s121]] 512
    %s123 = scalar_lea.smem [#allocation43], 2
    %124 = sst [smem:[%s123]] 4
    %s125 = scalar_lea.smem [#allocation43], 3
    %126 = sst [smem:[%s125]] 64
    %s127 = scalar_lea.smem [#allocation43], 4
    %128 = sst [smem:[%s127]] 128
    %s129 = scalar_lea.smem [#allocation43], 5
    %130 = sst [smem:[%s129]] 2
    %s131 = scalar_lea.smem [#allocation43], 6
    %132 = sst [smem:[%s131]] 256
    %s133 = scalar_lea.smem [#allocation43], 7
    %134 = sst [smem:[%s133]] 64
    %s135 = scalar_lea.smem [#allocation43], 8
    %136 = sst [smem:[%s135]] 4
    %138 = dma.general %s5, 4096, %s117, %s103, [#allocation42], [#allocation43], %s115, 0
    %s139 = scalar_lea.sflag [#allocation26], 3
    %s141 = sshll.u32 1, 14
    %s142 = sxor.u32 4294967295, %s141
    %s144 = sadd.s32 2, %s108
    %s146 = sshll.u32 7, 26
    %s147 = sxor.u32 4294967295, %s146
    %s148 = sand.u32 0, %s147
    %s149 = sshll.u32 %s144, 26
    %s150 = sor.u32 %s148, %s149
    %s151 = sshll.u32 [#allocation5], 4
    %s152 = int_to_ptr.vmem [resolvable:$true] %s151
    %155 = sst [smem:[#allocation45]] 256
    %s156 = scalar_lea.smem [#allocation45], 1
    %157 = sst [smem:[%s156]] 256
    %s158 = scalar_lea.smem [#allocation45], 2
    %159 = sst [smem:[%s158]] 2
    %s160 = scalar_lea.smem [#allocation45], 3
    %161 = sst [smem:[%s160]] 64
    %s162 = scalar_lea.smem [#allocation45], 4
    %163 = sst [smem:[%s162]] 128
    %s164 = scalar_lea.smem [#allocation45], 5
    %165 = sst [smem:[%s164]] 2
    %s166 = scalar_lea.smem [#allocation45], 6
    %167 = sst [smem:[%s166]] 128
    %s168 = scalar_lea.smem [#allocation45], 7
    %169 = sst [smem:[%s168]] 64
    %s170 = scalar_lea.smem [#allocation45], 8
    %171 = sst [smem:[%s170]] 4
    %173 = dma.general %s6, 4096, %s152, %s139, [#allocation44], [#allocation45], %s150, 0
    %s174 = scalar_lea.sflag [#allocation26], 4
    %s176 = sshll.u32 1, 14
    %s177 = sxor.u32 4294967295, %s176
    %s179 = sadd.s32 2, %s108
    %s181 = sshll.u32 7, 26
    %s182 = sxor.u32 4294967295, %s181
    %s183 = sand.u32 0, %s182
    %s184 = sshll.u32 %s179, 26
    %s185 = sor.u32 %s183, %s184
    %s186 = sshll.u32 [#allocation6], 4
    %s187 = int_to_ptr.vmem [resolvable:$true] %s186
    %190 = sst [smem:[#allocation47]] 256
    %s191 = scalar_lea.smem [#allocation47], 1
    %192 = sst [smem:[%s191]] 256
    %s193 = scalar_lea.smem [#allocation47], 2
    %194 = sst [smem:[%s193]] 2
    %s195 = scalar_lea.smem [#allocation47], 3
    %196 = sst [smem:[%s195]] 64
    %s197 = scalar_lea.smem [#allocation47], 4
    %198 = sst [smem:[%s197]] 128
    %s199 = scalar_lea.smem [#allocation47], 5
    %200 = sst [smem:[%s199]] 2
    %s201 = scalar_lea.smem [#allocation47], 6
    %202 = sst [smem:[%s201]] 128
    %s203 = scalar_lea.smem [#allocation47], 7
    %204 = sst [smem:[%s203]] 64
    %s205 = scalar_lea.smem [#allocation47], 8
    %206 = sst [smem:[%s205]] 4
    %208 = dma.general %s7, 4096, %s187, %s174, [#allocation46], [#allocation47], %s185, 0
    %s209 = scalar_lea.sflag [#allocation26], 5
    %s211 = sshll.u32 1, 14
    %s212 = sxor.u32 4294967295, %s211
    %s214 = sadd.s32 2, %s108
    %s216 = sshll.u32 7, 26
    %s217 = sxor.u32 4294967295, %s216
    %s218 = sand.u32 0, %s217
    %s219 = sshll.u32 %s214, 26
    %s220 = sor.u32 %s218, %s219
    %s221 = sshll.u32 [#allocation7], 4
    %s222 = int_to_ptr.vmem [resolvable:$true] %s221
    %225 = sst [smem:[#allocation49]] 256
    %s226 = scalar_lea.smem [#allocation49], 1
    %227 = sst [smem:[%s226]] 256
    %s228 = scalar_lea.smem [#allocation49], 2
    %229 = sst [smem:[%s228]] 2
    %s230 = scalar_lea.smem [#allocation49], 3
    %231 = sst [smem:[%s230]] 64
    %s232 = scalar_lea.smem [#allocation49], 4
    %233 = sst [smem:[%s232]] 128
    %s234 = scalar_lea.smem [#allocation49], 5
    %235 = sst [smem:[%s234]] 2
    %s236 = scalar_lea.smem [#allocation49], 6
    %237 = sst [smem:[%s236]] 128
    %s238 = scalar_lea.smem [#allocation49], 7
    %239 = sst [smem:[%s238]] 64
    %s240 = scalar_lea.smem [#allocation49], 8
    %241 = sst [smem:[%s240]] 4
    %243 = dma.general %s8, 4096, %s222, %s209, [#allocation48], [#allocation49], %s220, 0
    %s244 = scalar_lea.sflag [#allocation26], 6
    %s246 = sshll.u32 1, 14
    %s247 = sxor.u32 4294967295, %s246
    %s249 = sadd.s32 2, %s108
    %s251 = sshll.u32 7, 26
    %s252 = sxor.u32 4294967295, %s251
    %s253 = sand.u32 0, %s252
    %s254 = sshll.u32 %s249, 26
    %s255 = sor.u32 %s253, %s254
    %s256 = sshll.u32 [#allocation8], 4
    %s257 = int_to_ptr.vmem [resolvable:$true] %s256
    %260 = sst [smem:[#allocation51]] 1024
    %s261 = scalar_lea.smem [#allocation51], 1
    %262 = sst [smem:[%s261]] 1024
    %s263 = scalar_lea.smem [#allocation51], 2
    %264 = sst [smem:[%s263]] 8
    %s265 = scalar_lea.smem [#allocation51], 3
    %266 = sst [smem:[%s265]] 64
    %s267 = scalar_lea.smem [#allocation51], 4
    %268 = sst [smem:[%s267]] 128
    %s269 = scalar_lea.smem [#allocation51], 5
    %270 = sst [smem:[%s269]] 2
    %s271 = scalar_lea.smem [#allocation51], 6
    %272 = sst [smem:[%s271]] 512
    %s273 = scalar_lea.smem [#allocation51], 7
    %274 = sst [smem:[%s273]] 64
    %s275 = scalar_lea.smem [#allocation51], 8
    %276 = sst [smem:[%s275]] 4
    %278 = dma.general %s9, 16384, %s257, %s244, [#allocation50], [#allocation51], %s255, 0
    %s279 = scalar_lea.sflag [#allocation26], 7
    %s281 = sshll.u32 1, 14
    %s282 = sxor.u32 4294967295, %s281
    %s284 = sadd.s32 2, %s108
    %s286 = sshll.u32 7, 26
    %s287 = sxor.u32 4294967295, %s286
    %s288 = sand.u32 0, %s287
    %s289 = sshll.u32 %s284, 26
    %s290 = sor.u32 %s288, %s289
    %s291 = sshll.u32 [#allocation9], 4
    %s292 = int_to_ptr.vmem [resolvable:$true] %s291
    %295 = sst [smem:[#allocation53]] 512
    %s296 = scalar_lea.smem [#allocation53], 1
    %297 = sst [smem:[%s296]] 512
    %s298 = scalar_lea.smem [#allocation53], 2
    %299 = sst [smem:[%s298]] 4
    %s300 = scalar_lea.smem [#allocation53], 3
    %301 = sst [smem:[%s300]] 64
    %s302 = scalar_lea.smem [#allocation53], 4
    %303 = sst [smem:[%s302]] 128
    %s304 = scalar_lea.smem [#allocation53], 5
    %305 = sst [smem:[%s304]] 2
    %s306 = scalar_lea.smem [#allocation53], 6
    %307 = sst [smem:[%s306]] 256
    %s308 = scalar_lea.smem [#allocation53], 7
    %309 = sst [smem:[%s308]] 64
    %s310 = scalar_lea.smem [#allocation53], 8
    %311 = sst [smem:[%s310]] 4
    %313 = dma.general %s10, 16384, %s292, %s279, [#allocation52], [#allocation53], %s290, 0
    %s314 = scalar_lea.sflag [#allocation26], 8
    %s316 = sshll.u32 1, 14
    %s317 = sxor.u32 4294967295, %s316
    %s319 = sadd.s32 2, %s108
    %s321 = sshll.u32 7, 26
    %s322 = sxor.u32 4294967295, %s321
    %s323 = sand.u32 0, %s322
    %s324 = sshll.u32 %s319, 26
    %s325 = sor.u32 %s323, %s324
    %s326 = sshll.u32 [#allocation10], 4
    %s327 = int_to_ptr.vmem [resolvable:$true] %s326
    %330 = sst [smem:[#allocation55]] 512
    %s331 = scalar_lea.smem [#allocation55], 1
    %332 = sst [smem:[%s331]] 512
    %s333 = scalar_lea.smem [#allocation55], 2
    %334 = sst [smem:[%s333]] 4
    %s335 = scalar_lea.smem [#allocation55], 3
    %336 = sst [smem:[%s335]] 64
    %s337 = scalar_lea.smem [#allocation55], 4
    %338 = sst [smem:[%s337]] 128
    %s339 = scalar_lea.smem [#allocation55], 5
    %340 = sst [smem:[%s339]] 2
    %s341 = scalar_lea.smem [#allocation55], 6
    %342 = sst [smem:[%s341]] 256
    %s343 = scalar_lea.smem [#allocation55], 7
    %344 = sst [smem:[%s343]] 64
    %s345 = scalar_lea.smem [#allocation55], 8
    %346 = sst [smem:[%s345]] 4
    %348 = dma.general %s11, 16384, %s327, %s314, [#allocation54], [#allocation55], %s325, 0
    %s349 = scalar_lea.sflag [#allocation26], 9
    %s351 = sshll.u32 1, 14
    %s352 = sxor.u32 4294967295, %s351
    %s354 = sadd.s32 2, %s108
    %s356 = sshll.u32 7, 26
    %s357 = sxor.u32 4294967295, %s356
    %s358 = sand.u32 0, %s357
    %s359 = sshll.u32 %s354, 26
    %s360 = sor.u32 %s358, %s359
    %s361 = sshll.u32 [#allocation11], 4
    %s362 = int_to_ptr.vmem [resolvable:$true] %s361
    %365 = sst [smem:[#allocation57]] 512
    %s366 = scalar_lea.smem [#allocation57], 1
    %367 = sst [smem:[%s366]] 512
    %s368 = scalar_lea.smem [#allocation57], 2
    %369 = sst [smem:[%s368]] 4
    %s370 = scalar_lea.smem [#allocation57], 3
    %371 = sst [smem:[%s370]] 64
    %s372 = scalar_lea.smem [#allocation57], 4
    %373 = sst [smem:[%s372]] 128
    %s374 = scalar_lea.smem [#allocation57], 5
    %375 = sst [smem:[%s374]] 2
    %s376 = scalar_lea.smem [#allocation57], 6
    %377 = sst [smem:[%s376]] 256
    %s378 = scalar_lea.smem [#allocation57], 7
    %379 = sst [smem:[%s378]] 64
    %s380 = scalar_lea.smem [#allocation57], 8
    %381 = sst [smem:[%s380]] 4
    %383 = dma.general %s12, 16384, %s362, %s349, [#allocation56], [#allocation57], %s360, 0
    %s384 = scalar_lea.sflag [#allocation26], 10
    %s386 = sshll.u32 1, 14
    %s387 = sxor.u32 4294967295, %s386
    %s389 = sadd.s32 2, %s108
    %s391 = sshll.u32 7, 26
    %s392 = sxor.u32 4294967295, %s391
    %s393 = sand.u32 0, %s392
    %s394 = sshll.u32 %s389, 26
    %s395 = sor.u32 %s393, %s394
    %s396 = sshll.u32 [#allocation12], 4
    %s397 = int_to_ptr.vmem [resolvable:$true] %s396
    %400 = sst [smem:[#allocation59]] 512
    %s401 = scalar_lea.smem [#allocation59], 1
    %402 = sst [smem:[%s401]] 512
    %s403 = scalar_lea.smem [#allocation59], 2
    %404 = sst [smem:[%s403]] 4
    %s405 = scalar_lea.smem [#allocation59], 3
    %406 = sst [smem:[%s405]] 64
    %s407 = scalar_lea.smem [#allocation59], 4
    %408 = sst [smem:[%s407]] 128
    %s409 = scalar_lea.smem [#allocation59], 5
    %410 = sst [smem:[%s409]] 2
    %s411 = scalar_lea.smem [#allocation59], 6
    %412 = sst [smem:[%s411]] 256
    %s413 = scalar_lea.smem [#allocation59], 7
    %414 = sst [smem:[%s413]] 64
    %s415 = scalar_lea.smem [#allocation59], 8
    %416 = sst [smem:[%s415]] 4
    %418 = dma.general %s13, 16384, %s397, %s384, [#allocation58], [#allocation59], %s395, 0
    %s419 = scalar_lea.sflag [#allocation26], 11
    %s421 = sshll.u32 1, 14
    %s422 = sxor.u32 4294967295, %s421
    %s424 = sadd.s32 2, %s108
    %s426 = sshll.u32 7, 26
    %s427 = sxor.u32 4294967295, %s426
    %s428 = sand.u32 0, %s427
    %s429 = sshll.u32 %s424, 26
    %s430 = sor.u32 %s428, %s429
    %s431 = sshll.u32 [#allocation13], 4
    %s432 = int_to_ptr.vmem [resolvable:$true] %s431
    %435 = sst [smem:[#allocation61]] 256
    %s436 = scalar_lea.smem [#allocation61], 1
    %437 = sst [smem:[%s436]] 256
    %s438 = scalar_lea.smem [#allocation61], 2
    %439 = sst [smem:[%s438]] 2
    %s440 = scalar_lea.smem [#allocation61], 3
    %441 = sst [smem:[%s440]] 64
    %s442 = scalar_lea.smem [#allocation61], 4
    %443 = sst [smem:[%s442]] 128
    %s444 = scalar_lea.smem [#allocation61], 5
    %445 = sst [smem:[%s444]] 2
    %s446 = scalar_lea.smem [#allocation61], 6
    %447 = sst [smem:[%s446]] 128
    %s448 = scalar_lea.smem [#allocation61], 7
    %449 = sst [smem:[%s448]] 64
    %s450 = scalar_lea.smem [#allocation61], 8
    %451 = sst [smem:[%s450]] 4
    %453 = dma.general %s14, 4096, %s432, %s419, [#allocation60], [#allocation61], %s430, 0
    %s454 = scalar_lea.sflag [#allocation26], 12
    %s456 = sshll.u32 1, 14
    %s457 = sxor.u32 4294967295, %s456
    %s459 = sadd.s32 2, %s108
    %s461 = sshll.u32 7, 26
    %s462 = sxor.u32 4294967295, %s461
    %s463 = sand.u32 0, %s462
    %s464 = sshll.u32 %s459, 26
    %s465 = sor.u32 %s463, %s464
    %s466 = sshll.u32 [#allocation14], 4
    %s467 = int_to_ptr.vmem [resolvable:$true] %s466
    %470 = sst [smem:[#allocation63]] 256
    %s471 = scalar_lea.smem [#allocation63], 1
    %472 = sst [smem:[%s471]] 256
    %s473 = scalar_lea.smem [#allocation63], 2
    %474 = sst [smem:[%s473]] 2
    %s475 = scalar_lea.smem [#allocation63], 3
    %476 = sst [smem:[%s475]] 64
    %s477 = scalar_lea.smem [#allocation63], 4
    %478 = sst [smem:[%s477]] 128
    %s479 = scalar_lea.smem [#allocation63], 5
    %480 = sst [smem:[%s479]] 2
    %s481 = scalar_lea.smem [#allocation63], 6
    %482 = sst [smem:[%s481]] 128
    %s483 = scalar_lea.smem [#allocation63], 7
    %484 = sst [smem:[%s483]] 64
    %s485 = scalar_lea.smem [#allocation63], 8
    %486 = sst [smem:[%s485]] 4
    %488 = dma.general %s15, 4096, %s467, %s454, [#allocation62], [#allocation63], %s465, 0
    %s489 = scalar_lea.sflag [#allocation26], 13
    // Predicated region
    $region34: #{g_forward.1} parent=1 // pred_check
      _
    $region35: #{g_forward.1} parent=1 // pred_check_branch
      %491 = sbr.rel target = $region37
    $region36: #{g_forward.1} parent=1 // pred_region
      %492 = sst [smem:[#allocation38]] [#allocation65]
      %493 = sst [smem:[#allocation39]] [#allocation64]
    $region37: #{g_forward.1} parent=1 // pred_fallthru
      _
    %495 = shalt.err (0)
    %s497 = sshll.u32 [#allocation15], 4
    %s498 = int_to_ptr.vmem [resolvable:$true] %s497
    %500 = dma.hbm_to_vmem [thread:$0]  %s16, 1024, %s498, %s489
    %s501 = scalar_lea.sflag [#allocation26], 14
    %p503 = scmp.lt.u32.totalorder 64, 8
    %p504 = pneg %p503
    // Predicated region
    $region38: #{g_forward.1} parent=1 // pred_check
      _
    $region39: #{g_forward.1} parent=1 // pred_check_branch
      %506 = sbr.rel (%p503) target = $region41
    $region40: #{g_forward.1} parent=1 // pred_region
      %s521 = sand.u32 64, 7
      %p522 = scmp.eq.s32.totalorder %s521, 0
      // Predicated region
      $region53: #{g_forward.1} parent=40 // pred_check
        %p523 = pneg %p522
      $region54: #{g_forward.1} parent=40 // pred_check_branch
        %525 = sbr.rel (%p523) target = $region56
      $region55: #{g_forward.1} parent=40 // pred_region
        loop: start=0, step=1, limit=1
        $region57: #{g_forward.1} parent=55 // loop_pre_header
          _
        $region58: #{g_forward.1} parent=55 // loop_header
          %s527 = sphi 0, %s531
          %p528 = scmp.ge.s32.totalorder %s527, 1
          %s532 = sphi %s17, %s17
          %s533 = sphi [#allocation16], [#allocation16]
        $region59: #{g_forward.1} parent=55 // loop_header_branch
          %530 = sbr.rel (%p528) target = $region63
        $region60: #{g_forward.1} parent=55 // loop_body
          %v534 = vld [vmem:[%s532] sm:$0xff]
          %535 = vst [vmem:[%s533] sm:$0xff] %v534
          %v536 = vld [vmem:[%s532 + $0x8] sm:$0xff]
          %537 = vst [vmem:[%s533 + $0x8] sm:$0xff] %v536
          %v538 = vld [vmem:[%s532 + $0x10] sm:$0xff]
          %539 = vst [vmem:[%s533 + $0x10] sm:$0xff] %v538
          %v540 = vld [vmem:[%s532 + $0x18] sm:$0xff]
          %541 = vst [vmem:[%s533 + $0x18] sm:$0xff] %v540
          %v542 = vld [vmem:[%s532 + $0x20] sm:$0xff]
          %543 = vst [vmem:[%s533 + $0x20] sm:$0xff] %v542
          %v544 = vld [vmem:[%s532 + $0x28] sm:$0xff]
          %545 = vst [vmem:[%s533 + $0x28] sm:$0xff] %v544
          %v546 = vld [vmem:[%s532 + $0x30] sm:$0xff]
          %547 = vst [vmem:[%s533 + $0x30] sm:$0xff] %v546
          %v548 = vld [vmem:[%s532 + $0x38] sm:$0xff]
          %549 = vst [vmem:[%s533 + $0x38] sm:$0xff] %v548
        $region61: #{g_forward.1} parent=55 // loop_footer
          %s531 = sadd.s32 1, %s527
        $region62: #{g_forward.1} parent=55 // loop_footer_branch
          %526 = sbr.rel target = $region58
        $region63: #{g_forward.1} parent=55 // loop_exit
          _
      $region56: #{g_forward.1} parent=40 // pred_fallthru
        _
      %p550 = pneg %p522
      // Predicated region
      $region64: #{g_forward.1} parent=40 // pred_check
        _
      $region65: #{g_forward.1} parent=40 // pred_check_branch
        %552 = sbr.rel (%p522) target = $region67
      $region66: #{g_forward.1} parent=40 // pred_region
        %s553 = sand.u32 64, 7
      $region67: #{g_forward.1} parent=40 // pred_fallthru
        _
    $region41: #{g_forward.1} parent=1 // pred_fallthru
      _
    // Predicated region
    $region42: #{g_forward.1} parent=1 // pred_check
      %p507 = pneg %p503
    $region43: #{g_forward.1} parent=1 // pred_check_branch
      %509 = sbr.rel (%p507) target = $region45
    $region44: #{g_forward.1} parent=1 // pred_region
      %s510 = sshllo.u32 0, 64
      loop: start=0, step=1, limit=1
      $region46: #{g_forward.1} parent=44 // loop_pre_header
        _
      $region47: #{g_forward.1} parent=44 // loop_header
        %s512 = sphi 0, %s516
        %p513 = scmp.ge.s32.totalorder %s512, 1
        %s517 = sphi %s17, %s17
        %s518 = sphi [#allocation16], [#allocation16]
      $region48: #{g_forward.1} parent=44 // loop_header_branch
        %515 = sbr.rel (%p513) target = $region52
      $region49: #{g_forward.1} parent=44 // loop_body
        %v519 = vld [vmem:[%s517] sm:%s510]
        %520 = vst [vmem:[%s518] sm:%s510] %v519
      $region50: #{g_forward.1} parent=44 // loop_footer
        %s516 = sadd.s32 1, %s512
      $region51: #{g_forward.1} parent=44 // loop_footer_branch
        %511 = sbr.rel target = $region47
      $region52: #{g_forward.1} parent=44 // loop_exit
        _
    $region45: #{g_forward.1} parent=1 // pred_fallthru
      _
    // Predicated region
    $region68: #{g_forward.1} parent=1 // pred_check
      _
    $region69: #{g_forward.1} parent=1 // pred_check_branch
      %556 = sbr.rel (0) target = $region71
    $region70: #{g_forward.1} parent=1 // pred_region
      %557 = vsyncadd %s501, 1024
    $region71: #{g_forward.1} parent=1 // pred_fallthru
      _
    %s558 = scalar_lea.sflag [#allocation26], 15
    // Predicated region
    $region72: #{g_forward.1} parent=1 // pred_check
      _
    $region73: #{g_forward.1} parent=1 // pred_check_branch
      %560 = sbr.rel target = $region75
    $region74: #{g_forward.1} parent=1 // pred_region
      %561 = sst [smem:[#allocation38]] [#allocation68]
      %562 = sst [smem:[#allocation39]] [#allocation67]
    $region75: #{g_forward.1} parent=1 // pred_fallthru
      _
    %564 = shalt.err (0)
    %s566 = sshll.u32 [#allocation17], 4
    %s567 = int_to_ptr.vmem [resolvable:$true] %s566
    %569 = dma.hbm_to_vmem [thread:$0]  %s18, 512, %s567, %s558
    %s570 = scalar_lea.sflag [#allocation26], 16
    %s572 = sshll.u32 1, 14
    %s573 = sxor.u32 4294967295, %s572
    %s575 = sadd.s32 2, %s108
    %s577 = sshll.u32 7, 26
    %s578 = sxor.u32 4294967295, %s577
    %s579 = sand.u32 0, %s578
    %s580 = sshll.u32 %s575, 26
    %s581 = sor.u32 %s579, %s580
    %s582 = sshll.u32 [#allocation18], 4
    %s583 = int_to_ptr.vmem [resolvable:$true] %s582
    %586 = sst [smem:[#allocation70]] 512
    %s587 = scalar_lea.smem [#allocation70], 1
    %588 = sst [smem:[%s587]] 512
    %s589 = scalar_lea.smem [#allocation70], 2
    %590 = sst [smem:[%s589]] 4
    %s591 = scalar_lea.smem [#allocation70], 3
    %592 = sst [smem:[%s591]] 64
    %s593 = scalar_lea.smem [#allocation70], 4
    %594 = sst [smem:[%s593]] 128
    %s595 = scalar_lea.smem [#allocation70], 5
    %596 = sst [smem:[%s595]] 2
    %s597 = scalar_lea.smem [#allocation70], 6
    %598 = sst [smem:[%s597]] 256
    %s599 = scalar_lea.smem [#allocation70], 7
    %600 = sst [smem:[%s599]] 64
    %s601 = scalar_lea.smem [#allocation70], 8
    %602 = sst [smem:[%s601]] 4
    %604 = dma.general %s19, 16384, %s583, %s570, [#allocation69], [#allocation70], %s581, 0
    %s605 = scalar_lea.sflag [#allocation26], 17
    %s607 = sshll.u32 1, 14
    %s608 = sxor.u32 4294967295, %s607
    %s610 = sadd.s32 2, %s108
    %s612 = sshll.u32 7, 26
    %s613 = sxor.u32 4294967295, %s612
    %s614 = sand.u32 0, %s613
    %s615 = sshll.u32 %s610, 26
    %s616 = sor.u32 %s614, %s615
    %s617 = sshll.u32 [#allocation19], 4
    %s618 = int_to_ptr.vmem [resolvable:$true] %s617
    %621 = sst [smem:[#allocation72]] 256
    %s622 = scalar_lea.smem [#allocation72], 1
    %623 = sst [smem:[%s622]] 256
    %s624 = scalar_lea.smem [#allocation72], 2
    %625 = sst [smem:[%s624]] 2
    %s626 = scalar_lea.smem [#allocation72], 3
    %627 = sst [smem:[%s626]] 64
    %s628 = scalar_lea.smem [#allocation72], 4
    %629 = sst [smem:[%s628]] 128
    %s630 = scalar_lea.smem [#allocation72], 5
    %631 = sst [smem:[%s630]] 2
    %s632 = scalar_lea.smem [#allocation72], 6
    %633 = sst [smem:[%s632]] 128
    %s634 = scalar_lea.smem [#allocation72], 7
    %635 = sst [smem:[%s634]] 64
    %s636 = scalar_lea.smem [#allocation72], 8
    %637 = sst [smem:[%s636]] 4
    %639 = dma.general %s20, 4096, %s618, %s605, [#allocation71], [#allocation72], %s616, 0
    %s640 = scalar_lea.sflag [#allocation26], 18
    %s642 = sshll.u32 1, 14
    %s643 = sxor.u32 4294967295, %s642
    %s645 = sadd.s32 2, %s108
    %s647 = sshll.u32 7, 26
    %s648 = sxor.u32 4294967295, %s647
    %s649 = sand.u32 0, %s648
    %s650 = sshll.u32 %s645, 26
    %s651 = sor.u32 %s649, %s650
    %s652 = sshll.u32 [#allocation20], 4
    %s653 = int_to_ptr.vmem [resolvable:$true] %s652
    %656 = sst [smem:[#allocation74]] 256
    %s657 = scalar_lea.smem [#allocation74], 1
    %658 = sst [smem:[%s657]] 256
    %s659 = scalar_lea.smem [#allocation74], 2
    %660 = sst [smem:[%s659]] 2
    %s661 = scalar_lea.smem [#allocation74], 3
    %662 = sst [smem:[%s661]] 64
    %s663 = scalar_lea.smem [#allocation74], 4
    %664 = sst [smem:[%s663]] 128
    %s665 = scalar_lea.smem [#allocation74], 5
    %666 = sst [smem:[%s665]] 2
    %s667 = scalar_lea.smem [#allocation74], 6
    %668 = sst [smem:[%s667]] 128
    %s669 = scalar_lea.smem [#allocation74], 7
    %670 = sst [smem:[%s669]] 64
    %s671 = scalar_lea.smem [#allocation74], 8
    %672 = sst [smem:[%s671]] 4
    %674 = dma.general %s21, 4096, %s653, %s640, [#allocation73], [#allocation74], %s651, 0
    %s675 = scalar_lea.sflag [#allocation26], 19
    // Predicated region
    $region76: #{g_forward.1} parent=1 // pred_check
      _
    $region77: #{g_forward.1} parent=1 // pred_check_branch
      %677 = sbr.rel target = $region79
    $region78: #{g_forward.1} parent=1 // pred_region
      %678 = sst [smem:[#allocation38]] [#allocation76]
      %679 = sst [smem:[#allocation39]] [#allocation75]
    $region79: #{g_forward.1} parent=1 // pred_fallthru
      _
    %681 = shalt.err (0)
    %s683 = sshll.u32 [#allocation21], 4
    %s684 = int_to_ptr.vmem [resolvable:$true] %s683
    %686 = dma.hbm_to_vmem [thread:$0]  %s22, 1024, %s684, %s675
    %s687 = scalar_lea.sflag [#allocation26], 20
    // Predicated region
    $region80: #{g_forward.1} parent=1 // pred_check
      _
    $region81: #{g_forward.1} parent=1 // pred_check_branch
      %689 = sbr.rel target = $region83
    $region82: #{g_forward.1} parent=1 // pred_region
      %690 = sst [smem:[#allocation38]] [#allocation78]
      %691 = sst [smem:[#allocation39]] [#allocation77]
    $region83: #{g_forward.1} parent=1 // pred_fallthru
      _
    %693 = shalt.err (0)
    %s695 = sshll.u32 [#allocation22], 4
    %s696 = int_to_ptr.vmem [resolvable:$true] %s695
    %698 = dma.hbm_to_vmem [thread:$0]  %s23, 1024, %s696, %s687
    %s699 = scalar_lea.sflag [#allocation26], 21
    // Predicated region
    $region84: #{g_forward.1} parent=1 // pred_check
      _
    $region85: #{g_forward.1} parent=1 // pred_check_branch
      %701 = sbr.rel target = $region87
    $region86: #{g_forward.1} parent=1 // pred_region
      %702 = sst [smem:[#allocation38]] [#allocation80]
      %703 = sst [smem:[#allocation39]] [#allocation79]
    $region87: #{g_forward.1} parent=1 // pred_fallthru
      _
    %705 = shalt.err (0)
    %s707 = sshll.u32 [#allocation23], 4
    %s708 = int_to_ptr.vmem [resolvable:$true] %s707
    %710 = dma.hbm_to_vmem [thread:$0]  %s24, 512, %s708, %s699
    %s711 = scalar_lea.sflag [#allocation26], 22
    %s713 = sshll.u32 1, 14
    %s714 = sxor.u32 4294967295, %s713
    %s716 = sadd.s32 2, %s108
    %s718 = sshll.u32 7, 26
    %s719 = sxor.u32 4294967295, %s718
    %s720 = sand.u32 0, %s719
    %s721 = sshll.u32 %s716, 26
    %s722 = sor.u32 %s720, %s721
    %s723 = sshll.u32 [#allocation24], 4
    %s724 = int_to_ptr.vmem [resolvable:$true] %s723
    %727 = sst [smem:[#allocation82]] 3712
    %s728 = scalar_lea.smem [#allocation82], 1
    %729 = sst [smem:[%s728]] 3712
    %s730 = scalar_lea.smem [#allocation82], 2
    %731 = sst [smem:[%s730]] 29
    %s732 = scalar_lea.smem [#allocation82], 3
    %733 = sst [smem:[%s732]] 64
    %s734 = scalar_lea.smem [#allocation82], 4
    %735 = sst [smem:[%s734]] 128
    %s736 = scalar_lea.smem [#allocation82], 5
    %737 = sst [smem:[%s736]] 2
    %s738 = scalar_lea.smem [#allocation82], 6
    %739 = sst [smem:[%s738]] 1856
    %s740 = scalar_lea.smem [#allocation82], 7
    %741 = sst [smem:[%s740]] 64
    %s742 = scalar_lea.smem [#allocation82], 8
    %743 = sst [smem:[%s742]] 4
    %745 = dma.general %s25, 14848, %s724, %s711, [#allocation81], [#allocation82], %s722, 0
    %s746 = scalar_lea.sflag [#allocation26], 23
    %s748 = sshll.u32 1, 14
    %s749 = sxor.u32 4294967295, %s748
    %s751 = sadd.s32 2, %s108
    %s753 = sshll.u32 7, 26
    %s754 = sxor.u32 4294967295, %s753
    %s755 = sand.u32 0, %s754
    %s756 = sshll.u32 %s751, 26
    %s757 = sor.u32 %s755, %s756
    %s758 = sshll.u32 [#allocation25], 4
    %s759 = int_to_ptr.vmem [resolvable:$true] %s758
    %762 = sst [smem:[#allocation84]] 3712
    %s763 = scalar_lea.smem [#allocation84], 1
    %764 = sst [smem:[%s763]] 3712
    %s765 = scalar_lea.smem [#allocation84], 2
    %766 = sst [smem:[%s765]] 29
    %s767 = scalar_lea.smem [#allocation84], 3
    %768 = sst [smem:[%s767]] 64
    %s769 = scalar_lea.smem [#allocation84], 4
    %770 = sst [smem:[%s769]] 128
    %s771 = scalar_lea.smem [#allocation84], 5
    %772 = sst [smem:[%s771]] 2
    %s773 = scalar_lea.smem [#allocation84], 6
    %774 = sst [smem:[%s773]] 1856
    %s775 = scalar_lea.smem [#allocation84], 7
    %776 = sst [smem:[%s775]] 64
    %s777 = scalar_lea.smem [#allocation84], 8
    %778 = sst [smem:[%s777]] 4
    %780 = dma.general %s26, 14848, %s759, %s746, [#allocation83], [#allocation84], %s757, 0
    %v781 = vld [vmem:[#allocation27] sm:$0xff]
    %s782 = smul.u32 4, 16
    %s783 = smul.u32 %s782, 1
    %s784 = sshll.u32 %s783, 4
    %785 = dma.done [#allocation26], %s784
    %s786 = sshll.u32 %s783, 4
    %787 = dma.done %s91, %s786
    %v788 = vld [vmem:[#allocation2] sm:$0xff]
    %v789 = vld [vmem:[#allocation2 + $0x8] sm:$0xff]
    %v790 = vld [vmem:[#allocation2 + $0x10] sm:$0xff]
    %v791 = vld [vmem:[#allocation2 + $0x18] sm:$0xff]
    %v792 = vld [vmem:[#allocation2 + $0x20] sm:$0xff]
    %v793 = vld [vmem:[#allocation2 + $0x28] sm:$0xff]
    %v794 = vld [vmem:[#allocation2 + $0x30] sm:$0xff]
    %v795 = vld [vmem:[#allocation2 + $0x38] sm:$0xff]
    %v796 = vld [vmem:[#allocation3] sm:$0xff]
    %v797 = vld [vmem:[#allocation3 + $0x8] sm:$0xff]
    %v798 = vld [vmem:[#allocation3 + $0x10] sm:$0xff]
    %v799 = vld [vmem:[#allocation3 + $0x18] sm:$0xff]
    %v800 = vld [vmem:[#allocation3 + $0x20] sm:$0xff]
    %v801 = vld [vmem:[#allocation3 + $0x28] sm:$0xff]
    %v802 = vld [vmem:[#allocation3 + $0x30] sm:$0xff]
    %v803 = vld [vmem:[#allocation3 + $0x38] sm:$0xff]
    %v804 = vld [vmem:[#allocation30] sm:$0xf]
    %v805 = vpack.c.bf16 %v781, %v781
    %806 = vmatprep.subr.bf16.mxu0 0
    %807 = vmatpush1.bf16.msra.mxu0 %v788
    %808 = vmatprep.subr.bf16.mxu0 0
    %809 = vmatpush1.bf16.msra.mxu0 %v789
    %810 = vmatprep.subr.bf16.mxu0 0
    %811 = vmatpush1.bf16.msra.mxu0 %v790
    %812 = vmatprep.subr.bf16.mxu0 0
    %813 = vmatpush1.bf16.msra.mxu0 %v791
    %814 = vmatprep.subr.bf16.mxu0 0
    %815 = vmatpush1.bf16.msra.mxu0 %v792
    %816 = vmatprep.subr.bf16.mxu0 0
    %817 = vmatpush1.bf16.msra.mxu0 %v793
    %818 = vmatprep.subr.bf16.mxu0 0
    %819 = vmatpush1.bf16.msra.mxu0 %v794
    %820 = vmatprep.subr.bf16.mxu0 0
    %821 = vmatpush1.bf16.msra.mxu0 %v795
    %822 = vmatprep.subr.bf16.mxu0 0
    %823 = vmatpush1.bf16.msra.mxu0 0
    %824 = vmatprep.subr.bf16.mxu0 0
    %825 = vmatpush1.bf16.msra.mxu0 0
    %826 = vmatprep.subr.bf16.mxu0 0
    %827 = vmatpush1.bf16.msra.mxu0 0
    %828 = vmatprep.subr.bf16.mxu0 0
    %829 = vmatpush1.bf16.msra.mxu0 0
    %830 = vmatprep.subr.bf16.mxu0 0
    %831 = vmatpush1.bf16.msra.mxu0 0
    %832 = vmatprep.subr.bf16.mxu0 0
    %833 = vmatpush1.bf16.msra.mxu0 0
    %834 = vmatprep.subr.bf16.mxu0 0
    %835 = vmatpush1.bf16.msra.mxu0 0
    %836 = vmatprep.subr.bf16.mxu0 0
    %837 = vmatpush1.bf16.msra.mxu0 0
    %838 = vmatprep.mubr.bf16.mxu0 0
    %839 = vmatmul.mubr.bf16.gmra.mrb[0].mxu0 %v805
    %v840 = vpop.f32.mrb[0].mxu0
    %v841 = vadd.f32 0.0, %v840
    %v842 = vpop.f32.mrb[0].mxu0
    %v843 = vpop.f32.mrb[0].mxu0
    %v844 = vpop.f32.mrb[0].mxu0
    %845 = vdwg.mxu0
    %v846 = vrot.slane %v841, 4
    %v847 = vadd.f32 %v841, %v846
    %v848 = vrot.slane %v847, 2
    %v849 = vadd.f32 %v847, %v848
    %v850 = vrot.slane %v849, 1
    %v851 = vadd.f32 %v849, %v850
    %v852 = vmul.f32 %v841, %v841
    %v853 = vrot.slane %v852, 4
    %v854 = vadd.f32 %v852, %v853
    %v855 = vrot.slane %v854, 2
    %v856 = vadd.f32 %v854, %v855
    %v857 = vrot.slane %v856, 1
    %v858 = vadd.f32 %v856, %v857
    %v859 = vmul.f32 %v851, 0.125
    %v860 = vmul.f32 %v858, 0.125
    %v861 = vmul.f32 %v859, %v859
    %v862 = vsub.f32 %v860, %v861
    %v863 = vmax.f32 %v862, 0.0
    %v864 = vadd.f32 %v863, 1e-05
    %v865 = vrsqrt.pop %v864
    %v866 = vmul.f32 %v804, %v865
    %v867 = vmul.f32 %v859, %v866
    %v869 = vrot.slane %v867, 7
    %v871 = vsub.f32 %v804, %v869
    %v872 = vlaneseq
    %v873 = vshrl.u32 %v872, 7
    %v874 = vsub.s32 0, %v873
    %v875 = vrot.slane %v866, %v874
    %v876 = vmul.f32 %v841, %v875
    %v877 = vlaneseq
    %v878 = vshrl.u32 %v877, 7
    %v879 = vsub.s32 1, %v878
    %v880 = vrot.slane %v871, %v879
    %v881 = vadd.f32 %v876, %v880
    %v882 = vmax.f32 %v881, 0.0
    %v883 = vpack.c.bf16 %v882, %v882
    %884 = vmatprep.subr.bf16.mxu0 0
    %885 = vmatpush1.bf16.msra.mxu0 %v796
    %886 = vmatprep.subr.bf16.mxu0 0
    %887 = vmatpush1.bf16.msra.mxu0 %v797
    %888 = vmatprep.subr.bf16.mxu0 0
    %889 = vmatpush1.bf16.msra.mxu0 %v798
    %890 = vmatprep.subr.bf16.mxu0 0
    %891 = vmatpush1.bf16.msra.mxu0 %v799
    %892 = vmatprep.subr.bf16.mxu0 0
    %893 = vmatpush1.bf16.msra.mxu0 %v800
    %894 = vmatprep.subr.bf16.mxu0 0
    %895 = vmatpush1.bf16.msra.mxu0 %v801
    %896 = vmatprep.subr.bf16.mxu0 0
    %897 = vmatpush1.bf16.msra.mxu0 %v802
    %898 = vmatprep.subr.bf16.mxu0 0
    %899 = vmatpush1.bf16.msra.mxu0 %v803
    %900 = vmatprep.subr.bf16.mxu0 0
    %901 = vmatpush1.bf16.msra.mxu0 0
    %902 = vmatprep.subr.bf16.mxu0 0
    %903 = vmatpush1.bf16.msra.mxu0 0
    %904 = vmatprep.subr.bf16.mxu0 0
    %905 = vmatpush1.bf16.msra.mxu0 0
    %906 = vmatprep.subr.bf16.mxu0 0
    %907 = vmatpush1.bf16.msra.mxu0 0
    %908 = vmatprep.subr.bf16.mxu0 0
    %909 = vmatpush1.bf16.msra.mxu0 0
    %910 = vmatprep.subr.bf16.mxu0 0
    %911 = vmatpush1.bf16.msra.mxu0 0
    %912 = vmatprep.subr.bf16.mxu0 0
    %913 = vmatpush1.bf16.msra.mxu0 0
    %914 = vmatprep.subr.bf16.mxu0 0
    %915 = vmatpush1.bf16.msra.mxu0 0
    %916 = vmatprep.mubr.bf16.mxu0 0
    %917 = vmatmul.mubr.bf16.gmra.mrb[0].mxu0 %v883
    %v918 = vpop.f32.mrb[0].mxu0
    %v919 = vadd.f32 0.0, %v918
    %v920 = vpop.f32.mrb[0].mxu0
    %v921 = vpop.f32.mrb[0].mxu0
    %v922 = vpop.f32.mrb[0].mxu0
    %923 = vdwg.mxu0
    %v924 = vrot.slane %v919, 4
    %v925 = vadd.f32 %v919, %v924
    %v926 = vrot.slane %v925, 2
    %v927 = vadd.f32 %v925, %v926
    %v928 = vrot.slane %v927, 1
    %v929 = vadd.f32 %v927, %v928
    %v930 = vmul.f32 %v919, %v919
    %v931 = vrot.slane %v930, 4
    %v932 = vadd.f32 %v930, %v931
    %v933 = vrot.slane %v932, 2
    %v934 = vadd.f32 %v932, %v933
    %v935 = vrot.slane %v934, 1
    %v936 = vadd.f32 %v934, %v935
    %v937 = vmul.f32 %v929, 0.125
    %v938 = vmul.f32 %v936, 0.125
    %v939 = vmul.f32 %v937, %v937
    %v940 = vsub.f32 %v938, %v939
    %v941 = vmax.f32 %v940, 0.0
    %v942 = vadd.f32 %v941, 1e-05
    %v943 = vrsqrt.pop %v942
    %v944 = vmul.f32 %v804, %v943
    %v945 = vmul.f32 %v937, %v944
    %v947 = vrot.slane %v945, 7
    %v949 = vsub.f32 %v804, %v947
    %v950 = vlaneseq
    %v951 = vshrl.u32 %v950, 7
    %v952 = vsub.s32 2, %v951
    %v953 = vrot.slane %v944, %v952
    %v954 = vmul.f32 %v919, %v953
    %v955 = vlaneseq
    %v956 = vshrl.u32 %v955, 7
    %v957 = vsub.s32 3, %v956
    %v958 = vrot.slane %v949, %v957
    %v959 = vadd.f32 %v954, %v958
    %v960 = vadd.f32 %v959, %v781
    %v961 = vmax.f32 %v960, 0.0
    %s962 = smul.u32 %s782, 4
    %s963 = sshll.u32 %s962, 4
    %964 = dma.done %s103, %s963
    %s965 = smul.u32 4, 32
    %s966 = smul.u32 %s965, 2
    %s967 = sshll.u32 %s966, 4
    %968 = dma.done %s139, %s967
    %v969 = vld [vmem:[#allocation4] sm:$0xff]
    %v970 = vld [vmem:[#allocation4 + $0x8] sm:$0xff]
    %v971 = vld [vmem:[#allocation4 + $0x10] sm:$0xff]
    %v972 = vld [vmem:[#allocation4 + $0x18] sm:$0xff]
    %v973 = vld [vmem:[#allocation4 + $0x20] sm:$0xff]
    %v974 = vld [vmem:[#allocation4 + $0x28] sm:$0xff]
    %v975 = vld [vmem:[#allocation4 + $0x30] sm:$0xff]
    %v976 = vld [vmem:[#allocation4 + $0x38] sm:$0xff]
    %v977 = vld [vmem:[#allocation4 + $0x40] sm:$0xff]
    %v978 = vld [vmem:[#allocation4 + $0x48] sm:$0xff]
    %v979 = vld [vmem:[#allocation4 + $0x50] sm:$0xff]
    %v980 = vld [vmem:[#allocation4 + $0x58] sm:$0xff]
    %v981 = vld [vmem:[#allocation4 + $0x60] sm:$0xff]
    %v982 = vld [vmem:[#allocation4 + $0x68] sm:$0xff]
    %v983 = vld [vmem:[#allocation4 + $0x70] sm:$0xff]
    %v984 = vld [vmem:[#allocation4 + $0x78] sm:$0xff]
    %v985 = vld [vmem:[#allocation4 + $0x80] sm:$0xff]
    %v986 = vld [vmem:[#allocation4 + $0x88] sm:$0xff]
    %v987 = vld [vmem:[#allocation4 + $0x90] sm:$0xff]
    %v988 = vld [vmem:[#allocation4 + $0x98] sm:$0xff]
    %v989 = vld [vmem:[#allocation4 + $0xa0] sm:$0xff]
    %v990 = vld [vmem:[#allocation4 + $0xa8] sm:$0xff]
    %v991 = vld [vmem:[#allocation4 + $0xb0] sm:$0xff]
    %v992 = vld [vmem:[#allocation4 + $0xb8] sm:$0xff]
    %v993 = vld [vmem:[#allocation4 + $0xc0] sm:$0xff]
    %v994 = vld [vmem:[#allocation4 + $0xc8] sm:$0xff]
    %v995 = vld [vmem:[#allocation4 + $0xd0] sm:$0xff]
    %v996 = vld [vmem:[#allocation4 + $0xd8] sm:$0xff]
    %v997 = vld [vmem:[#allocation4 + $0xe0] sm:$0xff]
    %v998 = vld [vmem:[#allocation4 + $0xe8] sm:$0xff]
    %v999 = vld [vmem:[#allocation4 + $0xf0] sm:$0xff]
    %v1000 = vld [vmem:[#allocation4 + $0xf8] sm:$0xff]
    %v1001 = vld [vmem:[#allocation5] sm:$0xff]
    %v1002 = vld [vmem:[#allocation5 + $0x8] sm:$0xff]
    %v1003 = vld [vmem:[#allocation5 + $0x10] sm:$0xff]
    %v1004 = vld [vmem:[#allocation5 + $0x18] sm:$0xff]
    %v1005 = vld [vmem:[#allocation5 + $0x20] sm:$0xff]
    %v1006 = vld [vmem:[#allocation5 + $0x28] sm:$0xff]
    %v1007 = vld [vmem:[#allocation5 + $0x30] sm:$0xff]
    %v1008 = vld [vmem:[#allocation5 + $0x38] sm:$0xff]
    %v1009 = vld [vmem:[#allocation5 + $0x40] sm:$0xff]
    %v1010 = vld [vmem:[#allocation5 + $0x48] sm:$0xff]
    %v1011 = vld [vmem:[#allocation5 + $0x50] sm:$0xff]
    %v1012 = vld [vmem:[#allocation5 + $0x58] sm:$0xff]
    %v1013 = vld [vmem:[#allocation5 + $0x60] sm:$0xff]
    %v1014 = vld [vmem:[#allocation5 + $0x68] sm:$0xff]
    %v1015 = vld [vmem:[#allocation5 + $0x70] sm:$0xff]
    %v1016 = vld [vmem:[#allocation5 + $0x78] sm:$0xff]
    %v1017 = vld [vmem:[#allocation5 + $0x80] sm:$0xff]
    %v1018 = vld [vmem:[#allocation5 + $0x88] sm:$0xff]
    %v1019 = vld [vmem:[#allocation5 + $0x90] sm:$0xff]
    %v1020 = vld [vmem:[#allocation5 + $0x98] sm:$0xff]
    %v1021 = vld [vmem:[#allocation5 + $0xa0] sm:$0xff]
    %v1022 = vld [vmem:[#allocation5 + $0xa8] sm:$0xff]
    %v1023 = vld [vmem:[#allocation5 + $0xb0] sm:$0xff]
    %v1024 = vld [vmem:[#allocation5 + $0xb8] sm:$0xff]
    %v1025 = vld [vmem:[#allocation5 + $0xc0] sm:$0xff]
    %v1026 = vld [vmem:[#allocation5 + $0xc8] sm:$0xff]
    %v1027 = vld [vmem:[#allocation5 + $0xd0] sm:$0xff]
    %v1028 = vld [vmem:[#allocation5 + $0xd8] sm:$0xff]
    %v1029 = vld [vmem:[#allocation5 + $0xe0] sm:$0xff]
    %v1030 = vld [vmem:[#allocation5 + $0xe8] sm:$0xff]
    %v1031 = vld [vmem:[#allocation5 + $0xf0] sm:$0xff]
    %v1032 = vld [vmem:[#allocation5 + $0xf8] sm:$0xff]
    %v1033 = vld [vmem:[#allocation30] sm:$0xf0]
    %v1034 = vld [vmem:[#allocation30 + $0x8] sm:$0xf0]
    %v1035 = vpack.c.bf16 %v961, %v961
    %1036 = vmatprep.subr.bf16.mxu0 %v970
    %1037 = vmatpush1.bf16.msra.mxu0 %v969
    %1038 = vmatprep.subr.bf16.mxu0 %v974
    %1039 = vmatpush1.bf16.msra.mxu0 %v973
    %1040 = vmatprep.subr.bf16.mxu0 %v978
    %1041 = vmatpush1.bf16.msra.mxu0 %v977
    %1042 = vmatprep.subr.bf16.mxu0 %v982
    %1043 = vmatpush1.bf16.msra.mxu0 %v981
    %1044 = vmatprep.subr.bf16.mxu0 %v986
    %1045 = vmatpush1.bf16.msra.mxu0 %v985
    %1046 = vmatprep.subr.bf16.mxu0 %v990
    %1047 = vmatpush1.bf16.msra.mxu0 %v989
    %1048 = vmatprep.subr.bf16.mxu0 %v994
    %1049 = vmatpush1.bf16.msra.mxu0 %v993
    %1050 = vmatprep.subr.bf16.mxu0 %v998
    %1051 = vmatpush1.bf16.msra.mxu0 %v997
    %1052 = vmatprep.subr.bf16.mxu0 0
    %1053 = vmatpush1.bf16.msra.mxu0 0
    %1054 = vmatprep.subr.bf16.mxu0 0
    %1055 = vmatpush1.bf16.msra.mxu0 0
    %1056 = vmatprep.subr.bf16.mxu0 0
    %1057 = vmatpush1.bf16.msra.mxu0 0
    %1058 = vmatprep.subr.bf16.mxu0 0
    %1059 = vmatpush1.bf16.msra.mxu0 0
    %1060 = vmatprep.subr.bf16.mxu0 0
    %1061 = vmatpush1.bf16.msra.mxu0 0
    %1062 = vmatprep.subr.bf16.mxu0 0
    %1063 = vmatpush1.bf16.msra.mxu0 0
    %1064 = vmatprep.subr.bf16.mxu0 0
    %1065 = vmatpush1.bf16.msra.mxu0 0
    %1066 = vmatprep.subr.bf16.mxu0 0
    %1067 = vmatpush1.bf16.msra.mxu0 0
    %1068 = vmatprep.mubr.bf16.mxu0 0
    %1069 = vmatmul.mubr.bf16.gmra.mrb[0].mxu0 %v1035
    %v1070 = vpop.f32.mrb[0].mxu0
    %v1071 = vadd.f32 0.0, %v1070
    %v1072 = vpop.f32.mrb[0].mxu0
    %v1073 = vadd.f32 0.0, %v1072
    %v1074 = vpop.f32.mrb[0].mxu0
    %v1075 = vpop.f32.mrb[0].mxu0
    %1076 = vdwg.mxu0
    %1077 = vmatprep.subr.bf16.mxu0 %v972
    %1078 = vmatpush1.bf16.msra.mxu0 %v971
    %1079 = vmatprep.subr.bf16.mxu0 %v976
    %1080 = vmatpush1.bf16.msra.mxu0 %v975
    %1081 = vmatprep.subr.bf16.mxu0 %v980
    %1082 = vmatpush1.bf16.msra.mxu0 %v979
    %1083 = vmatprep.subr.bf16.mxu0 %v984
    %1084 = vmatpush1.bf16.msra.mxu0 %v983
    %1085 = vmatprep.subr.bf16.mxu0 %v988
    %1086 = vmatpush1.bf16.msra.mxu0 %v987
    %1087 = vmatprep.subr.bf16.mxu0 %v992
    %1088 = vmatpush1.bf16.msra.mxu0 %v991
    %1089 = vmatprep.subr.bf16.mxu0 %v996
    %1090 = vmatpush1.bf16.msra.mxu0 %v995
    %1091 = vmatprep.subr.bf16.mxu0 %v1000
    %1092 = vmatpush1.bf16.msra.mxu0 %v999
    %1093 = vmatprep.subr.bf16.mxu0 0
    %1094 = vmatpush1.bf16.msra.mxu0 0
    %1095 = vmatprep.subr.bf16.mxu0 0
    %1096 = vmatpush1.bf16.msra.mxu0 0
    %1097 = vmatprep.subr.bf16.mxu0 0
    %1098 = vmatpush1.bf16.msra.mxu0 0
    %1099 = vmatprep.subr.bf16.mxu0 0
    %1100 = vmatpush1.bf16.msra.mxu0 0
    %1101 = vmatprep.subr.bf16.mxu0 0
    %1102 = vmatpush1.bf16.msra.mxu0 0
    %1103 = vmatprep.subr.bf16.mxu0 0
    %1104 = vmatpush1.bf16.msra.mxu0 0
    %1105 = vmatprep.subr.bf16.mxu0 0
    %1106 = vmatpush1.bf16.msra.mxu0 0
    %1107 = vmatprep.subr.bf16.mxu0 0
    %1108 = vmatpush1.bf16.msra.mxu0 0
    %1109 = vmatprep.mubr.bf16.mxu0 0
    %1110 = vmatmul.mubr.bf16.gmra.mrb[0].mxu0 %v1035
    %v1111 = vpop.f32.mrb[0].mxu0
    %v1112 = vadd.f32 0.0, %v1111
    %v1113 = vpop.f32.mrb[0].mxu0
    %v1114 = vadd.f32 0.0, %v1113
    %v1115 = vpop.f32.mrb[0].mxu0
    %v1116 = vpop.f32.mrb[0].mxu0
    %1117 = vdwg.mxu0
    %v1118 = vrot.slane %v1071, 4
    %v1119 = vadd.f32 %v1071, %v1118
    %v1120 = vrot.slane %v1119, 2
    %v1121 = vadd.f32 %v1119, %v1120
    %v1122 = vrot.slane %v1121, 1
    %v1123 = vadd.f32 %v1121, %v1122
    %v1124 = vrot.slane %v1073, 4
    %v1125 = vadd.f32 %v1073, %v1124
    %v1126 = vrot.slane %v1125, 2
    %v1127 = vadd.f32 %v1125, %v1126
    %v1128 = vrot.slane %v1127, 1
    %v1129 = vadd.f32 %v1127, %v1128
    %v1130 = vmul.f32 %v1071, %v1071
    %v1131 = vmul.f32 %v1073, %v1073
    %v1132 = vrot.slane %v1130, 4
    %v1133 = vadd.f32 %v1130, %v1132
    %v1134 = vrot.slane %v1133, 2
    %v1135 = vadd.f32 %v1133, %v1134
    %v1136 = vrot.slane %v1135, 1
    %v1137 = vadd.f32 %v1135, %v1136
    %v1138 = vrot.slane %v1131, 4
    %v1139 = vadd.f32 %v1131, %v1138
    %v1140 = vrot.slane %v1139, 2
    %v1141 = vadd.f32 %v1139, %v1140
    %v1142 = vrot.slane %v1141, 1
    %v1143 = vadd.f32 %v1141, %v1142
    %v1144 = vmul.f32 %v1123, 0.125
    %v1145 = vmul.f32 %v1129, 0.125
    %v1146 = vmul.f32 %v1137, 0.125
    %v1147 = vmul.f32 %v1143, 0.125
    %v1148 = vmul.f32 %v1144, %v1144
    %v1149 = vmul.f32 %v1145, %v1145
    %v1150 = vsub.f32 %v1146, %v1148
    %v1151 = vsub.f32 %v1147, %v1149
    %v1152 = vmax.f32 %v1150, 0.0
    %v1153 = vmax.f32 %v1151, 0.0
    %v1154 = vadd.f32 %v1152, 1e-05
    %v1155 = vadd.f32 %v1153, 1e-05
    %v1156 = vrsqrt.pop %v1154
    %v1157 = vrsqrt.pop %v1155
    %v1158 = vmul.f32 %v1033, %v1156
    %v1159 = vmul.f32 %v1034, %v1157
    %v1160 = vmul.f32 %v1144, %v1158
    %v1161 = vmul.f32 %v1145, %v1159
    %v1164 = vrot.slane %v1160, 7
    %v1165 = vrot.slane %v1161, 7
    %v1168 = vsub.f32 %v1033, %v1164
    %v1169 = vsub.f32 %v1034, %v1165
    %v1170 = vlaneseq
    %v1171 = vshrl.u32 %v1170, 7
    %v1172 = vsub.s32 4, %v1171
    %v1173 = vrot.slane %v1158, %v1172
    %v1174 = vlaneseq
    %v1175 = vshrl.u32 %v1174, 7
    %v1176 = vsub.s32 4, %v1175
    %v1177 = vrot.slane %v1159, %v1176
    %v1178 = vmul.f32 %v1071, %v1173
    %v1179 = vmul.f32 %v1073, %v1177
    %v1180 = vlaneseq
    %v1181 = vshrl.u32 %v1180, 7
    %v1182 = vsub.s32 5, %v1181
    %v1183 = vrot.slane %v1168, %v1182
    %v1184 = vlaneseq
    %v1185 = vshrl.u32 %v1184, 7
    %v1186 = vsub.s32 5, %v1185
    %v1187 = vrot.slane %v1169, %v1186
    %v1188 = vadd.f32 %v1178, %v1183
    %v1189 = vadd.f32 %v1179, %v1187
    %v1190 = vmax.f32 %v1188, 0.0
    %v1191 = vmax.f32 %v1189, 0.0
    %v1192 = vpack.c.bf16 %v1190, %v1190
    %v1193 = vpack.c.bf16 %v1191, %v1191
    %1194 = vmatprep.subr.bf16.mxu0 %v1002
    %1195 = vmatpush1.bf16.msra.mxu0 %v1001
    %1196 = vmatprep.subr.bf16.mxu0 %v1004
    %1197 = vmatpush1.bf16.msra.mxu0 %v1003
    %1198 = vmatprep.subr.bf16.mxu0 %v1006
    %1199 = vmatpush1.bf16.msra.mxu0 %v1005
    %1200 = vmatprep.subr.bf16.mxu0 %v1008
    %1201 = vmatpush1.bf16.msra.mxu0 %v1007
    %1202 = vmatprep.subr.bf16.mxu0 %v1010
    %1203 = vmatpush1.bf16.msra.mxu0 %v1009
    %1204 = vmatprep.subr.bf16.mxu0 %v1012
    %1205 = vmatpush1.bf16.msra.mxu0 %v1011
    %1206 = vmatprep.subr.bf16.mxu0 %v1014
    %1207 = vmatpush1.bf16.msra.mxu0 %v1013
    %1208 = vmatprep.subr.bf16.mxu0 %v1016
    %1209 = vmatpush1.bf16.msra.mxu0 %v1015
    %1210 = vmatprep.subr.bf16.mxu0 %v1018
    %1211 = vmatpush1.bf16.msra.mxu0 %v1017
    %1212 = vmatprep.subr.bf16.mxu0 %v1020
    %1213 = vmatpush1.bf16.msra.mxu0 %v1019
    %1214 = vmatprep.subr.bf16.mxu0 %v1022
    %1215 = vmatpush1.bf16.msra.mxu0 %v1021
    %1216 = vmatprep.subr.bf16.mxu0 %v1024
    %1217 = vmatpush1.bf16.msra.mxu0 %v1023
    %1218 = vmatprep.subr.bf16.mxu0 %v1026
    %1219 = vmatpush1.bf16.msra.mxu0 %v1025
    %1220 = vmatprep.subr.bf16.mxu0 %v1028
    %1221 = vmatpush1.bf16.msra.mxu0 %v1027
    %1222 = vmatprep.subr.bf16.mxu0 %v1030
    %1223 = vmatpush1.bf16.msra.mxu0 %v1029
    %1224 = vmatprep.subr.bf16.mxu0 %v1032
    %1225 = vmatpush1.bf16.msra.mxu0 %v1031
    %1226 = vmatprep.mubr.bf16.mxu0 %v1193
    %1227 = vmatmul.mubr.bf16.gmra.mrb[0].mxu0 %v1192
    %v1228 = vpop.f32.mrb[0].mxu0
    %v1229 = vadd.f32 0.0, %v1228
    %v1230 = vpop.f32.mrb[0].mxu0
    %v1231 = vadd.f32 0.0, %v1230
    %v1232 = vpop.f32.mrb[0].mxu0
    %v1233 = vpop.f32.mrb[0].mxu0
    %1234 = vdwg.mxu0
    %v1235 = vrot.slane %v1229, 4
    %v1236 = vadd.f32 %v1229, %v1235
    %v1237 = vrot.slane %v1236, 2
    %v1238 = vadd.f32 %v1236, %v1237
    %v1239 = vrot.slane %v1238, 1
    %v1240 = vadd.f32 %v1238, %v1239
    %v1241 = vrot.slane %v1231, 4
    %v1242 = vadd.f32 %v1231, %v1241
    %v1243 = vrot.slane %v1242, 2
    %v1244 = vadd.f32 %v1242, %v1243
    %v1245 = vrot.slane %v1244, 1
    %v1246 = vadd.f32 %v1244, %v1245
    %v1247 = vmul.f32 %v1229, %v1229
    %v1248 = vmul.f32 %v1231, %v1231
    %v1249 = vrot.slane %v1247, 4
    %v1250 = vadd.f32 %v1247, %v1249
    %v1251 = vrot.slane %v1250, 2
    %v1252 = vadd.f32 %v1250, %v1251
    %v1253 = vrot.slane %v1252, 1
    %v1254 = vadd.f32 %v1252, %v1253
    %v1255 = vrot.slane %v1248, 4
    %v1256 = vadd.f32 %v1248, %v1255
    %v1257 = vrot.slane %v1256, 2
    %v1258 = vadd.f32 %v1256, %v1257
    %v1259 = vrot.slane %v1258, 1
    %v1260 = vadd.f32 %v1258, %v1259
    %v1261 = vmul.f32 %v1240, 0.125
    %v1262 = vmul.f32 %v1246, 0.125
    %v1263 = vmul.f32 %v1254, 0.125
    %v1264 = vmul.f32 %v1260, 0.125
    %v1265 = vmul.f32 %v1261, %v1261
    %v1266 = vmul.f32 %v1262, %v1262
    %v1267 = vsub.f32 %v1263, %v1265
    %v1268 = vsub.f32 %v1264, %v1266
    %v1269 = vmax.f32 %v1267, 0.0
    %v1270 = vmax.f32 %v1268, 0.0
    %v1271 = vadd.f32 %v1269, 1e-05
    %v1272 = vadd.f32 %v1270, 1e-05
    %v1273 = vrsqrt.pop %v1271
    %v1274 = vrsqrt.pop %v1272
    %v1275 = vmul.f32 %v1033, %v1273
    %v1276 = vmul.f32 %v1034, %v1274
    %v1277 = vmul.f32 %v1261, %v1275
    %v1278 = vmul.f32 %v1262, %v1276
    %v1281 = vrot.slane %v1277, 7
    %v1282 = vrot.slane %v1278, 7
    %v1285 = vsub.f32 %v1033, %v1281
    %v1286 = vsub.f32 %v1034, %v1282
    %v1287 = vlaneseq
    %v1288 = vshrl.u32 %v1287, 7
    %v1289 = vsub.s32 6, %v1288
    %v1290 = vrot.slane %v1275, %v1289
    %v1291 = vlaneseq
    %v1292 = vshrl.u32 %v1291, 7
    %v1293 = vsub.s32 6, %v1292
    %v1294 = vrot.slane %v1276, %v1293
    %v1295 = vmul.f32 %v1229, %v1290
    %v1296 = vmul.f32 %v1231, %v1294
    %v1297 = vlaneseq
    %v1298 = vshrl.u32 %v1297, 7
    %v1299 = vsub.s32 7, %v1298
    %v1300 = vrot.slane %v1285, %v1299
    %v1301 = vlaneseq
    %v1302 = vshrl.u32 %v1301, 7
    %v1303 = vsub.s32 7, %v1302
    %v1304 = vrot.slane %v1286, %v1303
    %v1305 = vadd.f32 %v1295, %v1300
    %v1306 = vadd.f32 %v1296, %v1304
    %v1307 = vadd.f32 %v1305, %v1112
    %v1308 = vadd.f32 %v1306, %v1114
    %v1309 = vmax.f32 %v1307, 0.0
    %v1310 = vmax.f32 %v1308, 0.0
    %s1311 = sshll.u32 %s966, 4
    %1312 = dma.done %s174, %s1311
    %s1313 = sshll.u32 %s966, 4
    %1314 = dma.done %s209, %s1313
    %v1315 = vld [vmem:[#allocation6] sm:$0xff]
    %v1316 = vld [vmem:[#allocation6 + $0x8] sm:$0xff]
    %v1317 = vld [vmem:[#allocation6 + $0x10] sm:$0xff]
    %v1318 = vld [vmem:[#allocation6 + $0x18] sm:$0xff]
    %v1319 = vld [vmem:[#allocation6 + $0x20] sm:$0xff]
    %v1320 = vld [vmem:[#allocation6 + $0x28] sm:$0xff]
    %v1321 = vld [vmem:[#allocation6 + $0x30] sm:$0xff]
    %v1322 = vld [vmem:[#allocation6 + $0x38] sm:$0xff]
    %v1323 = vld [vmem:[#allocation6 + $0x40] sm:$0xff]
    %v1324 = vld [vmem:[#allocation6 + $0x48] sm:$0xff]
    %v1325 = vld [vmem:[#allocation6 + $0x50] sm:$0xff]
    %v1326 = vld [vmem:[#allocation6 + $0x58] sm:$0xff]
    %v1327 = vld [vmem:[#allocation6 + $0x60] sm:$0xff]
    %v1328 = vld [vmem:[#allocation6 + $0x68] sm:$0xff]
    %v1329 = vld [vmem:[#allocation6 + $0x70] sm:$0xff]
    %v1330 = vld [vmem:[#allocation6 + $0x78] sm:$0xff]
    %v1331 = vld [vmem:[#allocation6 + $0x80] sm:$0xff]
    %v1332 = vld [vmem:[#allocation6 + $0x88] sm:$0xff]
    %v1333 = vld [vmem:[#allocation6 + $0x90] sm:$0xff]
    %v1334 = vld [vmem:[#allocation6 + $0x98] sm:$0xff]
    %v1335 = vld [vmem:[#allocation6 + $0xa0] sm:$0xff]
    %v1336 = vld [vmem:[#allocation6 + $0xa8] sm:$0xff]
    %v1337 = vld [vmem:[#allocation6 + $0xb0] sm:$0xff]
    %v1338 = vld [vmem:[#allocation6 + $0xb8] sm:$0xff]
    %v1339 = vld [vmem:[#allocation6 + $0xc0] sm:$0xff]
    %v1340 = vld [vmem:[#allocation6 + $0xc8] sm:$0xff]
    %v1341 = vld [vmem:[#allocation6 + $0xd0] sm:$0xff]
    %v1342 = vld [vmem:[#allocation6 + $0xd8] sm:$0xff]
    %v1343 = vld [vmem:[#allocation6 + $0xe0] sm:$0xff]
    %v1344 = vld [vmem:[#allocation6 + $0xe8] sm:$0xff]
    %v1345 = vld [vmem:[#allocation6 + $0xf0] sm:$0xff]
    %v1346 = vld [vmem:[#allocation6 + $0xf8] sm:$0xff]
    %v1347 = vld [vmem:[#allocation7] sm:$0xff]
    %v1348 = vld [vmem:[#allocation7 + $0x8] sm:$0xff]
    %v1349 = vld [vmem:[#allocation7 + $0x10] sm:$0xff]
    %v1350 = vld [vmem:[#allocation7 + $0x18] sm:$0xff]
    %v1351 = vld [vmem:[#allocation7 + $0x20] sm:$0xff]
    %v1352 = vld [vmem:[#allocation7 + $0x28] sm:$0xff]
    %v1353 = vld [vmem:[#allocation7 + $0x30] sm:$0xff]
    %v1354 = vld [vmem:[#allocation7 + $0x38] sm:$0xff]
    %v1355 = vld [vmem:[#allocation7 + $0x40] sm:$0xff]
    %v1356 = vld [vmem:[#allocation7 + $0x48] sm:$0xff]
    %v1357 = vld [vmem:[#allocation7 + $0x50] sm:$0xff]
    %v1358 = vld [vmem:[#allocation7 + $0x58] sm:$0xff]
    %v1359 = vld [vmem:[#allocation7 + $0x60] sm:$0xff]
    %v1360 = vld [vmem:[#allocation7 + $0x68] sm:$0xff]
    %v1361 = vld [vmem:[#allocation7 + $0x70] sm:$0xff]
    %v1362 = vld [vmem:[#allocation7 + $0x78] sm:$0xff]
    %v1363 = vld [vmem:[#allocation7 + $0x80] sm:$0xff]
    %v1364 = vld [vmem:[#allocation7 + $0x88] sm:$0xff]
    %v1365 = vld [vmem:[#allocation7 + $0x90] sm:$0xff]
    %v1366 = vld [vmem:[#allocation7 + $0x98] sm:$0xff]
    %v1367 = vld [vmem:[#allocation7 + $0xa0] sm:$0xff]
    %v1368 = vld [vmem:[#allocation7 + $0xa8] sm:$0xff]
    %v1369 = vld [vmem:[#allocation7 + $0xb0] sm:$0xff]
    %v1370 = vld [vmem:[#allocation7 + $0xb8] sm:$0xff]
    %v1371 = vld [vmem:[#allocation7 + $0xc0] sm:$0xff]
    %v1372 = vld [vmem:[#allocation7 + $0xc8] sm:$0xff]
    %v1373 = vld [vmem:[#allocation7 + $0xd0] sm:$0xff]
    %v1374 = vld [vmem:[#allocation7 + $0xd8] sm:$0xff]
    %v1375 = vld [vmem:[#allocation7 + $0xe0] sm:$0xff]
    %v1376 = vld [vmem:[#allocation7 + $0xe8] sm:$0xff]
    %v1377 = vld [vmem:[#allocation7 + $0xf0] sm:$0xff]
    %v1378 = vld [vmem:[#allocation7 + $0xf8] sm:$0xff]
    %v1379 = vld [vmem:[#allocation30 + $0x20] sm:$0xf]
    %v1380 = vld [vmem:[#allocation30 + $0x28] sm:$0xf]
    %v1381 = vpack.c.bf16 %v1309, %v1309
    %v1382 = vpack.c.bf16 %v1310, %v1310
    %1383 = vmatprep.subr.bf16.mxu0 %v1316
    %1384 = vmatpush1.bf16.msra.mxu0 %v1315
    %1385 = vmatprep.subr.bf16.mxu0 %v1318
    %1386 = vmatpush1.bf16.msra.mxu0 %v1317
    %1387 = vmatprep.subr.bf16.mxu0 %v1320
    %1388 = vmatpush1.bf16.msra.mxu0 %v1319
    %1389 = vmatprep.subr.bf16.mxu0 %v1322
    %1390 = vmatpush1.bf16.msra.mxu0 %v1321
    %1391 = vmatprep.subr.bf16.mxu0 %v1324
    %1392 = vmatpush1.bf16.msra.mxu0 %v1323
    %1393 = vmatprep.subr.bf16.mxu0 %v1326
    %1394 = vmatpush1.bf16.msra.mxu0 %v1325
    %1395 = vmatprep.subr.bf16.mxu0 %v1328
    %1396 = vmatpush1.bf16.msra.mxu0 %v1327
    %1397 = vmatprep.subr.bf16.mxu0 %v1330
    %1398 = vmatpush1.bf16.msra.mxu0 %v1329
    %1399 = vmatprep.subr.bf16.mxu0 %v1332
    %1400 = vmatpush1.bf16.msra.mxu0 %v1331
    %1401 = vmatprep.subr.bf16.mxu0 %v1334
    %1402 = vmatpush1.bf16.msra.mxu0 %v1333
    %1403 = vmatprep.subr.bf16.mxu0 %v1336
    %1404 = vmatpush1.bf16.msra.mxu0 %v1335
    %1405 = vmatprep.subr.bf16.mxu0 %v1338
    %1406 = vmatpush1.bf16.msra.mxu0 %v1337
    %1407 = vmatprep.subr.bf16.mxu0 %v1340
    %1408 = vmatpush1.bf16.msra.mxu0 %v1339
    %1409 = vmatprep.subr.bf16.mxu0 %v1342
    %1410 = vmatpush1.bf16.msra.mxu0 %v1341
    %1411 = vmatprep.subr.bf16.mxu0 %v1344
    %1412 = vmatpush1.bf16.msra.mxu0 %v1343
    %1413 = vmatprep.subr.bf16.mxu0 %v1346
    %1414 = vmatpush1.bf16.msra.mxu0 %v1345
    %1415 = vmatprep.mubr.bf16.mxu0 %v1382
    %1416 = vmatmul.mubr.bf16.gmra.mrb[0].mxu0 %v1381
    %v1417 = vpop.f32.mrb[0].mxu0
    %v1418 = vadd.f32 0.0, %v1417
    %v1419 = vpop.f32.mrb[0].mxu0
    %v1420 = vadd.f32 0.0, %v1419
    %v1421 = vpop.f32.mrb[0].mxu0
    %v1422 = vpop.f32.mrb[0].mxu0
    %1423 = vdwg.mxu0
    %v1424 = vrot.slane %v1418, 4
    %v1425 = vadd.f32 %v1418, %v1424
    %v1426 = vrot.slane %v1425, 2
    %v1427 = vadd.f32 %v1425, %v1426
    %v1428 = vrot.slane %v1427, 1
    %v1429 = vadd.f32 %v1427, %v1428
    %v1430 = vrot.slane %v1420, 4
    %v1431 = vadd.f32 %v1420, %v1430
    %v1432 = vrot.slane %v1431, 2
    %v1433 = vadd.f32 %v1431, %v1432
    %v1434 = vrot.slane %v1433, 1
    %v1435 = vadd.f32 %v1433, %v1434
    %v1436 = vmul.f32 %v1418, %v1418
    %v1437 = vmul.f32 %v1420, %v1420
    %v1438 = vrot.slane %v1436, 4
    %v1439 = vadd.f32 %v1436, %v1438
    %v1440 = vrot.slane %v1439, 2
    %v1441 = vadd.f32 %v1439, %v1440
    %v1442 = vrot.slane %v1441, 1
    %v1443 = vadd.f32 %v1441, %v1442
    %v1444 = vrot.slane %v1437, 4
    %v1445 = vadd.f32 %v1437, %v1444
    %v1446 = vrot.slane %v1445, 2
    %v1447 = vadd.f32 %v1445, %v1446
    %v1448 = vrot.slane %v1447, 1
    %v1449 = vadd.f32 %v1447, %v1448
    %v1450 = vmul.f32 %v1429, 0.125
    %v1451 = vmul.f32 %v1435, 0.125
    %v1452 = vmul.f32 %v1443, 0.125
    %v1453 = vmul.f32 %v1449, 0.125
    %v1454 = vmul.f32 %v1450, %v1450
    %v1455 = vmul.f32 %v1451, %v1451
    %v1456 = vsub.f32 %v1452, %v1454
    %v1457 = vsub.f32 %v1453, %v1455
    %v1458 = vmax.f32 %v1456, 0.0
    %v1459 = vmax.f32 %v1457, 0.0
    %v1460 = vadd.f32 %v1458, 1e-05
    %v1461 = vadd.f32 %v1459, 1e-05
    %v1462 = vrsqrt.pop %v1460
    %v1463 = vrsqrt.pop %v1461
    %v1464 = vmul.f32 %v1379, %v1462
    %v1465 = vmul.f32 %v1380, %v1463
    %v1466 = vmul.f32 %v1450, %v1464
    %v1467 = vmul.f32 %v1451, %v1465
    %v1470 = vrot.slane %v1466, 7
    %v1471 = vrot.slane %v1467, 7
    %v1474 = vsub.f32 %v1379, %v1470
    %v1475 = vsub.f32 %v1380, %v1471
    %v1476 = vlaneseq
    %v1477 = vshrl.u32 %v1476, 7
    %v1478 = vsub.s32 0, %v1477
    %v1479 = vrot.slane %v1464, %v1478
    %v1480 = vlaneseq
    %v1481 = vshrl.u32 %v1480, 7
    %v1482 = vsub.s32 0, %v1481
    %v1483 = vrot.slane %v1465, %v1482
    %v1484 = vmul.f32 %v1418, %v1479
    %v1485 = vmul.f32 %v1420, %v1483
    %v1486 = vlaneseq
    %v1487 = vshrl.u32 %v1486, 7
    %v1488 = vsub.s32 1, %v1487
    %v1489 = vrot.slane %v1474, %v1488
    %v1490 = vlaneseq
    %v1491 = vshrl.u32 %v1490, 7
    %v1492 = vsub.s32 1, %v1491
    %v1493 = vrot.slane %v1475, %v1492
    %v1494 = vadd.f32 %v1484, %v1489
    %v1495 = vadd.f32 %v1485, %v1493
    %v1496 = vmax.f32 %v1494, 0.0
    %v1497 = vmax.f32 %v1495, 0.0
    %v1498 = vpack.c.bf16 %v1496, %v1496
    %v1499 = vpack.c.bf16 %v1497, %v1497
    %1500 = vmatprep.subr.bf16.mxu0 %v1348
    %1501 = vmatpush1.bf16.msra.mxu0 %v1347
    %1502 = vmatprep.subr.bf16.mxu0 %v1350
    %1503 = vmatpush1.bf16.msra.mxu0 %v1349
    %1504 = vmatprep.subr.bf16.mxu0 %v1352
    %1505 = vmatpush1.bf16.msra.mxu0 %v1351
    %1506 = vmatprep.subr.bf16.mxu0 %v1354
    %1507 = vmatpush1.bf16.msra.mxu0 %v1353
    %1508 = vmatprep.subr.bf16.mxu0 %v1356
    %1509 = vmatpush1.bf16.msra.mxu0 %v1355
    %1510 = vmatprep.subr.bf16.mxu0 %v1358
    %1511 = vmatpush1.bf16.msra.mxu0 %v1357
    %1512 = vmatprep.subr.bf16.mxu0 %v1360
    %1513 = vmatpush1.bf16.msra.mxu0 %v1359
    %1514 = vmatprep.subr.bf16.mxu0 %v1362
    %1515 = vmatpush1.bf16.msra.mxu0 %v1361
    %1516 = vmatprep.subr.bf16.mxu0 %v1364
    %1517 = vmatpush1.bf16.msra.mxu0 %v1363
    %1518 = vmatprep.subr.bf16.mxu0 %v1366
    %1519 = vmatpush1.bf16.msra.mxu0 %v1365
    %1520 = vmatprep.subr.bf16.mxu0 %v1368
    %1521 = vmatpush1.bf16.msra.mxu0 %v1367
    %1522 = vmatprep.subr.bf16.mxu0 %v1370
    %1523 = vmatpush1.bf16.msra.mxu0 %v1369
    %1524 = vmatprep.subr.bf16.mxu0 %v1372
    %1525 = vmatpush1.bf16.msra.mxu0 %v1371
    %1526 = vmatprep.subr.bf16.mxu0 %v1374
    %1527 = vmatpush1.bf16.msra.mxu0 %v1373
    %1528 = vmatprep.subr.bf16.mxu0 %v1376
    %1529 = vmatpush1.bf16.msra.mxu0 %v1375
    %1530 = vmatprep.subr.bf16.mxu0 %v1378
    %1531 = vmatpush1.bf16.msra.mxu0 %v1377
    %1532 = vmatprep.mubr.bf16.mxu0 %v1499
    %1533 = vmatmul.mubr.bf16.gmra.mrb[0].mxu0 %v1498
    %v1534 = vpop.f32.mrb[0].mxu0
    %v1535 = vadd.f32 0.0, %v1534
    %v1536 = vpop.f32.mrb[0].mxu0
    %v1537 = vadd.f32 0.0, %v1536
    %v1538 = vpop.f32.mrb[0].mxu0
    %v1539 = vpop.f32.mrb[0].mxu0
    %1540 = vdwg.mxu0
    %v1541 = vrot.slane %v1535, 4
    %v1542 = vadd.f32 %v1535, %v1541
    %v1543 = vrot.slane %v1542, 2
    %v1544 = vadd.f32 %v1542, %v1543
    %v1545 = vrot.slane %v1544, 1
    %v1546 = vadd.f32 %v1544, %v1545
    %v1547 = vrot.slane %v1537, 4
    %v1548 = vadd.f32 %v1537, %v1547
    %v1549 = vrot.slane %v1548, 2
    %v1550 = vadd.f32 %v1548, %v1549
    %v1551 = vrot.slane %v1550, 1
    %v1552 = vadd.f32 %v1550, %v1551
    %v1553 = vmul.f32 %v1535, %v1535
    %v1554 = vmul.f32 %v1537, %v1537
    %v1555 = vrot.slane %v1553, 4
    %v1556 = vadd.f32 %v1553, %v1555
    %v1557 = vrot.slane %v1556, 2
    %v1558 = vadd.f32 %v1556, %v1557
    %v1559 = vrot.slane %v1558, 1
    %v1560 = vadd.f32 %v1558, %v1559
    %v1561 = vrot.slane %v1554, 4
    %v1562 = vadd.f32 %v1554, %v1561
    %v1563 = vrot.slane %v1562, 2
    %v1564 = vadd.f32 %v1562, %v1563
    %v1565 = vrot.slane %v1564, 1
    %v1566 = vadd.f32 %v1564, %v1565
    %v1567 = vmul.f32 %v1546, 0.125
    %v1568 = vmul.f32 %v1552, 0.125
    %v1569 = vmul.f32 %v1560, 0.125
    %v1570 = vmul.f32 %v1566, 0.125
    %v1571 = vmul.f32 %v1567, %v1567
    %v1572 = vmul.f32 %v1568, %v1568
    %v1573 = vsub.f32 %v1569, %v1571
    %v1574 = vsub.f32 %v1570, %v1572
    %v1575 = vmax.f32 %v1573, 0.0
    %v1576 = vmax.f32 %v1574, 0.0
    %v1577 = vadd.f32 %v1575, 1e-05
    %v1578 = vadd.f32 %v1576, 1e-05
    %v1579 = vrsqrt.pop %v1577
    %v1580 = vrsqrt.pop %v1578
    %v1581 = vmul.f32 %v1379, %v1579
    %v1582 = vmul.f32 %v1380, %v1580
    %v1583 = vmul.f32 %v1567, %v1581
    %v1584 = vmul.f32 %v1568, %v1582
    %v1587 = vrot.slane %v1583, 7
    %v1588 = vrot.slane %v1584, 7
    %v1591 = vsub.f32 %v1379, %v1587
    %v1592 = vsub.f32 %v1380, %v1588
    %v1593 = vlaneseq
    %v1594 = vshrl.u32 %v1593, 7
    %v1595 = vsub.s32 2, %v1594
    %v1596 = vrot.slane %v1581, %v1595
    %v1597 = vlaneseq
    %v1598 = vshrl.u32 %v1597, 7
    %v1599 = vsub.s32 2, %v1598
    %v1600 = vrot.slane %v1582, %v1599
    %v1601 = vmul.f32 %v1535, %v1596
    %v1602 = vmul.f32 %v1537, %v1600
    %v1603 = vlaneseq
    %v1604 = vshrl.u32 %v1603, 7
    %v1605 = vsub.s32 3, %v1604
    %v1606 = vrot.slane %v1591, %v1605
    %v1607 = vlaneseq
    %v1608 = vshrl.u32 %v1607, 7
    %v1609 = vsub.s32 3, %v1608
    %v1610 = vrot.slane %v1592, %v1609
    %v1611 = vadd.f32 %v1601, %v1606
    %v1612 = vadd.f32 %v1602, %v1610
    %v1613 = vadd.f32 %v1611, %v1309
    %v1614 = vadd.f32 %v1612, %v1310
    %v1615 = vmax.f32 %v1613, 0.0
    %v1616 = vmax.f32 %v1614, 0.0
    %s1617 = smul.u32 %s965, 8
    %s1618 = sshll.u32 %s1617, 4
    %1619 = dma.done %s244, %s1618
    %s1620 = smul.u32 4, 64
    %s1621 = smul.u32 %s1620, 4
    %s1622 = sshll.u32 %s1621, 4
    %1623 = dma.done %s279, %s1622
    %v1624 = vld [vmem:[#allocation8] sm:$0xff]
    %v1625 = vld [vmem:[#allocation8 + $0x8] sm:$0xff]
    %v1626 = vld [vmem:[#allocation8 + $0x10] sm:$0xff]
    %v1627 = vld [vmem:[#allocation8 + $0x18] sm:$0xff]
    %v1628 = vld [vmem:[#allocation8 + $0x20] sm:$0xff]
    %v1629 = vld [vmem:[#allocation8 + $0x28] sm:$0xff]
    %v1630 = vld [vmem:[#allocation8 + $0x30] sm:$0xff]
    %v1631 = vld [vmem:[#allocation8 + $0x38] sm:$0xff]
    %v1632 = vld [vmem:[#allocation8 + $0x40] sm:$0xff]
    %v1633 = vld [vmem:[#allocation8 + $0x48] sm:$0xff]
    %v1634 = vld [vmem:[#allocation8 + $0x50] sm:$0xff]
    %v1635 = vld [vmem:[#allocation8 + $0x58] sm:$0xff]
    %v1636 = vld [vmem:[#allocation8 + $0x60] sm:$0xff]
    %v1637 = vld [vmem:[#allocation8 + $0x68] sm:$0xff]
    %v1638 = vld [vmem:[#allocation8 + $0x70] sm:$0xff]
    %v1639 = vld [vmem:[#allocation8 + $0x78] sm:$0xff]
    %v1640 = vld [vmem:[#allocation8 + $0x80] sm:$0xff]
    %v1641 = vld [vmem:[#allocation8 + $0x88] sm:$0xff]
    %v1642 = vld [vmem:[#allocation8 + $0x90] sm:$0xff]
    %v1643 = vld [vmem:[#allocation8 + $0x98] sm:$0xff]
    %v1644 = vld [vmem:[#allocation8 + $0xa0] sm:$0xff]
    %v1645 = vld [vmem:[#allocation8 + $0xa8] sm:$0xff]
    %v1646 = vld [vmem:[#allocation8 + $0xb0] sm:$0xff]
    %v1647 = vld [vmem:[#allocation8 + $0xb8] sm:$0xff]
    %v1648 = vld [vmem:[#allocation8 + $0xc0] sm:$0xff]
    %v1649 = vld [vmem:[#allocation8 + $0xc8] sm:$0xff]
    %v1650 = vld [vmem:[#allocation8 + $0xd0] sm:$0xff]
    %v1651 = vld [vmem:[#allocation8 + $0xd8] sm:$0xff]
    %v1652 = vld [vmem:[#allocation8 + $0xe0] sm:$0xff]
    %v1653 = vld [vmem:[#allocation8 + $0xe8] sm:$0xff]
    %v1654 = vld [vmem:[#allocation8 + $0xf0] sm:$0xff]
    %v1655 = vld [vmem:[#allocation8 + $0xf8] sm:$0xff]
    %v1656 = vld [vmem:[#allocation8 + $0x100] sm:$0xff]
    %v1657 = vld [vmem:[#allocation8 + $0x108] sm:$0xff]
    %v1658 = vld [vmem:[#allocation8 + $0x110] sm:$0xff]
    %v1659 = vld [vmem:[#allocation8 + $0x118] sm:$0xff]
    %v1660 = vld [vmem:[#allocation8 + $0x120] sm:$0xff]
    %v1661 = vld [vmem:[#allocation8 + $0x128] sm:$0xff]
    %v1662 = vld [vmem:[#allocation8 + $0x130] sm:$0xff]
    %v1663 = vld [vmem:[#allocation8 + $0x138] sm:$0xff]
    %v1664 = vld [vmem:[#allocation8 + $0x140] sm:$0xff]
    %v1665 = vld [vmem:[#allocation8 + $0x148] sm:$0xff]
    %v1666 = vld [vmem:[#allocation8 + $0x150] sm:$0xff]
    %v1667 = vld [vmem:[#allocation8 + $0x158] sm:$0xff]
    %v1668 = vld [vmem:[#allocation8 + $0x160] sm:$0xff]
    %v1669 = vld [vmem:[#allocation8 + $0x168] sm:$0xff]
    %v1670 = vld [vmem:[#allocation8 + $0x170] sm:$0xff]
    %v1671 = vld [vmem:[#allocation8 + $0x178] sm:$0xff]
    %v1672 = vld [vmem:[#allocation8 + $0x180] sm:$0xff]
    %v1673 = vld [vmem:[#allocation8 + $0x188] sm:$0xff]
    %v1674 = vld [vmem:[#allocation8 + $0x190] sm:$0xff]
    %v1675 = vld [vmem:[#allocation8 + $0x198] sm:$0xff]
    %v1676 = vld [vmem:[#allocation8 + $0x1a0] sm:$0xff]
    %v1677 = vld [vmem:[#allocation8 + $0x1a8] sm:$0xff]
    %v1678 = vld [vmem:[#allocation8 + $0x1b0] sm:$0xff]
    %v1679 = vld [vmem:[#allocation8 + $0x1b8] sm:$0xff]
    %v1680 = vld [vmem:[#allocation8 + $0x1c0] sm:$0xff]
    %v1681 = vld [vmem:[#allocation8 + $0x1c8] sm:$0xff]
    %v1682 = vld [vmem:[#allocation8 + $0x1d0] sm:$0xff]
    %v1683 = vld [vmem:[#allocation8 + $0x1d8] sm:$0xff]
    %v1684 = vld [vmem:[#allocation8 + $0x1e0] sm:$0xff]
    %v1685 = vld [vmem:[#allocation8 + $0x1e8] sm:$0xff]
    %v1686 = vld [vmem:[#allocation8 + $0x1f0] sm:$0xff]
    %v1687 = vld [vmem:[#allocation8 + $0x1f8] sm:$0xff]
    %v1688 = vld [vmem:[#allocation8 + $0x200] sm:$0xff]
    %v1689 = vld [vmem:[#allocation8 + $0x208] sm:$0xff]
    %v1690 = vld [vmem:[#allocation8 + $0x210] sm:$0xff]
    %v1691 = vld [vmem:[#allocation8 + $0x218] sm:$0xff]
    %v1692 = vld [vmem:[#allocation8 + $0x220] sm:$0xff]
    %v1693 = vld [vmem:[#allocation8 + $0x228] sm:$0xff]
    %v1694 = vld [vmem:[#allocation8 + $0x230] sm:$0xff]
    %v1695 = vld [vmem:[#allocation8 + $0x238] sm:$0xff]
    %v1696 = vld [vmem:[#allocation8 + $0x240] sm:$0xff]
    %v1697 = vld [vmem:[#allocation8 + $0x248] sm:$0xff]
    %v1698 = vld [vmem:[#allocation8 + $0x250] sm:$0xff]
    %v1699 = vld [vmem:[#allocation8 + $0x258] sm:$0xff]
    %v1700 = vld [vmem:[#allocation8 + $0x260] sm:$0xff]
    %v1701 = vld [vmem:[#allocation8 + $0x268] sm:$0xff]
    %v1702 = vld [vmem:[#allocation8 + $0x270] sm:$0xff]
    %v1703 = vld [vmem:[#allocation8 + $0x278] sm:$0xff]
    %v1704 = vld [vmem:[#allocation8 + $0x280] sm:$0xff]
    %v1705 = vld [vmem:[#allocation8 + $0x288] sm:$0xff]
    %v1706 = vld [vmem:[#allocation8 + $0x290] sm:$0xff]
    %v1707 = vld [vmem:[#allocation8 + $0x298] sm:$0xff]
    %v1708 = vld [vmem:[#allocation8 + $0x2a0] sm:$0xff]
    %v1709 = vld [vmem:[#allocation8 + $0x2a8] sm:$0xff]
    %v1710 = vld [vmem:[#allocation8 + $0x2b0] sm:$0xff]
    %v1711 = vld [vmem:[#allocation8 + $0x2b8] sm:$0xff]
    %v1712 = vld [vmem:[#allocation8 + $0x2c0] sm:$0xff]
    %v1713 = vld [vmem:[#allocation8 + $0x2c8] sm:$0xff]
    %v1714 = vld [vmem:[#allocation8 + $0x2d0] sm:$0xff]
    %v1715 = vld [vmem:[#allocation8 + $0x2d8] sm:$0xff]
    %v1716 = vld [vmem:[#allocation8 + $0x2e0] sm:$0xff]
    %v1717 = vld [vmem:[#allocation8 + $0x2e8] sm:$0xff]
    %v1718 = vld [vmem:[#allocation8 + $0x2f0] sm:$0xff]
    %v1719 = vld [vmem:[#allocation8 + $0x2f8] sm:$0xff]
    %v1720 = vld [vmem:[#allocation8 + $0x300] sm:$0xff]
    %v1721 = vld [vmem:[#allocation8 + $0x308] sm:$0xff]
    %v1722 = vld [vmem:[#allocation8 + $0x310] sm:$0xff]
    %v1723 = vld [vmem:[#allocation8 + $0x318] sm:$0xff]
    %v1724 = vld [vmem:[#allocation8 + $0x320] sm:$0xff]
    %v1725 = vld [vmem:[#allocation8 + $0x328] sm:$0xff]
    %v1726 = vld [vmem:[#allocation8 + $0x330] sm:$0xff]
    %v1727 = vld [vmem:[#allocation8 + $0x338] sm:$0xff]
    %v1728 = vld [vmem:[#allocation8 + $0x340] sm:$0xff]
    %v1729 = vld [vmem:[#allocation8 + $0x348] sm:$0xff]
    %v1730 = vld [vmem:[#allocation8 + $0x350] sm:$0xff]
    %v1731 = vld [vmem:[#allocation8 + $0x358] sm:$0xff]
    %v1732 = vld [vmem:[#allocation8 + $0x360] sm:$0xff]
    %v1733 = vld [vmem:[#allocation8 + $0x368] sm:$0xff]
    %v1734 = vld [vmem:[#allocation8 + $0x370] sm:$0xff]
    %v1735 = vld [vmem:[#allocation8 + $0x378] sm:$0xff]
    %v1736 = vld [vmem:[#allocation8 + $0x380] sm:$0xff]
    %v1737 = vld [vmem:[#allocation8 + $0x388] sm:$0xff]
    %v1738 = vld [vmem:[#allocation8 + $0x390] sm:$0xff]
    %v1739 = vld [vmem:[#allocation8 + $0x398] sm:$0xff]
    %v1740 = vld [vmem:[#allocation8 + $0x3a0] sm:$0xff]
    %v1741 = vld [vmem:[#allocation8 + $0x3a8] sm:$0xff]
    %v1742 = vld [vmem:[#allocation8 + $0x3b0] sm:$0xff]
    %v1743 = vld [vmem:[#allocation8 + $0x3b8] sm:$0xff]
    %v1744 = vld [vmem:[#allocation8 + $0x3c0] sm:$0xff]
    %v1745 = vld [vmem:[#allocation8 + $0x3c8] sm:$0xff]
    %v1746 = vld [vmem:[#allocation8 + $0x3d0] sm:$0xff]
    %v1747 = vld [vmem:[#allocation8 + $0x3d8] sm:$0xff]
    %v1748 = vld [vmem:[#allocation8 + $0x3e0] sm:$0xff]
    %v1749 = vld [vmem:[#allocation8 + $0x3e8] sm:$0xff]
    %v1750 = vld [vmem:[#allocation8 + $0x3f0] sm:$0xff]
    %v1751 = vld [vmem:[#allocation8 + $0x3f8] sm:$0xff]
    %v1752 = vld [vmem:[#allocation9] sm:$0xff]
    %v1753 = vld [vmem:[#allocation9 + $0x8] sm:$0xff]
    %v1754 = vld [vmem:[#allocation9 + $0x10] sm:$0xff]
    %v1755 = vld [vmem:[#allocation9 + $0x18] sm:$0xff]
    %v1756 = vld [vmem:[#allocation9 + $0x20] sm:$0xff]
    %v1757 = vld [vmem:[#allocation9 + $0x28] sm:$0xff]
    %v1758 = vld [vmem:[#allocation9 + $0x30] sm:$0xff]
    %v1759 = vld [vmem:[#allocation9 + $0x38] sm:$0xff]
    %v1760 = vld [vmem:[#allocation9 + $0x40] sm:$0xff]
    %v1761 = vld [vmem:[#allocation9 + $0x48] sm:$0xff]
    %v1762 = vld [vmem:[#allocation9 + $0x50] sm:$0xff]
    %v1763 = vld [vmem:[#allocation9 + $0x58] sm:$0xff]
    %v1764 = vld [vmem:[#allocation9 + $0x60] sm:$0xff]
    %v1765 = vld [vmem:[#allocation9 + $0x68] sm:$0xff]
    %v1766 = vld [vmem:[#allocation9 + $0x70] sm:$0xff]
    %v1767 = vld [vmem:[#allocation9 + $0x78] sm:$0xff]
    %v1768 = vld [vmem:[#allocation9 + $0x80] sm:$0xff]
    %v1769 = vld [vmem:[#allocation9 + $0x88] sm:$0xff]
    %v1770 = vld [vmem:[#allocation9 + $0x90] sm:$0xff]
    %v1771 = vld [vmem:[#allocation9 + $0x98] sm:$0xff]
    %v1772 = vld [vmem:[#allocation9 + $0xa0] sm:$0xff]
    %v1773 = vld [vmem:[#allocation9 + $0xa8] sm:$0xff]
    %v1774 = vld [vmem:[#allocation9 + $0xb0] sm:$0xff]
    %v1775 = vld [vmem:[#allocation9 + $0xb8] sm:$0xff]
    %v1776 = vld [vmem:[#allocation9 + $0xc0] sm:$0xff]
    %v1777 = vld [vmem:[#allocation9 + $0xc8] sm:$0xff]
    %v1778 = vld [vmem:[#allocation9 + $0xd0] sm:$0xff]
    %v1779 = vld [vmem:[#allocation9 + $0xd8] sm:$0xff]
    %v1780 = vld [vmem:[#allocation9 + $0xe0] sm:$0xff]
    %v1781 = vld [vmem:[#allocation9 + $0xe8] sm:$0xff]
    %v1782 = vld [vmem:[#allocation9 + $0xf0] sm:$0xff]
    %v1783 = vld [vmem:[#allocation9 + $0xf8] sm:$0xff]
    %v1784 = vld [vmem:[#allocation9 + $0x100] sm:$0xff]
    %v1785 = vld [vmem:[#allocation9 + $0x108] sm:$0xff]
    %v1786 = vld [vmem:[#allocation9 + $0x110] sm:$0xff]
    %v1787 = vld [vmem:[#allocation9 + $0x118] sm:$0xff]
    %v1788 = vld [vmem:[#allocation9 + $0x120] sm:$0xff]
    %v1789 = vld [vmem:[#allocation9 + $0x128] sm:$0xff]
    %v1790 = vld [vmem:[#allocation9 + $0x130] sm:$0xff]
    %v1791 = vld [vmem:[#allocation9 + $0x138] sm:$0xff]
    %v1792 = vld [vmem:[#allocation9 + $0x140] sm:$0xff]
    %v1793 = vld [vmem:[#allocation9 + $0x148] sm:$0xff]
    %v1794 = vld [vmem:[#allocation9 + $0x150] sm:$0xff]
    %v1795 = vld [vmem:[#allocation9 + $0x158] sm:$0xff]
    %v1796 = vld [vmem:[#allocation9 + $0x160] sm:$0xff]
    %v1797 = vld [vmem:[#allocation9 + $0x168] sm:$0xff]
    %v1798 = vld [vmem:[#allocation9 + $0x170] sm:$0xff]
    %v1799 = vld [vmem:[#allocation9 + $0x178] sm:$0xff]
    %v1800 = vld [vmem:[#allocation9 + $0x180] sm:$0xff]
    %v1801 = vld [vmem:[#allocation9 + $0x188] sm:$0xff]
    %v1802 = vld [vmem:[#allocation9 + $0x190] sm:$0xff]
    %v1803 = vld [vmem:[#allocation9 + $0x198] sm:$0xff]
    %v1804 = vld [vmem:[#allocation9 + $0x1a0] sm:$0xff]
    %v1805 = vld [vmem:[#allocation9 + $0x1a8] sm:$0xff]
    %v1806 = vld [vmem:[#allocation9 + $0x1b0] sm:$0xff]
    %v1807 = vld [vmem:[#allocation9 + $0x1b8] sm:$0xff]
    %v1808 = vld [vmem:[#allocation9 + $0x1c0] sm:$0xff]
    %v1809 = vld [vmem:[#allocation9 + $0x1c8] sm:$0xff]
    %v1810 = vld [vmem:[#allocation9 + $0x1d0] sm:$0xff]
    %v1811 = vld [vmem:[#allocation9 + $0x1d8] sm:$0xff]
    %v1812 = vld [vmem:[#allocation9 + $0x1e0] sm:$0xff]
    %v1813 = vld [vmem:[#allocation9 + $0x1e8] sm:$0xff]
    %v1814 = vld [vmem:[#allocation9 + $0x1f0] sm:$0xff]
    %v1815 = vld [vmem:[#allocation9 + $0x1f8] sm:$0xff]
    %v1816 = vld [vmem:[#allocation9 + $0x200] sm:$0xff]
    %v1817 = vld [vmem:[#allocation9 + $0x208] sm:$0xff]
    %v1818 = vld [vmem:[#allocation9 + $0x210] sm:$0xff]
    %v1819 = vld [vmem:[#allocation9 + $0x218] sm:$0xff]
    %v1820 = vld [vmem:[#allocation9 + $0x220] sm:$0xff]
    %v1821 = vld [vmem:[#allocation9 + $0x228] sm:$0xff]
    %v1822 = vld [vmem:[#allocation9 + $0x230] sm:$0xff]
    %v1823 = vld [vmem:[#allocation9 + $0x238] sm:$0xff]
    %v1824 = vld [vmem:[#allocation9 + $0x240] sm:$0xff]
    %v1825 = vld [vmem:[#allocation9 + $0x248] sm:$0xff]
    %v1826 = vld [vmem:[#allocation9 + $0x250] sm:$0xff]
    %v1827 = vld [vmem:[#allocation9 + $0x258] sm:$0xff]
    %v1828 = vld [vmem:[#allocation9 + $0x260] sm:$0xff]
    %v1829 = vld [vmem:[#allocation9 + $0x268] sm:$0xff]
    %v1830 = vld [vmem:[#allocation9 + $0x270] sm:$0xff]
    %v1831 = vld [vmem:[#allocation9 + $0x278] sm:$0xff]
    %v1832 = vld [vmem:[#allocation9 + $0x280] sm:$0xff]
    %v1833 = vld [vmem:[#allocation9 + $0x288] sm:$0xff]
    %v1834 = vld [vmem:[#allocation9 + $0x290] sm:$0xff]
    %v1835 = vld [vmem:[#allocation9 + $0x298] sm:$0xff]
    %v1836 = vld [vmem:[#allocation9 + $0x2a0] sm:$0xff]
    %v1837 = vld [vmem:[#allocation9 + $0x2a8] sm:$0xff]
    %v1838 = vld [vmem:[#allocation9 + $0x2b0] sm:$0xff]
    %v1839 = vld [vmem:[#allocation9 + $0x2b8] sm:$0xff]
    %v1840 = vld [vmem:[#allocation9 + $0x2c0] sm:$0xff]
    %v1841 = vld [vmem:[#allocation9 + $0x2c8] sm:$0xff]
    %v1842 = vld [vmem:[#allocation9 + $0x2d0] sm:$0xff]
    %v1843 = vld [vmem:[#allocation9 + $0x2d8] sm:$0xff]
    %v1844 = vld [vmem:[#allocation9 + $0x2e0] sm:$0xff]
    %v1845 = vld [vmem:[#allocation9 + $0x2e8] sm:$0xff]
    %v1846 = vld [vmem:[#allocation9 + $0x2f0] sm:$0xff]
    %v1847 = vld [vmem:[#allocation9 + $0x2f8] sm:$0xff]
    %v1848 = vld [vmem:[#allocation9 + $0x300] sm:$0xff]
    %v1849 = vld [vmem:[#allocation9 + $0x308] sm:$0xff]
    %v1850 = vld [vmem:[#allocation9 + $0x310] sm:$0xff]
    %v1851 = vld [vmem:[#allocation9 + $0x318] sm:$0xff]
    %v1852 = vld [vmem:[#allocation9 + $0x320] sm:$0xff]
    %v1853 = vld [vmem:[#allocation9 + $0x328] sm:$0xff]
    %v1854 = vld [vmem:[#allocation9 + $0x330] sm:$0xff]
    %v1855 = vld [vmem:[#allocation9 + $0x338] sm:$0xff]
    %v1856 = vld [vmem:[#allocation9 + $0x340] sm:$0xff]
    %v1857 = vld [vmem:[#allocation9 + $0x348] sm:$0xff]
    %v1858 = vld [vmem:[#allocation9 + $0x350] sm:$0xff]
    %v1859 = vld [vmem:[#allocation9 + $0x358] sm:$0xff]
    %v1860 = vld [vmem:[#allocation9 + $0x360] sm:$0xff]
    %v1861 = vld [vmem:[#allocation9 + $0x368] sm:$0xff]
    %v1862 = vld [vmem:[#allocation9 + $0x370] sm:$0xff]
    %v1863 = vld [vmem:[#allocation9 + $0x378] sm:$0xff]
    %v1864 = vld [vmem:[#allocation9 + $0x380] sm:$0xff]
    %v1865 = vld [vmem:[#allocation9 + $0x388] sm:$0xff]
    %v1866 = vld [vmem:[#allocation9 + $0x390] sm:$0xff]
    %v1867 = vld [vmem:[#allocation9 + $0x398] sm:$0xff]
    %v1868 = vld [vmem:[#allocation9 + $0x3a0] sm:$0xff]
    %v1869 = vld [vmem:[#allocation9 + $0x3a8] sm:$0xff]
    %v1870 = vld [vmem:[#allocation9 + $0x3b0] sm:$0xff]
    %v1871 = vld [vmem:[#allocation9 + $0x3b8] sm:$0xff]
    %v1872 = vld [vmem:[#allocation9 + $0x3c0] sm:$0xff]
    %v1873 = vld [vmem:[#allocation9 + $0x3c8] sm:$0xff]
    %v1874 = vld [vmem:[#allocation9 + $0x3d0] sm:$0xff]
    %v1875 = vld [vmem:[#allocation9 + $0x3d8] sm:$0xff]
    %v1876 = vld [vmem:[#allocation9 + $0x3e0] sm:$0xff]
    %v1877 = vld [vmem:[#allocation9 + $0x3e8] sm:$0xff]
    %v1878 = vld [vmem:[#allocation9 + $0x3f0] sm:$0xff]
    %v1879 = vld [vmem:[#allocation9 + $0x3f8] sm:$0xff]
    %v1880 = vld [vmem:[#allocation30 + $0x20] sm:$0xf0]
    %v1881 = vld [vmem:[#allocation30 + $0x28] sm:$0xf0]
    %v1882 = vld [vmem:[#allocation30 + $0x30] sm:$0xf0]
    %v1883 = vld [vmem:[#allocation30 + $0x38] sm:$0xf0]
    %v1884 = vpack.c.bf16 %v1615, %v1615
    %v1885 = vpack.c.bf16 %v1616, %v1616
    %1886 = vmatprep.subr.bf16.mxu0 %v1625
    %1887 = vmatpush1.bf16.msra.mxu0 %v1624
    %1888 = vmatprep.subr.bf16.mxu0 %v1633
    %1889 = vmatpush1.bf16.msra.mxu0 %v1632
    %1890 = vmatprep.subr.bf16.mxu0 %v1641
    %1891 = vmatpush1.bf16.msra.mxu0 %v1640
    %1892 = vmatprep.subr.bf16.mxu0 %v1649
    %1893 = vmatpush1.bf16.msra.mxu0 %v1648
    %1894 = vmatprep.subr.bf16.mxu0 %v1657
    %1895 = vmatpush1.bf16.msra.mxu0 %v1656
    %1896 = vmatprep.subr.bf16.mxu0 %v1665
    %1897 = vmatpush1.bf16.msra.mxu0 %v1664
    %1898 = vmatprep.subr.bf16.mxu0 %v1673
    %1899 = vmatpush1.bf16.msra.mxu0 %v1672
    %1900 = vmatprep.subr.bf16.mxu0 %v1681
    %1901 = vmatpush1.bf16.msra.mxu0 %v1680
    %1902 = vmatprep.subr.bf16.mxu0 %v1689
    %1903 = vmatpush1.bf16.msra.mxu0 %v1688
    %1904 = vmatprep.subr.bf16.mxu0 %v1697
    %1905 = vmatpush1.bf16.msra.mxu0 %v1696
    %1906 = vmatprep.subr.bf16.mxu0 %v1705
    %1907 = vmatpush1.bf16.msra.mxu0 %v1704
    %1908 = vmatprep.subr.bf16.mxu0 %v1713
    %1909 = vmatpush1.bf16.msra.mxu0 %v1712
    %1910 = vmatprep.subr.bf16.mxu0 %v1721
    %1911 = vmatpush1.bf16.msra.mxu0 %v1720
    %1912 = vmatprep.subr.bf16.mxu0 %v1729
    %1913 = vmatpush1.bf16.msra.mxu0 %v1728
    %1914 = vmatprep.subr.bf16.mxu0 %v1737
    %1915 = vmatpush1.bf16.msra.mxu0 %v1736
    %1916 = vmatprep.subr.bf16.mxu0 %v1745
    %1917 = vmatpush1.bf16.msra.mxu0 %v1744
    %1918 = vmatprep.mubr.bf16.mxu0 %v1885
    %1919 = vmatmul.mubr.bf16.gmra.mrb[0].mxu0 %v1884
    %v1920 = vpop.f32.mrb[0].mxu0
    %v1921 = vadd.f32 0.0, %v1920
    %v1922 = vpop.f32.mrb[0].mxu0
    %v1923 = vadd.f32 0.0, %v1922
    %v1924 = vpop.f32.mrb[0].mxu0
    %v1925 = vpop.f32.mrb[0].mxu0
    %1926 = vdwg.mxu0
    %1927 = vmatprep.subr.bf16.mxu0 %v1627
    %1928 = vmatpush1.bf16.msra.mxu0 %v1626
    %1929 = vmatprep.subr.bf16.mxu0 %v1635
    %1930 = vmatpush1.bf16.msra.mxu0 %v1634
    %1931 = vmatprep.subr.bf16.mxu0 %v1643
    %1932 = vmatpush1.bf16.msra.mxu0 %v1642
    %1933 = vmatprep.subr.bf16.mxu0 %v1651
    %1934 = vmatpush1.bf16.msra.mxu0 %v1650
    %1935 = vmatprep.subr.bf16.mxu0 %v1659
    %1936 = vmatpush1.bf16.msra.mxu0 %v1658
    %1937 = vmatprep.subr.bf16.mxu0 %v1667
    %1938 = vmatpush1.bf16.msra.mxu0 %v1666
    %1939 = vmatprep.subr.bf16.mxu0 %v1675
    %1940 = vmatpush1.bf16.msra.mxu0 %v1674
    %1941 = vmatprep.subr.bf16.mxu0 %v1683
    %1942 = vmatpush1.bf16.msra.mxu0 %v1682
    %1943 = vmatprep.subr.bf16.mxu0 %v1691
    %1944 = vmatpush1.bf16.msra.mxu0 %v1690
    %1945 = vmatprep.subr.bf16.mxu0 %v1699
    %1946 = vmatpush1.bf16.msra.mxu0 %v1698
    %1947 = vmatprep.subr.bf16.mxu0 %v1707
    %1948 = vmatpush1.bf16.msra.mxu0 %v1706
    %1949 = vmatprep.subr.bf16.mxu0 %v1715
    %1950 = vmatpush1.bf16.msra.mxu0 %v1714
    %1951 = vmatprep.subr.bf16.mxu0 %v1723
    %1952 = vmatpush1.bf16.msra.mxu0 %v1722
    %1953 = vmatprep.subr.bf16.mxu0 %v1731
    %1954 = vmatpush1.bf16.msra.mxu0 %v1730
    %1955 = vmatprep.subr.bf16.mxu0 %v1739
    %1956 = vmatpush1.bf16.msra.mxu0 %v1738
    %1957 = vmatprep.subr.bf16.mxu0 %v1747
    %1958 = vmatpush1.bf16.msra.mxu0 %v1746
    %1959 = vmatprep.mubr.bf16.mxu0 %v1885
    %1960 = vmatmul.mubr.bf16.gmra.mrb[0].mxu0 %v1884
    %v1961 = vpop.f32.mrb[0].mxu0
    %v1962 = vadd.f32 0.0, %v1961
    %v1963 = vpop.f32.mrb[0].mxu0
    %v1964 = vadd.f32 0.0, %v1963
    %v1965 = vpop.f32.mrb[0].mxu0
    %v1966 = vpop.f32.mrb[0].mxu0
    %1967 = vdwg.mxu0
    %1968 = vmatprep.subr.bf16.mxu0 %v1629
    %1969 = vmatpush1.bf16.msra.mxu0 %v1628
    %1970 = vmatprep.subr.bf16.mxu0 %v1637
    %1971 = vmatpush1.bf16.msra.mxu0 %v1636
    %1972 = vmatprep.subr.bf16.mxu0 %v1645
    %1973 = vmatpush1.bf16.msra.mxu0 %v1644
    %1974 = vmatprep.subr.bf16.mxu0 %v1653
    %1975 = vmatpush1.bf16.msra.mxu0 %v1652
    %1976 = vmatprep.subr.bf16.mxu0 %v1661
    %1977 = vmatpush1.bf16.msra.mxu0 %v1660
    %1978 = vmatprep.subr.bf16.mxu0 %v1669
    %1979 = vmatpush1.bf16.msra.mxu0 %v1668
    %1980 = vmatprep.subr.bf16.mxu0 %v1677
    %1981 = vmatpush1.bf16.msra.mxu0 %v1676
    %1982 = vmatprep.subr.bf16.mxu0 %v1685
    %1983 = vmatpush1.bf16.msra.mxu0 %v1684
    %1984 = vmatprep.subr.bf16.mxu0 %v1693
    %1985 = vmatpush1.bf16.msra.mxu0 %v1692
    %1986 = vmatprep.subr.bf16.mxu0 %v1701
    %1987 = vmatpush1.bf16.msra.mxu0 %v1700
    %1988 = vmatprep.subr.bf16.mxu0 %v1709
    %1989 = vmatpush1.bf16.msra.mxu0 %v1708
    %1990 = vmatprep.subr.bf16.mxu0 %v1717
    %1991 = vmatpush1.bf16.msra.mxu0 %v1716
    %1992 = vmatprep.subr.bf16.mxu0 %v1725
    %1993 = vmatpush1.bf16.msra.mxu0 %v1724
    %1994 = vmatprep.subr.bf16.mxu0 %v1733
    %1995 = vmatpush1.bf16.msra.mxu0 %v1732
    %1996 = vmatprep.subr.bf16.mxu0 %v1741
    %1997 = vmatpush1.bf16.msra.mxu0 %v1740
    %1998 = vmatprep.subr.bf16.mxu0 %v1749
    %1999 = vmatpush1.bf16.msra.mxu0 %v1748
    %2000 = vmatprep.mubr.bf16.mxu0 %v1885
    %2001 = vmatmul.mubr.bf16.gmra.mrb[0].mxu0 %v1884
    %v2002 = vpop.f32.mrb[0].mxu0
    %v2003 = vadd.f32 0.0, %v2002
    %v2004 = vpop.f32.mrb[0].mxu0
    %v2005 = vadd.f32 0.0, %v2004
    %v2006 = vpop.f32.mrb[0].mxu0
    %v2007 = vpop.f32.mrb[0].mxu0
    %2008 = vdwg.mxu0
    %2009 = vmatprep.subr.bf16.mxu0 %v1631
    %2010 = vmatpush1.bf16.msra.mxu0 %v1630
    %2011 = vmatprep.subr.bf16.mxu0 %v1639
    %2012 = vmatpush1.bf16.msra.mxu0 %v1638
    %2013 = vmatprep.subr.bf16.mxu0 %v1647
    %2014 = vmatpush1.bf16.msra.mxu0 %v1646
    %2015 = vmatprep.subr.bf16.mxu0 %v1655
    %2016 = vmatpush1.bf16.msra.mxu0 %v1654
    %2017 = vmatprep.subr.bf16.mxu0 %v1663
    %2018 = vmatpush1.bf16.msra.mxu0 %v1662
    %2019 = vmatprep.subr.bf16.mxu0 %v1671
    %2020 = vmatpush1.bf16.msra.mxu0 %v1670
    %2021 = vmatprep.subr.bf16.mxu0 %v1679
    %2022 = vmatpush1.bf16.msra.mxu0 %v1678
    %2023 = vmatprep.subr.bf16.mxu0 %v1687
    %2024 = vmatpush1.bf16.msra.mxu0 %v1686
    %2025 = vmatprep.subr.bf16.mxu0 %v1695
    %2026 = vmatpush1.bf16.msra.mxu0 %v1694
    %2027 = vmatprep.subr.bf16.mxu0 %v1703
    %2028 = vmatpush1.bf16.msra.mxu0 %v1702
    %2029 = vmatprep.subr.bf16.mxu0 %v1711
    %2030 = vmatpush1.bf16.msra.mxu0 %v1710
    %2031 = vmatprep.subr.bf16.mxu0 %v1719
    %2032 = vmatpush1.bf16.msra.mxu0 %v1718
    %2033 = vmatprep.subr.bf16.mxu0 %v1727
    %2034 = vmatpush1.bf16.msra.mxu0 %v1726
    %2035 = vmatprep.subr.bf16.mxu0 %v1735
    %2036 = vmatpush1.bf16.msra.mxu0 %v1734
    %2037 = vmatprep.subr.bf16.mxu0 %v1743
    %2038 = vmatpush1.bf16.msra.mxu0 %v1742
    %2039 = vmatprep.subr.bf16.mxu0 %v1751
    %2040 = vmatpush1.bf16.msra.mxu0 %v1750
    %2041 = vmatprep.mubr.bf16.mxu0 %v1885
    %2042 = vmatmul.mubr.bf16.gmra.mrb[0].mxu0 %v1884
    %v2043 = vpop.f32.mrb[0].mxu0
    %v2044 = vadd.f32 0.0, %v2043
    %v2045 = vpop.f32.mrb[0].mxu0
    %v2046 = vadd.f32 0.0, %v2045
    %v2047 = vpop.f32.mrb[0].mxu0
    %v2048 = vpop.f32.mrb[0].mxu0
    %2049 = vdwg.mxu0
    %v2050 = vrot.slane %v1921, 4
    %v2051 = vadd.f32 %v1921, %v2050
    %v2052 = vrot.slane %v2051, 2
    %v2053 = vadd.f32 %v2051, %v2052
    %v2054 = vrot.slane %v2053, 1
    %v2055 = vadd.f32 %v2053, %v2054
    %v2056 = vrot.slane %v1923, 4
    %v2057 = vadd.f32 %v1923, %v2056
    %v2058 = vrot.slane %v2057, 2
    %v2059 = vadd.f32 %v2057, %v2058
    %v2060 = vrot.slane %v2059, 1
    %v2061 = vadd.f32 %v2059, %v2060
    %v2062 = vrot.slane %v1962, 4
    %v2063 = vadd.f32 %v1962, %v2062
    %v2064 = vrot.slane %v2063, 2
    %v2065 = vadd.f32 %v2063, %v2064
    %v2066 = vrot.slane %v2065, 1
    %v2067 = vadd.f32 %v2065, %v2066
    %v2068 = vrot.slane %v1964, 4
    %v2069 = vadd.f32 %v1964, %v2068
    %v2070 = vrot.slane %v2069, 2
    %v2071 = vadd.f32 %v2069, %v2070
    %v2072 = vrot.slane %v2071, 1
    %v2073 = vadd.f32 %v2071, %v2072
    %v2074 = vmul.f32 %v1921, %v1921
    %v2075 = vmul.f32 %v1923, %v1923
    %v2076 = vmul.f32 %v1962, %v1962
    %v2077 = vmul.f32 %v1964, %v1964
    %v2078 = vrot.slane %v2074, 4
    %v2079 = vadd.f32 %v2074, %v2078
    %v2080 = vrot.slane %v2079, 2
    %v2081 = vadd.f32 %v2079, %v2080
    %v2082 = vrot.slane %v2081, 1
    %v2083 = vadd.f32 %v2081, %v2082
    %v2084 = vrot.slane %v2075, 4
    %v2085 = vadd.f32 %v2075, %v2084
    %v2086 = vrot.slane %v2085, 2
    %v2087 = vadd.f32 %v2085, %v2086
    %v2088 = vrot.slane %v2087, 1
    %v2089 = vadd.f32 %v2087, %v2088
    %v2090 = vrot.slane %v2076, 4
    %v2091 = vadd.f32 %v2076, %v2090
    %v2092 = vrot.slane %v2091, 2
    %v2093 = vadd.f32 %v2091, %v2092
    %v2094 = vrot.slane %v2093, 1
    %v2095 = vadd.f32 %v2093, %v2094
    %v2096 = vrot.slane %v2077, 4
    %v2097 = vadd.f32 %v2077, %v2096
    %v2098 = vrot.slane %v2097, 2
    %v2099 = vadd.f32 %v2097, %v2098
    %v2100 = vrot.slane %v2099, 1
    %v2101 = vadd.f32 %v2099, %v2100
    %v2102 = vmul.f32 %v2055, 0.125
    %v2103 = vmul.f32 %v2061, 0.125
    %v2104 = vmul.f32 %v2067, 0.125
    %v2105 = vmul.f32 %v2073, 0.125
    %v2106 = vmul.f32 %v2083, 0.125
    %v2107 = vmul.f32 %v2089, 0.125
    %v2108 = vmul.f32 %v2095, 0.125
    %v2109 = vmul.f32 %v2101, 0.125
    %v2110 = vmul.f32 %v2102, %v2102
    %v2111 = vmul.f32 %v2103, %v2103
    %v2112 = vmul.f32 %v2104, %v2104
    %v2113 = vmul.f32 %v2105, %v2105
    %v2114 = vsub.f32 %v2106, %v2110
    %v2115 = vsub.f32 %v2107, %v2111
    %v2116 = vsub.f32 %v2108, %v2112
    %v2117 = vsub.f32 %v2109, %v2113
    %v2118 = vmax.f32 %v2114, 0.0
    %v2119 = vmax.f32 %v2115, 0.0
    %v2120 = vmax.f32 %v2116, 0.0
    %v2121 = vmax.f32 %v2117, 0.0
    %v2122 = vadd.f32 %v2118, 1e-05
    %v2123 = vadd.f32 %v2119, 1e-05
    %v2124 = vadd.f32 %v2120, 1e-05
    %v2125 = vadd.f32 %v2121, 1e-05
    %v2126 = vrsqrt.pop %v2122
    %v2127 = vrsqrt.pop %v2123
    %v2128 = vrsqrt.pop %v2124
    %v2129 = vrsqrt.pop %v2125
    %v2130 = vmul.f32 %v1880, %v2126
    %v2131 = vmul.f32 %v1881, %v2127
    %v2132 = vmul.f32 %v1882, %v2128
    %v2133 = vmul.f32 %v1883, %v2129
    %v2134 = vmul.f32 %v2102, %v2130
    %v2135 = vmul.f32 %v2103, %v2131
    %v2136 = vmul.f32 %v2104, %v2132
    %v2137 = vmul.f32 %v2105, %v2133
    %v2142 = vrot.slane %v2134, 7
    %v2143 = vrot.slane %v2135, 7
    %v2144 = vrot.slane %v2136, 7
    %v2145 = vrot.slane %v2137, 7
    %v2150 = vsub.f32 %v1880, %v2142
    %v2151 = vsub.f32 %v1881, %v2143
    %v2152 = vsub.f32 %v1882, %v2144
    %v2153 = vsub.f32 %v1883, %v2145
    %v2154 = vlaneseq
    %v2155 = vshrl.u32 %v2154, 7
    %v2156 = vsub.s32 4, %v2155
    %v2157 = vrot.slane %v2130, %v2156
    %v2158 = vlaneseq
    %v2159 = vshrl.u32 %v2158, 7
    %v2160 = vsub.s32 4, %v2159
    %v2161 = vrot.slane %v2131, %v2160
    %v2162 = vlaneseq
    %v2163 = vshrl.u32 %v2162, 7
    %v2164 = vsub.s32 4, %v2163
    %v2165 = vrot.slane %v2132, %v2164
    %v2166 = vlaneseq
    %v2167 = vshrl.u32 %v2166, 7
    %v2168 = vsub.s32 4, %v2167
    %v2169 = vrot.slane %v2133, %v2168
    %v2170 = vmul.f32 %v1921, %v2157
    %v2171 = vmul.f32 %v1923, %v2161
    %v2172 = vmul.f32 %v1962, %v2165
    %v2173 = vmul.f32 %v1964, %v2169
    %v2174 = vlaneseq
    %v2175 = vshrl.u32 %v2174, 7
    %v2176 = vsub.s32 5, %v2175
    %v2177 = vrot.slane %v2150, %v2176
    %v2178 = vlaneseq
    %v2179 = vshrl.u32 %v2178, 7
    %v2180 = vsub.s32 5, %v2179
    %v2181 = vrot.slane %v2151, %v2180
    %v2182 = vlaneseq
    %v2183 = vshrl.u32 %v2182, 7
    %v2184 = vsub.s32 5, %v2183
    %v2185 = vrot.slane %v2152, %v2184
    %v2186 = vlaneseq
    %v2187 = vshrl.u32 %v2186, 7
    %v2188 = vsub.s32 5, %v2187
    %v2189 = vrot.slane %v2153, %v2188
    %v2190 = vadd.f32 %v2170, %v2177
    %v2191 = vadd.f32 %v2171, %v2181
    %v2192 = vadd.f32 %v2172, %v2185
    %v2193 = vadd.f32 %v2173, %v2189
    %v2194 = vmax.f32 %v2190, 0.0
    %v2195 = vmax.f32 %v2191, 0.0
    %v2196 = vmax.f32 %v2192, 0.0
    %v2197 = vmax.f32 %v2193, 0.0
    %v2198 = vpack.c.bf16 %v2194, %v2194
    %v2199 = vpack.c.bf16 %v2195, %v2195
    %v2200 = vpack.c.bf16 %v2196, %v2196
    %v2201 = vpack.c.bf16 %v2197, %v2197
    %2202 = vmatprep.subr.bf16.mxu0 %v1753
    %2203 = vmatpush1.bf16.msra.mxu0 %v1752
    %2204 = vmatprep.subr.bf16.mxu0 %v1757
    %2205 = vmatpush1.bf16.msra.mxu0 %v1756
    %2206 = vmatprep.subr.bf16.mxu0 %v1761
    %2207 = vmatpush1.bf16.msra.mxu0 %v1760
    %2208 = vmatprep.subr.bf16.mxu0 %v1765
    %2209 = vmatpush1.bf16.msra.mxu0 %v1764
    %2210 = vmatprep.subr.bf16.mxu0 %v1769
    %2211 = vmatpush1.bf16.msra.mxu0 %v1768
    %2212 = vmatprep.subr.bf16.mxu0 %v1773
    %2213 = vmatpush1.bf16.msra.mxu0 %v1772
    %2214 = vmatprep.subr.bf16.mxu0 %v1777
    %2215 = vmatpush1.bf16.msra.mxu0 %v1776
    %2216 = vmatprep.subr.bf16.mxu0 %v1781
    %2217 = vmatpush1.bf16.msra.mxu0 %v1780
    %2218 = vmatprep.subr.bf16.mxu0 %v1785
    %2219 = vmatpush1.bf16.msra.mxu0 %v1784
    %2220 = vmatprep.subr.bf16.mxu0 %v1789
    %2221 = vmatpush1.bf16.msra.mxu0 %v1788
    %2222 = vmatprep.subr.bf16.mxu0 %v1793
    %2223 = vmatpush1.bf16.msra.mxu0 %v1792
    %2224 = vmatprep.subr.bf16.mxu0 %v1797
    %2225 = vmatpush1.bf16.msra.mxu0 %v1796
    %2226 = vmatprep.subr.bf16.mxu0 %v1801
    %2227 = vmatpush1.bf16.msra.mxu0 %v1800
    %2228 = vmatprep.subr.bf16.mxu0 %v1805
    %2229 = vmatpush1.bf16.msra.mxu0 %v1804
    %2230 = vmatprep.subr.bf16.mxu0 %v1809
    %2231 = vmatpush1.bf16.msra.mxu0 %v1808
    %2232 = vmatprep.subr.bf16.mxu0 %v1813
    %2233 = vmatpush1.bf16.msra.mxu0 %v1812
    %2234 = vmatprep.mubr.bf16.mxu0 %v2199
    %2235 = vmatmul.mubr.bf16.gmra.mrb[0].mxu0 %v2198
    %v2236 = vpop.f32.mrb[0].mxu0
    %v2237 = vadd.f32 0.0, %v2236
    %v2238 = vpop.f32.mrb[0].mxu0
    %v2239 = vadd.f32 0.0, %v2238
    %v2240 = vpop.f32.mrb[0].mxu0
    %v2241 = vpop.f32.mrb[0].mxu0
    %2242 = vdwg.mxu0
    %2243 = vmatprep.subr.bf16.mxu0 %v1817
    %2244 = vmatpush1.bf16.msra.mxu0 %v1816
    %2245 = vmatprep.subr.bf16.mxu0 %v1821
    %2246 = vmatpush1.bf16.msra.mxu0 %v1820
    %2247 = vmatprep.subr.bf16.mxu0 %v1825
    %2248 = vmatpush1.bf16.msra.mxu0 %v1824
    %2249 = vmatprep.subr.bf16.mxu0 %v1829
    %2250 = vmatpush1.bf16.msra.mxu0 %v1828
    %2251 = vmatprep.subr.bf16.mxu0 %v1833
    %2252 = vmatpush1.bf16.msra.mxu0 %v1832
    %2253 = vmatprep.subr.bf16.mxu0 %v1837
    %2254 = vmatpush1.bf16.msra.mxu0 %v1836
    %2255 = vmatprep.subr.bf16.mxu0 %v1841
    %2256 = vmatpush1.bf16.msra.mxu0 %v1840
    %2257 = vmatprep.subr.bf16.mxu0 %v1845
    %2258 = vmatpush1.bf16.msra.mxu0 %v1844
    %2259 = vmatprep.subr.bf16.mxu0 %v1849
    %2260 = vmatpush1.bf16.msra.mxu0 %v1848
    %2261 = vmatprep.subr.bf16.mxu0 %v1853
    %2262 = vmatpush1.bf16.msra.mxu0 %v1852
    %2263 = vmatprep.subr.bf16.mxu0 %v1857
    %2264 = vmatpush1.bf16.msra.mxu0 %v1856
    %2265 = vmatprep.subr.bf16.mxu0 %v1861
    %2266 = vmatpush1.bf16.msra.mxu0 %v1860
    %2267 = vmatprep.subr.bf16.mxu0 %v1865
    %2268 = vmatpush1.bf16.msra.mxu0 %v1864
    %2269 = vmatprep.subr.bf16.mxu0 %v1869
    %2270 = vmatpush1.bf16.msra.mxu0 %v1868
    %2271 = vmatprep.subr.bf16.mxu0 %v1873
    %2272 = vmatpush1.bf16.msra.mxu0 %v1872
    %2273 = vmatprep.subr.bf16.mxu0 %v1877
    %2274 = vmatpush1.bf16.msra.mxu0 %v1876
    %2275 = vmatprep.mubr.bf16.mxu0 %v2201
    %2276 = vmatmul.mubr.bf16.gmra.mrb[0].mxu0 %v2200
    %v2277 = vpop.f32.mrb[0].mxu0
    %v2278 = vadd.f32 %v2237, %v2277
    %v2279 = vpop.f32.mrb[0].mxu0
    %v2280 = vadd.f32 %v2239, %v2279
    %v2281 = vpop.f32.mrb[0].mxu0
    %v2282 = vpop.f32.mrb[0].mxu0
    %2283 = vdwg.mxu0
    %2284 = vmatprep.subr.bf16.mxu0 %v1755
    %2285 = vmatpush1.bf16.msra.mxu0 %v1754
    %2286 = vmatprep.subr.bf16.mxu0 %v1759
    %2287 = vmatpush1.bf16.msra.mxu0 %v1758
    %2288 = vmatprep.subr.bf16.mxu0 %v1763
    %2289 = vmatpush1.bf16.msra.mxu0 %v1762
    %2290 = vmatprep.subr.bf16.mxu0 %v1767
    %2291 = vmatpush1.bf16.msra.mxu0 %v1766
    %2292 = vmatprep.subr.bf16.mxu0 %v1771
    %2293 = vmatpush1.bf16.msra.mxu0 %v1770
    %2294 = vmatprep.subr.bf16.mxu0 %v1775
    %2295 = vmatpush1.bf16.msra.mxu0 %v1774
    %2296 = vmatprep.subr.bf16.mxu0 %v1779
    %2297 = vmatpush1.bf16.msra.mxu0 %v1778
    %2298 = vmatprep.subr.bf16.mxu0 %v1783
    %2299 = vmatpush1.bf16.msra.mxu0 %v1782
    %2300 = vmatprep.subr.bf16.mxu0 %v1787
    %2301 = vmatpush1.bf16.msra.mxu0 %v1786
    %2302 = vmatprep.subr.bf16.mxu0 %v1791
    %2303 = vmatpush1.bf16.msra.mxu0 %v1790
    %2304 = vmatprep.subr.bf16.mxu0 %v1795
    %2305 = vmatpush1.bf16.msra.mxu0 %v1794
    %2306 = vmatprep.subr.bf16.mxu0 %v1799
    %2307 = vmatpush1.bf16.msra.mxu0 %v1798
    %2308 = vmatprep.subr.bf16.mxu0 %v1803
    %2309 = vmatpush1.bf16.msra.mxu0 %v1802
    %2310 = vmatprep.subr.bf16.mxu0 %v1807
    %2311 = vmatpush1.bf16.msra.mxu0 %v1806
    %2312 = vmatprep.subr.bf16.mxu0 %v1811
    %2313 = vmatpush1.bf16.msra.mxu0 %v1810
    %2314 = vmatprep.subr.bf16.mxu0 %v1815
    %2315 = vmatpush1.bf16.msra.mxu0 %v1814
    %2316 = vmatprep.mubr.bf16.mxu0 %v2199
    %2317 = vmatmul.mubr.bf16.gmra.mrb[0].mxu0 %v2198
    %v2318 = vpop.f32.mrb[0].mxu0
    %v2319 = vadd.f32 0.0, %v2318
    %v2320 = vpop.f32.mrb[0].mxu0
    %v2321 = vadd.f32 0.0, %v2320
    %v2322 = vpop.f32.mrb[0].mxu0
    %v2323 = vpop.f32.mrb[0].mxu0
    %2324 = vdwg.mxu0
    %2325 = vmatprep.subr.bf16.mxu0 %v1819
    %2326 = vmatpush1.bf16.msra.mxu0 %v1818
    %2327 = vmatprep.subr.bf16.mxu0 %v1823
    %2328 = vmatpush1.bf16.msra.mxu0 %v1822
    %2329 = vmatprep.subr.bf16.mxu0 %v1827
    %2330 = vmatpush1.bf16.msra.mxu0 %v1826
    %2331 = vmatprep.subr.bf16.mxu0 %v1831
    %2332 = vmatpush1.bf16.msra.mxu0 %v1830
    %2333 = vmatprep.subr.bf16.mxu0 %v1835
    %2334 = vmatpush1.bf16.msra.mxu0 %v1834
    %2335 = vmatprep.subr.bf16.mxu0 %v1839
    %2336 = vmatpush1.bf16.msra.mxu0 %v1838
    %2337 = vmatprep.subr.bf16.mxu0 %v1843
    %2338 = vmatpush1.bf16.msra.mxu0 %v1842
    %2339 = vmatprep.subr.bf16.mxu0 %v1847
    %2340 = vmatpush1.bf16.msra.mxu0 %v1846
    %2341 = vmatprep.subr.bf16.mxu0 %v1851
    %2342 = vmatpush1.bf16.msra.mxu0 %v1850
    %2343 = vmatprep.subr.bf16.mxu0 %v1855
    %2344 = vmatpush1.bf16.msra.mxu0 %v1854
    %2345 = vmatprep.subr.bf16.mxu0 %v1859
    %2346 = vmatpush1.bf16.msra.mxu0 %v1858
    %2347 = vmatprep.subr.bf16.mxu0 %v1863
    %2348 = vmatpush1.bf16.msra.mxu0 %v1862
    %2349 = vmatprep.subr.bf16.mxu0 %v1867
    %2350 = vmatpush1.bf16.msra.mxu0 %v1866
    %2351 = vmatprep.subr.bf16.mxu0 %v1871
    %2352 = vmatpush1.bf16.msra.mxu0 %v1870
    %2353 = vmatprep.subr.bf16.mxu0 %v1875
    %2354 = vmatpush1.bf16.msra.mxu0 %v1874
    %2355 = vmatprep.subr.bf16.mxu0 %v1879
    %2356 = vmatpush1.bf16.msra.mxu0 %v1878
    %2357 = vmatprep.mubr.bf16.mxu0 %v2201
    %2358 = vmatmul.mubr.bf16.gmra.mrb[0].mxu0 %v2200
    %v2359 = vpop.f32.mrb[0].mxu0
    %v2360 = vadd.f32 %v2319, %v2359
    %v2361 = vpop.f32.mrb[0].mxu0
    %v2362 = vadd.f32 %v2321, %v2361
    %v2363 = vpop.f32.mrb[0].mxu0
    %v2364 = vpop.f32.mrb[0].mxu0
    %2365 = vdwg.mxu0
    %v2366 = vrot.slane %v2278, 4
    %v2367 = vadd.f32 %v2278, %v2366
    %v2368 = vrot.slane %v2367, 2
    %v2369 = vadd.f32 %v2367, %v2368
    %v2370 = vrot.slane %v2369, 1
    %v2371 = vadd.f32 %v2369, %v2370
    %v2372 = vrot.slane %v2280, 4
    %v2373 = vadd.f32 %v2280, %v2372
    %v2374 = vrot.slane %v2373, 2
    %v2375 = vadd.f32 %v2373, %v2374
    %v2376 = vrot.slane %v2375, 1
    %v2377 = vadd.f32 %v2375, %v2376
    %v2378 = vrot.slane %v2360, 4
    %v2379 = vadd.f32 %v2360, %v2378
    %v2380 = vrot.slane %v2379, 2
    %v2381 = vadd.f32 %v2379, %v2380
    %v2382 = vrot.slane %v2381, 1
    %v2383 = vadd.f32 %v2381, %v2382
    %v2384 = vrot.slane %v2362, 4
    %v2385 = vadd.f32 %v2362, %v2384
    %v2386 = vrot.slane %v2385, 2
    %v2387 = vadd.f32 %v2385, %v2386
    %v2388 = vrot.slane %v2387, 1
    %v2389 = vadd.f32 %v2387, %v2388
    %v2390 = vmul.f32 %v2278, %v2278
    %v2391 = vmul.f32 %v2280, %v2280
    %v2392 = vmul.f32 %v2360, %v2360
    %v2393 = vmul.f32 %v2362, %v2362
    %v2394 = vrot.slane %v2390, 4
    %v2395 = vadd.f32 %v2390, %v2394
    %v2396 = vrot.slane %v2395, 2
    %v2397 = vadd.f32 %v2395, %v2396
    %v2398 = vrot.slane %v2397, 1
    %v2399 = vadd.f32 %v2397, %v2398
    %v2400 = vrot.slane %v2391, 4
    %v2401 = vadd.f32 %v2391, %v2400
    %v2402 = vrot.slane %v2401, 2
    %v2403 = vadd.f32 %v2401, %v2402
    %v2404 = vrot.slane %v2403, 1
    %v2405 = vadd.f32 %v2403, %v2404
    %v2406 = vrot.slane %v2392, 4
    %v2407 = vadd.f32 %v2392, %v2406
    %v2408 = vrot.slane %v2407, 2
    %v2409 = vadd.f32 %v2407, %v2408
    %v2410 = vrot.slane %v2409, 1
    %v2411 = vadd.f32 %v2409, %v2410
    %v2412 = vrot.slane %v2393, 4
    %v2413 = vadd.f32 %v2393, %v2412
    %v2414 = vrot.slane %v2413, 2
    %v2415 = vadd.f32 %v2413, %v2414
    %v2416 = vrot.slane %v2415, 1
    %v2417 = vadd.f32 %v2415, %v2416
    %v2418 = vmul.f32 %v2371, 0.125
    %v2419 = vmul.f32 %v2377, 0.125
    %v2420 = vmul.f32 %v2383, 0.125
    %v2421 = vmul.f32 %v2389, 0.125
    %v2422 = vmul.f32 %v2399, 0.125
    %v2423 = vmul.f32 %v2405, 0.125
    %v2424 = vmul.f32 %v2411, 0.125
    %v2425 = vmul.f32 %v2417, 0.125
    %v2426 = vmul.f32 %v2418, %v2418
    %v2427 = vmul.f32 %v2419, %v2419
    %v2428 = vmul.f32 %v2420, %v2420
    %v2429 = vmul.f32 %v2421, %v2421
    %v2430 = vsub.f32 %v2422, %v2426
    %v2431 = vsub.f32 %v2423, %v2427
    %v2432 = vsub.f32 %v2424, %v2428
    %v2433 = vsub.f32 %v2425, %v2429
    %v2434 = vmax.f32 %v2430, 0.0
    %v2435 = vmax.f32 %v2431, 0.0
    %v2436 = vmax.f32 %v2432, 0.0
    %v2437 = vmax.f32 %v2433, 0.0
    %v2438 = vadd.f32 %v2434, 1e-05
    %v2439 = vadd.f32 %v2435, 1e-05
    %v2440 = vadd.f32 %v2436, 1e-05
    %v2441 = vadd.f32 %v2437, 1e-05
    %v2442 = vrsqrt.pop %v2438
    %v2443 = vrsqrt.pop %v2439
    %v2444 = vrsqrt.pop %v2440
    %v2445 = vrsqrt.pop %v2441
    %v2446 = vmul.f32 %v1880, %v2442
    %v2447 = vmul.f32 %v1881, %v2443
    %v2448 = vmul.f32 %v1882, %v2444
    %v2449 = vmul.f32 %v1883, %v2445
    %v2450 = vmul.f32 %v2418, %v2446
    %v2451 = vmul.f32 %v2419, %v2447
    %v2452 = vmul.f32 %v2420, %v2448
    %v2453 = vmul.f32 %v2421, %v2449
    %v2458 = vrot.slane %v2450, 7
    %v2459 = vrot.slane %v2451, 7
    %v2460 = vrot.slane %v2452, 7
    %v2461 = vrot.slane %v2453, 7
    %v2466 = vsub.f32 %v1880, %v2458
    %v2467 = vsub.f32 %v1881, %v2459
    %v2468 = vsub.f32 %v1882, %v2460
    %v2469 = vsub.f32 %v1883, %v2461
    %v2470 = vlaneseq
    %v2471 = vshrl.u32 %v2470, 7
    %v2472 = vsub.s32 6, %v2471
    %v2473 = vrot.slane %v2446, %v2472
    %v2474 = vlaneseq
    %v2475 = vshrl.u32 %v2474, 7
    %v2476 = vsub.s32 6, %v2475
    %v2477 = vrot.slane %v2447, %v2476
    %v2478 = vlaneseq
    %v2479 = vshrl.u32 %v2478, 7
    %v2480 = vsub.s32 6, %v2479
    %v2481 = vrot.slane %v2448, %v2480
    %v2482 = vlaneseq
    %v2483 = vshrl.u32 %v2482, 7
    %v2484 = vsub.s32 6, %v2483
    %v2485 = vrot.slane %v2449, %v2484
    %v2486 = vmul.f32 %v2278, %v2473
    %v2487 = vmul.f32 %v2280, %v2477
    %v2488 = vmul.f32 %v2360, %v2481
    %v2489 = vmul.f32 %v2362, %v2485
    %v2490 = vlaneseq
    %v2491 = vshrl.u32 %v2490, 7
    %v2492 = vsub.s32 7, %v2491
    %v2493 = vrot.slane %v2466, %v2492
    %v2494 = vlaneseq
    %v2495 = vshrl.u32 %v2494, 7
    %v2496 = vsub.s32 7, %v2495
    %v2497 = vrot.slane %v2467, %v2496
    %v2498 = vlaneseq
    %v2499 = vshrl.u32 %v2498, 7
    %v2500 = vsub.s32 7, %v2499
    %v2501 = vrot.slane %v2468, %v2500
    %v2502 = vlaneseq
    %v2503 = vshrl.u32 %v2502, 7
    %v2504 = vsub.s32 7, %v2503
    %v2505 = vrot.slane %v2469, %v2504
    %v2506 = vadd.f32 %v2486, %v2493
    %v2507 = vadd.f32 %v2487, %v2497
    %v2508 = vadd.f32 %v2488, %v2501
    %v2509 = vadd.f32 %v2489, %v2505
    %v2510 = vadd.f32 %v2506, %v2003
    %v2511 = vadd.f32 %v2507, %v2005
    %v2512 = vadd.f32 %v2508, %v2044
    %v2513 = vadd.f32 %v2509, %v2046
    %v2514 = vmax.f32 %v2510, 0.0
    %v2515 = vmax.f32 %v2511, 0.0
    %v2516 = vmax.f32 %v2512, 0.0
    %v2517 = vmax.f32 %v2513, 0.0
    %s2518 = sshll.u32 %s1621, 4
    %2519 = dma.done %s314, %s2518
    %s2520 = sshll.u32 %s1621, 4
    %2521 = dma.done %s349, %s2520
    %v2522 = vld [vmem:[#allocation10] sm:$0xff]
    %v2523 = vld [vmem:[#allocation10 + $0x8] sm:$0xff]
    %v2524 = vld [vmem:[#allocation10 + $0x10] sm:$0xff]
    %v2525 = vld [vmem:[#allocation10 + $0x18] sm:$0xff]
    %v2526 = vld [vmem:[#allocation10 + $0x20] sm:$0xff]
    %v2527 = vld [vmem:[#allocation10 + $0x28] sm:$0xff]
    %v2528 = vld [vmem:[#allocation10 + $0x30] sm:$0xff]
    %v2529 = vld [vmem:[#allocation10 + $0x38] sm:$0xff]
    %v2530 = vld [vmem:[#allocation10 + $0x40] sm:$0xff]
    %v2531 = vld [vmem:[#allocation10 + $0x48] sm:$0xff]
    %v2532 = vld [vmem:[#allocation10 + $0x50] sm:$0xff]
    %v2533 = vld [vmem:[#allocation10 + $0x58] sm:$0xff]
    %v2534 = vld [vmem:[#allocation10 + $0x60] sm:$0xff]
    %v2535 = vld [vmem:[#allocation10 + $0x68] sm:$0xff]
    %v2536 = vld [vmem:[#allocation10 + $0x70] sm:$0xff]
    %v2537 = vld [vmem:[#allocation10 + $0x78] sm:$0xff]
    %v2538 = vld [vmem:[#allocation10 + $0x80] sm:$0xff]
    %v2539 = vld [vmem:[#allocation10 + $0x88] sm:$0xff]
    %v2540 = vld [vmem:[#allocation10 + $0x90] sm:$0xff]
    %v2541 = vld [vmem:[#allocation10 + $0x98] sm:$0xff]
    %v2542 = vld [vmem:[#allocation10 + $0xa0] sm:$0xff]
    %v2543 = vld [vmem:[#allocation10 + $0xa8] sm:$0xff]
    %v2544 = vld [vmem:[#allocation10 + $0xb0] sm:$0xff]
    %v2545 = vld [vmem:[#allocation10 + $0xb8] sm:$0xff]
    %v2546 = vld [vmem:[#allocation10 + $0xc0] sm:$0xff]
    %v2547 = vld [vmem:[#allocation10 + $0xc8] sm:$0xff]
    %v2548 = vld [vmem:[#allocation10 + $0xd0] sm:$0xff]
    %v2549 = vld [vmem:[#allocation10 + $0xd8] sm:$0xff]
    %v2550 = vld [vmem:[#allocation10 + $0xe0] sm:$0xff]
    %v2551 = vld [vmem:[#allocation10 + $0xe8] sm:$0xff]
    %v2552 = vld [vmem:[#allocation10 + $0xf0] sm:$0xff]
    %v2553 = vld [vmem:[#allocation10 + $0xf8] sm:$0xff]
    %v2554 = vld [vmem:[#allocation10 + $0x100] sm:$0xff]
    %v2555 = vld [vmem:[#allocation10 + $0x108] sm:$0xff]
    %v2556 = vld [vmem:[#allocation10 + $0x110] sm:$0xff]
    %v2557 = vld [vmem:[#allocation10 + $0x118] sm:$0xff]
    %v2558 = vld [vmem:[#allocation10 + $0x120] sm:$0xff]
    %v2559 = vld [vmem:[#allocation10 + $0x128] sm:$0xff]
    %v2560 = vld [vmem:[#allocation10 + $0x130] sm:$0xff]
    %v2561 = vld [vmem:[#allocation10 + $0x138] sm:$0xff]
    %v2562 = vld [vmem:[#allocation10 + $0x140] sm:$0xff]
    %v2563 = vld [vmem:[#allocation10 + $0x148] sm:$0xff]
    %v2564 = vld [vmem:[#allocation10 + $0x150] sm:$0xff]
    %v2565 = vld [vmem:[#allocation10 + $0x158] sm:$0xff]
    %v2566 = vld [vmem:[#allocation10 + $0x160] sm:$0xff]
    %v2567 = vld [vmem:[#allocation10 + $0x168] sm:$0xff]
    %v2568 = vld [vmem:[#allocation10 + $0x170] sm:$0xff]
    %v2569 = vld [vmem:[#allocation10 + $0x178] sm:$0xff]
    %v2570 = vld [vmem:[#allocation10 + $0x180] sm:$0xff]
    %v2571 = vld [vmem:[#allocation10 + $0x188] sm:$0xff]
    %v2572 = vld [vmem:[#allocation10 + $0x190] sm:$0xff]
    %v2573 = vld [vmem:[#allocation10 + $0x198] sm:$0xff]
    %v2574 = vld [vmem:[#allocation10 + $0x1a0] sm:$0xff]
    %v2575 = vld [vmem:[#allocation10 + $0x1a8] sm:$0xff]
    %v2576 = vld [vmem:[#allocation10 + $0x1b0] sm:$0xff]
    %v2577 = vld [vmem:[#allocation10 + $0x1b8] sm:$0xff]
    %v2578 = vld [vmem:[#allocation10 + $0x1c0] sm:$0xff]
    %v2579 = vld [vmem:[#allocation10 + $0x1c8] sm:$0xff]
    %v2580 = vld [vmem:[#allocation10 + $0x1d0] sm:$0xff]
    %v2581 = vld [vmem:[#allocation10 + $0x1d8] sm:$0xff]
    %v2582 = vld [vmem:[#allocation10 + $0x1e0] sm:$0xff]
    %v2583 = vld [vmem:[#allocation10 + $0x1e8] sm:$0xff]
    %v2584 = vld [vmem:[#allocation10 + $0x1f0] sm:$0xff]
    %v2585 = vld [vmem:[#allocation10 + $0x1f8] sm:$0xff]
    %v2586 = vld [vmem:[#allocation10 + $0x200] sm:$0xff]
    %v2587 = vld [vmem:[#allocation10 + $0x208] sm:$0xff]
    %v2588 = vld [vmem:[#allocation10 + $0x210] sm:$0xff]
    %v2589 = vld [vmem:[#allocation10 + $0x218] sm:$0xff]
    %v2590 = vld [vmem:[#allocation10 + $0x220] sm:$0xff]
    %v2591 = vld [vmem:[#allocation10 + $0x228] sm:$0xff]
    %v2592 = vld [vmem:[#allocation10 + $0x230] sm:$0xff]
    %v2593 = vld [vmem:[#allocation10 + $0x238] sm:$0xff]
    %v2594 = vld [vmem:[#allocation10 + $0x240] sm:$0xff]
    %v2595 = vld [vmem:[#allocation10 + $0x248] sm:$0xff]
    %v2596 = vld [vmem:[#allocation10 + $0x250] sm:$0xff]
    %v2597 = vld [vmem:[#allocation10 + $0x258] sm:$0xff]
    %v2598 = vld [vmem:[#allocation10 + $0x260] sm:$0xff]
    %v2599 = vld [vmem:[#allocation10 + $0x268] sm:$0xff]
    %v2600 = vld [vmem:[#allocation10 + $0x270] sm:$0xff]
    %v2601 = vld [vmem:[#allocation10 + $0x278] sm:$0xff]
    %v2602 = vld [vmem:[#allocation10 + $0x280] sm:$0xff]
    %v2603 = vld [vmem:[#allocation10 + $0x288] sm:$0xff]
    %v2604 = vld [vmem:[#allocation10 + $0x290] sm:$0xff]
    %v2605 = vld [vmem:[#allocation10 + $0x298] sm:$0xff]
    %v2606 = vld [vmem:[#allocation10 + $0x2a0] sm:$0xff]
    %v2607 = vld [vmem:[#allocation10 + $0x2a8] sm:$0xff]
    %v2608 = vld [vmem:[#allocation10 + $0x2b0] sm:$0xff]
    %v2609 = vld [vmem:[#allocation10 + $0x2b8] sm:$0xff]
    %v2610 = vld [vmem:[#allocation10 + $0x2c0] sm:$0xff]
    %v2611 = vld [vmem:[#allocation10 + $0x2c8] sm:$0xff]
    %v2612 = vld [vmem:[#allocation10 + $0x2d0] sm:$0xff]
    %v2613 = vld [vmem:[#allocation10 + $0x2d8] sm:$0xff]
    %v2614 = vld [vmem:[#allocation10 + $0x2e0] sm:$0xff]
    %v2615 = vld [vmem:[#allocation10 + $0x2e8] sm:$0xff]
    %v2616 = vld [vmem:[#allocation10 + $0x2f0] sm:$0xff]
    %v2617 = vld [vmem:[#allocation10 + $0x2f8] sm:$0xff]
    %v2618 = vld [vmem:[#allocation10 + $0x300] sm:$0xff]
    %v2619 = vld [vmem:[#allocation10 + $0x308] sm:$0xff]
    %v2620 = vld [vmem:[#allocation10 + $0x310] sm:$0xff]
    %v2621 = vld [vmem:[#allocation10 + $0x318] sm:$0xff]
    %v2622 = vld [vmem:[#allocation10 + $0x320] sm:$0xff]
    %v2623 = vld [vmem:[#allocation10 + $0x328] sm:$0xff]
    %v2624 = vld [vmem:[#allocation10 + $0x330] sm:$0xff]
    %v2625 = vld [vmem:[#allocation10 + $0x338] sm:$0xff]
    %v2626 = vld [vmem:[#allocation10 + $0x340] sm:$0xff]
    %v2627 = vld [vmem:[#allocation10 + $0x348] sm:$0xff]
    %v2628 = vld [vmem:[#allocation10 + $0x350] sm:$0xff]
    %v2629 = vld [vmem:[#allocation10 + $0x358] sm:$0xff]
    %v2630 = vld [vmem:[#allocation10 + $0x360] sm:$0xff]
    %v2631 = vld [vmem:[#allocation10 + $0x368] sm:$0xff]
    %v2632 = vld [vmem:[#allocation10 + $0x370] sm:$0xff]
    %v2633 = vld [vmem:[#allocation10 + $0x378] sm:$0xff]
    %v2634 = vld [vmem:[#allocation10 + $0x380] sm:$0xff]
    %v2635 = vld [vmem:[#allocation10 + $0x388] sm:$0xff]
    %v2636 = vld [vmem:[#allocation10 + $0x390] sm:$0xff]
    %v2637 = vld [vmem:[#allocation10 + $0x398] sm:$0xff]
    %v2638 = vld [vmem:[#allocation10 + $0x3a0] sm:$0xff]
    %v2639 = vld [vmem:[#allocation10 + $0x3a8] sm:$0xff]
    %v2640 = vld [vmem:[#allocation10 + $0x3b0] sm:$0xff]
    %v2641 = vld [vmem:[#allocation10 + $0x3b8] sm:$0xff]
    %v2642 = vld [vmem:[#allocation10 + $0x3c0] sm:$0xff]
    %v2643 = vld [vmem:[#allocation10 + $0x3c8] sm:$0xff]
    %v2644 = vld [vmem:[#allocation10 + $0x3d0] sm:$0xff]
    %v2645 = vld [vmem:[#allocation10 + $0x3d8] sm:$0xff]
    %v2646 = vld [vmem:[#allocation10 + $0x3e0] sm:$0xff]
    %v2647 = vld [vmem:[#allocation10 + $0x3e8] sm:$0xff]
    %v2648 = vld [vmem:[#allocation10 + $0x3f0] sm:$0xff]
    %v2649 = vld [vmem:[#allocation10 + $0x3f8] sm:$0xff]
    %v2650 = vld [vmem:[#allocation11] sm:$0xff]
    %v2651 = vld [vmem:[#allocation11 + $0x8] sm:$0xff]
    %v2652 = vld [vmem:[#allocation11 + $0x10] sm:$0xff]
    %v2653 = vld [vmem:[#allocation11 + $0x18] sm:$0xff]
    %v2654 = vld [vmem:[#allocation11 + $0x20] sm:$0xff]
    %v2655 = vld [vmem:[#allocation11 + $0x28] sm:$0xff]
    %v2656 = vld [vmem:[#allocation11 + $0x30] sm:$0xff]
    %v2657 = vld [vmem:[#allocation11 + $0x38] sm:$0xff]
    %v2658 = vld [vmem:[#allocation11 + $0x40] sm:$0xff]
    %v2659 = vld [vmem:[#allocation11 + $0x48] sm:$0xff]
    %v2660 = vld [vmem:[#allocation11 + $0x50] sm:$0xff]
    %v2661 = vld [vmem:[#allocation11 + $0x58] sm:$0xff]
    %v2662 = vld [vmem:[#allocation11 + $0x60] sm:$0xff]
    %v2663 = vld [vmem:[#allocation11 + $0x68] sm:$0xff]
    %v2664 = vld [vmem:[#allocation11 + $0x70] sm:$0xff]
    %v2665 = vld [vmem:[#allocation11 + $0x78] sm:$0xff]
    %v2666 = vld [vmem:[#allocation11 + $0x80] sm:$0xff]
    %v2667 = vld [vmem:[#allocation11 + $0x88] sm:$0xff]
    %v2668 = vld [vmem:[#allocation11 + $0x90] sm:$0xff]
    %v2669 = vld [vmem:[#allocation11 + $0x98] sm:$0xff]
    %v2670 = vld [vmem:[#allocation11 + $0xa0] sm:$0xff]
    %v2671 = vld [vmem:[#allocation11 + $0xa8] sm:$0xff]
    %v2672 = vld [vmem:[#allocation11 + $0xb0] sm:$0xff]
    %v2673 = vld [vmem:[#allocation11 + $0xb8] sm:$0xff]
    %v2674 = vld [vmem:[#allocation11 + $0xc0] sm:$0xff]
    %v2675 = vld [vmem:[#allocation11 + $0xc8] sm:$0xff]
    %v2676 = vld [vmem:[#allocation11 + $0xd0] sm:$0xff]
    %v2677 = vld [vmem:[#allocation11 + $0xd8] sm:$0xff]
    %v2678 = vld [vmem:[#allocation11 + $0xe0] sm:$0xff]
    %v2679 = vld [vmem:[#allocation11 + $0xe8] sm:$0xff]
    %v2680 = vld [vmem:[#allocation11 + $0xf0] sm:$0xff]
    %v2681 = vld [vmem:[#allocation11 + $0xf8] sm:$0xff]
    %v2682 = vld [vmem:[#allocation11 + $0x100] sm:$0xff]
    %v2683 = vld [vmem:[#allocation11 + $0x108] sm:$0xff]
    %v2684 = vld [vmem:[#allocation11 + $0x110] sm:$0xff]
    %v2685 = vld [vmem:[#allocation11 + $0x118] sm:$0xff]
    %v2686 = vld [vmem:[#allocation11 + $0x120] sm:$0xff]
    %v2687 = vld [vmem:[#allocation11 + $0x128] sm:$0xff]
    %v2688 = vld [vmem:[#allocation11 + $0x130] sm:$0xff]
    %v2689 = vld [vmem:[#allocation11 + $0x138] sm:$0xff]
    %v2690 = vld [vmem:[#allocation11 + $0x140] sm:$0xff]
    %v2691 = vld [vmem:[#allocation11 + $0x148] sm:$0xff]
    %v2692 = vld [vmem:[#allocation11 + $0x150] sm:$0xff]
    %v2693 = vld [vmem:[#allocation11 + $0x158] sm:$0xff]
    %v2694 = vld [vmem:[#allocation11 + $0x160] sm:$0xff]
    %v2695 = vld [vmem:[#allocation11 + $0x168] sm:$0xff]
    %v2696 = vld [vmem:[#allocation11 + $0x170] sm:$0xff]
    %v2697 = vld [vmem:[#allocation11 + $0x178] sm:$0xff]
    %v2698 = vld [vmem:[#allocation11 + $0x180] sm:$0xff]
    %v2699 = vld [vmem:[#allocation11 + $0x188] sm:$0xff]
    %v2700 = vld [vmem:[#allocation11 + $0x190] sm:$0xff]
    %v2701 = vld [vmem:[#allocation11 + $0x198] sm:$0xff]
    %v2702 = vld [vmem:[#allocation11 + $0x1a0] sm:$0xff]
    %v2703 = vld [vmem:[#allocation11 + $0x1a8] sm:$0xff]
    %v2704 = vld [vmem:[#allocation11 + $0x1b0] sm:$0xff]
    %v2705 = vld [vmem:[#allocation11 + $0x1b8] sm:$0xff]
    %v2706 = vld [vmem:[#allocation11 + $0x1c0] sm:$0xff]
    %v2707 = vld [vmem:[#allocation11 + $0x1c8] sm:$0xff]
    %v2708 = vld [vmem:[#allocation11 + $0x1d0] sm:$0xff]
    %v2709 = vld [vmem:[#allocation11 + $0x1d8] sm:$0xff]
    %v2710 = vld [vmem:[#allocation11 + $0x1e0] sm:$0xff]
    %v2711 = vld [vmem:[#allocation11 + $0x1e8] sm:$0xff]
    %v2712 = vld [vmem:[#allocation11 + $0x1f0] sm:$0xff]
    %v2713 = vld [vmem:[#allocation11 + $0x1f8] sm:$0xff]
    %v2714 = vld [vmem:[#allocation11 + $0x200] sm:$0xff]
    %v2715 = vld [vmem:[#allocation11 + $0x208] sm:$0xff]
    %v2716 = vld [vmem:[#allocation11 + $0x210] sm:$0xff]
    %v2717 = vld [vmem:[#allocation11 + $0x218] sm:$0xff]
    %v2718 = vld [vmem:[#allocation11 + $0x220] sm:$0xff]
    %v2719 = vld [vmem:[#allocation11 + $0x228] sm:$0xff]
    %v2720 = vld [vmem:[#allocation11 + $0x230] sm:$0xff]
    %v2721 = vld [vmem:[#allocation11 + $0x238] sm:$0xff]
    %v2722 = vld [vmem:[#allocation11 + $0x240] sm:$0xff]
    %v2723 = vld [vmem:[#allocation11 + $0x248] sm:$0xff]
    %v2724 = vld [vmem:[#allocation11 + $0x250] sm:$0xff]
    %v2725 = vld [vmem:[#allocation11 + $0x258] sm:$0xff]
    %v2726 = vld [vmem:[#allocation11 + $0x260] sm:$0xff]
    %v2727 = vld [vmem:[#allocation11 + $0x268] sm:$0xff]
    %v2728 = vld [vmem:[#allocation11 + $0x270] sm:$0xff]
    %v2729 = vld [vmem:[#allocation11 + $0x278] sm:$0xff]
    %v2730 = vld [vmem:[#allocation11 + $0x280] sm:$0xff]
    %v2731 = vld [vmem:[#allocation11 + $0x288] sm:$0xff]
    %v2732 = vld [vmem:[#allocation11 + $0x290] sm:$0xff]
    %v2733 = vld [vmem:[#allocation11 + $0x298] sm:$0xff]
    %v2734 = vld [vmem:[#allocation11 + $0x2a0] sm:$0xff]
    %v2735 = vld [vmem:[#allocation11 + $0x2a8] sm:$0xff]
    %v2736 = vld [vmem:[#allocation11 + $0x2b0] sm:$0xff]
    %v2737 = vld [vmem:[#allocation11 + $0x2b8] sm:$0xff]
    %v2738 = vld [vmem:[#allocation11 + $0x2c0] sm:$0xff]
    %v2739 = vld [vmem:[#allocation11 + $0x2c8] sm:$0xff]
    %v2740 = vld [vmem:[#allocation11 + $0x2d0] sm:$0xff]
    %v2741 = vld [vmem:[#allocation11 + $0x2d8] sm:$0xff]
    %v2742 = vld [vmem:[#allocation11 + $0x2e0] sm:$0xff]
    %v2743 = vld [vmem:[#allocation11 + $0x2e8] sm:$0xff]
    %v2744 = vld [vmem:[#allocation11 + $0x2f0] sm:$0xff]
    %v2745 = vld [vmem:[#allocation11 + $0x2f8] sm:$0xff]
    %v2746 = vld [vmem:[#allocation11 + $0x300] sm:$0xff]
    %v2747 = vld [vmem:[#allocation11 + $0x308] sm:$0xff]
    %v2748 = vld [vmem:[#allocation11 + $0x310] sm:$0xff]
    %v2749 = vld [vmem:[#allocation11 + $0x318] sm:$0xff]
    %v2750 = vld [vmem:[#allocation11 + $0x320] sm:$0xff]
    %v2751 = vld [vmem:[#allocation11 + $0x328] sm:$0xff]
    %v2752 = vld [vmem:[#allocation11 + $0x330] sm:$0xff]
    %v2753 = vld [vmem:[#allocation11 + $0x338] sm:$0xff]
    %v2754 = vld [vmem:[#allocation11 + $0x340] sm:$0xff]
    %v2755 = vld [vmem:[#allocation11 + $0x348] sm:$0xff]
    %v2756 = vld [vmem:[#allocation11 + $0x350] sm:$0xff]
    %v2757 = vld [vmem:[#allocation11 + $0x358] sm:$0xff]
    %v2758 = vld [vmem:[#allocation11 + $0x360] sm:$0xff]
    %v2759 = vld [vmem:[#allocation11 + $0x368] sm:$0xff]
    %v2760 = vld [vmem:[#allocation11 + $0x370] sm:$0xff]
    %v2761 = vld [vmem:[#allocation11 + $0x378] sm:$0xff]
    %v2762 = vld [vmem:[#allocation11 + $0x380] sm:$0xff]
    %v2763 = vld [vmem:[#allocation11 + $0x388] sm:$0xff]
    %v2764 = vld [vmem:[#allocation11 + $0x390] sm:$0xff]
    %v2765 = vld [vmem:[#allocation11 + $0x398] sm:$0xff]
    %v2766 = vld [vmem:[#allocation11 + $0x3a0] sm:$0xff]
    %v2767 = vld [vmem:[#allocation11 + $0x3a8] sm:$0xff]
    %v2768 = vld [vmem:[#allocation11 + $0x3b0] sm:$0xff]
    %v2769 = vld [vmem:[#allocation11 + $0x3b8] sm:$0xff]
    %v2770 = vld [vmem:[#allocation11 + $0x3c0] sm:$0xff]
    %v2771 = vld [vmem:[#allocation11 + $0x3c8] sm:$0xff]
    %v2772 = vld [vmem:[#allocation11 + $0x3d0] sm:$0xff]
    %v2773 = vld [vmem:[#allocation11 + $0x3d8] sm:$0xff]
    %v2774 = vld [vmem:[#allocation11 + $0x3e0] sm:$0xff]
    %v2775 = vld [vmem:[#allocation11 + $0x3e8] sm:$0xff]
    %v2776 = vld [vmem:[#allocation11 + $0x3f0] sm:$0xff]
    %v2777 = vld [vmem:[#allocation11 + $0x3f8] sm:$0xff]
    %v2778 = vld [vmem:[#allocation30 + $0x40] sm:$0xf]
    %v2779 = vld [vmem:[#allocation30 + $0x48] sm:$0xf]
    %v2780 = vld [vmem:[#allocation30 + $0x50] sm:$0xf]
    %v2781 = vld [vmem:[#allocation30 + $0x58] sm:$0xf]
    %v2782 = vpack.c.bf16 %v2514, %v2514
    %v2783 = vpack.c.bf16 %v2515, %v2515
    %v2784 = vpack.c.bf16 %v2516, %v2516
    %v2785 = vpack.c.bf16 %v2517, %v2517
    %2786 = vmatprep.subr.bf16.mxu0 %v2523
    %2787 = vmatpush1.bf16.msra.mxu0 %v2522
    %2788 = vmatprep.subr.bf16.mxu0 %v2527
    %2789 = vmatpush1.bf16.msra.mxu0 %v2526
    %2790 = vmatprep.subr.bf16.mxu0 %v2531
    %2791 = vmatpush1.bf16.msra.mxu0 %v2530
    %2792 = vmatprep.subr.bf16.mxu0 %v2535
    %2793 = vmatpush1.bf16.msra.mxu0 %v2534
    %2794 = vmatprep.subr.bf16.mxu0 %v2539
    %2795 = vmatpush1.bf16.msra.mxu0 %v2538
    %2796 = vmatprep.subr.bf16.mxu0 %v2543
    %2797 = vmatpush1.bf16.msra.mxu0 %v2542
    %2798 = vmatprep.subr.bf16.mxu0 %v2547
    %2799 = vmatpush1.bf16.msra.mxu0 %v2546
    %2800 = vmatprep.subr.bf16.mxu0 %v2551
    %2801 = vmatpush1.bf16.msra.mxu0 %v2550
    %2802 = vmatprep.subr.bf16.mxu0 %v2555
    %2803 = vmatpush1.bf16.msra.mxu0 %v2554
    %2804 = vmatprep.subr.bf16.mxu0 %v2559
    %2805 = vmatpush1.bf16.msra.mxu0 %v2558
    %2806 = vmatprep.subr.bf16.mxu0 %v2563
    %2807 = vmatpush1.bf16.msra.mxu0 %v2562
    %2808 = vmatprep.subr.bf16.mxu0 %v2567
    %2809 = vmatpush1.bf16.msra.mxu0 %v2566
    %2810 = vmatprep.subr.bf16.mxu0 %v2571
    %2811 = vmatpush1.bf16.msra.mxu0 %v2570
    %2812 = vmatprep.subr.bf16.mxu0 %v2575
    %2813 = vmatpush1.bf16.msra.mxu0 %v2574
    %2814 = vmatprep.subr.bf16.mxu0 %v2579
    %2815 = vmatpush1.bf16.msra.mxu0 %v2578
    %2816 = vmatprep.subr.bf16.mxu0 %v2583
    %2817 = vmatpush1.bf16.msra.mxu0 %v2582
    %2818 = vmatprep.mubr.bf16.mxu0 %v2783
    %2819 = vmatmul.mubr.bf16.gmra.mrb[0].mxu0 %v2782
    %v2820 = vpop.f32.mrb[0].mxu0
    %v2821 = vadd.f32 0.0, %v2820
    %v2822 = vpop.f32.mrb[0].mxu0
    %v2823 = vadd.f32 0.0, %v2822
    %v2824 = vpop.f32.mrb[0].mxu0
    %v2825 = vpop.f32.mrb[0].mxu0
    %2826 = vdwg.mxu0
    %2827 = vmatprep.subr.bf16.mxu0 %v2587
    %2828 = vmatpush1.bf16.msra.mxu0 %v2586
    %2829 = vmatprep.subr.bf16.mxu0 %v2591
    %2830 = vmatpush1.bf16.msra.mxu0 %v2590
    %2831 = vmatprep.subr.bf16.mxu0 %v2595
    %2832 = vmatpush1.bf16.msra.mxu0 %v2594
    %2833 = vmatprep.subr.bf16.mxu0 %v2599
    %2834 = vmatpush1.bf16.msra.mxu0 %v2598
    %2835 = vmatprep.subr.bf16.mxu0 %v2603
    %2836 = vmatpush1.bf16.msra.mxu0 %v2602
    %2837 = vmatprep.subr.bf16.mxu0 %v2607
    %2838 = vmatpush1.bf16.msra.mxu0 %v2606
    %2839 = vmatprep.subr.bf16.mxu0 %v2611
    %2840 = vmatpush1.bf16.msra.mxu0 %v2610
    %2841 = vmatprep.subr.bf16.mxu0 %v2615
    %2842 = vmatpush1.bf16.msra.mxu0 %v2614
    %2843 = vmatprep.subr.bf16.mxu0 %v2619
    %2844 = vmatpush1.bf16.msra.mxu0 %v2618
    %2845 = vmatprep.subr.bf16.mxu0 %v2623
    %2846 = vmatpush1.bf16.msra.mxu0 %v2622
    %2847 = vmatprep.subr.bf16.mxu0 %v2627
    %2848 = vmatpush1.bf16.msra.mxu0 %v2626
    %2849 = vmatprep.subr.bf16.mxu0 %v2631
    %2850 = vmatpush1.bf16.msra.mxu0 %v2630
    %2851 = vmatprep.subr.bf16.mxu0 %v2635
    %2852 = vmatpush1.bf16.msra.mxu0 %v2634
    %2853 = vmatprep.subr.bf16.mxu0 %v2639
    %2854 = vmatpush1.bf16.msra.mxu0 %v2638
    %2855 = vmatprep.subr.bf16.mxu0 %v2643
    %2856 = vmatpush1.bf16.msra.mxu0 %v2642
    %2857 = vmatprep.subr.bf16.mxu0 %v2647
    %2858 = vmatpush1.bf16.msra.mxu0 %v2646
    %2859 = vmatprep.mubr.bf16.mxu0 %v2785
    %2860 = vmatmul.mubr.bf16.gmra.mrb[0].mxu0 %v2784
    %v2861 = vpop.f32.mrb[0].mxu0
    %v2862 = vadd.f32 %v2821, %v2861
    %v2863 = vpop.f32.mrb[0].mxu0
    %v2864 = vadd.f32 %v2823, %v2863
    %v2865 = vpop.f32.mrb[0].mxu0
    %v2866 = vpop.f32.mrb[0].mxu0
    %2867 = vdwg.mxu0
    %2868 = vmatprep.subr.bf16.mxu0 %v2525
    %2869 = vmatpush1.bf16.msra.mxu0 %v2524
    %2870 = vmatprep.subr.bf16.mxu0 %v2529
    %2871 = vmatpush1.bf16.msra.mxu0 %v2528
    %2872 = vmatprep.subr.bf16.mxu0 %v2533
    %2873 = vmatpush1.bf16.msra.mxu0 %v2532
    %2874 = vmatprep.subr.bf16.mxu0 %v2537
    %2875 = vmatpush1.bf16.msra.mxu0 %v2536
    %2876 = vmatprep.subr.bf16.mxu0 %v2541
    %2877 = vmatpush1.bf16.msra.mxu0 %v2540
    %2878 = vmatprep.subr.bf16.mxu0 %v2545
    %2879 = vmatpush1.bf16.msra.mxu0 %v2544
    %2880 = vmatprep.subr.bf16.mxu0 %v2549
    %2881 = vmatpush1.bf16.msra.mxu0 %v2548
    %2882 = vmatprep.subr.bf16.mxu0 %v2553
    %2883 = vmatpush1.bf16.msra.mxu0 %v2552
    %2884 = vmatprep.subr.bf16.mxu0 %v2557
    %2885 = vmatpush1.bf16.msra.mxu0 %v2556
    %2886 = vmatprep.subr.bf16.mxu0 %v2561
    %2887 = vmatpush1.bf16.msra.mxu0 %v2560
    %2888 = vmatprep.subr.bf16.mxu0 %v2565
    %2889 = vmatpush1.bf16.msra.mxu0 %v2564
    %2890 = vmatprep.subr.bf16.mxu0 %v2569
    %2891 = vmatpush1.bf16.msra.mxu0 %v2568
    %2892 = vmatprep.subr.bf16.mxu0 %v2573
    %2893 = vmatpush1.bf16.msra.mxu0 %v2572
    %2894 = vmatprep.subr.bf16.mxu0 %v2577
    %2895 = vmatpush1.bf16.msra.mxu0 %v2576
    %2896 = vmatprep.subr.bf16.mxu0 %v2581
    %2897 = vmatpush1.bf16.msra.mxu0 %v2580
    %2898 = vmatprep.subr.bf16.mxu0 %v2585
    %2899 = vmatpush1.bf16.msra.mxu0 %v2584
    %2900 = vmatprep.mubr.bf16.mxu0 %v2783
    %2901 = vmatmul.mubr.bf16.gmra.mrb[0].mxu0 %v2782
    %v2902 = vpop.f32.mrb[0].mxu0
    %v2903 = vadd.f32 0.0, %v2902
    %v2904 = vpop.f32.mrb[0].mxu0
    %v2905 = vadd.f32 0.0, %v2904
    %v2906 = vpop.f32.mrb[0].mxu0
    %v2907 = vpop.f32.mrb[0].mxu0
    %2908 = vdwg.mxu0
    %2909 = vmatprep.subr.bf16.mxu0 %v2589
    %2910 = vmatpush1.bf16.msra.mxu0 %v2588
    %2911 = vmatprep.subr.bf16.mxu0 %v2593
    %2912 = vmatpush1.bf16.msra.mxu0 %v2592
    %2913 = vmatprep.subr.bf16.mxu0 %v2597
    %2914 = vmatpush1.bf16.msra.mxu0 %v2596
    %2915 = vmatprep.subr.bf16.mxu0 %v2601
    %2916 = vmatpush1.bf16.msra.mxu0 %v2600
    %2917 = vmatprep.subr.bf16.mxu0 %v2605
    %2918 = vmatpush1.bf16.msra.mxu0 %v2604
    %2919 = vmatprep.subr.bf16.mxu0 %v2609
    %2920 = vmatpush1.bf16.msra.mxu0 %v2608
    %2921 = vmatprep.subr.bf16.mxu0 %v2613
    %2922 = vmatpush1.bf16.msra.mxu0 %v2612
    %2923 = vmatprep.subr.bf16.mxu0 %v2617
    %2924 = vmatpush1.bf16.msra.mxu0 %v2616
    %2925 = vmatprep.subr.bf16.mxu0 %v2621
    %2926 = vmatpush1.bf16.msra.mxu0 %v2620
    %2927 = vmatprep.subr.bf16.mxu0 %v2625
    %2928 = vmatpush1.bf16.msra.mxu0 %v2624
    %2929 = vmatprep.subr.bf16.mxu0 %v2629
    %2930 = vmatpush1.bf16.msra.mxu0 %v2628
    %2931 = vmatprep.subr.bf16.mxu0 %v2633
    %2932 = vmatpush1.bf16.msra.mxu0 %v2632
    %2933 = vmatprep.subr.bf16.mxu0 %v2637
    %2934 = vmatpush1.bf16.msra.mxu0 %v2636
    %2935 = vmatprep.subr.bf16.mxu0 %v2641
    %2936 = vmatpush1.bf16.msra.mxu0 %v2640
    %2937 = vmatprep.subr.bf16.mxu0 %v2645
    %2938 = vmatpush1.bf16.msra.mxu0 %v2644
    %2939 = vmatprep.subr.bf16.mxu0 %v2649
    %2940 = vmatpush1.bf16.msra.mxu0 %v2648
    %2941 = vmatprep.mubr.bf16.mxu0 %v2785
    %2942 = vmatmul.mubr.bf16.gmra.mrb[0].mxu0 %v2784
    %v2943 = vpop.f32.mrb[0].mxu0
    %v2944 = vadd.f32 %v2903, %v2943
    %v2945 = vpop.f32.mrb[0].mxu0
    %v2946 = vadd.f32 %v2905, %v2945
    %v2947 = vpop.f32.mrb[0].mxu0
    %v2948 = vpop.f32.mrb[0].mxu0
    %2949 = vdwg.mxu0
    %v2950 = vrot.slane %v2862, 4
    %v2951 = vadd.f32 %v2862, %v2950
    %v2952 = vrot.slane %v2951, 2
    %v2953 = vadd.f32 %v2951, %v2952
    %v2954 = vrot.slane %v2953, 1
    %v2955 = vadd.f32 %v2953, %v2954
    %v2956 = vrot.slane %v2864, 4
    %v2957 = vadd.f32 %v2864, %v2956
    %v2958 = vrot.slane %v2957, 2
    %v2959 = vadd.f32 %v2957, %v2958
    %v2960 = vrot.slane %v2959, 1
    %v2961 = vadd.f32 %v2959, %v2960
    %v2962 = vrot.slane %v2944, 4
    %v2963 = vadd.f32 %v2944, %v2962
    %v2964 = vrot.slane %v2963, 2
    %v2965 = vadd.f32 %v2963, %v2964
    %v2966 = vrot.slane %v2965, 1
    %v2967 = vadd.f32 %v2965, %v2966
    %v2968 = vrot.slane %v2946, 4
    %v2969 = vadd.f32 %v2946, %v2968
    %v2970 = vrot.slane %v2969, 2
    %v2971 = vadd.f32 %v2969, %v2970
    %v2972 = vrot.slane %v2971, 1
    %v2973 = vadd.f32 %v2971, %v2972
    %v2974 = vmul.f32 %v2862, %v2862
    %v2975 = vmul.f32 %v2864, %v2864
    %v2976 = vmul.f32 %v2944, %v2944
    %v2977 = vmul.f32 %v2946, %v2946
    %v2978 = vrot.slane %v2974, 4
    %v2979 = vadd.f32 %v2974, %v2978
    %v2980 = vrot.slane %v2979, 2
    %v2981 = vadd.f32 %v2979, %v2980
    %v2982 = vrot.slane %v2981, 1
    %v2983 = vadd.f32 %v2981, %v2982
    %v2984 = vrot.slane %v2975, 4
    %v2985 = vadd.f32 %v2975, %v2984
    %v2986 = vrot.slane %v2985, 2
    %v2987 = vadd.f32 %v2985, %v2986
    %v2988 = vrot.slane %v2987, 1
    %v2989 = vadd.f32 %v2987, %v2988
    %v2990 = vrot.slane %v2976, 4
    %v2991 = vadd.f32 %v2976, %v2990
    %v2992 = vrot.slane %v2991, 2
    %v2993 = vadd.f32 %v2991, %v2992
    %v2994 = vrot.slane %v2993, 1
    %v2995 = vadd.f32 %v2993, %v2994
    %v2996 = vrot.slane %v2977, 4
    %v2997 = vadd.f32 %v2977, %v2996
    %v2998 = vrot.slane %v2997, 2
    %v2999 = vadd.f32 %v2997, %v2998
    %v3000 = vrot.slane %v2999, 1
    %v3001 = vadd.f32 %v2999, %v3000
    %v3002 = vmul.f32 %v2955, 0.125
    %v3003 = vmul.f32 %v2961, 0.125
    %v3004 = vmul.f32 %v2967, 0.125
    %v3005 = vmul.f32 %v2973, 0.125
    %v3006 = vmul.f32 %v2983, 0.125
    %v3007 = vmul.f32 %v2989, 0.125
    %v3008 = vmul.f32 %v2995, 0.125
    %v3009 = vmul.f32 %v3001, 0.125
    %v3010 = vmul.f32 %v3002, %v3002
    %v3011 = vmul.f32 %v3003, %v3003
    %v3012 = vmul.f32 %v3004, %v3004
    %v3013 = vmul.f32 %v3005, %v3005
    %v3014 = vsub.f32 %v3006, %v3010
    %v3015 = vsub.f32 %v3007, %v3011
    %v3016 = vsub.f32 %v3008, %v3012
    %v3017 = vsub.f32 %v3009, %v3013
    %v3018 = vmax.f32 %v3014, 0.0
    %v3019 = vmax.f32 %v3015, 0.0
    %v3020 = vmax.f32 %v3016, 0.0
    %v3021 = vmax.f32 %v3017, 0.0
    %v3022 = vadd.f32 %v3018, 1e-05
    %v3023 = vadd.f32 %v3019, 1e-05
    %v3024 = vadd.f32 %v3020, 1e-05
    %v3025 = vadd.f32 %v3021, 1e-05
    %v3026 = vrsqrt.pop %v3022
    %v3027 = vrsqrt.pop %v3023
    %v3028 = vrsqrt.pop %v3024
    %v3029 = vrsqrt.pop %v3025
    %v3030 = vmul.f32 %v2778, %v3026
    %v3031 = vmul.f32 %v2779, %v3027
    %v3032 = vmul.f32 %v2780, %v3028
    %v3033 = vmul.f32 %v2781, %v3029
    %v3034 = vmul.f32 %v3002, %v3030
    %v3035 = vmul.f32 %v3003, %v3031
    %v3036 = vmul.f32 %v3004, %v3032
    %v3037 = vmul.f32 %v3005, %v3033
    %v3042 = vrot.slane %v3034, 7
    %v3043 = vrot.slane %v3035, 7
    %v3044 = vrot.slane %v3036, 7
    %v3045 = vrot.slane %v3037, 7
    %v3050 = vsub.f32 %v2778, %v3042
    %v3051 = vsub.f32 %v2779, %v3043
    %v3052 = vsub.f32 %v2780, %v3044
    %v3053 = vsub.f32 %v2781, %v3045
    %v3054 = vlaneseq
    %v3055 = vshrl.u32 %v3054, 7
    %v3056 = vsub.s32 0, %v3055
    %v3057 = vrot.slane %v3030, %v3056
    %v3058 = vlaneseq
    %v3059 = vshrl.u32 %v3058, 7
    %v3060 = vsub.s32 0, %v3059
    %v3061 = vrot.slane %v3031, %v3060
    %v3062 = vlaneseq
    %v3063 = vshrl.u32 %v3062, 7
    %v3064 = vsub.s32 0, %v3063
    %v3065 = vrot.slane %v3032, %v3064
    %v3066 = vlaneseq
    %v3067 = vshrl.u32 %v3066, 7
    %v3068 = vsub.s32 0, %v3067
    %v3069 = vrot.slane %v3033, %v3068
    %v3070 = vmul.f32 %v2862, %v3057
    %v3071 = vmul.f32 %v2864, %v3061
    %v3072 = vmul.f32 %v2944, %v3065
    %v3073 = vmul.f32 %v2946, %v3069
    %v3074 = vlaneseq
    %v3075 = vshrl.u32 %v3074, 7
    %v3076 = vsub.s32 1, %v3075
    %v3077 = vrot.slane %v3050, %v3076
    %v3078 = vlaneseq
    %v3079 = vshrl.u32 %v3078, 7
    %v3080 = vsub.s32 1, %v3079
    %v3081 = vrot.slane %v3051, %v3080
    %v3082 = vlaneseq
    %v3083 = vshrl.u32 %v3082, 7
    %v3084 = vsub.s32 1, %v3083
    %v3085 = vrot.slane %v3052, %v3084
    %v3086 = vlaneseq
    %v3087 = vshrl.u32 %v3086, 7
    %v3088 = vsub.s32 1, %v3087
    %v3089 = vrot.slane %v3053, %v3088
    %v3090 = vadd.f32 %v3070, %v3077
    %v3091 = vadd.f32 %v3071, %v3081
    %v3092 = vadd.f32 %v3072, %v3085
    %v3093 = vadd.f32 %v3073, %v3089
    %v3094 = vmax.f32 %v3090, 0.0
    %v3095 = vmax.f32 %v3091, 0.0
    %v3096 = vmax.f32 %v3092, 0.0
    %v3097 = vmax.f32 %v3093, 0.0
    %v3098 = vpack.c.bf16 %v3094, %v3094
    %v3099 = vpack.c.bf16 %v3095, %v3095
    %v3100 = vpack.c.bf16 %v3096, %v3096
    %v3101 = vpack.c.bf16 %v3097, %v3097
    %3102 = vmatprep.subr.bf16.mxu0 %v2651
    %3103 = vmatpush1.bf16.msra.mxu0 %v2650
    %3104 = vmatprep.subr.bf16.mxu0 %v2655
    %3105 = vmatpush1.bf16.msra.mxu0 %v2654
    %3106 = vmatprep.subr.bf16.mxu0 %v2659
    %3107 = vmatpush1.bf16.msra.mxu0 %v2658
    %3108 = vmatprep.subr.bf16.mxu0 %v2663
    %3109 = vmatpush1.bf16.msra.mxu0 %v2662
    %3110 = vmatprep.subr.bf16.mxu0 %v2667
    %3111 = vmatpush1.bf16.msra.mxu0 %v2666
    %3112 = vmatprep.subr.bf16.mxu0 %v2671
    %3113 = vmatpush1.bf16.msra.mxu0 %v2670
    %3114 = vmatprep.subr.bf16.mxu0 %v2675
    %3115 = vmatpush1.bf16.msra.mxu0 %v2674
    %3116 = vmatprep.subr.bf16.mxu0 %v2679
    %3117 = vmatpush1.bf16.msra.mxu0 %v2678
    %3118 = vmatprep.subr.bf16.mxu0 %v2683
    %3119 = vmatpush1.bf16.msra.mxu0 %v2682
    %3120 = vmatprep.subr.bf16.mxu0 %v2687
    %3121 = vmatpush1.bf16.msra.mxu0 %v2686
    %3122 = vmatprep.subr.bf16.mxu0 %v2691
    %3123 = vmatpush1.bf16.msra.mxu0 %v2690
    %3124 = vmatprep.subr.bf16.mxu0 %v2695
    %3125 = vmatpush1.bf16.msra.mxu0 %v2694
    %3126 = vmatprep.subr.bf16.mxu0 %v2699
    %3127 = vmatpush1.bf16.msra.mxu0 %v2698
    %3128 = vmatprep.subr.bf16.mxu0 %v2703
    %3129 = vmatpush1.bf16.msra.mxu0 %v2702
    %3130 = vmatprep.subr.bf16.mxu0 %v2707
    %3131 = vmatpush1.bf16.msra.mxu0 %v2706
    %3132 = vmatprep.subr.bf16.mxu0 %v2711
    %3133 = vmatpush1.bf16.msra.mxu0 %v2710
    %3134 = vmatprep.mubr.bf16.mxu0 %v3099
    %3135 = vmatmul.mubr.bf16.gmra.mrb[0].mxu0 %v3098
    %v3136 = vpop.f32.mrb[0].mxu0
    %v3137 = vadd.f32 0.0, %v3136
    %v3138 = vpop.f32.mrb[0].mxu0
    %v3139 = vadd.f32 0.0, %v3138
    %v3140 = vpop.f32.mrb[0].mxu0
    %v3141 = vpop.f32.mrb[0].mxu0
    %3142 = vdwg.mxu0
    %3143 = vmatprep.subr.bf16.mxu0 %v2715
    %3144 = vmatpush1.bf16.msra.mxu0 %v2714
    %3145 = vmatprep.subr.bf16.mxu0 %v2719
    %3146 = vmatpush1.bf16.msra.mxu0 %v2718
    %3147 = vmatprep.subr.bf16.mxu0 %v2723
    %3148 = vmatpush1.bf16.msra.mxu0 %v2722
    %3149 = vmatprep.subr.bf16.mxu0 %v2727
    %3150 = vmatpush1.bf16.msra.mxu0 %v2726
    %3151 = vmatprep.subr.bf16.mxu0 %v2731
    %3152 = vmatpush1.bf16.msra.mxu0 %v2730
    %3153 = vmatprep.subr.bf16.mxu0 %v2735
    %3154 = vmatpush1.bf16.msra.mxu0 %v2734
    %3155 = vmatprep.subr.bf16.mxu0 %v2739
    %3156 = vmatpush1.bf16.msra.mxu0 %v2738
    %3157 = vmatprep.subr.bf16.mxu0 %v2743
    %3158 = vmatpush1.bf16.msra.mxu0 %v2742
    %3159 = vmatprep.subr.bf16.mxu0 %v2747
    %3160 = vmatpush1.bf16.msra.mxu0 %v2746
    %3161 = vmatprep.subr.bf16.mxu0 %v2751
    %3162 = vmatpush1.bf16.msra.mxu0 %v2750
    %3163 = vmatprep.subr.bf16.mxu0 %v2755
    %3164 = vmatpush1.bf16.msra.mxu0 %v2754
    %3165 = vmatprep.subr.bf16.mxu0 %v2759
    %3166 = vmatpush1.bf16.msra.mxu0 %v2758
    %3167 = vmatprep.subr.bf16.mxu0 %v2763
    %3168 = vmatpush1.bf16.msra.mxu0 %v2762
    %3169 = vmatprep.subr.bf16.mxu0 %v2767
    %3170 = vmatpush1.bf16.msra.mxu0 %v2766
    %3171 = vmatprep.subr.bf16.mxu0 %v2771
    %3172 = vmatpush1.bf16.msra.mxu0 %v2770
    %3173 = vmatprep.subr.bf16.mxu0 %v2775
    %3174 = vmatpush1.bf16.msra.mxu0 %v2774
    %3175 = vmatprep.mubr.bf16.mxu0 %v3101
    %3176 = vmatmul.mubr.bf16.gmra.mrb[0].mxu0 %v3100
    %v3177 = vpop.f32.mrb[0].mxu0
    %v3178 = vadd.f32 %v3137, %v3177
    %v3179 = vpop.f32.mrb[0].mxu0
    %v3180 = vadd.f32 %v3139, %v3179
    %v3181 = vpop.f32.mrb[0].mxu0
    %v3182 = vpop.f32.mrb[0].mxu0
    %3183 = vdwg.mxu0
    %3184 = vmatprep.subr.bf16.mxu0 %v2653
    %3185 = vmatpush1.bf16.msra.mxu0 %v2652
    %3186 = vmatprep.subr.bf16.mxu0 %v2657
    %3187 = vmatpush1.bf16.msra.mxu0 %v2656
    %3188 = vmatprep.subr.bf16.mxu0 %v2661
    %3189 = vmatpush1.bf16.msra.mxu0 %v2660
    %3190 = vmatprep.subr.bf16.mxu0 %v2665
    %3191 = vmatpush1.bf16.msra.mxu0 %v2664
    %3192 = vmatprep.subr.bf16.mxu0 %v2669
    %3193 = vmatpush1.bf16.msra.mxu0 %v2668
    %3194 = vmatprep.subr.bf16.mxu0 %v2673
    %3195 = vmatpush1.bf16.msra.mxu0 %v2672
    %3196 = vmatprep.subr.bf16.mxu0 %v2677
    %3197 = vmatpush1.bf16.msra.mxu0 %v2676
    %3198 = vmatprep.subr.bf16.mxu0 %v2681
    %3199 = vmatpush1.bf16.msra.mxu0 %v2680
    %3200 = vmatprep.subr.bf16.mxu0 %v2685
    %3201 = vmatpush1.bf16.msra.mxu0 %v2684
    %3202 = vmatprep.subr.bf16.mxu0 %v2689
    %3203 = vmatpush1.bf16.msra.mxu0 %v2688
    %3204 = vmatprep.subr.bf16.mxu0 %v2693
    %3205 = vmatpush1.bf16.msra.mxu0 %v2692
    %3206 = vmatprep.subr.bf16.mxu0 %v2697
    %3207 = vmatpush1.bf16.msra.mxu0 %v2696
    %3208 = vmatprep.subr.bf16.mxu0 %v2701
    %3209 = vmatpush1.bf16.msra.mxu0 %v2700
    %3210 = vmatprep.subr.bf16.mxu0 %v2705
    %3211 = vmatpush1.bf16.msra.mxu0 %v2704
    %3212 = vmatprep.subr.bf16.mxu0 %v2709
    %3213 = vmatpush1.bf16.msra.mxu0 %v2708
    %3214 = vmatprep.subr.bf16.mxu0 %v2713
    %3215 = vmatpush1.bf16.msra.mxu0 %v2712
    %3216 = vmatprep.mubr.bf16.mxu0 %v3099
    %3217 = vmatmul.mubr.bf16.gmra.mrb[0].mxu0 %v3098
    %v3218 = vpop.f32.mrb[0].mxu0
    %v3219 = vadd.f32 0.0, %v3218
    %v3220 = vpop.f32.mrb[0].mxu0
    %v3221 = vadd.f32 0.0, %v3220
    %v3222 = vpop.f32.mrb[0].mxu0
    %v3223 = vpop.f32.mrb[0].mxu0
    %3224 = vdwg.mxu0
    %3225 = vmatprep.subr.bf16.mxu0 %v2717
    %3226 = vmatpush1.bf16.msra.mxu0 %v2716
    %3227 = vmatprep.subr.bf16.mxu0 %v2721
    %3228 = vmatpush1.bf16.msra.mxu0 %v2720
    %3229 = vmatprep.subr.bf16.mxu0 %v2725
    %3230 = vmatpush1.bf16.msra.mxu0 %v2724
    %3231 = vmatprep.subr.bf16.mxu0 %v2729
    %3232 = vmatpush1.bf16.msra.mxu0 %v2728
    %3233 = vmatprep.subr.bf16.mxu0 %v2733
    %3234 = vmatpush1.bf16.msra.mxu0 %v2732
    %3235 = vmatprep.subr.bf16.mxu0 %v2737
    %3236 = vmatpush1.bf16.msra.mxu0 %v2736
    %3237 = vmatprep.subr.bf16.mxu0 %v2741
    %3238 = vmatpush1.bf16.msra.mxu0 %v2740
    %3239 = vmatprep.subr.bf16.mxu0 %v2745
    %3240 = vmatpush1.bf16.msra.mxu0 %v2744
    %3241 = vmatprep.subr.bf16.mxu0 %v2749
    %3242 = vmatpush1.bf16.msra.mxu0 %v2748
    %3243 = vmatprep.subr.bf16.mxu0 %v2753
    %3244 = vmatpush1.bf16.msra.mxu0 %v2752
    %3245 = vmatprep.subr.bf16.mxu0 %v2757
    %3246 = vmatpush1.bf16.msra.mxu0 %v2756
    %3247 = vmatprep.subr.bf16.mxu0 %v2761
    %3248 = vmatpush1.bf16.msra.mxu0 %v2760
    %3249 = vmatprep.subr.bf16.mxu0 %v2765
    %3250 = vmatpush1.bf16.msra.mxu0 %v2764
    %3251 = vmatprep.subr.bf16.mxu0 %v2769
    %3252 = vmatpush1.bf16.msra.mxu0 %v2768
    %3253 = vmatprep.subr.bf16.mxu0 %v2773
    %3254 = vmatpush1.bf16.msra.mxu0 %v2772
    %3255 = vmatprep.subr.bf16.mxu0 %v2777
    %3256 = vmatpush1.bf16.msra.mxu0 %v2776
    %3257 = vmatprep.mubr.bf16.mxu0 %v3101
    %3258 = vmatmul.mubr.bf16.gmra.mrb[0].mxu0 %v3100
    %v3259 = vpop.f32.mrb[0].mxu0
    %v3260 = vadd.f32 %v3219, %v3259
    %v3261 = vpop.f32.mrb[0].mxu0
    %v3262 = vadd.f32 %v3221, %v3261
    %v3263 = vpop.f32.mrb[0].mxu0
    %v3264 = vpop.f32.mrb[0].mxu0
    %3265 = vdwg.mxu0
    %v3266 = vrot.slane %v3178, 4
    %v3267 = vadd.f32 %v3178, %v3266
    %v3268 = vrot.slane %v3267, 2
    %v3269 = vadd.f32 %v3267, %v3268
    %v3270 = vrot.slane %v3269, 1
    %v3271 = vadd.f32 %v3269, %v3270
    %v3272 = vrot.slane %v3180, 4
    %v3273 = vadd.f32 %v3180, %v3272
    %v3274 = vrot.slane %v3273, 2
    %v3275 = vadd.f32 %v3273, %v3274
    %v3276 = vrot.slane %v3275, 1
    %v3277 = vadd.f32 %v3275, %v3276
    %v3278 = vrot.slane %v3260, 4
    %v3279 = vadd.f32 %v3260, %v3278
    %v3280 = vrot.slane %v3279, 2
    %v3281 = vadd.f32 %v3279, %v3280
    %v3282 = vrot.slane %v3281, 1
    %v3283 = vadd.f32 %v3281, %v3282
    %v3284 = vrot.slane %v3262, 4
    %v3285 = vadd.f32 %v3262, %v3284
    %v3286 = vrot.slane %v3285, 2
    %v3287 = vadd.f32 %v3285, %v3286
    %v3288 = vrot.slane %v3287, 1
    %v3289 = vadd.f32 %v3287, %v3288
    %v3290 = vmul.f32 %v3178, %v3178
    %v3291 = vmul.f32 %v3180, %v3180
    %v3292 = vmul.f32 %v3260, %v3260
    %v3293 = vmul.f32 %v3262, %v3262
    %v3294 = vrot.slane %v3290, 4
    %v3295 = vadd.f32 %v3290, %v3294
    %v3296 = vrot.slane %v3295, 2
    %v3297 = vadd.f32 %v3295, %v3296
    %v3298 = vrot.slane %v3297, 1
    %v3299 = vadd.f32 %v3297, %v3298
    %v3300 = vrot.slane %v3291, 4
    %v3301 = vadd.f32 %v3291, %v3300
    %v3302 = vrot.slane %v3301, 2
    %v3303 = vadd.f32 %v3301, %v3302
    %v3304 = vrot.slane %v3303, 1
    %v3305 = vadd.f32 %v3303, %v3304
    %v3306 = vrot.slane %v3292, 4
    %v3307 = vadd.f32 %v3292, %v3306
    %v3308 = vrot.slane %v3307, 2
    %v3309 = vadd.f32 %v3307, %v3308
    %v3310 = vrot.slane %v3309, 1
    %v3311 = vadd.f32 %v3309, %v3310
    %v3312 = vrot.slane %v3293, 4
    %v3313 = vadd.f32 %v3293, %v3312
    %v3314 = vrot.slane %v3313, 2
    %v3315 = vadd.f32 %v3313, %v3314
    %v3316 = vrot.slane %v3315, 1
    %v3317 = vadd.f32 %v3315, %v3316
    %v3318 = vmul.f32 %v3271, 0.125
    %v3319 = vmul.f32 %v3277, 0.125
    %v3320 = vmul.f32 %v3283, 0.125
    %v3321 = vmul.f32 %v3289, 0.125
    %v3322 = vmul.f32 %v3299, 0.125
    %v3323 = vmul.f32 %v3305, 0.125
    %v3324 = vmul.f32 %v3311, 0.125
    %v3325 = vmul.f32 %v3317, 0.125
    %v3326 = vmul.f32 %v3318, %v3318
    %v3327 = vmul.f32 %v3319, %v3319
    %v3328 = vmul.f32 %v3320, %v3320
    %v3329 = vmul.f32 %v3321, %v3321
    %v3330 = vsub.f32 %v3322, %v3326
    %v3331 = vsub.f32 %v3323, %v3327
    %v3332 = vsub.f32 %v3324, %v3328
    %v3333 = vsub.f32 %v3325, %v3329
    %v3334 = vmax.f32 %v3330, 0.0
    %v3335 = vmax.f32 %v3331, 0.0
    %v3336 = vmax.f32 %v3332, 0.0
    %v3337 = vmax.f32 %v3333, 0.0
    %v3338 = vadd.f32 %v3334, 1e-05
    %v3339 = vadd.f32 %v3335, 1e-05
    %v3340 = vadd.f32 %v3336, 1e-05
    %v3341 = vadd.f32 %v3337, 1e-05
    %v3342 = vrsqrt.pop %v3338
    %v3343 = vrsqrt.pop %v3339
    %v3344 = vrsqrt.pop %v3340
    %v3345 = vrsqrt.pop %v3341
    %v3346 = vmul.f32 %v2778, %v3342
    %v3347 = vmul.f32 %v2779, %v3343
    %v3348 = vmul.f32 %v2780, %v3344
    %v3349 = vmul.f32 %v2781, %v3345
    %v3350 = vmul.f32 %v3318, %v3346
    %v3351 = vmul.f32 %v3319, %v3347
    %v3352 = vmul.f32 %v3320, %v3348
    %v3353 = vmul.f32 %v3321, %v3349
    %v3358 = vrot.slane %v3350, 7
    %v3359 = vrot.slane %v3351, 7
    %v3360 = vrot.slane %v3352, 7
    %v3361 = vrot.slane %v3353, 7
    %v3366 = vsub.f32 %v2778, %v3358
    %v3367 = vsub.f32 %v2779, %v3359
    %v3368 = vsub.f32 %v2780, %v3360
    %v3369 = vsub.f32 %v2781, %v3361
    %v3370 = vlaneseq
    %v3371 = vshrl.u32 %v3370, 7
    %v3372 = vsub.s32 2, %v3371
    %v3373 = vrot.slane %v3346, %v3372
    %v3374 = vlaneseq
    %v3375 = vshrl.u32 %v3374, 7
    %v3376 = vsub.s32 2, %v3375
    %v3377 = vrot.slane %v3347, %v3376
    %v3378 = vlaneseq
    %v3379 = vshrl.u32 %v3378, 7
    %v3380 = vsub.s32 2, %v3379
    %v3381 = vrot.slane %v3348, %v3380
    %v3382 = vlaneseq
    %v3383 = vshrl.u32 %v3382, 7
    %v3384 = vsub.s32 2, %v3383
    %v3385 = vrot.slane %v3349, %v3384
    %v3386 = vmul.f32 %v3178, %v3373
    %v3387 = vmul.f32 %v3180, %v3377
    %v3388 = vmul.f32 %v3260, %v3381
    %v3389 = vmul.f32 %v3262, %v3385
    %v3390 = vlaneseq
    %v3391 = vshrl.u32 %v3390, 7
    %v3392 = vsub.s32 3, %v3391
    %v3393 = vrot.slane %v3366, %v3392
    %v3394 = vlaneseq
    %v3395 = vshrl.u32 %v3394, 7
    %v3396 = vsub.s32 3, %v3395
    %v3397 = vrot.slane %v3367, %v3396
    %v3398 = vlaneseq
    %v3399 = vshrl.u32 %v3398, 7
    %v3400 = vsub.s32 3, %v3399
    %v3401 = vrot.slane %v3368, %v3400
    %v3402 = vlaneseq
    %v3403 = vshrl.u32 %v3402, 7
    %v3404 = vsub.s32 3, %v3403
    %v3405 = vrot.slane %v3369, %v3404
    %v3406 = vadd.f32 %v3386, %v3393
    %v3407 = vadd.f32 %v3387, %v3397
    %v3408 = vadd.f32 %v3388, %v3401
    %v3409 = vadd.f32 %v3389, %v3405
    %v3410 = vadd.f32 %v3406, %v2514
    %v3411 = vadd.f32 %v3407, %v2515
    %v3412 = vadd.f32 %v3408, %v2516
    %v3413 = vadd.f32 %v3409, %v2517
    %v3414 = vmax.f32 %v3410, 0.0
    %v3415 = vmax.f32 %v3411, 0.0
    %v3416 = vmax.f32 %v3412, 0.0
    %v3417 = vmax.f32 %v3413, 0.0
    %s3418 = sshll.u32 %s1621, 4
    %3419 = dma.done %s384, %s3418
    %s3420 = sshll.u32 %s966, 4
    %3421 = dma.done %s419, %s3420
    %v3422 = vld [vmem:[#allocation12] sm:$0xff]
    %v3423 = vld [vmem:[#allocation12 + $0x8] sm:$0xff]
    %v3424 = vld [vmem:[#allocation12 + $0x10] sm:$0xff]
    %v3425 = vld [vmem:[#allocation12 + $0x18] sm:$0xff]
    %v3426 = vld [vmem:[#allocation12 + $0x20] sm:$0xff]
    %v3427 = vld [vmem:[#allocation12 + $0x28] sm:$0xff]
    %v3428 = vld [vmem:[#allocation12 + $0x30] sm:$0xff]
    %v3429 = vld [vmem:[#allocation12 + $0x38] sm:$0xff]
    %v3430 = vld [vmem:[#allocation12 + $0x40] sm:$0xff]
    %v3431 = vld [vmem:[#allocation12 + $0x48] sm:$0xff]
    %v3432 = vld [vmem:[#allocation12 + $0x50] sm:$0xff]
    %v3433 = vld [vmem:[#allocation12 + $0x58] sm:$0xff]
    %v3434 = vld [vmem:[#allocation12 + $0x60] sm:$0xff]
    %v3435 = vld [vmem:[#allocation12 + $0x68] sm:$0xff]
    %v3436 = vld [vmem:[#allocation12 + $0x70] sm:$0xff]
    %v3437 = vld [vmem:[#allocation12 + $0x78] sm:$0xff]
    %v3438 = vld [vmem:[#allocation12 + $0x80] sm:$0xff]
    %v3439 = vld [vmem:[#allocation12 + $0x88] sm:$0xff]
    %v3440 = vld [vmem:[#allocation12 + $0x90] sm:$0xff]
    %v3441 = vld [vmem:[#allocation12 + $0x98] sm:$0xff]
    %v3442 = vld [vmem:[#allocation12 + $0xa0] sm:$0xff]
    %v3443 = vld [vmem:[#allocation12 + $0xa8] sm:$0xff]
    %v3444 = vld [vmem:[#allocation12 + $0xb0] sm:$0xff]
    %v3445 = vld [vmem:[#allocation12 + $0xb8] sm:$0xff]
    %v3446 = vld [vmem:[#allocation12 + $0xc0] sm:$0xff]
    %v3447 = vld [vmem:[#allocation12 + $0xc8] sm:$0xff]
    %v3448 = vld [vmem:[#allocation12 + $0xd0] sm:$0xff]
    %v3449 = vld [vmem:[#allocation12 + $0xd8] sm:$0xff]
    %v3450 = vld [vmem:[#allocation12 + $0xe0] sm:$0xff]
    %v3451 = vld [vmem:[#allocation12 + $0xe8] sm:$0xff]
    %v3452 = vld [vmem:[#allocation12 + $0xf0] sm:$0xff]
    %v3453 = vld [vmem:[#allocation12 + $0xf8] sm:$0xff]
    %v3454 = vld [vmem:[#allocation12 + $0x100] sm:$0xff]
    %v3455 = vld [vmem:[#allocation12 + $0x108] sm:$0xff]
    %v3456 = vld [vmem:[#allocation12 + $0x110] sm:$0xff]
    %v3457 = vld [vmem:[#allocation12 + $0x118] sm:$0xff]
    %v3458 = vld [vmem:[#allocation12 + $0x120] sm:$0xff]
    %v3459 = vld [vmem:[#allocation12 + $0x128] sm:$0xff]
    %v3460 = vld [vmem:[#allocation12 + $0x130] sm:$0xff]
    %v3461 = vld [vmem:[#allocation12 + $0x138] sm:$0xff]
    %v3462 = vld [vmem:[#allocation12 + $0x140] sm:$0xff]
    %v3463 = vld [vmem:[#allocation12 + $0x148] sm:$0xff]
    %v3464 = vld [vmem:[#allocation12 + $0x150] sm:$0xff]
    %v3465 = vld [vmem:[#allocation12 + $0x158] sm:$0xff]
    %v3466 = vld [vmem:[#allocation12 + $0x160] sm:$0xff]
    %v3467 = vld [vmem:[#allocation12 + $0x168] sm:$0xff]
    %v3468 = vld [vmem:[#allocation12 + $0x170] sm:$0xff]
    %v3469 = vld [vmem:[#allocation12 + $0x178] sm:$0xff]
    %v3470 = vld [vmem:[#allocation12 + $0x180] sm:$0xff]
    %v3471 = vld [vmem:[#allocation12 + $0x188] sm:$0xff]
    %v3472 = vld [vmem:[#allocation12 + $0x190] sm:$0xff]
    %v3473 = vld [vmem:[#allocation12 + $0x198] sm:$0xff]
    %v3474 = vld [vmem:[#allocation12 + $0x1a0] sm:$0xff]
    %v3475 = vld [vmem:[#allocation12 + $0x1a8] sm:$0xff]
    %v3476 = vld [vmem:[#allocation12 + $0x1b0] sm:$0xff]
    %v3477 = vld [vmem:[#allocation12 + $0x1b8] sm:$0xff]
    %v3478 = vld [vmem:[#allocation12 + $0x1c0] sm:$0xff]
    %v3479 = vld [vmem:[#allocation12 + $0x1c8] sm:$0xff]
    %v3480 = vld [vmem:[#allocation12 + $0x1d0] sm:$0xff]
    %v3481 = vld [vmem:[#allocation12 + $0x1d8] sm:$0xff]
    %v3482 = vld [vmem:[#allocation12 + $0x1e0] sm:$0xff]
    %v3483 = vld [vmem:[#allocation12 + $0x1e8] sm:$0xff]
    %v3484 = vld [vmem:[#allocation12 + $0x1f0] sm:$0xff]
    %v3485 = vld [vmem:[#allocation12 + $0x1f8] sm:$0xff]
    %v3486 = vld [vmem:[#allocation12 + $0x200] sm:$0xff]
    %v3487 = vld [vmem:[#allocation12 + $0x208] sm:$0xff]
    %v3488 = vld [vmem:[#allocation12 + $0x210] sm:$0xff]
    %v3489 = vld [vmem:[#allocation12 + $0x218] sm:$0xff]
    %v3490 = vld [vmem:[#allocation12 + $0x220] sm:$0xff]
    %v3491 = vld [vmem:[#allocation12 + $0x228] sm:$0xff]
    %v3492 = vld [vmem:[#allocation12 + $0x230] sm:$0xff]
    %v3493 = vld [vmem:[#allocation12 + $0x238] sm:$0xff]
    %v3494 = vld [vmem:[#allocation12 + $0x240] sm:$0xff]
    %v3495 = vld [vmem:[#allocation12 + $0x248] sm:$0xff]
    %v3496 = vld [vmem:[#allocation12 + $0x250] sm:$0xff]
    %v3497 = vld [vmem:[#allocation12 + $0x258] sm:$0xff]
    %v3498 = vld [vmem:[#allocation12 + $0x260] sm:$0xff]
    %v3499 = vld [vmem:[#allocation12 + $0x268] sm:$0xff]
    %v3500 = vld [vmem:[#allocation12 + $0x270] sm:$0xff]
    %v3501 = vld [vmem:[#allocation12 + $0x278] sm:$0xff]
    %v3502 = vld [vmem:[#allocation12 + $0x280] sm:$0xff]
    %v3503 = vld [vmem:[#allocation12 + $0x288] sm:$0xff]
    %v3504 = vld [vmem:[#allocation12 + $0x290] sm:$0xff]
    %v3505 = vld [vmem:[#allocation12 + $0x298] sm:$0xff]
    %v3506 = vld [vmem:[#allocation12 + $0x2a0] sm:$0xff]
    %v3507 = vld [vmem:[#allocation12 + $0x2a8] sm:$0xff]
    %v3508 = vld [vmem:[#allocation12 + $0x2b0] sm:$0xff]
    %v3509 = vld [vmem:[#allocation12 + $0x2b8] sm:$0xff]
    %v3510 = vld [vmem:[#allocation12 + $0x2c0] sm:$0xff]
    %v3511 = vld [vmem:[#allocation12 + $0x2c8] sm:$0xff]
    %v3512 = vld [vmem:[#allocation12 + $0x2d0] sm:$0xff]
    %v3513 = vld [vmem:[#allocation12 + $0x2d8] sm:$0xff]
    %v3514 = vld [vmem:[#allocation12 + $0x2e0] sm:$0xff]
    %v3515 = vld [vmem:[#allocation12 + $0x2e8] sm:$0xff]
    %v3516 = vld [vmem:[#allocation12 + $0x2f0] sm:$0xff]
    %v3517 = vld [vmem:[#allocation12 + $0x2f8] sm:$0xff]
    %v3518 = vld [vmem:[#allocation12 + $0x300] sm:$0xff]
    %v3519 = vld [vmem:[#allocation12 + $0x308] sm:$0xff]
    %v3520 = vld [vmem:[#allocation12 + $0x310] sm:$0xff]
    %v3521 = vld [vmem:[#allocation12 + $0x318] sm:$0xff]
    %v3522 = vld [vmem:[#allocation12 + $0x320] sm:$0xff]
    %v3523 = vld [vmem:[#allocation12 + $0x328] sm:$0xff]
    %v3524 = vld [vmem:[#allocation12 + $0x330] sm:$0xff]
    %v3525 = vld [vmem:[#allocation12 + $0x338] sm:$0xff]
    %v3526 = vld [vmem:[#allocation12 + $0x340] sm:$0xff]
    %v3527 = vld [vmem:[#allocation12 + $0x348] sm:$0xff]
    %v3528 = vld [vmem:[#allocation12 + $0x350] sm:$0xff]
    %v3529 = vld [vmem:[#allocation12 + $0x358] sm:$0xff]
    %v3530 = vld [vmem:[#allocation12 + $0x360] sm:$0xff]
    %v3531 = vld [vmem:[#allocation12 + $0x368] sm:$0xff]
    %v3532 = vld [vmem:[#allocation12 + $0x370] sm:$0xff]
    %v3533 = vld [vmem:[#allocation12 + $0x378] sm:$0xff]
    %v3534 = vld [vmem:[#allocation12 + $0x380] sm:$0xff]
    %v3535 = vld [vmem:[#allocation12 + $0x388] sm:$0xff]
    %v3536 = vld [vmem:[#allocation12 + $0x390] sm:$0xff]
    %v3537 = vld [vmem:[#allocation12 + $0x398] sm:$0xff]
    %v3538 = vld [vmem:[#allocation12 + $0x3a0] sm:$0xff]
    %v3539 = vld [vmem:[#allocation12 + $0x3a8] sm:$0xff]
    %v3540 = vld [vmem:[#allocation12 + $0x3b0] sm:$0xff]
    %v3541 = vld [vmem:[#allocation12 + $0x3b8] sm:$0xff]
    %v3542 = vld [vmem:[#allocation12 + $0x3c0] sm:$0xff]
    %v3543 = vld [vmem:[#allocation12 + $0x3c8] sm:$0xff]
    %v3544 = vld [vmem:[#allocation12 + $0x3d0] sm:$0xff]
    %v3545 = vld [vmem:[#allocation12 + $0x3d8] sm:$0xff]
    %v3546 = vld [vmem:[#allocation12 + $0x3e0] sm:$0xff]
    %v3547 = vld [vmem:[#allocation12 + $0x3e8] sm:$0xff]
    %v3548 = vld [vmem:[#allocation12 + $0x3f0] sm:$0xff]
    %v3549 = vld [vmem:[#allocation12 + $0x3f8] sm:$0xff]
    %v3550 = vld [vmem:[#allocation13] sm:$0xff]
    %v3551 = vld [vmem:[#allocation13 + $0x8] sm:$0xff]
    %v3552 = vld [vmem:[#allocation13 + $0x10] sm:$0xff]
    %v3553 = vld [vmem:[#allocation13 + $0x18] sm:$0xff]
    %v3554 = vld [vmem:[#allocation13 + $0x20] sm:$0xff]
    %v3555 = vld [vmem:[#allocation13 + $0x28] sm:$0xff]
    %v3556 = vld [vmem:[#allocation13 + $0x30] sm:$0xff]
    %v3557 = vld [vmem:[#allocation13 + $0x38] sm:$0xff]
    %v3558 = vld [vmem:[#allocation13 + $0x40] sm:$0xff]
    %v3559 = vld [vmem:[#allocation13 + $0x48] sm:$0xff]
    %v3560 = vld [vmem:[#allocation13 + $0x50] sm:$0xff]
    %v3561 = vld [vmem:[#allocation13 + $0x58] sm:$0xff]
    %v3562 = vld [vmem:[#allocation13 + $0x60] sm:$0xff]
    %v3563 = vld [vmem:[#allocation13 + $0x68] sm:$0xff]
    %v3564 = vld [vmem:[#allocation13 + $0x70] sm:$0xff]
    %v3565 = vld [vmem:[#allocation13 + $0x78] sm:$0xff]
    %v3566 = vld [vmem:[#allocation13 + $0x80] sm:$0xff]
    %v3567 = vld [vmem:[#allocation13 + $0x88] sm:$0xff]
    %v3568 = vld [vmem:[#allocation13 + $0x90] sm:$0xff]
    %v3569 = vld [vmem:[#allocation13 + $0x98] sm:$0xff]
    %v3570 = vld [vmem:[#allocation13 + $0xa0] sm:$0xff]
    %v3571 = vld [vmem:[#allocation13 + $0xa8] sm:$0xff]
    %v3572 = vld [vmem:[#allocation13 + $0xb0] sm:$0xff]
    %v3573 = vld [vmem:[#allocation13 + $0xb8] sm:$0xff]
    %v3574 = vld [vmem:[#allocation13 + $0xc0] sm:$0xff]
    %v3575 = vld [vmem:[#allocation13 + $0xc8] sm:$0xff]
    %v3576 = vld [vmem:[#allocation13 + $0xd0] sm:$0xff]
    %v3577 = vld [vmem:[#allocation13 + $0xd8] sm:$0xff]
    %v3578 = vld [vmem:[#allocation13 + $0xe0] sm:$0xff]
    %v3579 = vld [vmem:[#allocation13 + $0xe8] sm:$0xff]
    %v3580 = vld [vmem:[#allocation13 + $0xf0] sm:$0xff]
    %v3581 = vld [vmem:[#allocation13 + $0xf8] sm:$0xff]
    %v3582 = vld [vmem:[#allocation30 + $0x40] sm:$0xf0]
    %v3583 = vld [vmem:[#allocation30 + $0x48] sm:$0xf0]
    %v3584 = vpack.c.bf16 %v3414, %v3414
    %v3585 = vpack.c.bf16 %v3415, %v3415
    %v3586 = vpack.c.bf16 %v3416, %v3416
    %v3587 = vpack.c.bf16 %v3417, %v3417
    %3588 = vmatprep.subr.bf16.mxu0 %v3423
    %3589 = vmatpush1.bf16.msra.mxu0 %v3422
    %3590 = vmatprep.subr.bf16.mxu0 %v3427
    %3591 = vmatpush1.bf16.msra.mxu0 %v3426
    %3592 = vmatprep.subr.bf16.mxu0 %v3431
    %3593 = vmatpush1.bf16.msra.mxu0 %v3430
    %3594 = vmatprep.subr.bf16.mxu0 %v3435
    %3595 = vmatpush1.bf16.msra.mxu0 %v3434
    %3596 = vmatprep.subr.bf16.mxu0 %v3439
    %3597 = vmatpush1.bf16.msra.mxu0 %v3438
    %3598 = vmatprep.subr.bf16.mxu0 %v3443
    %3599 = vmatpush1.bf16.msra.mxu0 %v3442
    %3600 = vmatprep.subr.bf16.mxu0 %v3447
    %3601 = vmatpush1.bf16.msra.mxu0 %v3446
    %3602 = vmatprep.subr.bf16.mxu0 %v3451
    %3603 = vmatpush1.bf16.msra.mxu0 %v3450
    %3604 = vmatprep.subr.bf16.mxu0 %v3455
    %3605 = vmatpush1.bf16.msra.mxu0 %v3454
    %3606 = vmatprep.subr.bf16.mxu0 %v3459
    %3607 = vmatpush1.bf16.msra.mxu0 %v3458
    %3608 = vmatprep.subr.bf16.mxu0 %v3463
    %3609 = vmatpush1.bf16.msra.mxu0 %v3462
    %3610 = vmatprep.subr.bf16.mxu0 %v3467
    %3611 = vmatpush1.bf16.msra.mxu0 %v3466
    %3612 = vmatprep.subr.bf16.mxu0 %v3471
    %3613 = vmatpush1.bf16.msra.mxu0 %v3470
    %3614 = vmatprep.subr.bf16.mxu0 %v3475
    %3615 = vmatpush1.bf16.msra.mxu0 %v3474
    %3616 = vmatprep.subr.bf16.mxu0 %v3479
    %3617 = vmatpush1.bf16.msra.mxu0 %v3478
    %3618 = vmatprep.subr.bf16.mxu0 %v3483
    %3619 = vmatpush1.bf16.msra.mxu0 %v3482
    %3620 = vmatprep.mubr.bf16.mxu0 %v3585
    %3621 = vmatmul.mubr.bf16.gmra.mrb[0].mxu0 %v3584
    %v3622 = vpop.f32.mrb[0].mxu0
    %v3623 = vadd.f32 0.0, %v3622
    %v3624 = vpop.f32.mrb[0].mxu0
    %v3625 = vadd.f32 0.0, %v3624
    %v3626 = vpop.f32.mrb[0].mxu0
    %v3627 = vpop.f32.mrb[0].mxu0
    %3628 = vdwg.mxu0
    %3629 = vmatprep.subr.bf16.mxu0 %v3487
    %3630 = vmatpush1.bf16.msra.mxu0 %v3486
    %3631 = vmatprep.subr.bf16.mxu0 %v3491
    %3632 = vmatpush1.bf16.msra.mxu0 %v3490
    %3633 = vmatprep.subr.bf16.mxu0 %v3495
    %3634 = vmatpush1.bf16.msra.mxu0 %v3494
    %3635 = vmatprep.subr.bf16.mxu0 %v3499
    %3636 = vmatpush1.bf16.msra.mxu0 %v3498
    %3637 = vmatprep.subr.bf16.mxu0 %v3503
    %3638 = vmatpush1.bf16.msra.mxu0 %v3502
    %3639 = vmatprep.subr.bf16.mxu0 %v3507
    %3640 = vmatpush1.bf16.msra.mxu0 %v3506
    %3641 = vmatprep.subr.bf16.mxu0 %v3511
    %3642 = vmatpush1.bf16.msra.mxu0 %v3510
    %3643 = vmatprep.subr.bf16.mxu0 %v3515
    %3644 = vmatpush1.bf16.msra.mxu0 %v3514
    %3645 = vmatprep.subr.bf16.mxu0 %v3519
    %3646 = vmatpush1.bf16.msra.mxu0 %v3518
    %3647 = vmatprep.subr.bf16.mxu0 %v3523
    %3648 = vmatpush1.bf16.msra.mxu0 %v3522
    %3649 = vmatprep.subr.bf16.mxu0 %v3527
    %3650 = vmatpush1.bf16.msra.mxu0 %v3526
    %3651 = vmatprep.subr.bf16.mxu0 %v3531
    %3652 = vmatpush1.bf16.msra.mxu0 %v3530
    %3653 = vmatprep.subr.bf16.mxu0 %v3535
    %3654 = vmatpush1.bf16.msra.mxu0 %v3534
    %3655 = vmatprep.subr.bf16.mxu0 %v3539
    %3656 = vmatpush1.bf16.msra.mxu0 %v3538
    %3657 = vmatprep.subr.bf16.mxu0 %v3543
    %3658 = vmatpush1.bf16.msra.mxu0 %v3542
    %3659 = vmatprep.subr.bf16.mxu0 %v3547
    %3660 = vmatpush1.bf16.msra.mxu0 %v3546
    %3661 = vmatprep.mubr.bf16.mxu0 %v3587
    %3662 = vmatmul.mubr.bf16.gmra.mrb[0].mxu0 %v3586
    %v3663 = vpop.f32.mrb[0].mxu0
    %v3664 = vadd.f32 %v3623, %v3663
    %v3665 = vpop.f32.mrb[0].mxu0
    %v3666 = vadd.f32 %v3625, %v3665
    %v3667 = vpop.f32.mrb[0].mxu0
    %v3668 = vpop.f32.mrb[0].mxu0
    %3669 = vdwg.mxu0
    %3670 = vmatprep.subr.bf16.mxu0 %v3425
    %3671 = vmatpush1.bf16.msra.mxu0 %v3424
    %3672 = vmatprep.subr.bf16.mxu0 %v3429
    %3673 = vmatpush1.bf16.msra.mxu0 %v3428
    %3674 = vmatprep.subr.bf16.mxu0 %v3433
    %3675 = vmatpush1.bf16.msra.mxu0 %v3432
    %3676 = vmatprep.subr.bf16.mxu0 %v3437
    %3677 = vmatpush1.bf16.msra.mxu0 %v3436
    %3678 = vmatprep.subr.bf16.mxu0 %v3441
    %3679 = vmatpush1.bf16.msra.mxu0 %v3440
    %3680 = vmatprep.subr.bf16.mxu0 %v3445
    %3681 = vmatpush1.bf16.msra.mxu0 %v3444
    %3682 = vmatprep.subr.bf16.mxu0 %v3449
    %3683 = vmatpush1.bf16.msra.mxu0 %v3448
    %3684 = vmatprep.subr.bf16.mxu0 %v3453
    %3685 = vmatpush1.bf16.msra.mxu0 %v3452
    %3686 = vmatprep.subr.bf16.mxu0 %v3457
    %3687 = vmatpush1.bf16.msra.mxu0 %v3456
    %3688 = vmatprep.subr.bf16.mxu0 %v3461
    %3689 = vmatpush1.bf16.msra.mxu0 %v3460
    %3690 = vmatprep.subr.bf16.mxu0 %v3465
    %3691 = vmatpush1.bf16.msra.mxu0 %v3464
    %3692 = vmatprep.subr.bf16.mxu0 %v3469
    %3693 = vmatpush1.bf16.msra.mxu0 %v3468
    %3694 = vmatprep.subr.bf16.mxu0 %v3473
    %3695 = vmatpush1.bf16.msra.mxu0 %v3472
    %3696 = vmatprep.subr.bf16.mxu0 %v3477
    %3697 = vmatpush1.bf16.msra.mxu0 %v3476
    %3698 = vmatprep.subr.bf16.mxu0 %v3481
    %3699 = vmatpush1.bf16.msra.mxu0 %v3480
    %3700 = vmatprep.subr.bf16.mxu0 %v3485
    %3701 = vmatpush1.bf16.msra.mxu0 %v3484
    %3702 = vmatprep.mubr.bf16.mxu0 %v3585
    %3703 = vmatmul.mubr.bf16.gmra.mrb[0].mxu0 %v3584
    %v3704 = vpop.f32.mrb[0].mxu0
    %v3705 = vadd.f32 0.0, %v3704
    %v3706 = vpop.f32.mrb[0].mxu0
    %v3707 = vadd.f32 0.0, %v3706
    %v3708 = vpop.f32.mrb[0].mxu0
    %v3709 = vpop.f32.mrb[0].mxu0
    %3710 = vdwg.mxu0
    %3711 = vmatprep.subr.bf16.mxu0 %v3489
    %3712 = vmatpush1.bf16.msra.mxu0 %v3488
    %3713 = vmatprep.subr.bf16.mxu0 %v3493
    %3714 = vmatpush1.bf16.msra.mxu0 %v3492
    %3715 = vmatprep.subr.bf16.mxu0 %v3497
    %3716 = vmatpush1.bf16.msra.mxu0 %v3496
    %3717 = vmatprep.subr.bf16.mxu0 %v3501
    %3718 = vmatpush1.bf16.msra.mxu0 %v3500
    %3719 = vmatprep.subr.bf16.mxu0 %v3505
    %3720 = vmatpush1.bf16.msra.mxu0 %v3504
    %3721 = vmatprep.subr.bf16.mxu0 %v3509
    %3722 = vmatpush1.bf16.msra.mxu0 %v3508
    %3723 = vmatprep.subr.bf16.mxu0 %v3513
    %3724 = vmatpush1.bf16.msra.mxu0 %v3512
    %3725 = vmatprep.subr.bf16.mxu0 %v3517
    %3726 = vmatpush1.bf16.msra.mxu0 %v3516
    %3727 = vmatprep.subr.bf16.mxu0 %v3521
    %3728 = vmatpush1.bf16.msra.mxu0 %v3520
    %3729 = vmatprep.subr.bf16.mxu0 %v3525
    %3730 = vmatpush1.bf16.msra.mxu0 %v3524
    %3731 = vmatprep.subr.bf16.mxu0 %v3529
    %3732 = vmatpush1.bf16.msra.mxu0 %v3528
    %3733 = vmatprep.subr.bf16.mxu0 %v3533
    %3734 = vmatpush1.bf16.msra.mxu0 %v3532
    %3735 = vmatprep.subr.bf16.mxu0 %v3537
    %3736 = vmatpush1.bf16.msra.mxu0 %v3536
    %3737 = vmatprep.subr.bf16.mxu0 %v3541
    %3738 = vmatpush1.bf16.msra.mxu0 %v3540
    %3739 = vmatprep.subr.bf16.mxu0 %v3545
    %3740 = vmatpush1.bf16.msra.mxu0 %v3544
    %3741 = vmatprep.subr.bf16.mxu0 %v3549
    %3742 = vmatpush1.bf16.msra.mxu0 %v3548
    %3743 = vmatprep.mubr.bf16.mxu0 %v3587
    %3744 = vmatmul.mubr.bf16.gmra.mrb[0].mxu0 %v3586
    %v3745 = vpop.f32.mrb[0].mxu0
    %v3746 = vadd.f32 %v3705, %v3745
    %v3747 = vpop.f32.mrb[0].mxu0
    %v3748 = vadd.f32 %v3707, %v3747
    %v3749 = vpop.f32.mrb[0].mxu0
    %v3750 = vpop.f32.mrb[0].mxu0
    %3751 = vdwg.mxu0
    %v3752 = vrot.slane %v3664, 4
    %v3753 = vadd.f32 %v3664, %v3752
    %v3754 = vrot.slane %v3753, 2
    %v3755 = vadd.f32 %v3753, %v3754
    %v3756 = vrot.slane %v3755, 1
    %v3757 = vadd.f32 %v3755, %v3756
    %v3758 = vrot.slane %v3666, 4
    %v3759 = vadd.f32 %v3666, %v3758
    %v3760 = vrot.slane %v3759, 2
    %v3761 = vadd.f32 %v3759, %v3760
    %v3762 = vrot.slane %v3761, 1
    %v3763 = vadd.f32 %v3761, %v3762
    %v3764 = vmul.f32 %v3664, %v3664
    %v3765 = vmul.f32 %v3666, %v3666
    %v3766 = vrot.slane %v3764, 4
    %v3767 = vadd.f32 %v3764, %v3766
    %v3768 = vrot.slane %v3767, 2
    %v3769 = vadd.f32 %v3767, %v3768
    %v3770 = vrot.slane %v3769, 1
    %v3771 = vadd.f32 %v3769, %v3770
    %v3772 = vrot.slane %v3765, 4
    %v3773 = vadd.f32 %v3765, %v3772
    %v3774 = vrot.slane %v3773, 2
    %v3775 = vadd.f32 %v3773, %v3774
    %v3776 = vrot.slane %v3775, 1
    %v3777 = vadd.f32 %v3775, %v3776
    %v3778 = vmul.f32 %v3757, 0.125
    %v3779 = vmul.f32 %v3763, 0.125
    %v3780 = vmul.f32 %v3771, 0.125
    %v3781 = vmul.f32 %v3777, 0.125
    %v3782 = vmul.f32 %v3778, %v3778
    %v3783 = vmul.f32 %v3779, %v3779
    %v3784 = vsub.f32 %v3780, %v3782
    %v3785 = vsub.f32 %v3781, %v3783
    %v3786 = vmax.f32 %v3784, 0.0
    %v3787 = vmax.f32 %v3785, 0.0
    %v3788 = vadd.f32 %v3786, 1e-05
    %v3789 = vadd.f32 %v3787, 1e-05
    %v3790 = vrsqrt.pop %v3788
    %v3791 = vrsqrt.pop %v3789
    %v3792 = vmul.f32 %v3582, %v3790
    %v3793 = vmul.f32 %v3583, %v3791
    %v3794 = vmul.f32 %v3778, %v3792
    %v3795 = vmul.f32 %v3779, %v3793
    %v3798 = vrot.slane %v3794, 7
    %v3799 = vrot.slane %v3795, 7
    %v3802 = vsub.f32 %v3582, %v3798
    %v3803 = vsub.f32 %v3583, %v3799
    %v3804 = vlaneseq
    %v3805 = vshrl.u32 %v3804, 7
    %v3806 = vsub.s32 4, %v3805
    %v3807 = vrot.slane %v3792, %v3806
    %v3808 = vlaneseq
    %v3809 = vshrl.u32 %v3808, 7
    %v3810 = vsub.s32 4, %v3809
    %v3811 = vrot.slane %v3793, %v3810
    %v3812 = vmul.f32 %v3664, %v3807
    %v3813 = vmul.f32 %v3666, %v3811
    %v3814 = vlaneseq
    %v3815 = vshrl.u32 %v3814, 7
    %v3816 = vsub.s32 5, %v3815
    %v3817 = vrot.slane %v3802, %v3816
    %v3818 = vlaneseq
    %v3819 = vshrl.u32 %v3818, 7
    %v3820 = vsub.s32 5, %v3819
    %v3821 = vrot.slane %v3803, %v3820
    %v3822 = vadd.f32 %v3812, %v3817
    %v3823 = vadd.f32 %v3813, %v3821
    %v3824 = vmax.f32 %v3822, 0.0
    %v3825 = vmax.f32 %v3823, 0.0
    %v3826 = vpack.c.bf16 %v3824, %v3824
    %v3827 = vpack.c.bf16 %v3825, %v3825
    %3828 = vmatprep.subr.bf16.mxu0 %v3551
    %3829 = vmatpush1.bf16.msra.mxu0 %v3550
    %3830 = vmatprep.subr.bf16.mxu0 %v3553
    %3831 = vmatpush1.bf16.msra.mxu0 %v3552
    %3832 = vmatprep.subr.bf16.mxu0 %v3555
    %3833 = vmatpush1.bf16.msra.mxu0 %v3554
    %3834 = vmatprep.subr.bf16.mxu0 %v3557
    %3835 = vmatpush1.bf16.msra.mxu0 %v3556
    %3836 = vmatprep.subr.bf16.mxu0 %v3559
    %3837 = vmatpush1.bf16.msra.mxu0 %v3558
    %3838 = vmatprep.subr.bf16.mxu0 %v3561
    %3839 = vmatpush1.bf16.msra.mxu0 %v3560
    %3840 = vmatprep.subr.bf16.mxu0 %v3563
    %3841 = vmatpush1.bf16.msra.mxu0 %v3562
    %3842 = vmatprep.subr.bf16.mxu0 %v3565
    %3843 = vmatpush1.bf16.msra.mxu0 %v3564
    %3844 = vmatprep.subr.bf16.mxu0 %v3567
    %3845 = vmatpush1.bf16.msra.mxu0 %v3566
    %3846 = vmatprep.subr.bf16.mxu0 %v3569
    %3847 = vmatpush1.bf16.msra.mxu0 %v3568
    %3848 = vmatprep.subr.bf16.mxu0 %v3571
    %3849 = vmatpush1.bf16.msra.mxu0 %v3570
    %3850 = vmatprep.subr.bf16.mxu0 %v3573
    %3851 = vmatpush1.bf16.msra.mxu0 %v3572
    %3852 = vmatprep.subr.bf16.mxu0 %v3575
    %3853 = vmatpush1.bf16.msra.mxu0 %v3574
    %3854 = vmatprep.subr.bf16.mxu0 %v3577
    %3855 = vmatpush1.bf16.msra.mxu0 %v3576
    %3856 = vmatprep.subr.bf16.mxu0 %v3579
    %3857 = vmatpush1.bf16.msra.mxu0 %v3578
    %3858 = vmatprep.subr.bf16.mxu0 %v3581
    %3859 = vmatpush1.bf16.msra.mxu0 %v3580
    %3860 = vmatprep.mubr.bf16.mxu0 %v3827
    %3861 = vmatmul.mubr.bf16.gmra.mrb[0].mxu0 %v3826
    %v3862 = vpop.f32.mrb[0].mxu0
    %v3863 = vadd.f32 0.0, %v3862
    %v3864 = vpop.f32.mrb[0].mxu0
    %v3865 = vadd.f32 0.0, %v3864
    %v3866 = vpop.f32.mrb[0].mxu0
    %v3867 = vpop.f32.mrb[0].mxu0
    %3868 = vdwg.mxu0
    %v3869 = vrot.slane %v3863, 4
    %v3870 = vadd.f32 %v3863, %v3869
    %v3871 = vrot.slane %v3870, 2
    %v3872 = vadd.f32 %v3870, %v3871
    %v3873 = vrot.slane %v3872, 1
    %v3874 = vadd.f32 %v3872, %v3873
    %v3875 = vrot.slane %v3865, 4
    %v3876 = vadd.f32 %v3865, %v3875
    %v3877 = vrot.slane %v3876, 2
    %v3878 = vadd.f32 %v3876, %v3877
    %v3879 = vrot.slane %v3878, 1
    %v3880 = vadd.f32 %v3878, %v3879
    %v3881 = vmul.f32 %v3863, %v3863
    %v3882 = vmul.f32 %v3865, %v3865
    %v3883 = vrot.slane %v3881, 4
    %v3884 = vadd.f32 %v3881, %v3883
    %v3885 = vrot.slane %v3884, 2
    %v3886 = vadd.f32 %v3884, %v3885
    %v3887 = vrot.slane %v3886, 1
    %v3888 = vadd.f32 %v3886, %v3887
    %v3889 = vrot.slane %v3882, 4
    %v3890 = vadd.f32 %v3882, %v3889
    %v3891 = vrot.slane %v3890, 2
    %v3892 = vadd.f32 %v3890, %v3891
    %v3893 = vrot.slane %v3892, 1
    %v3894 = vadd.f32 %v3892, %v3893
    %v3895 = vmul.f32 %v3874, 0.125
    %v3896 = vmul.f32 %v3880, 0.125
    %v3897 = vmul.f32 %v3888, 0.125
    %v3898 = vmul.f32 %v3894, 0.125
    %v3899 = vmul.f32 %v3895, %v3895
    %v3900 = vmul.f32 %v3896, %v3896
    %v3901 = vsub.f32 %v3897, %v3899
    %v3902 = vsub.f32 %v3898, %v3900
    %v3903 = vmax.f32 %v3901, 0.0
    %v3904 = vmax.f32 %v3902, 0.0
    %v3905 = vadd.f32 %v3903, 1e-05
    %v3906 = vadd.f32 %v3904, 1e-05
    %v3907 = vrsqrt.pop %v3905
    %v3908 = vrsqrt.pop %v3906
    %v3909 = vmul.f32 %v3582, %v3907
    %v3910 = vmul.f32 %v3583, %v3908
    %v3911 = vmul.f32 %v3895, %v3909
    %v3912 = vmul.f32 %v3896, %v3910
    %v3915 = vrot.slane %v3911, 7
    %v3916 = vrot.slane %v3912, 7
    %v3919 = vsub.f32 %v3582, %v3915
    %v3920 = vsub.f32 %v3583, %v3916
    %v3921 = vlaneseq
    %v3922 = vshrl.u32 %v3921, 7
    %v3923 = vsub.s32 6, %v3922
    %v3924 = vrot.slane %v3909, %v3923
    %v3925 = vlaneseq
    %v3926 = vshrl.u32 %v3925, 7
    %v3927 = vsub.s32 6, %v3926
    %v3928 = vrot.slane %v3910, %v3927
    %v3929 = vmul.f32 %v3863, %v3924
    %v3930 = vmul.f32 %v3865, %v3928
    %v3931 = vlaneseq
    %v3932 = vshrl.u32 %v3931, 7
    %v3933 = vsub.s32 7, %v3932
    %v3934 = vrot.slane %v3919, %v3933
    %v3935 = vlaneseq
    %v3936 = vshrl.u32 %v3935, 7
    %v3937 = vsub.s32 7, %v3936
    %v3938 = vrot.slane %v3920, %v3937
    %v3939 = vadd.f32 %v3929, %v3934
    %v3940 = vadd.f32 %v3930, %v3938
    %v3941 = vadd.f32 %v3939, %v3746
    %v3942 = vadd.f32 %v3940, %v3748
    %v3943 = vmax.f32 %v3941, 0.0
    %v3944 = vmax.f32 %v3942, 0.0
    %s3945 = sshll.u32 %s966, 4
    %3946 = dma.done %s454, %s3945
    %s3947 = sshll.u32 %s783, 4
    %3948 = dma.done %s489, %s3947
    %v3949 = vld [vmem:[#allocation14] sm:$0xff]
    %v3950 = vld [vmem:[#allocation14 + $0x8] sm:$0xff]
    %v3951 = vld [vmem:[#allocation14 + $0x10] sm:$0xff]
    %v3952 = vld [vmem:[#allocation14 + $0x18] sm:$0xff]
    %v3953 = vld [vmem:[#allocation14 + $0x20] sm:$0xff]
    %v3954 = vld [vmem:[#allocation14 + $0x28] sm:$0xff]
    %v3955 = vld [vmem:[#allocation14 + $0x30] sm:$0xff]
    %v3956 = vld [vmem:[#allocation14 + $0x38] sm:$0xff]
    %v3957 = vld [vmem:[#allocation14 + $0x40] sm:$0xff]
    %v3958 = vld [vmem:[#allocation14 + $0x48] sm:$0xff]
    %v3959 = vld [vmem:[#allocation14 + $0x50] sm:$0xff]
    %v3960 = vld [vmem:[#allocation14 + $0x58] sm:$0xff]
    %v3961 = vld [vmem:[#allocation14 + $0x60] sm:$0xff]
    %v3962 = vld [vmem:[#allocation14 + $0x68] sm:$0xff]
    %v3963 = vld [vmem:[#allocation14 + $0x70] sm:$0xff]
    %v3964 = vld [vmem:[#allocation14 + $0x78] sm:$0xff]
    %v3965 = vld [vmem:[#allocation14 + $0x80] sm:$0xff]
    %v3966 = vld [vmem:[#allocation14 + $0x88] sm:$0xff]
    %v3967 = vld [vmem:[#allocation14 + $0x90] sm:$0xff]
    %v3968 = vld [vmem:[#allocation14 + $0x98] sm:$0xff]
    %v3969 = vld [vmem:[#allocation14 + $0xa0] sm:$0xff]
    %v3970 = vld [vmem:[#allocation14 + $0xa8] sm:$0xff]
    %v3971 = vld [vmem:[#allocation14 + $0xb0] sm:$0xff]
    %v3972 = vld [vmem:[#allocation14 + $0xb8] sm:$0xff]
    %v3973 = vld [vmem:[#allocation14 + $0xc0] sm:$0xff]
    %v3974 = vld [vmem:[#allocation14 + $0xc8] sm:$0xff]
    %v3975 = vld [vmem:[#allocation14 + $0xd0] sm:$0xff]
    %v3976 = vld [vmem:[#allocation14 + $0xd8] sm:$0xff]
    %v3977 = vld [vmem:[#allocation14 + $0xe0] sm:$0xff]
    %v3978 = vld [vmem:[#allocation14 + $0xe8] sm:$0xff]
    %v3979 = vld [vmem:[#allocation14 + $0xf0] sm:$0xff]
    %v3980 = vld [vmem:[#allocation14 + $0xf8] sm:$0xff]
    %v3981 = vld [vmem:[#allocation15] sm:$0xff]
    %v3982 = vld [vmem:[#allocation15 + $0x8] sm:$0xff]
    %v3983 = vld [vmem:[#allocation15 + $0x10] sm:$0xff]
    %v3984 = vld [vmem:[#allocation15 + $0x18] sm:$0xff]
    %v3985 = vld [vmem:[#allocation15 + $0x20] sm:$0xff]
    %v3986 = vld [vmem:[#allocation15 + $0x28] sm:$0xff]
    %v3987 = vld [vmem:[#allocation15 + $0x30] sm:$0xff]
    %v3988 = vld [vmem:[#allocation15 + $0x38] sm:$0xff]
    %v3989 = vld [vmem:[#allocation30 + $0x60] sm:$0xf]
    %v3990 = vpack.c.bf16 %v3943, %v3943
    %v3991 = vpack.c.bf16 %v3944, %v3944
    %3992 = vmatprep.subr.bf16.mxu0 %v3950
    %3993 = vmatpush1.bf16.msra.mxu0 %v3949
    %3994 = vmatprep.subr.bf16.mxu0 %v3952
    %3995 = vmatpush1.bf16.msra.mxu0 %v3951
    %3996 = vmatprep.subr.bf16.mxu0 %v3954
    %3997 = vmatpush1.bf16.msra.mxu0 %v3953
    %3998 = vmatprep.subr.bf16.mxu0 %v3956
    %3999 = vmatpush1.bf16.msra.mxu0 %v3955
    %4000 = vmatprep.subr.bf16.mxu0 %v3958
    %4001 = vmatpush1.bf16.msra.mxu0 %v3957
    %4002 = vmatprep.subr.bf16.mxu0 %v3960
    %4003 = vmatpush1.bf16.msra.mxu0 %v3959
    %4004 = vmatprep.subr.bf16.mxu0 %v3962
    %4005 = vmatpush1.bf16.msra.mxu0 %v3961
    %4006 = vmatprep.subr.bf16.mxu0 %v3964
    %4007 = vmatpush1.bf16.msra.mxu0 %v3963
    %4008 = vmatprep.subr.bf16.mxu0 %v3966
    %4009 = vmatpush1.bf16.msra.mxu0 %v3965
    %4010 = vmatprep.subr.bf16.mxu0 %v3968
    %4011 = vmatpush1.bf16.msra.mxu0 %v3967
    %4012 = vmatprep.subr.bf16.mxu0 %v3970
    %4013 = vmatpush1.bf16.msra.mxu0 %v3969
    %4014 = vmatprep.subr.bf16.mxu0 %v3972
    %4015 = vmatpush1.bf16.msra.mxu0 %v3971
    %4016 = vmatprep.subr.bf16.mxu0 %v3974
    %4017 = vmatpush1.bf16.msra.mxu0 %v3973
    %4018 = vmatprep.subr.bf16.mxu0 %v3976
    %4019 = vmatpush1.bf16.msra.mxu0 %v3975
    %4020 = vmatprep.subr.bf16.mxu0 %v3978
    %4021 = vmatpush1.bf16.msra.mxu0 %v3977
    %4022 = vmatprep.subr.bf16.mxu0 %v3980
    %4023 = vmatpush1.bf16.msra.mxu0 %v3979
    %4024 = vmatprep.mubr.bf16.mxu0 %v3991
    %4025 = vmatmul.mubr.bf16.gmra.mrb[0].mxu0 %v3990
    %v4026 = vpop.f32.mrb[0].mxu0
    %v4027 = vadd.f32 0.0, %v4026
    %v4028 = vpop.f32.mrb[0].mxu0
    %v4029 = vadd.f32 0.0, %v4028
    %v4030 = vpop.f32.mrb[0].mxu0
    %v4031 = vpop.f32.mrb[0].mxu0
    %4032 = vdwg.mxu0
    %v4033 = vrot.slane %v4027, 4
    %v4034 = vadd.f32 %v4027, %v4033
    %v4035 = vrot.slane %v4034, 2
    %v4036 = vadd.f32 %v4034, %v4035
    %v4037 = vrot.slane %v4036, 1
    %v4038 = vadd.f32 %v4036, %v4037
    %v4039 = vmul.f32 %v4027, %v4027
    %v4040 = vrot.slane %v4039, 4
    %v4041 = vadd.f32 %v4039, %v4040
    %v4042 = vrot.slane %v4041, 2
    %v4043 = vadd.f32 %v4041, %v4042
    %v4044 = vrot.slane %v4043, 1
    %v4045 = vadd.f32 %v4043, %v4044
    %v4046 = vmul.f32 %v4038, 0.125
    %v4047 = vmul.f32 %v4045, 0.125
    %v4048 = vmul.f32 %v4046, %v4046
    %v4049 = vsub.f32 %v4047, %v4048
    %v4050 = vmax.f32 %v4049, 0.0
    %v4051 = vadd.f32 %v4050, 1e-05
    %v4052 = vrsqrt.pop %v4051
    %v4053 = vmul.f32 %v3989, %v4052
    %v4054 = vmul.f32 %v4046, %v4053
    %v4056 = vrot.slane %v4054, 7
    %v4058 = vsub.f32 %v3989, %v4056
    %v4059 = vlaneseq
    %v4060 = vshrl.u32 %v4059, 7
    %v4061 = vsub.s32 0, %v4060
    %v4062 = vrot.slane %v4053, %v4061
    %v4063 = vmul.f32 %v4027, %v4062
    %v4064 = vlaneseq
    %v4065 = vshrl.u32 %v4064, 7
    %v4066 = vsub.s32 1, %v4065
    %v4067 = vrot.slane %v4058, %v4066
    %v4068 = vadd.f32 %v4063, %v4067
    %v4069 = vmax.f32 %v4068, 0.0
    %v4070 = vpack.c.bf16 %v4069, %v4069
    %4071 = vmatprep.subr.bf16.mxu0 0
    %4072 = vmatpush1.bf16.msra.mxu0 %v3981
    %4073 = vmatprep.subr.bf16.mxu0 0
    %4074 = vmatpush1.bf16.msra.mxu0 %v3982
    %4075 = vmatprep.subr.bf16.mxu0 0
    %4076 = vmatpush1.bf16.msra.mxu0 %v3983
    %4077 = vmatprep.subr.bf16.mxu0 0
    %4078 = vmatpush1.bf16.msra.mxu0 %v3984
    %4079 = vmatprep.subr.bf16.mxu0 0
    %4080 = vmatpush1.bf16.msra.mxu0 %v3985
    %4081 = vmatprep.subr.bf16.mxu0 0
    %4082 = vmatpush1.bf16.msra.mxu0 %v3986
    %4083 = vmatprep.subr.bf16.mxu0 0
    %4084 = vmatpush1.bf16.msra.mxu0 %v3987
    %4085 = vmatprep.subr.bf16.mxu0 0
    %4086 = vmatpush1.bf16.msra.mxu0 %v3988
    %4087 = vmatprep.subr.bf16.mxu0 0
    %4088 = vmatpush1.bf16.msra.mxu0 0
    %4089 = vmatprep.subr.bf16.mxu0 0
    %4090 = vmatpush1.bf16.msra.mxu0 0
    %4091 = vmatprep.subr.bf16.mxu0 0
    %4092 = vmatpush1.bf16.msra.mxu0 0
    %4093 = vmatprep.subr.bf16.mxu0 0
    %4094 = vmatpush1.bf16.msra.mxu0 0
    %4095 = vmatprep.subr.bf16.mxu0 0
    %4096 = vmatpush1.bf16.msra.mxu0 0
    %4097 = vmatprep.subr.bf16.mxu0 0
    %4098 = vmatpush1.bf16.msra.mxu0 0
    %4099 = vmatprep.subr.bf16.mxu0 0
    %4100 = vmatpush1.bf16.msra.mxu0 0
    %4101 = vmatprep.subr.bf16.mxu0 0
    %4102 = vmatpush1.bf16.msra.mxu0 0
    %4103 = vmatprep.mubr.bf16.mxu0 0
    %4104 = vmatmul.mubr.bf16.gmra.mrb[0].mxu0 %v4070
    %v4105 = vpop.f32.mrb[0].mxu0
    %v4106 = vadd.f32 0.0, %v4105
    %v4107 = vpop.f32.mrb[0].mxu0
    %v4108 = vpop.f32.mrb[0].mxu0
    %v4109 = vpop.f32.mrb[0].mxu0
    %4110 = vdwg.mxu0
    %v4111 = vrot.slane %v4106, 4
    %v4112 = vadd.f32 %v4106, %v4111
    %v4113 = vrot.slane %v4112, 2
    %v4114 = vadd.f32 %v4112, %v4113
    %v4115 = vrot.slane %v4114, 1
    %v4116 = vadd.f32 %v4114, %v4115
    %v4117 = vmul.f32 %v4106, %v4106
    %v4118 = vrot.slane %v4117, 4
    %v4119 = vadd.f32 %v4117, %v4118
    %v4120 = vrot.slane %v4119, 2
    %v4121 = vadd.f32 %v4119, %v4120
    %v4122 = vrot.slane %v4121, 1
    %v4123 = vadd.f32 %v4121, %v4122
    %v4124 = vmul.f32 %v4116, 0.125
    %v4125 = vmul.f32 %v4123, 0.125
    %v4126 = vmul.f32 %v4124, %v4124
    %v4127 = vsub.f32 %v4125, %v4126
    %v4128 = vmax.f32 %v4127, 0.0
    %v4129 = vadd.f32 %v4128, 1e-05
    %v4130 = vrsqrt.pop %v4129
    %v4131 = vmul.f32 %v3989, %v4130
    %v4132 = vmul.f32 %v4124, %v4131
    %v4134 = vrot.slane %v4132, 7
    %v4136 = vsub.f32 %v3989, %v4134
    %v4137 = vlaneseq
    %v4138 = vshrl.u32 %v4137, 7
    %v4139 = vsub.s32 2, %v4138
    %v4140 = vrot.slane %v4131, %v4139
    %v4141 = vmul.f32 %v4106, %v4140
    %v4142 = vlaneseq
    %v4143 = vshrl.u32 %v4142, 7
    %v4144 = vsub.s32 3, %v4143
    %v4145 = vrot.slane %v4136, %v4144
    %v4146 = vadd.f32 %v4141, %v4145
    %v4147 = vadd.f32 %v4146, %v4029
    %v4148 = vmax.f32 %v4147, 0.0
    %s4149 = sshll.u32 %s783, 4
    %4150 = dma.done %s501, %s4149
    %s4151 = smul.u32 4, 8
    %s4152 = smul.u32 %s4151, 1
    %s4153 = sshll.u32 %s4152, 4
    %4154 = dma.done %s558, %s4153
    %v4155 = vld [vmem:[#allocation16] sm:$0xff]
    %v4156 = vld [vmem:[#allocation16 + $0x8] sm:$0xff]
    %v4157 = vld [vmem:[#allocation16 + $0x10] sm:$0xff]
    %v4158 = vld [vmem:[#allocation16 + $0x18] sm:$0xff]
    %v4159 = vld [vmem:[#allocation16 + $0x20] sm:$0xff]
    %v4160 = vld [vmem:[#allocation16 + $0x28] sm:$0xff]
    %v4161 = vld [vmem:[#allocation16 + $0x30] sm:$0xff]
    %v4162 = vld [vmem:[#allocation16 + $0x38] sm:$0xff]
    %v4163 = vld [vmem:[#allocation17] sm:$0xff]
    %v4164 = vld [vmem:[#allocation17 + $0x8] sm:$0xff]
    %v4165 = vld [vmem:[#allocation17 + $0x10] sm:$0xff]
    %v4166 = vld [vmem:[#allocation17 + $0x18] sm:$0xff]
    %v4167 = vld [vmem:[#allocation30 + $0x60] sm:$0xf0]
    %v4168 = vpack.c.bf16 %v4148, %v4148
    %4169 = vmatprep.subr.bf16.mxu0 0
    %4170 = vmatpush1.bf16.msra.mxu0 %v4155
    %4171 = vmatprep.subr.bf16.mxu0 0
    %4172 = vmatpush1.bf16.msra.mxu0 %v4156
    %4173 = vmatprep.subr.bf16.mxu0 0
    %4174 = vmatpush1.bf16.msra.mxu0 %v4157
    %4175 = vmatprep.subr.bf16.mxu0 0
    %4176 = vmatpush1.bf16.msra.mxu0 %v4158
    %4177 = vmatprep.subr.bf16.mxu0 0
    %4178 = vmatpush1.bf16.msra.mxu0 %v4159
    %4179 = vmatprep.subr.bf16.mxu0 0
    %4180 = vmatpush1.bf16.msra.mxu0 %v4160
    %4181 = vmatprep.subr.bf16.mxu0 0
    %4182 = vmatpush1.bf16.msra.mxu0 %v4161
    %4183 = vmatprep.subr.bf16.mxu0 0
    %4184 = vmatpush1.bf16.msra.mxu0 %v4162
    %4185 = vmatprep.subr.bf16.mxu0 0
    %4186 = vmatpush1.bf16.msra.mxu0 0
    %4187 = vmatprep.subr.bf16.mxu0 0
    %4188 = vmatpush1.bf16.msra.mxu0 0
    %4189 = vmatprep.subr.bf16.mxu0 0
    %4190 = vmatpush1.bf16.msra.mxu0 0
    %4191 = vmatprep.subr.bf16.mxu0 0
    %4192 = vmatpush1.bf16.msra.mxu0 0
    %4193 = vmatprep.subr.bf16.mxu0 0
    %4194 = vmatpush1.bf16.msra.mxu0 0
    %4195 = vmatprep.subr.bf16.mxu0 0
    %4196 = vmatpush1.bf16.msra.mxu0 0
    %4197 = vmatprep.subr.bf16.mxu0 0
    %4198 = vmatpush1.bf16.msra.mxu0 0
    %4199 = vmatprep.subr.bf16.mxu0 0
    %4200 = vmatpush1.bf16.msra.mxu0 0
    %4201 = vmatprep.mubr.bf16.mxu0 0
    %4202 = vmatmul.mubr.bf16.gmra.mrb[0].mxu0 %v4168
    %v4203 = vpop.f32.mrb[0].mxu0
    %v4204 = vadd.f32 0.0, %v4203
    %v4205 = vpop.f32.mrb[0].mxu0
    %v4206 = vpop.f32.mrb[0].mxu0
    %v4207 = vpop.f32.mrb[0].mxu0
    %4208 = vdwg.mxu0
    %vm4209 = vcmask 523264
    %v4210 = vsel %vm4209, %v4204, 0.0
    %v4211 = vrot.slane %v4210, 4
    %v4212 = vadd.f32 %v4210, %v4211
    %v4213 = vrot.slane %v4212, 2
    %v4214 = vadd.f32 %v4212, %v4213
    %v4215 = vrot.slane %v4214, 1
    %v4216 = vadd.f32 %v4214, %v4215
    %v4217 = vmul.f32 %v4204, %v4204
    %v4218 = vsel %vm4209, %v4217, 0.0
    %v4219 = vrot.slane %v4218, 4
    %v4220 = vadd.f32 %v4218, %v4219
    %v4221 = vrot.slane %v4220, 2
    %v4222 = vadd.f32 %v4220, %v4221
    %v4223 = vrot.slane %v4222, 1
    %v4224 = vadd.f32 %v4222, %v4223
    %v4225 = vmul.f32 %v4216, 0.125
    %v4226 = vmul.f32 %v4224, 0.125
    %v4227 = vmul.f32 %v4225, %v4225
    %v4228 = vsub.f32 %v4226, %v4227
    %v4229 = vmax.f32 %v4228, 0.0
    %v4230 = vadd.f32 %v4229, 1e-05
    %v4231 = vrsqrt.pop %v4230
    %v4232 = vmul.f32 %v4167, %v4231
    %v4233 = vmul.f32 %v4225, %v4232
    %v4235 = vrot.slane %v4233, 7
    %v4237 = vsub.f32 %v4167, %v4235
    %v4238 = vlaneseq
    %v4239 = vshrl.u32 %v4238, 7
    %v4240 = vsub.s32 4, %v4239
    %v4241 = vrot.slane %v4232, %v4240
    %v4242 = vmul.f32 %v4204, %v4241
    %v4243 = vlaneseq
    %v4244 = vshrl.u32 %v4243, 7
    %v4245 = vsub.s32 5, %v4244
    %v4246 = vrot.slane %v4237, %v4245
    %v4247 = vadd.f32 %v4242, %v4246
    %v4248 = vmax.f32 %v4247, 0.0
    %v4249 = vpack.c.bf16 %v4248, %v4248
    %v4251 = vsel %vm4209, %v4249, 0
    %4253 = vmatprep.subr.bf16.mxu0 0
    %4254 = vmatpush1.bf16.msra.mxu0 %v4163
    %4255 = vmatprep.subr.bf16.mxu0 0
    %4256 = vmatpush1.bf16.msra.mxu0 %v4164
    %4257 = vmatprep.subr.bf16.mxu0 0
    %4258 = vmatpush1.bf16.msra.mxu0 %v4165
    %4259 = vmatprep.subr.bf16.mxu0 0
    %4260 = vmatpush1.bf16.msra.mxu0 %v4166
    %4261 = vmatprep.subr.bf16.mxu0 0
    %4262 = vmatpush1.bf16.msra.mxu0 0
    %4263 = vmatprep.subr.bf16.mxu0 0
    %4264 = vmatpush1.bf16.msra.mxu0 0
    %4265 = vmatprep.subr.bf16.mxu0 0
    %4266 = vmatpush1.bf16.msra.mxu0 0
    %4267 = vmatprep.subr.bf16.mxu0 0
    %4268 = vmatpush1.bf16.msra.mxu0 0
    %4269 = vmatprep.subr.bf16.mxu0 0
    %4270 = vmatpush1.bf16.msra.mxu0 0
    %4271 = vmatprep.subr.bf16.mxu0 0
    %4272 = vmatpush1.bf16.msra.mxu0 0
    %4273 = vmatprep.subr.bf16.mxu0 0
    %4274 = vmatpush1.bf16.msra.mxu0 0
    %4275 = vmatprep.subr.bf16.mxu0 0
    %4276 = vmatpush1.bf16.msra.mxu0 0
    %4277 = vmatprep.subr.bf16.mxu0 0
    %4278 = vmatpush1.bf16.msra.mxu0 0
    %4279 = vmatprep.subr.bf16.mxu0 0
    %4280 = vmatpush1.bf16.msra.mxu0 0
    %4281 = vmatprep.subr.bf16.mxu0 0
    %4282 = vmatpush1.bf16.msra.mxu0 0
    %4283 = vmatprep.subr.bf16.mxu0 0
    %4284 = vmatpush1.bf16.msra.mxu0 0
    %4285 = vmatprep.mubr.bf16.mxu0 0
    %4286 = vmatmul.mubr.bf16.gmra.mrb[0].mxu0 %v4251
    %v4287 = vpop.f32.mrb[0].mxu0
    %v4288 = vadd.f32 0.0, %v4287
    %v4289 = vpop.f32.mrb[0].mxu0
    %v4290 = vpop.f32.mrb[0].mxu0
    %v4291 = vpop.f32.mrb[0].mxu0
    %4292 = vdwg.mxu0
    %v4293 = vsel %vm4209, %v4288, 0.0
    %v4294 = vrot.slane %v4293, 4
    %v4295 = vadd.f32 %v4293, %v4294
    %v4296 = vrot.slane %v4295, 2
    %v4297 = vadd.f32 %v4295, %v4296
    %v4298 = vrot.slane %v4297, 1
    %v4299 = vadd.f32 %v4297, %v4298
    %v4300 = vmul.f32 %v4288, %v4288
    %v4301 = vsel %vm4209, %v4300, 0.0
    %v4302 = vrot.slane %v4301, 4
    %v4303 = vadd.f32 %v4301, %v4302
    %v4304 = vrot.slane %v4303, 2
    %v4305 = vadd.f32 %v4303, %v4304
    %v4306 = vrot.slane %v4305, 1
    %v4307 = vadd.f32 %v4305, %v4306
    %v4308 = vmul.f32 %v4299, 0.125
    %v4309 = vmul.f32 %v4307, 0.125
    %v4310 = vmul.f32 %v4308, %v4308
    %v4311 = vsub.f32 %v4309, %v4310
    %v4312 = vmax.f32 %v4311, 0.0
    %v4313 = vadd.f32 %v4312, 1e-05
    %v4314 = vrsqrt.pop %v4313
    %v4315 = vmul.f32 %v4167, %v4314
    %v4316 = vmul.f32 %v4308, %v4315
    %v4318 = vrot.slane %v4316, 7
    %v4320 = vsub.f32 %v4167, %v4318
    %v4321 = vlaneseq
    %v4322 = vshrl.u32 %v4321, 7
    %v4323 = vsub.s32 6, %v4322
    %v4324 = vrot.slane %v4315, %v4323
    %v4325 = vmul.f32 %v4288, %v4324
    %v4326 = vlaneseq
    %v4327 = vshrl.u32 %v4326, 7
    %v4328 = vsub.s32 7, %v4327
    %v4329 = vrot.slane %v4320, %v4328
    %v4330 = vadd.f32 %v4325, %v4329
    %4332 = vrot.lane.b32.xlu0 %v4204, 64
    %v4333 = vpop.permute.xlu0 %4332
    %v4335 = vadd.f32 %v4330, %v4333
    %v4336 = vmax.f32 %v4335, 0.0
    %s4337 = sshll.u32 %s1621, 4
    %4338 = dma.done %s570, %s4337
    %s4339 = sshll.u32 %s966, 4
    %4340 = dma.done %s605, %s4339
    %v4341 = vld [vmem:[#allocation18] sm:$0xff]
    %v4342 = vld [vmem:[#allocation18 + $0x8] sm:$0xff]
    %v4343 = vld [vmem:[#allocation18 + $0x10] sm:$0xff]
    %v4344 = vld [vmem:[#allocation18 + $0x18] sm:$0xff]
    %v4345 = vld [vmem:[#allocation18 + $0x20] sm:$0xff]
    %v4346 = vld [vmem:[#allocation18 + $0x28] sm:$0xff]
    %v4347 = vld [vmem:[#allocation18 + $0x30] sm:$0xff]
    %v4348 = vld [vmem:[#allocation18 + $0x38] sm:$0xff]
    %v4349 = vld [vmem:[#allocation18 + $0x40] sm:$0xff]
    %v4350 = vld [vmem:[#allocation18 + $0x48] sm:$0xff]
    %v4351 = vld [vmem:[#allocation18 + $0x50] sm:$0xff]
    %v4352 = vld [vmem:[#allocation18 + $0x58] sm:$0xff]
    %v4353 = vld [vmem:[#allocation18 + $0x60] sm:$0xff]
    %v4354 = vld [vmem:[#allocation18 + $0x68] sm:$0xff]
    %v4355 = vld [vmem:[#allocation18 + $0x70] sm:$0xff]
    %v4356 = vld [vmem:[#allocation18 + $0x78] sm:$0xff]
    %v4357 = vld [vmem:[#allocation18 + $0x80] sm:$0xff]
    %v4358 = vld [vmem:[#allocation18 + $0x88] sm:$0xff]
    %v4359 = vld [vmem:[#allocation18 + $0x90] sm:$0xff]
    %v4360 = vld [vmem:[#allocation18 + $0x98] sm:$0xff]
    %v4361 = vld [vmem:[#allocation18 + $0xa0] sm:$0xff]
    %v4362 = vld [vmem:[#allocation18 + $0xa8] sm:$0xff]
    %v4363 = vld [vmem:[#allocation18 + $0xb0] sm:$0xff]
    %v4364 = vld [vmem:[#allocation18 + $0xb8] sm:$0xff]
    %v4365 = vld [vmem:[#allocation18 + $0xc0] sm:$0xff]
    %v4366 = vld [vmem:[#allocation18 + $0xc8] sm:$0xff]
    %v4367 = vld [vmem:[#allocation18 + $0xd0] sm:$0xff]
    %v4368 = vld [vmem:[#allocation18 + $0xd8] sm:$0xff]
    %v4369 = vld [vmem:[#allocation18 + $0xe0] sm:$0xff]
    %v4370 = vld [vmem:[#allocation18 + $0xe8] sm:$0xff]
    %v4371 = vld [vmem:[#allocation18 + $0xf0] sm:$0xff]
    %v4372 = vld [vmem:[#allocation18 + $0xf8] sm:$0xff]
    %v4373 = vld [vmem:[#allocation18 + $0x100] sm:$0xff]
    %v4374 = vld [vmem:[#allocation18 + $0x108] sm:$0xff]
    %v4375 = vld [vmem:[#allocation18 + $0x110] sm:$0xff]
    %v4376 = vld [vmem:[#allocation18 + $0x118] sm:$0xff]
    %v4377 = vld [vmem:[#allocation18 + $0x120] sm:$0xff]
    %v4378 = vld [vmem:[#allocation18 + $0x128] sm:$0xff]
    %v4379 = vld [vmem:[#allocation18 + $0x130] sm:$0xff]
    %v4380 = vld [vmem:[#allocation18 + $0x138] sm:$0xff]
    %v4381 = vld [vmem:[#allocation18 + $0x140] sm:$0xff]
    %v4382 = vld [vmem:[#allocation18 + $0x148] sm:$0xff]
    %v4383 = vld [vmem:[#allocation18 + $0x150] sm:$0xff]
    %v4384 = vld [vmem:[#allocation18 + $0x158] sm:$0xff]
    %v4385 = vld [vmem:[#allocation18 + $0x160] sm:$0xff]
    %v4386 = vld [vmem:[#allocation18 + $0x168] sm:$0xff]
    %v4387 = vld [vmem:[#allocation18 + $0x170] sm:$0xff]
    %v4388 = vld [vmem:[#allocation18 + $0x178] sm:$0xff]
    %v4389 = vld [vmem:[#allocation18 + $0x180] sm:$0xff]
    %v4390 = vld [vmem:[#allocation18 + $0x188] sm:$0xff]
    %v4391 = vld [vmem:[#allocation18 + $0x190] sm:$0xff]
    %v4392 = vld [vmem:[#allocation18 + $0x198] sm:$0xff]
    %v4393 = vld [vmem:[#allocation18 + $0x1a0] sm:$0xff]
    %v4394 = vld [vmem:[#allocation18 + $0x1a8] sm:$0xff]
    %v4395 = vld [vmem:[#allocation18 + $0x1b0] sm:$0xff]
    %v4396 = vld [vmem:[#allocation18 + $0x1b8] sm:$0xff]
    %v4397 = vld [vmem:[#allocation18 + $0x1c0] sm:$0xff]
    %v4398 = vld [vmem:[#allocation18 + $0x1c8] sm:$0xff]
    %v4399 = vld [vmem:[#allocation18 + $0x1d0] sm:$0xff]
    %v4400 = vld [vmem:[#allocation18 + $0x1d8] sm:$0xff]
    %v4401 = vld [vmem:[#allocation18 + $0x1e0] sm:$0xff]
    %v4402 = vld [vmem:[#allocation18 + $0x1e8] sm:$0xff]
    %v4403 = vld [vmem:[#allocation18 + $0x1f0] sm:$0xff]
    %v4404 = vld [vmem:[#allocation18 + $0x1f8] sm:$0xff]
    %v4405 = vld [vmem:[#allocation18 + $0x200] sm:$0xff]
    %v4406 = vld [vmem:[#allocation18 + $0x208] sm:$0xff]
    %v4407 = vld [vmem:[#allocation18 + $0x210] sm:$0xff]
    %v4408 = vld [vmem:[#allocation18 + $0x218] sm:$0xff]
    %v4409 = vld [vmem:[#allocation18 + $0x220] sm:$0xff]
    %v4410 = vld [vmem:[#allocation18 + $0x228] sm:$0xff]
    %v4411 = vld [vmem:[#allocation18 + $0x230] sm:$0xff]
    %v4412 = vld [vmem:[#allocation18 + $0x238] sm:$0xff]
    %v4413 = vld [vmem:[#allocation18 + $0x240] sm:$0xff]
    %v4414 = vld [vmem:[#allocation18 + $0x248] sm:$0xff]
    %v4415 = vld [vmem:[#allocation18 + $0x250] sm:$0xff]
    %v4416 = vld [vmem:[#allocation18 + $0x258] sm:$0xff]
    %v4417 = vld [vmem:[#allocation18 + $0x260] sm:$0xff]
    %v4418 = vld [vmem:[#allocation18 + $0x268] sm:$0xff]
    %v4419 = vld [vmem:[#allocation18 + $0x270] sm:$0xff]
    %v4420 = vld [vmem:[#allocation18 + $0x278] sm:$0xff]
    %v4421 = vld [vmem:[#allocation18 + $0x280] sm:$0xff]
    %v4422 = vld [vmem:[#allocation18 + $0x288] sm:$0xff]
    %v4423 = vld [vmem:[#allocation18 + $0x290] sm:$0xff]
    %v4424 = vld [vmem:[#allocation18 + $0x298] sm:$0xff]
    %v4425 = vld [vmem:[#allocation18 + $0x2a0] sm:$0xff]
    %v4426 = vld [vmem:[#allocation18 + $0x2a8] sm:$0xff]
    %v4427 = vld [vmem:[#allocation18 + $0x2b0] sm:$0xff]
    %v4428 = vld [vmem:[#allocation18 + $0x2b8] sm:$0xff]
    %v4429 = vld [vmem:[#allocation18 + $0x2c0] sm:$0xff]
    %v4430 = vld [vmem:[#allocation18 + $0x2c8] sm:$0xff]
    %v4431 = vld [vmem:[#allocation18 + $0x2d0] sm:$0xff]
    %v4432 = vld [vmem:[#allocation18 + $0x2d8] sm:$0xff]
    %v4433 = vld [vmem:[#allocation18 + $0x2e0] sm:$0xff]
    %v4434 = vld [vmem:[#allocation18 + $0x2e8] sm:$0xff]
    %v4435 = vld [vmem:[#allocation18 + $0x2f0] sm:$0xff]
    %v4436 = vld [vmem:[#allocation18 + $0x2f8] sm:$0xff]
    %v4437 = vld [vmem:[#allocation18 + $0x300] sm:$0xff]
    %v4438 = vld [vmem:[#allocation18 + $0x308] sm:$0xff]
    %v4439 = vld [vmem:[#allocation18 + $0x310] sm:$0xff]
    %v4440 = vld [vmem:[#allocation18 + $0x318] sm:$0xff]
    %v4441 = vld [vmem:[#allocation18 + $0x320] sm:$0xff]
    %v4442 = vld [vmem:[#allocation18 + $0x328] sm:$0xff]
    %v4443 = vld [vmem:[#allocation18 + $0x330] sm:$0xff]
    %v4444 = vld [vmem:[#allocation18 + $0x338] sm:$0xff]
    %v4445 = vld [vmem:[#allocation18 + $0x340] sm:$0xff]
    %v4446 = vld [vmem:[#allocation18 + $0x348] sm:$0xff]
    %v4447 = vld [vmem:[#allocation18 + $0x350] sm:$0xff]
    %v4448 = vld [vmem:[#allocation18 + $0x358] sm:$0xff]
    %v4449 = vld [vmem:[#allocation18 + $0x360] sm:$0xff]
    %v4450 = vld [vmem:[#allocation18 + $0x368] sm:$0xff]
    %v4451 = vld [vmem:[#allocation18 + $0x370] sm:$0xff]
    %v4452 = vld [vmem:[#allocation18 + $0x378] sm:$0xff]
    %v4453 = vld [vmem:[#allocation18 + $0x380] sm:$0xff]
    %v4454 = vld [vmem:[#allocation18 + $0x388] sm:$0xff]
    %v4455 = vld [vmem:[#allocation18 + $0x390] sm:$0xff]
    %v4456 = vld [vmem:[#allocation18 + $0x398] sm:$0xff]
    %v4457 = vld [vmem:[#allocation18 + $0x3a0] sm:$0xff]
    %v4458 = vld [vmem:[#allocation18 + $0x3a8] sm:$0xff]
    %v4459 = vld [vmem:[#allocation18 + $0x3b0] sm:$0xff]
    %v4460 = vld [vmem:[#allocation18 + $0x3b8] sm:$0xff]
    %v4461 = vld [vmem:[#allocation18 + $0x3c0] sm:$0xff]
    %v4462 = vld [vmem:[#allocation18 + $0x3c8] sm:$0xff]
    %v4463 = vld [vmem:[#allocation18 + $0x3d0] sm:$0xff]
    %v4464 = vld [vmem:[#allocation18 + $0x3d8] sm:$0xff]
    %v4465 = vld [vmem:[#allocation18 + $0x3e0] sm:$0xff]
    %v4466 = vld [vmem:[#allocation18 + $0x3e8] sm:$0xff]
    %v4467 = vld [vmem:[#allocation18 + $0x3f0] sm:$0xff]
    %v4468 = vld [vmem:[#allocation18 + $0x3f8] sm:$0xff]
    %v4469 = vld [vmem:[#allocation19] sm:$0xff]
    %v4470 = vld [vmem:[#allocation19 + $0x8] sm:$0xff]
    %v4471 = vld [vmem:[#allocation19 + $0x10] sm:$0xff]
    %v4472 = vld [vmem:[#allocation19 + $0x18] sm:$0xff]
    %v4473 = vld [vmem:[#allocation19 + $0x20] sm:$0xff]
    %v4474 = vld [vmem:[#allocation19 + $0x28] sm:$0xff]
    %v4475 = vld [vmem:[#allocation19 + $0x30] sm:$0xff]
    %v4476 = vld [vmem:[#allocation19 + $0x38] sm:$0xff]
    %v4477 = vld [vmem:[#allocation19 + $0x40] sm:$0xff]
    %v4478 = vld [vmem:[#allocation19 + $0x48] sm:$0xff]
    %v4479 = vld [vmem:[#allocation19 + $0x50] sm:$0xff]
    %v4480 = vld [vmem:[#allocation19 + $0x58] sm:$0xff]
    %v4481 = vld [vmem:[#allocation19 + $0x60] sm:$0xff]
    %v4482 = vld [vmem:[#allocation19 + $0x68] sm:$0xff]
    %v4483 = vld [vmem:[#allocation19 + $0x70] sm:$0xff]
    %v4484 = vld [vmem:[#allocation19 + $0x78] sm:$0xff]
    %v4485 = vld [vmem:[#allocation19 + $0x80] sm:$0xff]
    %v4486 = vld [vmem:[#allocation19 + $0x88] sm:$0xff]
    %v4487 = vld [vmem:[#allocation19 + $0x90] sm:$0xff]
    %v4488 = vld [vmem:[#allocation19 + $0x98] sm:$0xff]
    %v4489 = vld [vmem:[#allocation19 + $0xa0] sm:$0xff]
    %v4490 = vld [vmem:[#allocation19 + $0xa8] sm:$0xff]
    %v4491 = vld [vmem:[#allocation19 + $0xb0] sm:$0xff]
    %v4492 = vld [vmem:[#allocation19 + $0xb8] sm:$0xff]
    %v4493 = vld [vmem:[#allocation19 + $0xc0] sm:$0xff]
    %v4494 = vld [vmem:[#allocation19 + $0xc8] sm:$0xff]
    %v4495 = vld [vmem:[#allocation19 + $0xd0] sm:$0xff]
    %v4496 = vld [vmem:[#allocation19 + $0xd8] sm:$0xff]
    %v4497 = vld [vmem:[#allocation19 + $0xe0] sm:$0xff]
    %v4498 = vld [vmem:[#allocation19 + $0xe8] sm:$0xff]
    %v4499 = vld [vmem:[#allocation19 + $0xf0] sm:$0xff]
    %v4500 = vld [vmem:[#allocation19 + $0xf8] sm:$0xff]
    %v4501 = vld [vmem:[#allocation30 + $0x80] sm:$0xf]
    %v4502 = vld [vmem:[#allocation30 + $0x88] sm:$0xf]
    %4503 = vmatprep.subr.bf16.mxu0 %v4342
    %4504 = vmatpush1.bf16.msra.mxu0 %v4341
    %4505 = vmatprep.subr.bf16.mxu0 %v4346
    %4506 = vmatpush1.bf16.msra.mxu0 %v4345
    %4507 = vmatprep.subr.bf16.mxu0 %v4350
    %4508 = vmatpush1.bf16.msra.mxu0 %v4349
    %4509 = vmatprep.subr.bf16.mxu0 %v4354
    %4510 = vmatpush1.bf16.msra.mxu0 %v4353
    %4511 = vmatprep.subr.bf16.mxu0 %v4358
    %4512 = vmatpush1.bf16.msra.mxu0 %v4357
    %4513 = vmatprep.subr.bf16.mxu0 %v4362
    %4514 = vmatpush1.bf16.msra.mxu0 %v4361
    %4515 = vmatprep.subr.bf16.mxu0 %v4366
    %4516 = vmatpush1.bf16.msra.mxu0 %v4365
    %4517 = vmatprep.subr.bf16.mxu0 %v4370
    %4518 = vmatpush1.bf16.msra.mxu0 %v4369
    %4519 = vmatprep.subr.bf16.mxu0 %v4374
    %4520 = vmatpush1.bf16.msra.mxu0 %v4373
    %4521 = vmatprep.subr.bf16.mxu0 %v4378
    %4522 = vmatpush1.bf16.msra.mxu0 %v4377
    %4523 = vmatprep.subr.bf16.mxu0 %v4382
    %4524 = vmatpush1.bf16.msra.mxu0 %v4381
    %4525 = vmatprep.subr.bf16.mxu0 %v4386
    %4526 = vmatpush1.bf16.msra.mxu0 %v4385
    %4527 = vmatprep.subr.bf16.mxu0 %v4390
    %4528 = vmatpush1.bf16.msra.mxu0 %v4389
    %4529 = vmatprep.subr.bf16.mxu0 %v4394
    %4530 = vmatpush1.bf16.msra.mxu0 %v4393
    %4531 = vmatprep.subr.bf16.mxu0 %v4398
    %4532 = vmatpush1.bf16.msra.mxu0 %v4397
    %4533 = vmatprep.subr.bf16.mxu0 %v4402
    %4534 = vmatpush1.bf16.msra.mxu0 %v4401
    %4535 = vmatprep.mubr.bf16.mxu0 %v3585
    %4536 = vmatmul.mubr.bf16.gmra.mrb[0].mxu0 %v3584
    %v4537 = vpop.f32.mrb[0].mxu0
    %v4538 = vadd.f32 0.0, %v4537
    %v4539 = vpop.f32.mrb[0].mxu0
    %v4540 = vadd.f32 0.0, %v4539
    %v4541 = vpop.f32.mrb[0].mxu0
    %v4542 = vpop.f32.mrb[0].mxu0
    %4543 = vdwg.mxu0
    %4544 = vmatprep.subr.bf16.mxu0 %v4406
    %4545 = vmatpush1.bf16.msra.mxu0 %v4405
    %4546 = vmatprep.subr.bf16.mxu0 %v4410
    %4547 = vmatpush1.bf16.msra.mxu0 %v4409
    %4548 = vmatprep.subr.bf16.mxu0 %v4414
    %4549 = vmatpush1.bf16.msra.mxu0 %v4413
    %4550 = vmatprep.subr.bf16.mxu0 %v4418
    %4551 = vmatpush1.bf16.msra.mxu0 %v4417
    %4552 = vmatprep.subr.bf16.mxu0 %v4422
    %4553 = vmatpush1.bf16.msra.mxu0 %v4421
    %4554 = vmatprep.subr.bf16.mxu0 %v4426
    %4555 = vmatpush1.bf16.msra.mxu0 %v4425
    %4556 = vmatprep.subr.bf16.mxu0 %v4430
    %4557 = vmatpush1.bf16.msra.mxu0 %v4429
    %4558 = vmatprep.subr.bf16.mxu0 %v4434
    %4559 = vmatpush1.bf16.msra.mxu0 %v4433
    %4560 = vmatprep.subr.bf16.mxu0 %v4438
    %4561 = vmatpush1.bf16.msra.mxu0 %v4437
    %4562 = vmatprep.subr.bf16.mxu0 %v4442
    %4563 = vmatpush1.bf16.msra.mxu0 %v4441
    %4564 = vmatprep.subr.bf16.mxu0 %v4446
    %4565 = vmatpush1.bf16.msra.mxu0 %v4445
    %4566 = vmatprep.subr.bf16.mxu0 %v4450
    %4567 = vmatpush1.bf16.msra.mxu0 %v4449
    %4568 = vmatprep.subr.bf16.mxu0 %v4454
    %4569 = vmatpush1.bf16.msra.mxu0 %v4453
    %4570 = vmatprep.subr.bf16.mxu0 %v4458
    %4571 = vmatpush1.bf16.msra.mxu0 %v4457
    %4572 = vmatprep.subr.bf16.mxu0 %v4462
    %4573 = vmatpush1.bf16.msra.mxu0 %v4461
    %4574 = vmatprep.subr.bf16.mxu0 %v4466
    %4575 = vmatpush1.bf16.msra.mxu0 %v4465
    %4576 = vmatprep.mubr.bf16.mxu0 %v3587
    %4577 = vmatmul.mubr.bf16.gmra.mrb[0].mxu0 %v3586
    %v4578 = vpop.f32.mrb[0].mxu0
    %v4579 = vadd.f32 %v4538, %v4578
    %v4580 = vpop.f32.mrb[0].mxu0
    %v4581 = vadd.f32 %v4540, %v4580
    %v4582 = vpop.f32.mrb[0].mxu0
    %v4583 = vpop.f32.mrb[0].mxu0
    %4584 = vdwg.mxu0
    %4585 = vmatprep.subr.bf16.mxu0 %v4344
    %4586 = vmatpush1.bf16.msra.mxu0 %v4343
    %4587 = vmatprep.subr.bf16.mxu0 %v4348
    %4588 = vmatpush1.bf16.msra.mxu0 %v4347
    %4589 = vmatprep.subr.bf16.mxu0 %v4352
    %4590 = vmatpush1.bf16.msra.mxu0 %v4351
    %4591 = vmatprep.subr.bf16.mxu0 %v4356
    %4592 = vmatpush1.bf16.msra.mxu0 %v4355
    %4593 = vmatprep.subr.bf16.mxu0 %v4360
    %4594 = vmatpush1.bf16.msra.mxu0 %v4359
    %4595 = vmatprep.subr.bf16.mxu0 %v4364
    %4596 = vmatpush1.bf16.msra.mxu0 %v4363
    %4597 = vmatprep.subr.bf16.mxu0 %v4368
    %4598 = vmatpush1.bf16.msra.mxu0 %v4367
    %4599 = vmatprep.subr.bf16.mxu0 %v4372
    %4600 = vmatpush1.bf16.msra.mxu0 %v4371
    %4601 = vmatprep.subr.bf16.mxu0 %v4376
    %4602 = vmatpush1.bf16.msra.mxu0 %v4375
    %4603 = vmatprep.subr.bf16.mxu0 %v4380
    %4604 = vmatpush1.bf16.msra.mxu0 %v4379
    %4605 = vmatprep.subr.bf16.mxu0 %v4384
    %4606 = vmatpush1.bf16.msra.mxu0 %v4383
    %4607 = vmatprep.subr.bf16.mxu0 %v4388
    %4608 = vmatpush1.bf16.msra.mxu0 %v4387
    %4609 = vmatprep.subr.bf16.mxu0 %v4392
    %4610 = vmatpush1.bf16.msra.mxu0 %v4391
    %4611 = vmatprep.subr.bf16.mxu0 %v4396
    %4612 = vmatpush1.bf16.msra.mxu0 %v4395
    %4613 = vmatprep.subr.bf16.mxu0 %v4400
    %4614 = vmatpush1.bf16.msra.mxu0 %v4399
    %4615 = vmatprep.subr.bf16.mxu0 %v4404
    %4616 = vmatpush1.bf16.msra.mxu0 %v4403
    %4617 = vmatprep.mubr.bf16.mxu0 %v3585
    %4618 = vmatmul.mubr.bf16.gmra.mrb[0].mxu0 %v3584
    %v4619 = vpop.f32.mrb[0].mxu0
    %v4620 = vadd.f32 0.0, %v4619
    %v4621 = vpop.f32.mrb[0].mxu0
    %v4622 = vadd.f32 0.0, %v4621
    %v4623 = vpop.f32.mrb[0].mxu0
    %v4624 = vpop.f32.mrb[0].mxu0
    %4625 = vdwg.mxu0
    %4626 = vmatprep.subr.bf16.mxu0 %v4408
    %4627 = vmatpush1.bf16.msra.mxu0 %v4407
    %4628 = vmatprep.subr.bf16.mxu0 %v4412
    %4629 = vmatpush1.bf16.msra.mxu0 %v4411
    %4630 = vmatprep.subr.bf16.mxu0 %v4416
    %4631 = vmatpush1.bf16.msra.mxu0 %v4415
    %4632 = vmatprep.subr.bf16.mxu0 %v4420
    %4633 = vmatpush1.bf16.msra.mxu0 %v4419
    %4634 = vmatprep.subr.bf16.mxu0 %v4424
    %4635 = vmatpush1.bf16.msra.mxu0 %v4423
    %4636 = vmatprep.subr.bf16.mxu0 %v4428
    %4637 = vmatpush1.bf16.msra.mxu0 %v4427
    %4638 = vmatprep.subr.bf16.mxu0 %v4432
    %4639 = vmatpush1.bf16.msra.mxu0 %v4431
    %4640 = vmatprep.subr.bf16.mxu0 %v4436
    %4641 = vmatpush1.bf16.msra.mxu0 %v4435
    %4642 = vmatprep.subr.bf16.mxu0 %v4440
    %4643 = vmatpush1.bf16.msra.mxu0 %v4439
    %4644 = vmatprep.subr.bf16.mxu0 %v4444
    %4645 = vmatpush1.bf16.msra.mxu0 %v4443
    %4646 = vmatprep.subr.bf16.mxu0 %v4448
    %4647 = vmatpush1.bf16.msra.mxu0 %v4447
    %4648 = vmatprep.subr.bf16.mxu0 %v4452
    %4649 = vmatpush1.bf16.msra.mxu0 %v4451
    %4650 = vmatprep.subr.bf16.mxu0 %v4456
    %4651 = vmatpush1.bf16.msra.mxu0 %v4455
    %4652 = vmatprep.subr.bf16.mxu0 %v4460
    %4653 = vmatpush1.bf16.msra.mxu0 %v4459
    %4654 = vmatprep.subr.bf16.mxu0 %v4464
    %4655 = vmatpush1.bf16.msra.mxu0 %v4463
    %4656 = vmatprep.subr.bf16.mxu0 %v4468
    %4657 = vmatpush1.bf16.msra.mxu0 %v4467
    %4658 = vmatprep.mubr.bf16.mxu0 %v3587
    %4659 = vmatmul.mubr.bf16.gmra.mrb[0].mxu0 %v3586
    %v4660 = vpop.f32.mrb[0].mxu0
    %v4661 = vadd.f32 %v4620, %v4660
    %v4662 = vpop.f32.mrb[0].mxu0
    %v4663 = vadd.f32 %v4622, %v4662
    %v4664 = vpop.f32.mrb[0].mxu0
    %v4665 = vpop.f32.mrb[0].mxu0
    %4666 = vdwg.mxu0
    %v4667 = vrot.slane %v4579, 4
    %v4668 = vadd.f32 %v4579, %v4667
    %v4669 = vrot.slane %v4668, 2
    %v4670 = vadd.f32 %v4668, %v4669
    %v4671 = vrot.slane %v4670, 1
    %v4672 = vadd.f32 %v4670, %v4671
    %v4673 = vrot.slane %v4581, 4
    %v4674 = vadd.f32 %v4581, %v4673
    %v4675 = vrot.slane %v4674, 2
    %v4676 = vadd.f32 %v4674, %v4675
    %v4677 = vrot.slane %v4676, 1
    %v4678 = vadd.f32 %v4676, %v4677
    %v4679 = vmul.f32 %v4579, %v4579
    %v4680 = vmul.f32 %v4581, %v4581
    %v4681 = vrot.slane %v4679, 4
    %v4682 = vadd.f32 %v4679, %v4681
    %v4683 = vrot.slane %v4682, 2
    %v4684 = vadd.f32 %v4682, %v4683
    %v4685 = vrot.slane %v4684, 1
    %v4686 = vadd.f32 %v4684, %v4685
    %v4687 = vrot.slane %v4680, 4
    %v4688 = vadd.f32 %v4680, %v4687
    %v4689 = vrot.slane %v4688, 2
    %v4690 = vadd.f32 %v4688, %v4689
    %v4691 = vrot.slane %v4690, 1
    %v4692 = vadd.f32 %v4690, %v4691
    %v4693 = vmul.f32 %v4672, 0.125
    %v4694 = vmul.f32 %v4678, 0.125
    %v4695 = vmul.f32 %v4686, 0.125
    %v4696 = vmul.f32 %v4692, 0.125
    %v4697 = vmul.f32 %v4693, %v4693
    %v4698 = vmul.f32 %v4694, %v4694
    %v4699 = vsub.f32 %v4695, %v4697
    %v4700 = vsub.f32 %v4696, %v4698
    %v4701 = vmax.f32 %v4699, 0.0
    %v4702 = vmax.f32 %v4700, 0.0
    %v4703 = vadd.f32 %v4701, 1e-05
    %v4704 = vadd.f32 %v4702, 1e-05
    %v4705 = vrsqrt.pop %v4703
    %v4706 = vrsqrt.pop %v4704
    %v4707 = vmul.f32 %v4501, %v4705
    %v4708 = vmul.f32 %v4502, %v4706
    %v4709 = vmul.f32 %v4693, %v4707
    %v4710 = vmul.f32 %v4694, %v4708
    %v4713 = vrot.slane %v4709, 7
    %v4714 = vrot.slane %v4710, 7
    %v4717 = vsub.f32 %v4501, %v4713
    %v4718 = vsub.f32 %v4502, %v4714
    %v4719 = vlaneseq
    %v4720 = vshrl.u32 %v4719, 7
    %v4721 = vsub.s32 0, %v4720
    %v4722 = vrot.slane %v4707, %v4721
    %v4723 = vlaneseq
    %v4724 = vshrl.u32 %v4723, 7
    %v4725 = vsub.s32 0, %v4724
    %v4726 = vrot.slane %v4708, %v4725
    %v4727 = vmul.f32 %v4579, %v4722
    %v4728 = vmul.f32 %v4581, %v4726
    %v4729 = vlaneseq
    %v4730 = vshrl.u32 %v4729, 7
    %v4731 = vsub.s32 1, %v4730
    %v4732 = vrot.slane %v4717, %v4731
    %v4733 = vlaneseq
    %v4734 = vshrl.u32 %v4733, 7
    %v4735 = vsub.s32 1, %v4734
    %v4736 = vrot.slane %v4718, %v4735
    %v4737 = vadd.f32 %v4727, %v4732
    %v4738 = vadd.f32 %v4728, %v4736
    %v4739 = vmax.f32 %v4737, 0.0
    %v4740 = vmax.f32 %v4738, 0.0
    %v4741 = vpack.c.bf16 %v4739, %v4739
    %v4742 = vpack.c.bf16 %v4740, %v4740
    %4743 = vmatprep.subr.bf16.mxu0 %v4470
    %4744 = vmatpush1.bf16.msra.mxu0 %v4469
    %4745 = vmatprep.subr.bf16.mxu0 %v4472
    %4746 = vmatpush1.bf16.msra.mxu0 %v4471
    %4747 = vmatprep.subr.bf16.mxu0 %v4474
    %4748 = vmatpush1.bf16.msra.mxu0 %v4473
    %4749 = vmatprep.subr.bf16.mxu0 %v4476
    %4750 = vmatpush1.bf16.msra.mxu0 %v4475
    %4751 = vmatprep.subr.bf16.mxu0 %v4478
    %4752 = vmatpush1.bf16.msra.mxu0 %v4477
    %4753 = vmatprep.subr.bf16.mxu0 %v4480
    %4754 = vmatpush1.bf16.msra.mxu0 %v4479
    %4755 = vmatprep.subr.bf16.mxu0 %v4482
    %4756 = vmatpush1.bf16.msra.mxu0 %v4481
    %4757 = vmatprep.subr.bf16.mxu0 %v4484
    %4758 = vmatpush1.bf16.msra.mxu0 %v4483
    %4759 = vmatprep.subr.bf16.mxu0 %v4486
    %4760 = vmatpush1.bf16.msra.mxu0 %v4485
    %4761 = vmatprep.subr.bf16.mxu0 %v4488
    %4762 = vmatpush1.bf16.msra.mxu0 %v4487
    %4763 = vmatprep.subr.bf16.mxu0 %v4490
    %4764 = vmatpush1.bf16.msra.mxu0 %v4489
    %4765 = vmatprep.subr.bf16.mxu0 %v4492
    %4766 = vmatpush1.bf16.msra.mxu0 %v4491
    %4767 = vmatprep.subr.bf16.mxu0 %v4494
    %4768 = vmatpush1.bf16.msra.mxu0 %v4493
    %4769 = vmatprep.subr.bf16.mxu0 %v4496
    %4770 = vmatpush1.bf16.msra.mxu0 %v4495
    %4771 = vmatprep.subr.bf16.mxu0 %v4498
    %4772 = vmatpush1.bf16.msra.mxu0 %v4497
    %4773 = vmatprep.subr.bf16.mxu0 %v4500
    %4774 = vmatpush1.bf16.msra.mxu0 %v4499
    %4775 = vmatprep.mubr.bf16.mxu0 %v4742
    %4776 = vmatmul.mubr.bf16.gmra.mrb[0].mxu0 %v4741
    %v4777 = vpop.f32.mrb[0].mxu0
    %v4778 = vadd.f32 0.0, %v4777
    %v4779 = vpop.f32.mrb[0].mxu0
    %v4780 = vadd.f32 0.0, %v4779
    %v4781 = vpop.f32.mrb[0].mxu0
    %v4782 = vpop.f32.mrb[0].mxu0
    %4783 = vdwg.mxu0
    %v4784 = vrot.slane %v4778, 4
    %v4785 = vadd.f32 %v4778, %v4784
    %v4786 = vrot.slane %v4785, 2
    %v4787 = vadd.f32 %v4785, %v4786
    %v4788 = vrot.slane %v4787, 1
    %v4789 = vadd.f32 %v4787, %v4788
    %v4790 = vrot.slane %v4780, 4
    %v4791 = vadd.f32 %v4780, %v4790
    %v4792 = vrot.slane %v4791, 2
    %v4793 = vadd.f32 %v4791, %v4792
    %v4794 = vrot.slane %v4793, 1
    %v4795 = vadd.f32 %v4793, %v4794
    %v4796 = vmul.f32 %v4778, %v4778
    %v4797 = vmul.f32 %v4780, %v4780
    %v4798 = vrot.slane %v4796, 4
    %v4799 = vadd.f32 %v4796, %v4798
    %v4800 = vrot.slane %v4799, 2
    %v4801 = vadd.f32 %v4799, %v4800
    %v4802 = vrot.slane %v4801, 1
    %v4803 = vadd.f32 %v4801, %v4802
    %v4804 = vrot.slane %v4797, 4
    %v4805 = vadd.f32 %v4797, %v4804
    %v4806 = vrot.slane %v4805, 2
    %v4807 = vadd.f32 %v4805, %v4806
    %v4808 = vrot.slane %v4807, 1
    %v4809 = vadd.f32 %v4807, %v4808
    %v4810 = vmul.f32 %v4789, 0.125
    %v4811 = vmul.f32 %v4795, 0.125
    %v4812 = vmul.f32 %v4803, 0.125
    %v4813 = vmul.f32 %v4809, 0.125
    %v4814 = vmul.f32 %v4810, %v4810
    %v4815 = vmul.f32 %v4811, %v4811
    %v4816 = vsub.f32 %v4812, %v4814
    %v4817 = vsub.f32 %v4813, %v4815
    %v4818 = vmax.f32 %v4816, 0.0
    %v4819 = vmax.f32 %v4817, 0.0
    %v4820 = vadd.f32 %v4818, 1e-05
    %v4821 = vadd.f32 %v4819, 1e-05
    %v4822 = vrsqrt.pop %v4820
    %v4823 = vrsqrt.pop %v4821
    %v4824 = vmul.f32 %v4501, %v4822
    %v4825 = vmul.f32 %v4502, %v4823
    %v4826 = vmul.f32 %v4810, %v4824
    %v4827 = vmul.f32 %v4811, %v4825
    %v4830 = vrot.slane %v4826, 7
    %v4831 = vrot.slane %v4827, 7
    %v4834 = vsub.f32 %v4501, %v4830
    %v4835 = vsub.f32 %v4502, %v4831
    %v4836 = vlaneseq
    %v4837 = vshrl.u32 %v4836, 7
    %v4838 = vsub.s32 2, %v4837
    %v4839 = vrot.slane %v4824, %v4838
    %v4840 = vlaneseq
    %v4841 = vshrl.u32 %v4840, 7
    %v4842 = vsub.s32 2, %v4841
    %v4843 = vrot.slane %v4825, %v4842
    %v4844 = vmul.f32 %v4778, %v4839
    %v4845 = vmul.f32 %v4780, %v4843
    %v4846 = vlaneseq
    %v4847 = vshrl.u32 %v4846, 7
    %v4848 = vsub.s32 3, %v4847
    %v4849 = vrot.slane %v4834, %v4848
    %v4850 = vlaneseq
    %v4851 = vshrl.u32 %v4850, 7
    %v4852 = vsub.s32 3, %v4851
    %v4853 = vrot.slane %v4835, %v4852
    %v4854 = vadd.f32 %v4844, %v4849
    %v4855 = vadd.f32 %v4845, %v4853
    %v4856 = vadd.f32 %v4854, %v4661
    %v4857 = vadd.f32 %v4855, %v4663
    %v4858 = vmax.f32 %v4856, 0.0
    %v4859 = vmax.f32 %v4857, 0.0
    %s4860 = sshll.u32 %s966, 4
    %4861 = dma.done %s640, %s4860
    %s4862 = sshll.u32 %s783, 4
    %4863 = dma.done %s675, %s4862
    %v4864 = vld [vmem:[#allocation20] sm:$0xff]
    %v4865 = vld [vmem:[#allocation20 + $0x8] sm:$0xff]
    %v4866 = vld [vmem:[#allocation20 + $0x10] sm:$0xff]
    %v4867 = vld [vmem:[#allocation20 + $0x18] sm:$0xff]
    %v4868 = vld [vmem:[#allocation20 + $0x20] sm:$0xff]
    %v4869 = vld [vmem:[#allocation20 + $0x28] sm:$0xff]
    %v4870 = vld [vmem:[#allocation20 + $0x30] sm:$0xff]
    %v4871 = vld [vmem:[#allocation20 + $0x38] sm:$0xff]
    %v4872 = vld [vmem:[#allocation20 + $0x40] sm:$0xff]
    %v4873 = vld [vmem:[#allocation20 + $0x48] sm:$0xff]
    %v4874 = vld [vmem:[#allocation20 + $0x50] sm:$0xff]
    %v4875 = vld [vmem:[#allocation20 + $0x58] sm:$0xff]
    %v4876 = vld [vmem:[#allocation20 + $0x60] sm:$0xff]
    %v4877 = vld [vmem:[#allocation20 + $0x68] sm:$0xff]
    %v4878 = vld [vmem:[#allocation20 + $0x70] sm:$0xff]
    %v4879 = vld [vmem:[#allocation20 + $0x78] sm:$0xff]
    %v4880 = vld [vmem:[#allocation20 + $0x80] sm:$0xff]
    %v4881 = vld [vmem:[#allocation20 + $0x88] sm:$0xff]
    %v4882 = vld [vmem:[#allocation20 + $0x90] sm:$0xff]
    %v4883 = vld [vmem:[#allocation20 + $0x98] sm:$0xff]
    %v4884 = vld [vmem:[#allocation20 + $0xa0] sm:$0xff]
    %v4885 = vld [vmem:[#allocation20 + $0xa8] sm:$0xff]
    %v4886 = vld [vmem:[#allocation20 + $0xb0] sm:$0xff]
    %v4887 = vld [vmem:[#allocation20 + $0xb8] sm:$0xff]
    %v4888 = vld [vmem:[#allocation20 + $0xc0] sm:$0xff]
    %v4889 = vld [vmem:[#allocation20 + $0xc8] sm:$0xff]
    %v4890 = vld [vmem:[#allocation20 + $0xd0] sm:$0xff]
    %v4891 = vld [vmem:[#allocation20 + $0xd8] sm:$0xff]
    %v4892 = vld [vmem:[#allocation20 + $0xe0] sm:$0xff]
    %v4893 = vld [vmem:[#allocation20 + $0xe8] sm:$0xff]
    %v4894 = vld [vmem:[#allocation20 + $0xf0] sm:$0xff]
    %v4895 = vld [vmem:[#allocation20 + $0xf8] sm:$0xff]
    %v4896 = vld [vmem:[#allocation21] sm:$0xff]
    %v4897 = vld [vmem:[#allocation21 + $0x8] sm:$0xff]
    %v4898 = vld [vmem:[#allocation21 + $0x10] sm:$0xff]
    %v4899 = vld [vmem:[#allocation21 + $0x18] sm:$0xff]
    %v4900 = vld [vmem:[#allocation21 + $0x20] sm:$0xff]
    %v4901 = vld [vmem:[#allocation21 + $0x28] sm:$0xff]
    %v4902 = vld [vmem:[#allocation21 + $0x30] sm:$0xff]
    %v4903 = vld [vmem:[#allocation21 + $0x38] sm:$0xff]
    %v4904 = vld [vmem:[#allocation30 + $0x80] sm:$0xf0]
    %v4905 = vpack.c.bf16 %v4858, %v4858
    %v4906 = vpack.c.bf16 %v4859, %v4859
    %4907 = vmatprep.subr.bf16.mxu0 %v4865
    %4908 = vmatpush1.bf16.msra.mxu0 %v4864
    %4909 = vmatprep.subr.bf16.mxu0 %v4867
    %4910 = vmatpush1.bf16.msra.mxu0 %v4866
    %4911 = vmatprep.subr.bf16.mxu0 %v4869
    %4912 = vmatpush1.bf16.msra.mxu0 %v4868
    %4913 = vmatprep.subr.bf16.mxu0 %v4871
    %4914 = vmatpush1.bf16.msra.mxu0 %v4870
    %4915 = vmatprep.subr.bf16.mxu0 %v4873
    %4916 = vmatpush1.bf16.msra.mxu0 %v4872
    %4917 = vmatprep.subr.bf16.mxu0 %v4875
    %4918 = vmatpush1.bf16.msra.mxu0 %v4874
    %4919 = vmatprep.subr.bf16.mxu0 %v4877
    %4920 = vmatpush1.bf16.msra.mxu0 %v4876
    %4921 = vmatprep.subr.bf16.mxu0 %v4879
    %4922 = vmatpush1.bf16.msra.mxu0 %v4878
    %4923 = vmatprep.subr.bf16.mxu0 %v4881
    %4924 = vmatpush1.bf16.msra.mxu0 %v4880
    %4925 = vmatprep.subr.bf16.mxu0 %v4883
    %4926 = vmatpush1.bf16.msra.mxu0 %v4882
    %4927 = vmatprep.subr.bf16.mxu0 %v4885
    %4928 = vmatpush1.bf16.msra.mxu0 %v4884
    %4929 = vmatprep.subr.bf16.mxu0 %v4887
    %4930 = vmatpush1.bf16.msra.mxu0 %v4886
    %4931 = vmatprep.subr.bf16.mxu0 %v4889
    %4932 = vmatpush1.bf16.msra.mxu0 %v4888
    %4933 = vmatprep.subr.bf16.mxu0 %v4891
    %4934 = vmatpush1.bf16.msra.mxu0 %v4890
    %4935 = vmatprep.subr.bf16.mxu0 %v4893
    %4936 = vmatpush1.bf16.msra.mxu0 %v4892
    %4937 = vmatprep.subr.bf16.mxu0 %v4895
    %4938 = vmatpush1.bf16.msra.mxu0 %v4894
    %4939 = vmatprep.mubr.bf16.mxu0 %v4906
    %4940 = vmatmul.mubr.bf16.gmra.mrb[0].mxu0 %v4905
    %v4941 = vpop.f32.mrb[0].mxu0
    %v4942 = vadd.f32 0.0, %v4941
    %v4943 = vpop.f32.mrb[0].mxu0
    %v4944 = vadd.f32 0.0, %v4943
    %v4945 = vpop.f32.mrb[0].mxu0
    %v4946 = vpop.f32.mrb[0].mxu0
    %4947 = vdwg.mxu0
    %v4948 = vrot.slane %v4942, 4
    %v4949 = vadd.f32 %v4942, %v4948
    %v4950 = vrot.slane %v4949, 2
    %v4951 = vadd.f32 %v4949, %v4950
    %v4952 = vrot.slane %v4951, 1
    %v4953 = vadd.f32 %v4951, %v4952
    %v4954 = vmul.f32 %v4942, %v4942
    %v4955 = vrot.slane %v4954, 4
    %v4956 = vadd.f32 %v4954, %v4955
    %v4957 = vrot.slane %v4956, 2
    %v4958 = vadd.f32 %v4956, %v4957
    %v4959 = vrot.slane %v4958, 1
    %v4960 = vadd.f32 %v4958, %v4959
    %v4961 = vmul.f32 %v4953, 0.125
    %v4962 = vmul.f32 %v4960, 0.125
    %v4963 = vmul.f32 %v4961, %v4961
    %v4964 = vsub.f32 %v4962, %v4963
    %v4965 = vmax.f32 %v4964, 0.0
    %v4966 = vadd.f32 %v4965, 1e-05
    %v4967 = vrsqrt.pop %v4966
    %v4968 = vmul.f32 %v4904, %v4967
    %v4969 = vmul.f32 %v4961, %v4968
    %v4971 = vrot.slane %v4969, 7
    %v4973 = vsub.f32 %v4904, %v4971
    %v4974 = vlaneseq
    %v4975 = vshrl.u32 %v4974, 7
    %v4976 = vsub.s32 4, %v4975
    %v4977 = vrot.slane %v4968, %v4976
    %v4978 = vmul.f32 %v4942, %v4977
    %v4979 = vlaneseq
    %v4980 = vshrl.u32 %v4979, 7
    %v4981 = vsub.s32 5, %v4980
    %v4982 = vrot.slane %v4973, %v4981
    %v4983 = vadd.f32 %v4978, %v4982
    %v4984 = vmax.f32 %v4983, 0.0
    %v4985 = vpack.c.bf16 %v4984, %v4984
    %4986 = vmatprep.subr.bf16.mxu0 0
    %4987 = vmatpush1.bf16.msra.mxu0 %v4896
    %4988 = vmatprep.subr.bf16.mxu0 0
    %4989 = vmatpush1.bf16.msra.mxu0 %v4897
    %4990 = vmatprep.subr.bf16.mxu0 0
    %4991 = vmatpush1.bf16.msra.mxu0 %v4898
    %4992 = vmatprep.subr.bf16.mxu0 0
    %4993 = vmatpush1.bf16.msra.mxu0 %v4899
    %4994 = vmatprep.subr.bf16.mxu0 0
    %4995 = vmatpush1.bf16.msra.mxu0 %v4900
    %4996 = vmatprep.subr.bf16.mxu0 0
    %4997 = vmatpush1.bf16.msra.mxu0 %v4901
    %4998 = vmatprep.subr.bf16.mxu0 0
    %4999 = vmatpush1.bf16.msra.mxu0 %v4902
    %5000 = vmatprep.subr.bf16.mxu0 0
    %5001 = vmatpush1.bf16.msra.mxu0 %v4903
    %5002 = vmatprep.subr.bf16.mxu0 0
    %5003 = vmatpush1.bf16.msra.mxu0 0
    %5004 = vmatprep.subr.bf16.mxu0 0
    %5005 = vmatpush1.bf16.msra.mxu0 0
    %5006 = vmatprep.subr.bf16.mxu0 0
    %5007 = vmatpush1.bf16.msra.mxu0 0
    %5008 = vmatprep.subr.bf16.mxu0 0
    %5009 = vmatpush1.bf16.msra.mxu0 0
    %5010 = vmatprep.subr.bf16.mxu0 0
    %5011 = vmatpush1.bf16.msra.mxu0 0
    %5012 = vmatprep.subr.bf16.mxu0 0
    %5013 = vmatpush1.bf16.msra.mxu0 0
    %5014 = vmatprep.subr.bf16.mxu0 0
    %5015 = vmatpush1.bf16.msra.mxu0 0
    %5016 = vmatprep.subr.bf16.mxu0 0
    %5017 = vmatpush1.bf16.msra.mxu0 0
    %5018 = vmatprep.mubr.bf16.mxu0 0
    %5019 = vmatmul.mubr.bf16.gmra.mrb[0].mxu0 %v4985
    %v5020 = vpop.f32.mrb[0].mxu0
    %v5021 = vadd.f32 0.0, %v5020
    %v5022 = vpop.f32.mrb[0].mxu0
    %v5023 = vpop.f32.mrb[0].mxu0
    %v5024 = vpop.f32.mrb[0].mxu0
    %5025 = vdwg.mxu0
    %v5026 = vrot.slane %v5021, 4
    %v5027 = vadd.f32 %v5021, %v5026
    %v5028 = vrot.slane %v5027, 2
    %v5029 = vadd.f32 %v5027, %v5028
    %v5030 = vrot.slane %v5029, 1
    %v5031 = vadd.f32 %v5029, %v5030
    %v5032 = vmul.f32 %v5021, %v5021
    %v5033 = vrot.slane %v5032, 4
    %v5034 = vadd.f32 %v5032, %v5033
    %v5035 = vrot.slane %v5034, 2
    %v5036 = vadd.f32 %v5034, %v5035
    %v5037 = vrot.slane %v5036, 1
    %v5038 = vadd.f32 %v5036, %v5037
    %v5039 = vmul.f32 %v5031, 0.125
    %v5040 = vmul.f32 %v5038, 0.125
    %v5041 = vmul.f32 %v5039, %v5039
    %v5042 = vsub.f32 %v5040, %v5041
    %v5043 = vmax.f32 %v5042, 0.0
    %v5044 = vadd.f32 %v5043, 1e-05
    %v5045 = vrsqrt.pop %v5044
    %v5046 = vmul.f32 %v4904, %v5045
    %v5047 = vmul.f32 %v5039, %v5046
    %v5049 = vrot.slane %v5047, 7
    %v5051 = vsub.f32 %v4904, %v5049
    %v5052 = vlaneseq
    %v5053 = vshrl.u32 %v5052, 7
    %v5054 = vsub.s32 6, %v5053
    %v5055 = vrot.slane %v5046, %v5054
    %v5056 = vmul.f32 %v5021, %v5055
    %v5057 = vlaneseq
    %v5058 = vshrl.u32 %v5057, 7
    %v5059 = vsub.s32 7, %v5058
    %v5060 = vrot.slane %v5051, %v5059
    %v5061 = vadd.f32 %v5056, %v5060
    %v5062 = vadd.f32 %v5061, %v4944
    %v5063 = vmax.f32 %v5062, 0.0
    %s5064 = sshll.u32 %s783, 4
    %5065 = dma.done %s687, %s5064
    %s5066 = sshll.u32 %s4152, 4
    %5067 = dma.done %s699, %s5066
    %v5068 = vld [vmem:[#allocation22] sm:$0xff]
    %v5069 = vld [vmem:[#allocation22 + $0x8] sm:$0xff]
    %v5070 = vld [vmem:[#allocation22 + $0x10] sm:$0xff]
    %v5071 = vld [vmem:[#allocation22 + $0x18] sm:$0xff]
    %v5072 = vld [vmem:[#allocation22 + $0x20] sm:$0xff]
    %v5073 = vld [vmem:[#allocation22 + $0x28] sm:$0xff]
    %v5074 = vld [vmem:[#allocation22 + $0x30] sm:$0xff]
    %v5075 = vld [vmem:[#allocation22 + $0x38] sm:$0xff]
    %v5076 = vld [vmem:[#allocation23] sm:$0xff]
    %v5077 = vld [vmem:[#allocation23 + $0x8] sm:$0xff]
    %v5078 = vld [vmem:[#allocation23 + $0x10] sm:$0xff]
    %v5079 = vld [vmem:[#allocation23 + $0x18] sm:$0xff]
    %v5080 = vld [vmem:[#allocation30 + $0xa0] sm:$0xf]
    %v5081 = vpack.c.bf16 %v5063, %v5063
    %5082 = vmatprep.subr.bf16.mxu0 0
    %5083 = vmatpush1.bf16.msra.mxu0 %v5068
    %5084 = vmatprep.subr.bf16.mxu0 0
    %5085 = vmatpush1.bf16.msra.mxu0 %v5069
    %5086 = vmatprep.subr.bf16.mxu0 0
    %5087 = vmatpush1.bf16.msra.mxu0 %v5070
    %5088 = vmatprep.subr.bf16.mxu0 0
    %5089 = vmatpush1.bf16.msra.mxu0 %v5071
    %5090 = vmatprep.subr.bf16.mxu0 0
    %5091 = vmatpush1.bf16.msra.mxu0 %v5072
    %5092 = vmatprep.subr.bf16.mxu0 0
    %5093 = vmatpush1.bf16.msra.mxu0 %v5073
    %5094 = vmatprep.subr.bf16.mxu0 0
    %5095 = vmatpush1.bf16.msra.mxu0 %v5074
    %5096 = vmatprep.subr.bf16.mxu0 0
    %5097 = vmatpush1.bf16.msra.mxu0 %v5075
    %5098 = vmatprep.subr.bf16.mxu0 0
    %5099 = vmatpush1.bf16.msra.mxu0 0
    %5100 = vmatprep.subr.bf16.mxu0 0
    %5101 = vmatpush1.bf16.msra.mxu0 0
    %5102 = vmatprep.subr.bf16.mxu0 0
    %5103 = vmatpush1.bf16.msra.mxu0 0
    %5104 = vmatprep.subr.bf16.mxu0 0
    %5105 = vmatpush1.bf16.msra.mxu0 0
    %5106 = vmatprep.subr.bf16.mxu0 0
    %5107 = vmatpush1.bf16.msra.mxu0 0
    %5108 = vmatprep.subr.bf16.mxu0 0
    %5109 = vmatpush1.bf16.msra.mxu0 0
    %5110 = vmatprep.subr.bf16.mxu0 0
    %5111 = vmatpush1.bf16.msra.mxu0 0
    %5112 = vmatprep.subr.bf16.mxu0 0
    %5113 = vmatpush1.bf16.msra.mxu0 0
    %5114 = vmatprep.mubr.bf16.mxu0 0
    %5115 = vmatmul.mubr.bf16.gmra.mrb[0].mxu0 %v5081
    %v5116 = vpop.f32.mrb[0].mxu0
    %v5117 = vadd.f32 0.0, %v5116
    %v5118 = vpop.f32.mrb[0].mxu0
    %v5119 = vpop.f32.mrb[0].mxu0
    %v5120 = vpop.f32.mrb[0].mxu0
    %5121 = vdwg.mxu0
    %v5122 = vsel %vm4209, %v5117, 0.0
    %v5123 = vrot.slane %v5122, 4
    %v5124 = vadd.f32 %v5122, %v5123
    %v5125 = vrot.slane %v5124, 2
    %v5126 = vadd.f32 %v5124, %v5125
    %v5127 = vrot.slane %v5126, 1
    %v5128 = vadd.f32 %v5126, %v5127
    %v5129 = vmul.f32 %v5117, %v5117
    %v5130 = vsel %vm4209, %v5129, 0.0
    %v5131 = vrot.slane %v5130, 4
    %v5132 = vadd.f32 %v5130, %v5131
    %v5133 = vrot.slane %v5132, 2
    %v5134 = vadd.f32 %v5132, %v5133
    %v5135 = vrot.slane %v5134, 1
    %v5136 = vadd.f32 %v5134, %v5135
    %v5137 = vmul.f32 %v5128, 0.125
    %v5138 = vmul.f32 %v5136, 0.125
    %v5139 = vmul.f32 %v5137, %v5137
    %v5140 = vsub.f32 %v5138, %v5139
    %v5141 = vmax.f32 %v5140, 0.0
    %v5142 = vadd.f32 %v5141, 1e-05
    %v5143 = vrsqrt.pop %v5142
    %v5144 = vmul.f32 %v5080, %v5143
    %v5145 = vmul.f32 %v5137, %v5144
    %v5147 = vrot.slane %v5145, 7
    %v5149 = vsub.f32 %v5080, %v5147
    %v5150 = vlaneseq
    %v5151 = vshrl.u32 %v5150, 7
    %v5152 = vsub.s32 0, %v5151
    %v5153 = vrot.slane %v5144, %v5152
    %v5154 = vmul.f32 %v5117, %v5153
    %v5155 = vlaneseq
    %v5156 = vshrl.u32 %v5155, 7
    %v5157 = vsub.s32 1, %v5156
    %v5158 = vrot.slane %v5149, %v5157
    %v5159 = vadd.f32 %v5154, %v5158
    %v5160 = vmax.f32 %v5159, 0.0
    %v5161 = vpack.c.bf16 %v5160, %v5160
    %v5163 = vsel %vm4209, %v5161, 0
    %5165 = vmatprep.subr.bf16.mxu0 0
    %5166 = vmatpush1.bf16.msra.mxu0 %v5076
    %5167 = vmatprep.subr.bf16.mxu0 0
    %5168 = vmatpush1.bf16.msra.mxu0 %v5077
    %5169 = vmatprep.subr.bf16.mxu0 0
    %5170 = vmatpush1.bf16.msra.mxu0 %v5078
    %5171 = vmatprep.subr.bf16.mxu0 0
    %5172 = vmatpush1.bf16.msra.mxu0 %v5079
    %5173 = vmatprep.subr.bf16.mxu0 0
    %5174 = vmatpush1.bf16.msra.mxu0 0
    %5175 = vmatprep.subr.bf16.mxu0 0
    %5176 = vmatpush1.bf16.msra.mxu0 0
    %5177 = vmatprep.subr.bf16.mxu0 0
    %5178 = vmatpush1.bf16.msra.mxu0 0
    %5179 = vmatprep.subr.bf16.mxu0 0
    %5180 = vmatpush1.bf16.msra.mxu0 0
    %5181 = vmatprep.subr.bf16.mxu0 0
    %5182 = vmatpush1.bf16.msra.mxu0 0
    %5183 = vmatprep.subr.bf16.mxu0 0
    %5184 = vmatpush1.bf16.msra.mxu0 0
    %5185 = vmatprep.subr.bf16.mxu0 0
    %5186 = vmatpush1.bf16.msra.mxu0 0
    %5187 = vmatprep.subr.bf16.mxu0 0
    %5188 = vmatpush1.bf16.msra.mxu0 0
    %5189 = vmatprep.subr.bf16.mxu0 0
    %5190 = vmatpush1.bf16.msra.mxu0 0
    %5191 = vmatprep.subr.bf16.mxu0 0
    %5192 = vmatpush1.bf16.msra.mxu0 0
    %5193 = vmatprep.subr.bf16.mxu0 0
    %5194 = vmatpush1.bf16.msra.mxu0 0
    %5195 = vmatprep.subr.bf16.mxu0 0
    %5196 = vmatpush1.bf16.msra.mxu0 0
    %5197 = vmatprep.mubr.bf16.mxu0 0
    %5198 = vmatmul.mubr.bf16.gmra.mrb[0].mxu0 %v5163
    %v5199 = vpop.f32.mrb[0].mxu0
    %v5200 = vadd.f32 0.0, %v5199
    %v5201 = vpop.f32.mrb[0].mxu0
    %v5202 = vpop.f32.mrb[0].mxu0
    %v5203 = vpop.f32.mrb[0].mxu0
    %5204 = vdwg.mxu0
    %v5205 = vsel %vm4209, %v5200, 0.0
    %v5206 = vrot.slane %v5205, 4
    %v5207 = vadd.f32 %v5205, %v5206
    %v5208 = vrot.slane %v5207, 2
    %v5209 = vadd.f32 %v5207, %v5208
    %v5210 = vrot.slane %v5209, 1
    %v5211 = vadd.f32 %v5209, %v5210
    %v5212 = vmul.f32 %v5200, %v5200
    %v5213 = vsel %vm4209, %v5212, 0.0
    %v5214 = vrot.slane %v5213, 4
    %v5215 = vadd.f32 %v5213, %v5214
    %v5216 = vrot.slane %v5215, 2
    %v5217 = vadd.f32 %v5215, %v5216
    %v5218 = vrot.slane %v5217, 1
    %v5219 = vadd.f32 %v5217, %v5218
    %v5220 = vmul.f32 %v5211, 0.125
    %v5221 = vmul.f32 %v5219, 0.125
    %v5222 = vmul.f32 %v5220, %v5220
    %v5223 = vsub.f32 %v5221, %v5222
    %v5224 = vmax.f32 %v5223, 0.0
    %v5225 = vadd.f32 %v5224, 1e-05
    %v5226 = vrsqrt.pop %v5225
    %v5227 = vmul.f32 %v5080, %v5226
    %v5228 = vmul.f32 %v5220, %v5227
    %v5230 = vrot.slane %v5228, 7
    %v5232 = vsub.f32 %v5080, %v5230
    %v5233 = vlaneseq
    %v5234 = vshrl.u32 %v5233, 7
    %v5235 = vsub.s32 2, %v5234
    %v5236 = vrot.slane %v5227, %v5235
    %v5237 = vmul.f32 %v5200, %v5236
    %v5238 = vlaneseq
    %v5239 = vshrl.u32 %v5238, 7
    %v5240 = vsub.s32 3, %v5239
    %v5241 = vrot.slane %v5232, %v5240
    %v5242 = vadd.f32 %v5237, %v5241
    %5244 = vrot.lane.b32.xlu0 %v5117, 64
    %v5245 = vpop.permute.xlu0 %5244
    %v5247 = vadd.f32 %v5242, %v5245
    %v5248 = vmax.f32 %v5247, 0.0
    %s5249 = smul.u32 %s4151, 29
    %s5250 = sshll.u32 %s5249, 4
    %5251 = dma.done %s711, %s5250
    %v5252 = vld [vmem:[#allocation24] sm:$0xff]
    %v5253 = vld [vmem:[#allocation24 + $0x8] sm:$0xff]
    %v5254 = vld [vmem:[#allocation24 + $0x10] sm:$0xff]
    %v5255 = vld [vmem:[#allocation24 + $0x18] sm:$0xff]
    %v5256 = vld [vmem:[#allocation24 + $0x20] sm:$0xff]
    %v5257 = vld [vmem:[#allocation24 + $0x28] sm:$0xff]
    %v5258 = vld [vmem:[#allocation24 + $0x30] sm:$0xff]
    %v5259 = vld [vmem:[#allocation24 + $0x38] sm:$0xff]
    %v5260 = vld [vmem:[#allocation24 + $0x40] sm:$0xff]
    %v5261 = vld [vmem:[#allocation24 + $0x48] sm:$0xff]
    %v5262 = vld [vmem:[#allocation24 + $0x50] sm:$0xff]
    %v5263 = vld [vmem:[#allocation24 + $0x58] sm:$0xff]
    %v5264 = vld [vmem:[#allocation24 + $0x60] sm:$0xff]
    %v5265 = vld [vmem:[#allocation24 + $0x68] sm:$0xff]
    %v5266 = vld [vmem:[#allocation24 + $0x70] sm:$0xff]
    %v5267 = vld [vmem:[#allocation24 + $0x78] sm:$0xff]
    %v5268 = vld [vmem:[#allocation24 + $0x80] sm:$0xff]
    %v5269 = vld [vmem:[#allocation24 + $0x88] sm:$0xff]
    %v5270 = vld [vmem:[#allocation24 + $0x90] sm:$0xff]
    %v5271 = vld [vmem:[#allocation24 + $0x98] sm:$0xff]
    %v5272 = vld [vmem:[#allocation24 + $0xa0] sm:$0xff]
    %v5273 = vld [vmem:[#allocation24 + $0xa8] sm:$0xff]
    %v5274 = vld [vmem:[#allocation24 + $0xb0] sm:$0xff]
    %v5275 = vld [vmem:[#allocation24 + $0xb8] sm:$0xff]
    %v5276 = vld [vmem:[#allocation24 + $0xc0] sm:$0xff]
    %v5277 = vld [vmem:[#allocation24 + $0xc8] sm:$0xff]
    %v5278 = vld [vmem:[#allocation24 + $0xd0] sm:$0xff]
    %v5279 = vld [vmem:[#allocation24 + $0xd8] sm:$0xff]
    %v5280 = vld [vmem:[#allocation24 + $0xe0] sm:$0xff]
    %v5281 = vld [vmem:[#allocation24 + $0xe8] sm:$0xff]
    %v5282 = vld [vmem:[#allocation24 + $0xf0] sm:$0xff]
    %v5283 = vld [vmem:[#allocation24 + $0xf8] sm:$0xff]
    %v5284 = vld [vmem:[#allocation24 + $0x100] sm:$0xff]
    %v5285 = vld [vmem:[#allocation24 + $0x108] sm:$0xff]
    %v5286 = vld [vmem:[#allocation24 + $0x110] sm:$0xff]
    %v5287 = vld [vmem:[#allocation24 + $0x118] sm:$0xff]
    %v5288 = vld [vmem:[#allocation24 + $0x120] sm:$0xff]
    %v5289 = vld [vmem:[#allocation24 + $0x128] sm:$0xff]
    %v5290 = vld [vmem:[#allocation24 + $0x130] sm:$0xff]
    %v5291 = vld [vmem:[#allocation24 + $0x138] sm:$0xff]
    %v5292 = vld [vmem:[#allocation24 + $0x140] sm:$0xff]
    %v5293 = vld [vmem:[#allocation24 + $0x148] sm:$0xff]
    %v5294 = vld [vmem:[#allocation24 + $0x150] sm:$0xff]
    %v5295 = vld [vmem:[#allocation24 + $0x158] sm:$0xff]
    %v5296 = vld [vmem:[#allocation24 + $0x160] sm:$0xff]
    %v5297 = vld [vmem:[#allocation24 + $0x168] sm:$0xff]
    %v5298 = vld [vmem:[#allocation24 + $0x170] sm:$0xff]
    %v5299 = vld [vmem:[#allocation24 + $0x178] sm:$0xff]
    %v5300 = vld [vmem:[#allocation24 + $0x180] sm:$0xff]
    %v5301 = vld [vmem:[#allocation24 + $0x188] sm:$0xff]
    %v5302 = vld [vmem:[#allocation24 + $0x190] sm:$0xff]
    %v5303 = vld [vmem:[#allocation24 + $0x198] sm:$0xff]
    %v5304 = vld [vmem:[#allocation24 + $0x1a0] sm:$0xff]
    %v5305 = vld [vmem:[#allocation24 + $0x1a8] sm:$0xff]
    %v5306 = vld [vmem:[#allocation24 + $0x1b0] sm:$0xff]
    %v5307 = vld [vmem:[#allocation24 + $0x1b8] sm:$0xff]
    %v5308 = vld [vmem:[#allocation24 + $0x1c0] sm:$0xff]
    %v5309 = vld [vmem:[#allocation24 + $0x1c8] sm:$0xff]
    %v5310 = vld [vmem:[#allocation24 + $0x1d0] sm:$0xff]
    %v5311 = vld [vmem:[#allocation24 + $0x1d8] sm:$0xff]
    %v5312 = vld [vmem:[#allocation24 + $0x1e0] sm:$0xff]
    %v5313 = vld [vmem:[#allocation24 + $0x1e8] sm:$0xff]
    %v5314 = vld [vmem:[#allocation24 + $0x1f0] sm:$0xff]
    %v5315 = vld [vmem:[#allocation24 + $0x1f8] sm:$0xff]
    %v5316 = vld [vmem:[#allocation24 + $0x200] sm:$0xff]
    %v5317 = vld [vmem:[#allocation24 + $0x208] sm:$0xff]
    %v5318 = vld [vmem:[#allocation24 + $0x210] sm:$0xff]
    %v5319 = vld [vmem:[#allocation24 + $0x218] sm:$0xff]
    %v5320 = vld [vmem:[#allocation24 + $0x220] sm:$0xff]
    %v5321 = vld [vmem:[#allocation24 + $0x228] sm:$0xff]
    %v5322 = vld [vmem:[#allocation24 + $0x230] sm:$0xff]
    %v5323 = vld [vmem:[#allocation24 + $0x238] sm:$0xff]
    %v5324 = vld [vmem:[#allocation24 + $0x240] sm:$0xff]
    %v5325 = vld [vmem:[#allocation24 + $0x248] sm:$0xff]
    %v5326 = vld [vmem:[#allocation24 + $0x250] sm:$0xff]
    %v5327 = vld [vmem:[#allocation24 + $0x258] sm:$0xff]
    %v5328 = vld [vmem:[#allocation24 + $0x260] sm:$0xff]
    %v5329 = vld [vmem:[#allocation24 + $0x268] sm:$0xff]
    %v5330 = vld [vmem:[#allocation24 + $0x270] sm:$0xff]
    %v5331 = vld [vmem:[#allocation24 + $0x278] sm:$0xff]
    %v5332 = vld [vmem:[#allocation24 + $0x280] sm:$0xff]
    %v5333 = vld [vmem:[#allocation24 + $0x288] sm:$0xff]
    %v5334 = vld [vmem:[#allocation24 + $0x290] sm:$0xff]
    %v5335 = vld [vmem:[#allocation24 + $0x298] sm:$0xff]
    %v5336 = vld [vmem:[#allocation24 + $0x2a0] sm:$0xff]
    %v5337 = vld [vmem:[#allocation24 + $0x2a8] sm:$0xff]
    %v5338 = vld [vmem:[#allocation24 + $0x2b0] sm:$0xff]
    %v5339 = vld [vmem:[#allocation24 + $0x2b8] sm:$0xff]
    %v5340 = vld [vmem:[#allocation24 + $0x2c0] sm:$0xff]
    %v5341 = vld [vmem:[#allocation24 + $0x2c8] sm:$0xff]
    %v5342 = vld [vmem:[#allocation24 + $0x2d0] sm:$0xff]
    %v5343 = vld [vmem:[#allocation24 + $0x2d8] sm:$0xff]
    %v5344 = vld [vmem:[#allocation24 + $0x2e0] sm:$0xff]
    %v5345 = vld [vmem:[#allocation24 + $0x2e8] sm:$0xff]
    %v5346 = vld [vmem:[#allocation24 + $0x2f0] sm:$0xff]
    %v5347 = vld [vmem:[#allocation24 + $0x2f8] sm:$0xff]
    %v5348 = vld [vmem:[#allocation24 + $0x300] sm:$0xff]
    %v5349 = vld [vmem:[#allocation24 + $0x308] sm:$0xff]
    %v5350 = vld [vmem:[#allocation24 + $0x310] sm:$0xff]
    %v5351 = vld [vmem:[#allocation24 + $0x318] sm:$0xff]
    %v5352 = vld [vmem:[#allocation24 + $0x320] sm:$0xff]
    %v5353 = vld [vmem:[#allocation24 + $0x328] sm:$0xff]
    %v5354 = vld [vmem:[#allocation24 + $0x330] sm:$0xff]
    %v5355 = vld [vmem:[#allocation24 + $0x338] sm:$0xff]
    %v5356 = vld [vmem:[#allocation24 + $0x340] sm:$0xff]
    %v5357 = vld [vmem:[#allocation24 + $0x348] sm:$0xff]
    %v5358 = vld [vmem:[#allocation24 + $0x350] sm:$0xff]
    %v5359 = vld [vmem:[#allocation24 + $0x358] sm:$0xff]
    %v5360 = vld [vmem:[#allocation24 + $0x360] sm:$0xff]
    %v5361 = vld [vmem:[#allocation24 + $0x368] sm:$0xff]
    %v5362 = vld [vmem:[#allocation24 + $0x370] sm:$0xff]
    %v5363 = vld [vmem:[#allocation24 + $0x378] sm:$0xff]
    %v5364 = vld [vmem:[#allocation24 + $0x380] sm:$0xff]
    %v5365 = vld [vmem:[#allocation24 + $0x388] sm:$0xff]
    %v5366 = vld [vmem:[#allocation24 + $0x390] sm:$0xff]
    %v5367 = vld [vmem:[#allocation24 + $0x398] sm:$0xff]
    %v5368 = vld [vmem:[#allocation32] ss:$2 sm:$0xff]
    %s5369 = scalar_lea.vmem [#allocation32], 16
    %v5370 = vld [vmem:[%s5369] ss:$2 sm:$0xff]
    %s5371 = scalar_lea.vmem [#allocation32], 32
    %v5372 = vld [vmem:[%s5371] ss:$2 sm:$0xff]
    %s5373 = scalar_lea.vmem [#allocation32], 48
    %v5374 = vld [vmem:[%s5373] ss:$2 sm:$0x1f]
    %v5375 = vpack.c.bf16 %v4336, %v4336
    %v5380 = vlaneseq
    %v5381 = vshrl.u32 %v5380, 7
    %v5382 = vsub.s32 0, %v5381
    %v5383 = vrot.slane %v5368, %v5382
    %v5384 = vlaneseq
    %v5385 = vshrl.u32 %v5384, 7
    %v5386 = vsub.s32 1, %v5385
    %v5387 = vrot.slane %v5368, %v5386
    %v5388 = vlaneseq
    %v5389 = vshrl.u32 %v5388, 7
    %v5390 = vsub.s32 2, %v5389
    %v5391 = vrot.slane %v5368, %v5390
    %v5392 = vlaneseq
    %v5393 = vshrl.u32 %v5392, 7
    %v5394 = vsub.s32 3, %v5393
    %v5395 = vrot.slane %v5368, %v5394
    %v5396 = vlaneseq
    %v5397 = vshrl.u32 %v5396, 7
    %v5398 = vsub.s32 4, %v5397
    %v5399 = vrot.slane %v5368, %v5398
    %v5400 = vlaneseq
    %v5401 = vshrl.u32 %v5400, 7
    %v5402 = vsub.s32 5, %v5401
    %v5403 = vrot.slane %v5368, %v5402
    %v5404 = vlaneseq
    %v5405 = vshrl.u32 %v5404, 7
    %v5406 = vsub.s32 6, %v5405
    %v5407 = vrot.slane %v5368, %v5406
    %v5408 = vlaneseq
    %v5409 = vshrl.u32 %v5408, 7
    %v5410 = vsub.s32 7, %v5409
    %v5411 = vrot.slane %v5368, %v5410
    %v5412 = vlaneseq
    %v5413 = vshrl.u32 %v5412, 7
    %v5414 = vsub.s32 0, %v5413
    %v5415 = vrot.slane %v5370, %v5414
    %v5416 = vlaneseq
    %v5417 = vshrl.u32 %v5416, 7
    %v5418 = vsub.s32 1, %v5417
    %v5419 = vrot.slane %v5370, %v5418
    %v5420 = vlaneseq
    %v5421 = vshrl.u32 %v5420, 7
    %v5422 = vsub.s32 2, %v5421
    %v5423 = vrot.slane %v5370, %v5422
    %v5424 = vlaneseq
    %v5425 = vshrl.u32 %v5424, 7
    %v5426 = vsub.s32 3, %v5425
    %v5427 = vrot.slane %v5370, %v5426
    %v5428 = vlaneseq
    %v5429 = vshrl.u32 %v5428, 7
    %v5430 = vsub.s32 4, %v5429
    %v5431 = vrot.slane %v5370, %v5430
    %v5432 = vlaneseq
    %v5433 = vshrl.u32 %v5432, 7
    %v5434 = vsub.s32 5, %v5433
    %v5435 = vrot.slane %v5370, %v5434
    %v5436 = vlaneseq
    %v5437 = vshrl.u32 %v5436, 7
    %v5438 = vsub.s32 6, %v5437
    %v5439 = vrot.slane %v5370, %v5438
    %v5440 = vlaneseq
    %v5441 = vshrl.u32 %v5440, 7
    %v5442 = vsub.s32 7, %v5441
    %v5443 = vrot.slane %v5370, %v5442
    %v5444 = vlaneseq
    %v5445 = vshrl.u32 %v5444, 7
    %v5446 = vsub.s32 0, %v5445
    %v5447 = vrot.slane %v5372, %v5446
    %v5448 = vlaneseq
    %v5449 = vshrl.u32 %v5448, 7
    %v5450 = vsub.s32 1, %v5449
    %v5451 = vrot.slane %v5372, %v5450
    %v5452 = vlaneseq
    %v5453 = vshrl.u32 %v5452, 7
    %v5454 = vsub.s32 2, %v5453
    %v5455 = vrot.slane %v5372, %v5454
    %v5456 = vlaneseq
    %v5457 = vshrl.u32 %v5456, 7
    %v5458 = vsub.s32 3, %v5457
    %v5459 = vrot.slane %v5372, %v5458
    %v5460 = vlaneseq
    %v5461 = vshrl.u32 %v5460, 7
    %v5462 = vsub.s32 4, %v5461
    %v5463 = vrot.slane %v5372, %v5462
    %v5464 = vlaneseq
    %v5465 = vshrl.u32 %v5464, 7
    %v5466 = vsub.s32 5, %v5465
    %v5467 = vrot.slane %v5372, %v5466
    %v5468 = vlaneseq
    %v5469 = vshrl.u32 %v5468, 7
    %v5470 = vsub.s32 6, %v5469
    %v5471 = vrot.slane %v5372, %v5470
    %v5472 = vlaneseq
    %v5473 = vshrl.u32 %v5472, 7
    %v5474 = vsub.s32 7, %v5473
    %v5475 = vrot.slane %v5372, %v5474
    %v5476 = vlaneseq
    %v5477 = vshrl.u32 %v5476, 7
    %v5478 = vsub.s32 0, %v5477
    %v5479 = vrot.slane %v5374, %v5478
    %v5480 = vlaneseq
    %v5481 = vshrl.u32 %v5480, 7
    %v5482 = vsub.s32 1, %v5481
    %v5483 = vrot.slane %v5374, %v5482
    %v5484 = vlaneseq
    %v5485 = vshrl.u32 %v5484, 7
    %v5486 = vsub.s32 2, %v5485
    %v5487 = vrot.slane %v5374, %v5486
    %v5488 = vlaneseq
    %v5489 = vshrl.u32 %v5488, 7
    %v5490 = vsub.s32 3, %v5489
    %v5491 = vrot.slane %v5374, %v5490
    %v5492 = vlaneseq
    %v5493 = vshrl.u32 %v5492, 7
    %v5494 = vsub.s32 4, %v5493
    %v5495 = vrot.slane %v5374, %v5494
    %v5526 = vsel %vm4209, %v5375, 0
    %5528 = vmatprep.subr.bf16.mxu0 %v5253
    %5529 = vmatpush1.bf16.msra.mxu0 %v5252
    %5530 = vmatprep.subr.bf16.mxu0 %v5282
    %5531 = vmatpush1.bf16.msra.mxu0 %v5281
    %5532 = vmatprep.subr.bf16.mxu0 %v5311
    %5533 = vmatpush1.bf16.msra.mxu0 %v5310
    %5534 = vmatprep.subr.bf16.mxu0 %v5340
    %5535 = vmatpush1.bf16.msra.mxu0 %v5339
    %5536 = vmatprep.subr.bf16.mxu0 0
    %5537 = vmatpush1.bf16.msra.mxu0 0
    %5538 = vmatprep.subr.bf16.mxu0 0
    %5539 = vmatpush1.bf16.msra.mxu0 0
    %5540 = vmatprep.subr.bf16.mxu0 0
    %5541 = vmatpush1.bf16.msra.mxu0 0
    %5542 = vmatprep.subr.bf16.mxu0 0
    %5543 = vmatpush1.bf16.msra.mxu0 0
    %5544 = vmatprep.subr.bf16.mxu0 0
    %5545 = vmatpush1.bf16.msra.mxu0 0
    %5546 = vmatprep.subr.bf16.mxu0 0
    %5547 = vmatpush1.bf16.msra.mxu0 0
    %5548 = vmatprep.subr.bf16.mxu0 0
    %5549 = vmatpush1.bf16.msra.mxu0 0
    %5550 = vmatprep.subr.bf16.mxu0 0
    %5551 = vmatpush1.bf16.msra.mxu0 0
    %5552 = vmatprep.subr.bf16.mxu0 0
    %5553 = vmatpush1.bf16.msra.mxu0 0
    %5554 = vmatprep.subr.bf16.mxu0 0
    %5555 = vmatpush1.bf16.msra.mxu0 0
    %5556 = vmatprep.subr.bf16.mxu0 0
    %5557 = vmatpush1.bf16.msra.mxu0 0
    %5558 = vmatprep.subr.bf16.mxu0 0
    %5559 = vmatpush1.bf16.msra.mxu0 0
    %5560 = vmatprep.mubr.bf16.mxu0 0
    %5561 = vmatmul.mubr.bf16.gmra.mrb[0].mxu0 %v5526
    %v5562 = vpop.f32.mrb[0].mxu0
    %v5563 = vadd.f32 %v5383, %v5562
    %v5564 = vpop.f32.mrb[0].mxu0
    %v5565 = vadd.f32 %v5387, %v5564
    %v5566 = vpop.f32.mrb[0].mxu0
    %v5567 = vpop.f32.mrb[0].mxu0
    %5568 = vdwg.mxu0
    %5569 = vmatprep.subr.bf16.mxu0 %v5255
    %5570 = vmatpush1.bf16.msra.mxu0 %v5254
    %5571 = vmatprep.subr.bf16.mxu0 %v5284
    %5572 = vmatpush1.bf16.msra.mxu0 %v5283
    %5573 = vmatprep.subr.bf16.mxu0 %v5313
    %5574 = vmatpush1.bf16.msra.mxu0 %v5312
    %5575 = vmatprep.subr.bf16.mxu0 %v5342
    %5576 = vmatpush1.bf16.msra.mxu0 %v5341
    %5577 = vmatprep.subr.bf16.mxu0 0
    %5578 = vmatpush1.bf16.msra.mxu0 0
    %5579 = vmatprep.subr.bf16.mxu0 0
    %5580 = vmatpush1.bf16.msra.mxu0 0
    %5581 = vmatprep.subr.bf16.mxu0 0
    %5582 = vmatpush1.bf16.msra.mxu0 0
    %5583 = vmatprep.subr.bf16.mxu0 0
    %5584 = vmatpush1.bf16.msra.mxu0 0
    %5585 = vmatprep.subr.bf16.mxu0 0
    %5586 = vmatpush1.bf16.msra.mxu0 0
    %5587 = vmatprep.subr.bf16.mxu0 0
    %5588 = vmatpush1.bf16.msra.mxu0 0
    %5589 = vmatprep.subr.bf16.mxu0 0
    %5590 = vmatpush1.bf16.msra.mxu0 0
    %5591 = vmatprep.subr.bf16.mxu0 0
    %5592 = vmatpush1.bf16.msra.mxu0 0
    %5593 = vmatprep.subr.bf16.mxu0 0
    %5594 = vmatpush1.bf16.msra.mxu0 0
    %5595 = vmatprep.subr.bf16.mxu0 0
    %5596 = vmatpush1.bf16.msra.mxu0 0
    %5597 = vmatprep.subr.bf16.mxu0 0
    %5598 = vmatpush1.bf16.msra.mxu0 0
    %5599 = vmatprep.subr.bf16.mxu0 0
    %5600 = vmatpush1.bf16.msra.mxu0 0
    %5601 = vmatprep.mubr.bf16.mxu0 0
    %5602 = vmatmul.mubr.bf16.gmra.mrb[0].mxu0 %v5526
    %v5603 = vpop.f32.mrb[0].mxu0
    %v5604 = vadd.f32 %v5391, %v5603
    %v5605 = vpop.f32.mrb[0].mxu0
    %v5606 = vadd.f32 %v5395, %v5605
    %v5607 = vpop.f32.mrb[0].mxu0
    %v5608 = vpop.f32.mrb[0].mxu0
    %5609 = vdwg.mxu0
    %5610 = vmatprep.subr.bf16.mxu0 %v5257
    %5611 = vmatpush1.bf16.msra.mxu0 %v5256
    %5612 = vmatprep.subr.bf16.mxu0 %v5286
    %5613 = vmatpush1.bf16.msra.mxu0 %v5285
    %5614 = vmatprep.subr.bf16.mxu0 %v5315
    %5615 = vmatpush1.bf16.msra.mxu0 %v5314
    %5616 = vmatprep.subr.bf16.mxu0 %v5344
    %5617 = vmatpush1.bf16.msra.mxu0 %v5343
    %5618 = vmatprep.subr.bf16.mxu0 0
    %5619 = vmatpush1.bf16.msra.mxu0 0
    %5620 = vmatprep.subr.bf16.mxu0 0
    %5621 = vmatpush1.bf16.msra.mxu0 0
    %5622 = vmatprep.subr.bf16.mxu0 0
    %5623 = vmatpush1.bf16.msra.mxu0 0
    %5624 = vmatprep.subr.bf16.mxu0 0
    %5625 = vmatpush1.bf16.msra.mxu0 0
    %5626 = vmatprep.subr.bf16.mxu0 0
    %5627 = vmatpush1.bf16.msra.mxu0 0
    %5628 = vmatprep.subr.bf16.mxu0 0
    %5629 = vmatpush1.bf16.msra.mxu0 0
    %5630 = vmatprep.subr.bf16.mxu0 0
    %5631 = vmatpush1.bf16.msra.mxu0 0
    %5632 = vmatprep.subr.bf16.mxu0 0
    %5633 = vmatpush1.bf16.msra.mxu0 0
    %5634 = vmatprep.subr.bf16.mxu0 0
    %5635 = vmatpush1.bf16.msra.mxu0 0
    %5636 = vmatprep.subr.bf16.mxu0 0
    %5637 = vmatpush1.bf16.msra.mxu0 0
    %5638 = vmatprep.subr.bf16.mxu0 0
    %5639 = vmatpush1.bf16.msra.mxu0 0
    %5640 = vmatprep.subr.bf16.mxu0 0
    %5641 = vmatpush1.bf16.msra.mxu0 0
    %5642 = vmatprep.mubr.bf16.mxu0 0
    %5643 = vmatmul.mubr.bf16.gmra.mrb[0].mxu0 %v5526
    %v5644 = vpop.f32.mrb[0].mxu0
    %v5645 = vadd.f32 %v5399, %v5644
    %v5646 = vpop.f32.mrb[0].mxu0
    %v5647 = vadd.f32 %v5403, %v5646
    %v5648 = vpop.f32.mrb[0].mxu0
    %v5649 = vpop.f32.mrb[0].mxu0
    %5650 = vdwg.mxu0
    %5651 = vmatprep.subr.bf16.mxu0 %v5259
    %5652 = vmatpush1.bf16.msra.mxu0 %v5258
    %5653 = vmatprep.subr.bf16.mxu0 %v5288
    %5654 = vmatpush1.bf16.msra.mxu0 %v5287
    %5655 = vmatprep.subr.bf16.mxu0 %v5317
    %5656 = vmatpush1.bf16.msra.mxu0 %v5316
    %5657 = vmatprep.subr.bf16.mxu0 %v5346
    %5658 = vmatpush1.bf16.msra.mxu0 %v5345
    %5659 = vmatprep.subr.bf16.mxu0 0
    %5660 = vmatpush1.bf16.msra.mxu0 0
    %5661 = vmatprep.subr.bf16.mxu0 0
    %5662 = vmatpush1.bf16.msra.mxu0 0
    %5663 = vmatprep.subr.bf16.mxu0 0
    %5664 = vmatpush1.bf16.msra.mxu0 0
    %5665 = vmatprep.subr.bf16.mxu0 0
    %5666 = vmatpush1.bf16.msra.mxu0 0
    %5667 = vmatprep.subr.bf16.mxu0 0
    %5668 = vmatpush1.bf16.msra.mxu0 0
    %5669 = vmatprep.subr.bf16.mxu0 0
    %5670 = vmatpush1.bf16.msra.mxu0 0
    %5671 = vmatprep.subr.bf16.mxu0 0
    %5672 = vmatpush1.bf16.msra.mxu0 0
    %5673 = vmatprep.subr.bf16.mxu0 0
    %5674 = vmatpush1.bf16.msra.mxu0 0
    %5675 = vmatprep.subr.bf16.mxu0 0
    %5676 = vmatpush1.bf16.msra.mxu0 0
    %5677 = vmatprep.subr.bf16.mxu0 0
    %5678 = vmatpush1.bf16.msra.mxu0 0
    %5679 = vmatprep.subr.bf16.mxu0 0
    %5680 = vmatpush1.bf16.msra.mxu0 0
    %5681 = vmatprep.subr.bf16.mxu0 0
    %5682 = vmatpush1.bf16.msra.mxu0 0
    %5683 = vmatprep.mubr.bf16.mxu0 0
    %5684 = vmatmul.mubr.bf16.gmra.mrb[0].mxu0 %v5526
    %v5685 = vpop.f32.mrb[0].mxu0
    %v5686 = vadd.f32 %v5407, %v5685
    %v5687 = vpop.f32.mrb[0].mxu0
    %v5688 = vadd.f32 %v5411, %v5687
    %v5689 = vpop.f32.mrb[0].mxu0
    %v5690 = vpop.f32.mrb[0].mxu0
    %5691 = vdwg.mxu0
    %5692 = vmatprep.subr.bf16.mxu0 %v5261
    %5693 = vmatpush1.bf16.msra.mxu0 %v5260
    %5694 = vmatprep.subr.bf16.mxu0 %v5290
    %5695 = vmatpush1.bf16.msra.mxu0 %v5289
    %5696 = vmatprep.subr.bf16.mxu0 %v5319
    %5697 = vmatpush1.bf16.msra.mxu0 %v5318
    %5698 = vmatprep.subr.bf16.mxu0 %v5348
    %5699 = vmatpush1.bf16.msra.mxu0 %v5347
    %5700 = vmatprep.subr.bf16.mxu0 0
    %5701 = vmatpush1.bf16.msra.mxu0 0
    %5702 = vmatprep.subr.bf16.mxu0 0
    %5703 = vmatpush1.bf16.msra.mxu0 0
    %5704 = vmatprep.subr.bf16.mxu0 0
    %5705 = vmatpush1.bf16.msra.mxu0 0
    %5706 = vmatprep.subr.bf16.mxu0 0
    %5707 = vmatpush1.bf16.msra.mxu0 0
    %5708 = vmatprep.subr.bf16.mxu0 0
    %5709 = vmatpush1.bf16.msra.mxu0 0
    %5710 = vmatprep.subr.bf16.mxu0 0
    %5711 = vmatpush1.bf16.msra.mxu0 0
    %5712 = vmatprep.subr.bf16.mxu0 0
    %5713 = vmatpush1.bf16.msra.mxu0 0
    %5714 = vmatprep.subr.bf16.mxu0 0
    %5715 = vmatpush1.bf16.msra.mxu0 0
    %5716 = vmatprep.subr.bf16.mxu0 0
    %5717 = vmatpush1.bf16.msra.mxu0 0
    %5718 = vmatprep.subr.bf16.mxu0 0
    %5719 = vmatpush1.bf16.msra.mxu0 0
    %5720 = vmatprep.subr.bf16.mxu0 0
    %5721 = vmatpush1.bf16.msra.mxu0 0
    %5722 = vmatprep.subr.bf16.mxu0 0
    %5723 = vmatpush1.bf16.msra.mxu0 0
    %5724 = vmatprep.mubr.bf16.mxu0 0
    %5725 = vmatmul.mubr.bf16.gmra.mrb[0].mxu0 %v5526
    %v5726 = vpop.f32.mrb[0].mxu0
    %v5727 = vadd.f32 %v5415, %v5726
    %v5728 = vpop.f32.mrb[0].mxu0
    %v5729 = vadd.f32 %v5419, %v5728
    %v5730 = vpop.f32.mrb[0].mxu0
    %v5731 = vpop.f32.mrb[0].mxu0
    %5732 = vdwg.mxu0
    %5733 = vmatprep.subr.bf16.mxu0 %v5263
    %5734 = vmatpush1.bf16.msra.mxu0 %v5262
    %5735 = vmatprep.subr.bf16.mxu0 %v5292
    %5736 = vmatpush1.bf16.msra.mxu0 %v5291
    %5737 = vmatprep.subr.bf16.mxu0 %v5321
    %5738 = vmatpush1.bf16.msra.mxu0 %v5320
    %5739 = vmatprep.subr.bf16.mxu0 %v5350
    %5740 = vmatpush1.bf16.msra.mxu0 %v5349
    %5741 = vmatprep.subr.bf16.mxu0 0
    %5742 = vmatpush1.bf16.msra.mxu0 0
    %5743 = vmatprep.subr.bf16.mxu0 0
    %5744 = vmatpush1.bf16.msra.mxu0 0
    %5745 = vmatprep.subr.bf16.mxu0 0
    %5746 = vmatpush1.bf16.msra.mxu0 0
    %5747 = vmatprep.subr.bf16.mxu0 0
    %5748 = vmatpush1.bf16.msra.mxu0 0
    %5749 = vmatprep.subr.bf16.mxu0 0
    %5750 = vmatpush1.bf16.msra.mxu0 0
    %5751 = vmatprep.subr.bf16.mxu0 0
    %5752 = vmatpush1.bf16.msra.mxu0 0
    %5753 = vmatprep.subr.bf16.mxu0 0
    %5754 = vmatpush1.bf16.msra.mxu0 0
    %5755 = vmatprep.subr.bf16.mxu0 0
    %5756 = vmatpush1.bf16.msra.mxu0 0
    %5757 = vmatprep.subr.bf16.mxu0 0
    %5758 = vmatpush1.bf16.msra.mxu0 0
    %5759 = vmatprep.subr.bf16.mxu0 0
    %5760 = vmatpush1.bf16.msra.mxu0 0
    %5761 = vmatprep.subr.bf16.mxu0 0
    %5762 = vmatpush1.bf16.msra.mxu0 0
    %5763 = vmatprep.subr.bf16.mxu0 0
    %5764 = vmatpush1.bf16.msra.mxu0 0
    %5765 = vmatprep.mubr.bf16.mxu0 0
    %5766 = vmatmul.mubr.bf16.gmra.mrb[0].mxu0 %v5526
    %v5767 = vpop.f32.mrb[0].mxu0
    %v5768 = vadd.f32 %v5423, %v5767
    %v5769 = vpop.f32.mrb[0].mxu0
    %v5770 = vadd.f32 %v5427, %v5769
    %v5771 = vpop.f32.mrb[0].mxu0
    %v5772 = vpop.f32.mrb[0].mxu0
    %5773 = vdwg.mxu0
    %5774 = vmatprep.subr.bf16.mxu0 %v5265
    %5775 = vmatpush1.bf16.msra.mxu0 %v5264
    %5776 = vmatprep.subr.bf16.mxu0 %v5294
    %5777 = vmatpush1.bf16.msra.mxu0 %v5293
    %5778 = vmatprep.subr.bf16.mxu0 %v5323
    %5779 = vmatpush1.bf16.msra.mxu0 %v5322
    %5780 = vmatprep.subr.bf16.mxu0 %v5352
    %5781 = vmatpush1.bf16.msra.mxu0 %v5351
    %5782 = vmatprep.subr.bf16.mxu0 0
    %5783 = vmatpush1.bf16.msra.mxu0 0
    %5784 = vmatprep.subr.bf16.mxu0 0
    %5785 = vmatpush1.bf16.msra.mxu0 0
    %5786 = vmatprep.subr.bf16.mxu0 0
    %5787 = vmatpush1.bf16.msra.mxu0 0
    %5788 = vmatprep.subr.bf16.mxu0 0
    %5789 = vmatpush1.bf16.msra.mxu0 0
    %5790 = vmatprep.subr.bf16.mxu0 0
    %5791 = vmatpush1.bf16.msra.mxu0 0
    %5792 = vmatprep.subr.bf16.mxu0 0
    %5793 = vmatpush1.bf16.msra.mxu0 0
    %5794 = vmatprep.subr.bf16.mxu0 0
    %5795 = vmatpush1.bf16.msra.mxu0 0
    %5796 = vmatprep.subr.bf16.mxu0 0
    %5797 = vmatpush1.bf16.msra.mxu0 0
    %5798 = vmatprep.subr.bf16.mxu0 0
    %5799 = vmatpush1.bf16.msra.mxu0 0
    %5800 = vmatprep.subr.bf16.mxu0 0
    %5801 = vmatpush1.bf16.msra.mxu0 0
    %5802 = vmatprep.subr.bf16.mxu0 0
    %5803 = vmatpush1.bf16.msra.mxu0 0
    %5804 = vmatprep.subr.bf16.mxu0 0
    %5805 = vmatpush1.bf16.msra.mxu0 0
    %5806 = vmatprep.mubr.bf16.mxu0 0
    %5807 = vmatmul.mubr.bf16.gmra.mrb[0].mxu0 %v5526
    %v5808 = vpop.f32.mrb[0].mxu0
    %v5809 = vadd.f32 %v5431, %v5808
    %v5810 = vpop.f32.mrb[0].mxu0
    %v5811 = vadd.f32 %v5435, %v5810
    %v5812 = vpop.f32.mrb[0].mxu0
    %v5813 = vpop.f32.mrb[0].mxu0
    %5814 = vdwg.mxu0
    %5815 = vmatprep.subr.bf16.mxu0 %v5267
    %5816 = vmatpush1.bf16.msra.mxu0 %v5266
    %5817 = vmatprep.subr.bf16.mxu0 %v5296
    %5818 = vmatpush1.bf16.msra.mxu0 %v5295
    %5819 = vmatprep.subr.bf16.mxu0 %v5325
    %5820 = vmatpush1.bf16.msra.mxu0 %v5324
    %5821 = vmatprep.subr.bf16.mxu0 %v5354
    %5822 = vmatpush1.bf16.msra.mxu0 %v5353
    %5823 = vmatprep.subr.bf16.mxu0 0
    %5824 = vmatpush1.bf16.msra.mxu0 0
    %5825 = vmatprep.subr.bf16.mxu0 0
    %5826 = vmatpush1.bf16.msra.mxu0 0
    %5827 = vmatprep.subr.bf16.mxu0 0
    %5828 = vmatpush1.bf16.msra.mxu0 0
    %5829 = vmatprep.subr.bf16.mxu0 0
    %5830 = vmatpush1.bf16.msra.mxu0 0
    %5831 = vmatprep.subr.bf16.mxu0 0
    %5832 = vmatpush1.bf16.msra.mxu0 0
    %5833 = vmatprep.subr.bf16.mxu0 0
    %5834 = vmatpush1.bf16.msra.mxu0 0
    %5835 = vmatprep.subr.bf16.mxu0 0
    %5836 = vmatpush1.bf16.msra.mxu0 0
    %5837 = vmatprep.subr.bf16.mxu0 0
    %5838 = vmatpush1.bf16.msra.mxu0 0
    %5839 = vmatprep.subr.bf16.mxu0 0
    %5840 = vmatpush1.bf16.msra.mxu0 0
    %5841 = vmatprep.subr.bf16.mxu0 0
    %5842 = vmatpush1.bf16.msra.mxu0 0
    %5843 = vmatprep.subr.bf16.mxu0 0
    %5844 = vmatpush1.bf16.msra.mxu0 0
    %5845 = vmatprep.subr.bf16.mxu0 0
    %5846 = vmatpush1.bf16.msra.mxu0 0
    %5847 = vmatprep.mubr.bf16.mxu0 0
    %5848 = vmatmul.mubr.bf16.gmra.mrb[0].mxu0 %v5526
    %v5849 = vpop.f32.mrb[0].mxu0
    %v5850 = vadd.f32 %v5439, %v5849
    %v5851 = vpop.f32.mrb[0].mxu0
    %v5852 = vadd.f32 %v5443, %v5851
    %v5853 = vpop.f32.mrb[0].mxu0
    %v5854 = vpop.f32.mrb[0].mxu0
    %5855 = vdwg.mxu0
    %5856 = vmatprep.subr.bf16.mxu0 %v5269
    %5857 = vmatpush1.bf16.msra.mxu0 %v5268
    %5858 = vmatprep.subr.bf16.mxu0 %v5298
    %5859 = vmatpush1.bf16.msra.mxu0 %v5297
    %5860 = vmatprep.subr.bf16.mxu0 %v5327
    %5861 = vmatpush1.bf16.msra.mxu0 %v5326
    %5862 = vmatprep.subr.bf16.mxu0 %v5356
    %5863 = vmatpush1.bf16.msra.mxu0 %v5355
    %5864 = vmatprep.subr.bf16.mxu0 0
    %5865 = vmatpush1.bf16.msra.mxu0 0
    %5866 = vmatprep.subr.bf16.mxu0 0
    %5867 = vmatpush1.bf16.msra.mxu0 0
    %5868 = vmatprep.subr.bf16.mxu0 0
    %5869 = vmatpush1.bf16.msra.mxu0 0
    %5870 = vmatprep.subr.bf16.mxu0 0
    %5871 = vmatpush1.bf16.msra.mxu0 0
    %5872 = vmatprep.subr.bf16.mxu0 0
    %5873 = vmatpush1.bf16.msra.mxu0 0
    %5874 = vmatprep.subr.bf16.mxu0 0
    %5875 = vmatpush1.bf16.msra.mxu0 0
    %5876 = vmatprep.subr.bf16.mxu0 0
    %5877 = vmatpush1.bf16.msra.mxu0 0
    %5878 = vmatprep.subr.bf16.mxu0 0
    %5879 = vmatpush1.bf16.msra.mxu0 0
    %5880 = vmatprep.subr.bf16.mxu0 0
    %5881 = vmatpush1.bf16.msra.mxu0 0
    %5882 = vmatprep.subr.bf16.mxu0 0
    %5883 = vmatpush1.bf16.msra.mxu0 0
    %5884 = vmatprep.subr.bf16.mxu0 0
    %5885 = vmatpush1.bf16.msra.mxu0 0
    %5886 = vmatprep.subr.bf16.mxu0 0
    %5887 = vmatpush1.bf16.msra.mxu0 0
    %5888 = vmatprep.mubr.bf16.mxu0 0
    %5889 = vmatmul.mubr.bf16.gmra.mrb[0].mxu0 %v5526
    %v5890 = vpop.f32.mrb[0].mxu0
    %v5891 = vadd.f32 %v5447, %v5890
    %v5892 = vpop.f32.mrb[0].mxu0
    %v5893 = vadd.f32 %v5451, %v5892
    %v5894 = vpop.f32.mrb[0].mxu0
    %v5895 = vpop.f32.mrb[0].mxu0
    %5896 = vdwg.mxu0
    %5897 = vmatprep.subr.bf16.mxu0 %v5271
    %5898 = vmatpush1.bf16.msra.mxu0 %v5270
    %5899 = vmatprep.subr.bf16.mxu0 %v5300
    %5900 = vmatpush1.bf16.msra.mxu0 %v5299
    %5901 = vmatprep.subr.bf16.mxu0 %v5329
    %5902 = vmatpush1.bf16.msra.mxu0 %v5328
    %5903 = vmatprep.subr.bf16.mxu0 %v5358
    %5904 = vmatpush1.bf16.msra.mxu0 %v5357
    %5905 = vmatprep.subr.bf16.mxu0 0
    %5906 = vmatpush1.bf16.msra.mxu0 0
    %5907 = vmatprep.subr.bf16.mxu0 0
    %5908 = vmatpush1.bf16.msra.mxu0 0
    %5909 = vmatprep.subr.bf16.mxu0 0
    %5910 = vmatpush1.bf16.msra.mxu0 0
    %5911 = vmatprep.subr.bf16.mxu0 0
    %5912 = vmatpush1.bf16.msra.mxu0 0
    %5913 = vmatprep.subr.bf16.mxu0 0
    %5914 = vmatpush1.bf16.msra.mxu0 0
    %5915 = vmatprep.subr.bf16.mxu0 0
    %5916 = vmatpush1.bf16.msra.mxu0 0
    %5917 = vmatprep.subr.bf16.mxu0 0
    %5918 = vmatpush1.bf16.msra.mxu0 0
    %5919 = vmatprep.subr.bf16.mxu0 0
    %5920 = vmatpush1.bf16.msra.mxu0 0
    %5921 = vmatprep.subr.bf16.mxu0 0
    %5922 = vmatpush1.bf16.msra.mxu0 0
    %5923 = vmatprep.subr.bf16.mxu0 0
    %5924 = vmatpush1.bf16.msra.mxu0 0
    %5925 = vmatprep.subr.bf16.mxu0 0
    %5926 = vmatpush1.bf16.msra.mxu0 0
    %5927 = vmatprep.subr.bf16.mxu0 0
    %5928 = vmatpush1.bf16.msra.mxu0 0
    %5929 = vmatprep.mubr.bf16.mxu0 0
    %5930 = vmatmul.mubr.bf16.gmra.mrb[0].mxu0 %v5526
    %v5931 = vpop.f32.mrb[0].mxu0
    %v5932 = vadd.f32 %v5455, %v5931
    %v5933 = vpop.f32.mrb[0].mxu0
    %v5934 = vadd.f32 %v5459, %v5933
    %v5935 = vpop.f32.mrb[0].mxu0
    %v5936 = vpop.f32.mrb[0].mxu0
    %5937 = vdwg.mxu0
    %5938 = vmatprep.subr.bf16.mxu0 %v5273
    %5939 = vmatpush1.bf16.msra.mxu0 %v5272
    %5940 = vmatprep.subr.bf16.mxu0 %v5302
    %5941 = vmatpush1.bf16.msra.mxu0 %v5301
    %5942 = vmatprep.subr.bf16.mxu0 %v5331
    %5943 = vmatpush1.bf16.msra.mxu0 %v5330
    %5944 = vmatprep.subr.bf16.mxu0 %v5360
    %5945 = vmatpush1.bf16.msra.mxu0 %v5359
    %5946 = vmatprep.subr.bf16.mxu0 0
    %5947 = vmatpush1.bf16.msra.mxu0 0
    %5948 = vmatprep.subr.bf16.mxu0 0
    %5949 = vmatpush1.bf16.msra.mxu0 0
    %5950 = vmatprep.subr.bf16.mxu0 0
    %5951 = vmatpush1.bf16.msra.mxu0 0
    %5952 = vmatprep.subr.bf16.mxu0 0
    %5953 = vmatpush1.bf16.msra.mxu0 0
    %5954 = vmatprep.subr.bf16.mxu0 0
    %5955 = vmatpush1.bf16.msra.mxu0 0
    %5956 = vmatprep.subr.bf16.mxu0 0
    %5957 = vmatpush1.bf16.msra.mxu0 0
    %5958 = vmatprep.subr.bf16.mxu0 0
    %5959 = vmatpush1.bf16.msra.mxu0 0
    %5960 = vmatprep.subr.bf16.mxu0 0
    %5961 = vmatpush1.bf16.msra.mxu0 0
    %5962 = vmatprep.subr.bf16.mxu0 0
    %5963 = vmatpush1.bf16.msra.mxu0 0
    %5964 = vmatprep.subr.bf16.mxu0 0
    %5965 = vmatpush1.bf16.msra.mxu0 0
    %5966 = vmatprep.subr.bf16.mxu0 0
    %5967 = vmatpush1.bf16.msra.mxu0 0
    %5968 = vmatprep.subr.bf16.mxu0 0
    %5969 = vmatpush1.bf16.msra.mxu0 0
    %5970 = vmatprep.mubr.bf16.mxu0 0
    %5971 = vmatmul.mubr.bf16.gmra.mrb[0].mxu0 %v5526
    %v5972 = vpop.f32.mrb[0].mxu0
    %v5973 = vadd.f32 %v5463, %v5972
    %v5974 = vpop.f32.mrb[0].mxu0
    %v5975 = vadd.f32 %v5467, %v5974
    %v5976 = vpop.f32.mrb[0].mxu0
    %v5977 = vpop.f32.mrb[0].mxu0
    %5978 = vdwg.mxu0
    %5979 = vmatprep.subr.bf16.mxu0 %v5275
    %5980 = vmatpush1.bf16.msra.mxu0 %v5274
    %5981 = vmatprep.subr.bf16.mxu0 %v5304
    %5982 = vmatpush1.bf16.msra.mxu0 %v5303
    %5983 = vmatprep.subr.bf16.mxu0 %v5333
    %5984 = vmatpush1.bf16.msra.mxu0 %v5332
    %5985 = vmatprep.subr.bf16.mxu0 %v5362
    %5986 = vmatpush1.bf16.msra.mxu0 %v5361
    %5987 = vmatprep.subr.bf16.mxu0 0
    %5988 = vmatpush1.bf16.msra.mxu0 0
    %5989 = vmatprep.subr.bf16.mxu0 0
    %5990 = vmatpush1.bf16.msra.mxu0 0
    %5991 = vmatprep.subr.bf16.mxu0 0
    %5992 = vmatpush1.bf16.msra.mxu0 0
    %5993 = vmatprep.subr.bf16.mxu0 0
    %5994 = vmatpush1.bf16.msra.mxu0 0
    %5995 = vmatprep.subr.bf16.mxu0 0
    %5996 = vmatpush1.bf16.msra.mxu0 0
    %5997 = vmatprep.subr.bf16.mxu0 0
    %5998 = vmatpush1.bf16.msra.mxu0 0
    %5999 = vmatprep.subr.bf16.mxu0 0
    %6000 = vmatpush1.bf16.msra.mxu0 0
    %6001 = vmatprep.subr.bf16.mxu0 0
    %6002 = vmatpush1.bf16.msra.mxu0 0
    %6003 = vmatprep.subr.bf16.mxu0 0
    %6004 = vmatpush1.bf16.msra.mxu0 0
    %6005 = vmatprep.subr.bf16.mxu0 0
    %6006 = vmatpush1.bf16.msra.mxu0 0
    %6007 = vmatprep.subr.bf16.mxu0 0
    %6008 = vmatpush1.bf16.msra.mxu0 0
    %6009 = vmatprep.subr.bf16.mxu0 0
    %6010 = vmatpush1.bf16.msra.mxu0 0
    %6011 = vmatprep.mubr.bf16.mxu0 0
    %6012 = vmatmul.mubr.bf16.gmra.mrb[0].mxu0 %v5526
    %v6013 = vpop.f32.mrb[0].mxu0
    %v6014 = vadd.f32 %v5471, %v6013
    %v6015 = vpop.f32.mrb[0].mxu0
    %v6016 = vadd.f32 %v5475, %v6015
    %v6017 = vpop.f32.mrb[0].mxu0
    %v6018 = vpop.f32.mrb[0].mxu0
    %6019 = vdwg.mxu0
    %6020 = vmatprep.subr.bf16.mxu0 %v5277
    %6021 = vmatpush1.bf16.msra.mxu0 %v5276
    %6022 = vmatprep.subr.bf16.mxu0 %v5306
    %6023 = vmatpush1.bf16.msra.mxu0 %v5305
    %6024 = vmatprep.subr.bf16.mxu0 %v5335
    %6025 = vmatpush1.bf16.msra.mxu0 %v5334
    %6026 = vmatprep.subr.bf16.mxu0 %v5364
    %6027 = vmatpush1.bf16.msra.mxu0 %v5363
    %6028 = vmatprep.subr.bf16.mxu0 0
    %6029 = vmatpush1.bf16.msra.mxu0 0
    %6030 = vmatprep.subr.bf16.mxu0 0
    %6031 = vmatpush1.bf16.msra.mxu0 0
    %6032 = vmatprep.subr.bf16.mxu0 0
    %6033 = vmatpush1.bf16.msra.mxu0 0
    %6034 = vmatprep.subr.bf16.mxu0 0
    %6035 = vmatpush1.bf16.msra.mxu0 0
    %6036 = vmatprep.subr.bf16.mxu0 0
    %6037 = vmatpush1.bf16.msra.mxu0 0
    %6038 = vmatprep.subr.bf16.mxu0 0
    %6039 = vmatpush1.bf16.msra.mxu0 0
    %6040 = vmatprep.subr.bf16.mxu0 0
    %6041 = vmatpush1.bf16.msra.mxu0 0
    %6042 = vmatprep.subr.bf16.mxu0 0
    %6043 = vmatpush1.bf16.msra.mxu0 0
    %6044 = vmatprep.subr.bf16.mxu0 0
    %6045 = vmatpush1.bf16.msra.mxu0 0
    %6046 = vmatprep.subr.bf16.mxu0 0
    %6047 = vmatpush1.bf16.msra.mxu0 0
    %6048 = vmatprep.subr.bf16.mxu0 0
    %6049 = vmatpush1.bf16.msra.mxu0 0
    %6050 = vmatprep.subr.bf16.mxu0 0
    %6051 = vmatpush1.bf16.msra.mxu0 0
    %6052 = vmatprep.mubr.bf16.mxu0 0
    %6053 = vmatmul.mubr.bf16.gmra.mrb[0].mxu0 %v5526
    %v6054 = vpop.f32.mrb[0].mxu0
    %v6055 = vadd.f32 %v5479, %v6054
    %v6056 = vpop.f32.mrb[0].mxu0
    %v6057 = vadd.f32 %v5483, %v6056
    %v6058 = vpop.f32.mrb[0].mxu0
    %v6059 = vpop.f32.mrb[0].mxu0
    %6060 = vdwg.mxu0
    %6061 = vmatprep.subr.bf16.mxu0 %v5279
    %6062 = vmatpush1.bf16.msra.mxu0 %v5278
    %6063 = vmatprep.subr.bf16.mxu0 %v5308
    %6064 = vmatpush1.bf16.msra.mxu0 %v5307
    %6065 = vmatprep.subr.bf16.mxu0 %v5337
    %6066 = vmatpush1.bf16.msra.mxu0 %v5336
    %6067 = vmatprep.subr.bf16.mxu0 %v5366
    %6068 = vmatpush1.bf16.msra.mxu0 %v5365
    %6069 = vmatprep.subr.bf16.mxu0 0
    %6070 = vmatpush1.bf16.msra.mxu0 0
    %6071 = vmatprep.subr.bf16.mxu0 0
    %6072 = vmatpush1.bf16.msra.mxu0 0
    %6073 = vmatprep.subr.bf16.mxu0 0
    %6074 = vmatpush1.bf16.msra.mxu0 0
    %6075 = vmatprep.subr.bf16.mxu0 0
    %6076 = vmatpush1.bf16.msra.mxu0 0
    %6077 = vmatprep.subr.bf16.mxu0 0
    %6078 = vmatpush1.bf16.msra.mxu0 0
    %6079 = vmatprep.subr.bf16.mxu0 0
    %6080 = vmatpush1.bf16.msra.mxu0 0
    %6081 = vmatprep.subr.bf16.mxu0 0
    %6082 = vmatpush1.bf16.msra.mxu0 0
    %6083 = vmatprep.subr.bf16.mxu0 0
    %6084 = vmatpush1.bf16.msra.mxu0 0
    %6085 = vmatprep.subr.bf16.mxu0 0
    %6086 = vmatpush1.bf16.msra.mxu0 0
    %6087 = vmatprep.subr.bf16.mxu0 0
    %6088 = vmatpush1.bf16.msra.mxu0 0
    %6089 = vmatprep.subr.bf16.mxu0 0
    %6090 = vmatpush1.bf16.msra.mxu0 0
    %6091 = vmatprep.subr.bf16.mxu0 0
    %6092 = vmatpush1.bf16.msra.mxu0 0
    %6093 = vmatprep.mubr.bf16.mxu0 0
    %6094 = vmatmul.mubr.bf16.gmra.mrb[0].mxu0 %v5526
    %v6095 = vpop.f32.mrb[0].mxu0
    %v6096 = vadd.f32 %v5487, %v6095
    %v6097 = vpop.f32.mrb[0].mxu0
    %v6098 = vadd.f32 %v5491, %v6097
    %v6099 = vpop.f32.mrb[0].mxu0
    %v6100 = vpop.f32.mrb[0].mxu0
    %6101 = vdwg.mxu0
    %6102 = vmatprep.subr.bf16.mxu0 0
    %6103 = vmatpush1.bf16.msra.mxu0 %v5280
    %6104 = vmatprep.subr.bf16.mxu0 0
    %6105 = vmatpush1.bf16.msra.mxu0 %v5309
    %6106 = vmatprep.subr.bf16.mxu0 0
    %6107 = vmatpush1.bf16.msra.mxu0 %v5338
    %6108 = vmatprep.subr.bf16.mxu0 0
    %6109 = vmatpush1.bf16.msra.mxu0 %v5367
    %6110 = vmatprep.subr.bf16.mxu0 0
    %6111 = vmatpush1.bf16.msra.mxu0 0
    %6112 = vmatprep.subr.bf16.mxu0 0
    %6113 = vmatpush1.bf16.msra.mxu0 0
    %6114 = vmatprep.subr.bf16.mxu0 0
    %6115 = vmatpush1.bf16.msra.mxu0 0
    %6116 = vmatprep.subr.bf16.mxu0 0
    %6117 = vmatpush1.bf16.msra.mxu0 0
    %6118 = vmatprep.subr.bf16.mxu0 0
    %6119 = vmatpush1.bf16.msra.mxu0 0
    %6120 = vmatprep.subr.bf16.mxu0 0
    %6121 = vmatpush1.bf16.msra.mxu0 0
    %6122 = vmatprep.subr.bf16.mxu0 0
    %6123 = vmatpush1.bf16.msra.mxu0 0
    %6124 = vmatprep.subr.bf16.mxu0 0
    %6125 = vmatpush1.bf16.msra.mxu0 0
    %6126 = vmatprep.subr.bf16.mxu0 0
    %6127 = vmatpush1.bf16.msra.mxu0 0
    %6128 = vmatprep.subr.bf16.mxu0 0
    %6129 = vmatpush1.bf16.msra.mxu0 0
    %6130 = vmatprep.subr.bf16.mxu0 0
    %6131 = vmatpush1.bf16.msra.mxu0 0
    %6132 = vmatprep.subr.bf16.mxu0 0
    %6133 = vmatpush1.bf16.msra.mxu0 0
    %6134 = vmatprep.mubr.bf16.mxu0 0
    %6135 = vmatmul.mubr.bf16.gmra.mrb[0].mxu0 %v5526
    %v6136 = vpop.f32.mrb[0].mxu0
    %v6137 = vadd.f32 %v5495, %v6136
    %v6138 = vpop.f32.mrb[0].mxu0
    %v6139 = vpop.f32.mrb[0].mxu0
    %v6140 = vpop.f32.mrb[0].mxu0
    %6141 = vdwg.mxu0
    %v6142 = vxor.u32 %v5563, 2147483648
    %v6143 = vxor.u32 %v5565, 2147483648
    %v6144 = vxor.u32 %v5604, 2147483648
    %v6145 = vxor.u32 %v5606, 2147483648
    %v6146 = vxor.u32 %v5645, 2147483648
    %v6147 = vxor.u32 %v5647, 2147483648
    %v6148 = vxor.u32 %v5686, 2147483648
    %v6149 = vxor.u32 %v5688, 2147483648
    %v6150 = vxor.u32 %v5727, 2147483648
    %v6151 = vxor.u32 %v5729, 2147483648
    %v6152 = vxor.u32 %v5768, 2147483648
    %v6153 = vxor.u32 %v5770, 2147483648
    %v6154 = vxor.u32 %v5809, 2147483648
    %v6155 = vxor.u32 %v5811, 2147483648
    %v6156 = vxor.u32 %v5850, 2147483648
    %v6157 = vxor.u32 %v5852, 2147483648
    %v6158 = vxor.u32 %v5891, 2147483648
    %v6159 = vxor.u32 %v5893, 2147483648
    %v6160 = vxor.u32 %v5932, 2147483648
    %v6161 = vxor.u32 %v5934, 2147483648
    %v6162 = vxor.u32 %v5973, 2147483648
    %v6163 = vxor.u32 %v5975, 2147483648
    %v6164 = vxor.u32 %v6014, 2147483648
    %v6165 = vxor.u32 %v6016, 2147483648
    %v6166 = vxor.u32 %v6055, 2147483648
    %v6167 = vxor.u32 %v6057, 2147483648
    %v6168 = vxor.u32 %v6096, 2147483648
    %v6169 = vxor.u32 %v6098, 2147483648
    %v6170 = vxor.u32 %v6137, 2147483648
    %v6171 = vmul.f32 %v6142, 1.442695
    %v6172 = vpow.pop %v6171
    %v6173 = vmul.f32 %v6143, 1.442695
    %v6174 = vpow.pop %v6173
    %v6175 = vmul.f32 %v6144, 1.442695
    %v6176 = vpow.pop %v6175
    %v6177 = vmul.f32 %v6145, 1.442695
    %v6178 = vpow.pop %v6177
    %v6179 = vmul.f32 %v6146, 1.442695
    %v6180 = vpow.pop %v6179
    %v6181 = vmul.f32 %v6147, 1.442695
    %v6182 = vpow.pop %v6181
    %v6183 = vmul.f32 %v6148, 1.442695
    %v6184 = vpow.pop %v6183
    %v6185 = vmul.f32 %v6149, 1.442695
    %v6186 = vpow.pop %v6185
    %v6187 = vmul.f32 %v6150, 1.442695
    %v6188 = vpow.pop %v6187
    %v6189 = vmul.f32 %v6151, 1.442695
    %v6190 = vpow.pop %v6189
    %v6191 = vmul.f32 %v6152, 1.442695
    %v6192 = vpow.pop %v6191
    %v6193 = vmul.f32 %v6153, 1.442695
    %v6194 = vpow.pop %v6193
    %v6195 = vmul.f32 %v6154, 1.442695
    %v6196 = vpow.pop %v6195
    %v6197 = vmul.f32 %v6155, 1.442695
    %v6198 = vpow.pop %v6197
    %v6199 = vmul.f32 %v6156, 1.442695
    %v6200 = vpow.pop %v6199
    %v6201 = vmul.f32 %v6157, 1.442695
    %v6202 = vpow.pop %v6201
    %v6203 = vmul.f32 %v6158, 1.442695
    %v6204 = vpow.pop %v6203
    %v6205 = vmul.f32 %v6159, 1.442695
    %v6206 = vpow.pop %v6205
    %v6207 = vmul.f32 %v6160, 1.442695
    %v6208 = vpow.pop %v6207
    %v6209 = vmul.f32 %v6161, 1.442695
    %v6210 = vpow.pop %v6209
    %v6211 = vmul.f32 %v6162, 1.442695
    %v6212 = vpow.pop %v6211
    %v6213 = vmul.f32 %v6163, 1.442695
    %v6214 = vpow.pop %v6213
    %v6215 = vmul.f32 %v6164, 1.442695
    %v6216 = vpow.pop %v6215
    %v6217 = vmul.f32 %v6165, 1.442695
    %v6218 = vpow.pop %v6217
    %v6219 = vmul.f32 %v6166, 1.442695
    %v6220 = vpow.pop %v6219
    %v6221 = vmul.f32 %v6167, 1.442695
    %v6222 = vpow.pop %v6221
    %v6223 = vmul.f32 %v6168, 1.442695
    %v6224 = vpow.pop %v6223
    %v6225 = vmul.f32 %v6169, 1.442695
    %v6226 = vpow.pop %v6225
    %v6227 = vmul.f32 %v6170, 1.442695
    %v6228 = vpow.pop %v6227
    %v6229 = vadd.f32 %v6172, 1.0
    %v6230 = vadd.f32 %v6174, 1.0
    %v6231 = vadd.f32 %v6176, 1.0
    %v6232 = vadd.f32 %v6178, 1.0
    %v6233 = vadd.f32 %v6180, 1.0
    %v6234 = vadd.f32 %v6182, 1.0
    %v6235 = vadd.f32 %v6184, 1.0
    %v6236 = vadd.f32 %v6186, 1.0
    %v6237 = vadd.f32 %v6188, 1.0
    %v6238 = vadd.f32 %v6190, 1.0
    %v6239 = vadd.f32 %v6192, 1.0
    %v6240 = vadd.f32 %v6194, 1.0
    %v6241 = vadd.f32 %v6196, 1.0
    %v6242 = vadd.f32 %v6198, 1.0
    %v6243 = vadd.f32 %v6200, 1.0
    %v6244 = vadd.f32 %v6202, 1.0
    %v6245 = vadd.f32 %v6204, 1.0
    %v6246 = vadd.f32 %v6206, 1.0
    %v6247 = vadd.f32 %v6208, 1.0
    %v6248 = vadd.f32 %v6210, 1.0
    %v6249 = vadd.f32 %v6212, 1.0
    %v6250 = vadd.f32 %v6214, 1.0
    %v6251 = vadd.f32 %v6216, 1.0
    %v6252 = vadd.f32 %v6218, 1.0
    %v6253 = vadd.f32 %v6220, 1.0
    %v6254 = vadd.f32 %v6222, 1.0
    %v6255 = vadd.f32 %v6224, 1.0
    %v6256 = vadd.f32 %v6226, 1.0
    %v6257 = vadd.f32 %v6228, 1.0
    %v6258 = vrcp.pop %v6229
    %v6259 = vmul.f32 1.0, %v6258
    %v6260 = vrcp.pop %v6230
    %v6261 = vmul.f32 1.0, %v6260
    %v6262 = vrcp.pop %v6231
    %v6263 = vmul.f32 1.0, %v6262
    %v6264 = vrcp.pop %v6232
    %v6265 = vmul.f32 1.0, %v6264
    %v6266 = vrcp.pop %v6233
    %v6267 = vmul.f32 1.0, %v6266
    %v6268 = vrcp.pop %v6234
    %v6269 = vmul.f32 1.0, %v6268
    %v6270 = vrcp.pop %v6235
    %v6271 = vmul.f32 1.0, %v6270
    %v6272 = vrcp.pop %v6236
    %v6273 = vmul.f32 1.0, %v6272
    %v6274 = vrcp.pop %v6237
    %v6275 = vmul.f32 1.0, %v6274
    %v6276 = vrcp.pop %v6238
    %v6277 = vmul.f32 1.0, %v6276
    %v6278 = vrcp.pop %v6239
    %v6279 = vmul.f32 1.0, %v6278
    %v6280 = vrcp.pop %v6240
    %v6281 = vmul.f32 1.0, %v6280
    %v6282 = vrcp.pop %v6241
    %v6283 = vmul.f32 1.0, %v6282
    %v6284 = vrcp.pop %v6242
    %v6285 = vmul.f32 1.0, %v6284
    %v6286 = vrcp.pop %v6243
    %v6287 = vmul.f32 1.0, %v6286
    %v6288 = vrcp.pop %v6244
    %v6289 = vmul.f32 1.0, %v6288
    %v6290 = vrcp.pop %v6245
    %v6291 = vmul.f32 1.0, %v6290
    %v6292 = vrcp.pop %v6246
    %v6293 = vmul.f32 1.0, %v6292
    %v6294 = vrcp.pop %v6247
    %v6295 = vmul.f32 1.0, %v6294
    %v6296 = vrcp.pop %v6248
    %v6297 = vmul.f32 1.0, %v6296
    %v6298 = vrcp.pop %v6249
    %v6299 = vmul.f32 1.0, %v6298
    %v6300 = vrcp.pop %v6250
    %v6301 = vmul.f32 1.0, %v6300
    %v6302 = vrcp.pop %v6251
    %v6303 = vmul.f32 1.0, %v6302
    %v6304 = vrcp.pop %v6252
    %v6305 = vmul.f32 1.0, %v6304
    %v6306 = vrcp.pop %v6253
    %v6307 = vmul.f32 1.0, %v6306
    %v6308 = vrcp.pop %v6254
    %v6309 = vmul.f32 1.0, %v6308
    %v6310 = vrcp.pop %v6255
    %v6311 = vmul.f32 1.0, %v6310
    %v6312 = vrcp.pop %v6256
    %v6313 = vmul.f32 1.0, %v6312
    %v6314 = vrcp.pop %v6257
    %v6315 = vmul.f32 1.0, %v6314
    %v6316 = vmul.f32 %v6259, 4.0
    %v6317 = vmul.f32 %v6261, 4.0
    %v6318 = vmul.f32 %v6263, 4.0
    %v6319 = vmul.f32 %v6265, 4.0
    %v6320 = vmul.f32 %v6267, 4.0
    %v6321 = vmul.f32 %v6269, 4.0
    %v6322 = vmul.f32 %v6271, 4.0
    %v6323 = vmul.f32 %v6273, 4.0
    %v6324 = vmul.f32 %v6275, 4.0
    %v6325 = vmul.f32 %v6277, 4.0
    %v6326 = vmul.f32 %v6279, 4.0
    %v6327 = vmul.f32 %v6281, 4.0
    %v6328 = vmul.f32 %v6283, 4.0
    %v6329 = vmul.f32 %v6285, 4.0
    %v6330 = vmul.f32 %v6287, 4.0
    %v6331 = vmul.f32 %v6289, 4.0
    %v6332 = vmul.f32 %v6291, 4.0
    %v6333 = vmul.f32 %v6293, 4.0
    %v6334 = vmul.f32 %v6295, 4.0
    %v6335 = vmul.f32 %v6297, 4.0
    %v6336 = vmul.f32 %v6299, 4.0
    %v6337 = vmul.f32 %v6301, 4.0
    %v6338 = vmul.f32 %v6303, 4.0
    %v6339 = vmul.f32 %v6305, 4.0
    %v6340 = vmul.f32 %v6307, 4.0
    %v6341 = vmul.f32 %v6309, 4.0
    %v6342 = vmul.f32 %v6311, 4.0
    %v6343 = vmul.f32 %v6313, 4.0
    %v6344 = vmul.f32 %v6315, 4.0
    %v6345 = vadd.f32 %v6316, 1.0
    %v6346 = vadd.f32 %v6317, 1.0
    %v6347 = vadd.f32 %v6318, 1.0
    %v6348 = vadd.f32 %v6319, 1.0
    %v6349 = vadd.f32 %v6320, 1.0
    %v6350 = vadd.f32 %v6321, 1.0
    %v6351 = vadd.f32 %v6322, 1.0
    %v6352 = vadd.f32 %v6323, 1.0
    %v6353 = vadd.f32 %v6324, 1.0
    %v6354 = vadd.f32 %v6325, 1.0
    %v6355 = vadd.f32 %v6326, 1.0
    %v6356 = vadd.f32 %v6327, 1.0
    %v6357 = vadd.f32 %v6328, 1.0
    %v6358 = vadd.f32 %v6329, 1.0
    %v6359 = vadd.f32 %v6330, 1.0
    %v6360 = vadd.f32 %v6331, 1.0
    %v6361 = vadd.f32 %v6332, 1.0
    %v6362 = vadd.f32 %v6333, 1.0
    %v6363 = vadd.f32 %v6334, 1.0
    %v6364 = vadd.f32 %v6335, 1.0
    %v6365 = vadd.f32 %v6336, 1.0
    %v6366 = vadd.f32 %v6337, 1.0
    %v6367 = vadd.f32 %v6338, 1.0
    %v6368 = vadd.f32 %v6339, 1.0
    %v6369 = vadd.f32 %v6340, 1.0
    %v6370 = vadd.f32 %v6341, 1.0
    %v6371 = vadd.f32 %v6342, 1.0
    %v6372 = vadd.f32 %v6343, 1.0
    %v6373 = vadd.f32 %v6344, 1.0
    %6374 = vst [vmem:[#allocation33] sm:$0xff] %v6345
    %6375 = vst [vmem:[#allocation33 + $0x8] sm:$0xff] %v6346
    %6376 = vst [vmem:[#allocation33 + $0x10] sm:$0xff] %v6347
    %6377 = vst [vmem:[#allocation33 + $0x18] sm:$0xff] %v6348
    %6378 = vst [vmem:[#allocation33 + $0x20] sm:$0xff] %v6349
    %6379 = vst [vmem:[#allocation33 + $0x28] sm:$0xff] %v6350
    %6380 = vst [vmem:[#allocation33 + $0x30] sm:$0xff] %v6351
    %6381 = vst [vmem:[#allocation33 + $0x38] sm:$0xff] %v6352
    %6382 = vst [vmem:[#allocation33 + $0x40] sm:$0xff] %v6353
    %6383 = vst [vmem:[#allocation33 + $0x48] sm:$0xff] %v6354
    %6384 = vst [vmem:[#allocation33 + $0x50] sm:$0xff] %v6355
    %6385 = vst [vmem:[#allocation33 + $0x58] sm:$0xff] %v6356
    %6386 = vst [vmem:[#allocation33 + $0x60] sm:$0xff] %v6357
    %6387 = vst [vmem:[#allocation33 + $0x68] sm:$0xff] %v6358
    %6388 = vst [vmem:[#allocation33 + $0x70] sm:$0xff] %v6359
    %6389 = vst [vmem:[#allocation33 + $0x78] sm:$0xff] %v6360
    %6390 = vst [vmem:[#allocation33 + $0x80] sm:$0xff] %v6361
    %6391 = vst [vmem:[#allocation33 + $0x88] sm:$0xff] %v6362
    %6392 = vst [vmem:[#allocation33 + $0x90] sm:$0xff] %v6363
    %6393 = vst [vmem:[#allocation33 + $0x98] sm:$0xff] %v6364
    %6394 = vst [vmem:[#allocation33 + $0xa0] sm:$0xff] %v6365
    %6395 = vst [vmem:[#allocation33 + $0xa8] sm:$0xff] %v6366
    %6396 = vst [vmem:[#allocation33 + $0xb0] sm:$0xff] %v6367
    %6397 = vst [vmem:[#allocation33 + $0xb8] sm:$0xff] %v6368
    %6398 = vst [vmem:[#allocation33 + $0xc0] sm:$0xff] %v6369
    %6399 = vst [vmem:[#allocation33 + $0xc8] sm:$0xff] %v6370
    %6400 = vst [vmem:[#allocation33 + $0xd0] sm:$0xff] %v6371
    %6401 = vst [vmem:[#allocation33 + $0xd8] sm:$0xff] %v6372
    %6402 = vst [vmem:[#allocation33 + $0xe0] sm:$0xff] %v6373
    %s6403 = sshll.u32 %s5249, 4
    %6404 = dma.done %s746, %s6403
    %v6405 = vld [vmem:[#allocation25] sm:$0xff]
    %v6406 = vld [vmem:[#allocation25 + $0x8] sm:$0xff]
    %v6407 = vld [vmem:[#allocation25 + $0x10] sm:$0xff]
    %v6408 = vld [vmem:[#allocation25 + $0x18] sm:$0xff]
    %v6409 = vld [vmem:[#allocation25 + $0x20] sm:$0xff]
    %v6410 = vld [vmem:[#allocation25 + $0x28] sm:$0xff]
    %v6411 = vld [vmem:[#allocation25 + $0x30] sm:$0xff]
    %v6412 = vld [vmem:[#allocation25 + $0x38] sm:$0xff]
    %v6413 = vld [vmem:[#allocation25 + $0x40] sm:$0xff]
    %v6414 = vld [vmem:[#allocation25 + $0x48] sm:$0xff]
    %v6415 = vld [vmem:[#allocation25 + $0x50] sm:$0xff]
    %v6416 = vld [vmem:[#allocation25 + $0x58] sm:$0xff]
    %v6417 = vld [vmem:[#allocation25 + $0x60] sm:$0xff]
    %v6418 = vld [vmem:[#allocation25 + $0x68] sm:$0xff]
    %v6419 = vld [vmem:[#allocation25 + $0x70] sm:$0xff]
    %v6420 = vld [vmem:[#allocation25 + $0x78] sm:$0xff]
    %v6421 = vld [vmem:[#allocation25 + $0x80] sm:$0xff]
    %v6422 = vld [vmem:[#allocation25 + $0x88] sm:$0xff]
    %v6423 = vld [vmem:[#allocation25 + $0x90] sm:$0xff]
    %v6424 = vld [vmem:[#allocation25 + $0x98] sm:$0xff]
    %v6425 = vld [vmem:[#allocation25 + $0xa0] sm:$0xff]
    %v6426 = vld [vmem:[#allocation25 + $0xa8] sm:$0xff]
    %v6427 = vld [vmem:[#allocation25 + $0xb0] sm:$0xff]
    %v6428 = vld [vmem:[#allocation25 + $0xb8] sm:$0xff]
    %v6429 = vld [vmem:[#allocation25 + $0xc0] sm:$0xff]
    %v6430 = vld [vmem:[#allocation25 + $0xc8] sm:$0xff]
    %v6431 = vld [vmem:[#allocation25 + $0xd0] sm:$0xff]
    %v6432 = vld [vmem:[#allocation25 + $0xd8] sm:$0xff]
    %v6433 = vld [vmem:[#allocation25 + $0xe0] sm:$0xff]
    %v6434 = vld [vmem:[#allocation25 + $0xe8] sm:$0xff]
    %v6435 = vld [vmem:[#allocation25 + $0xf0] sm:$0xff]
    %v6436 = vld [vmem:[#allocation25 + $0xf8] sm:$0xff]
    %v6437 = vld [vmem:[#allocation25 + $0x100] sm:$0xff]
    %v6438 = vld [vmem:[#allocation25 + $0x108] sm:$0xff]
    %v6439 = vld [vmem:[#allocation25 + $0x110] sm:$0xff]
    %v6440 = vld [vmem:[#allocation25 + $0x118] sm:$0xff]
    %v6441 = vld [vmem:[#allocation25 + $0x120] sm:$0xff]
    %v6442 = vld [vmem:[#allocation25 + $0x128] sm:$0xff]
    %v6443 = vld [vmem:[#allocation25 + $0x130] sm:$0xff]
    %v6444 = vld [vmem:[#allocation25 + $0x138] sm:$0xff]
    %v6445 = vld [vmem:[#allocation25 + $0x140] sm:$0xff]
    %v6446 = vld [vmem:[#allocation25 + $0x148] sm:$0xff]
    %v6447 = vld [vmem:[#allocation25 + $0x150] sm:$0xff]
    %v6448 = vld [vmem:[#allocation25 + $0x158] sm:$0xff]
    %v6449 = vld [vmem:[#allocation25 + $0x160] sm:$0xff]
    %v6450 = vld [vmem:[#allocation25 + $0x168] sm:$0xff]
    %v6451 = vld [vmem:[#allocation25 + $0x170] sm:$0xff]
    %v6452 = vld [vmem:[#allocation25 + $0x178] sm:$0xff]
    %v6453 = vld [vmem:[#allocation25 + $0x180] sm:$0xff]
    %v6454 = vld [vmem:[#allocation25 + $0x188] sm:$0xff]
    %v6455 = vld [vmem:[#allocation25 + $0x190] sm:$0xff]
    %v6456 = vld [vmem:[#allocation25 + $0x198] sm:$0xff]
    %v6457 = vld [vmem:[#allocation25 + $0x1a0] sm:$0xff]
    %v6458 = vld [vmem:[#allocation25 + $0x1a8] sm:$0xff]
    %v6459 = vld [vmem:[#allocation25 + $0x1b0] sm:$0xff]
    %v6460 = vld [vmem:[#allocation25 + $0x1b8] sm:$0xff]
    %v6461 = vld [vmem:[#allocation25 + $0x1c0] sm:$0xff]
    %v6462 = vld [vmem:[#allocation25 + $0x1c8] sm:$0xff]
    %v6463 = vld [vmem:[#allocation25 + $0x1d0] sm:$0xff]
    %v6464 = vld [vmem:[#allocation25 + $0x1d8] sm:$0xff]
    %v6465 = vld [vmem:[#allocation25 + $0x1e0] sm:$0xff]
    %v6466 = vld [vmem:[#allocation25 + $0x1e8] sm:$0xff]
    %v6467 = vld [vmem:[#allocation25 + $0x1f0] sm:$0xff]
    %v6468 = vld [vmem:[#allocation25 + $0x1f8] sm:$0xff]
    %v6469 = vld [vmem:[#allocation25 + $0x200] sm:$0xff]
    %v6470 = vld [vmem:[#allocation25 + $0x208] sm:$0xff]
    %v6471 = vld [vmem:[#allocation25 + $0x210] sm:$0xff]
    %v6472 = vld [vmem:[#allocation25 + $0x218] sm:$0xff]
    %v6473 = vld [vmem:[#allocation25 + $0x220] sm:$0xff]
    %v6474 = vld [vmem:[#allocation25 + $0x228] sm:$0xff]
    %v6475 = vld [vmem:[#allocation25 + $0x230] sm:$0xff]
    %v6476 = vld [vmem:[#allocation25 + $0x238] sm:$0xff]
    %v6477 = vld [vmem:[#allocation25 + $0x240] sm:$0xff]
    %v6478 = vld [vmem:[#allocation25 + $0x248] sm:$0xff]
    %v6479 = vld [vmem:[#allocation25 + $0x250] sm:$0xff]
    %v6480 = vld [vmem:[#allocation25 + $0x258] sm:$0xff]
    %v6481 = vld [vmem:[#allocation25 + $0x260] sm:$0xff]
    %v6482 = vld [vmem:[#allocation25 + $0x268] sm:$0xff]
    %v6483 = vld [vmem:[#allocation25 + $0x270] sm:$0xff]
    %v6484 = vld [vmem:[#allocation25 + $0x278] sm:$0xff]
    %v6485 = vld [vmem:[#allocation25 + $0x280] sm:$0xff]
    %v6486 = vld [vmem:[#allocation25 + $0x288] sm:$0xff]
    %v6487 = vld [vmem:[#allocation25 + $0x290] sm:$0xff]
    %v6488 = vld [vmem:[#allocation25 + $0x298] sm:$0xff]
    %v6489 = vld [vmem:[#allocation25 + $0x2a0] sm:$0xff]
    %v6490 = vld [vmem:[#allocation25 + $0x2a8] sm:$0xff]
    %v6491 = vld [vmem:[#allocation25 + $0x2b0] sm:$0xff]
    %v6492 = vld [vmem:[#allocation25 + $0x2b8] sm:$0xff]
    %v6493 = vld [vmem:[#allocation25 + $0x2c0] sm:$0xff]
    %v6494 = vld [vmem:[#allocation25 + $0x2c8] sm:$0xff]
    %v6495 = vld [vmem:[#allocation25 + $0x2d0] sm:$0xff]
    %v6496 = vld [vmem:[#allocation25 + $0x2d8] sm:$0xff]
    %v6497 = vld [vmem:[#allocation25 + $0x2e0] sm:$0xff]
    %v6498 = vld [vmem:[#allocation25 + $0x2e8] sm:$0xff]
    %v6499 = vld [vmem:[#allocation25 + $0x2f0] sm:$0xff]
    %v6500 = vld [vmem:[#allocation25 + $0x2f8] sm:$0xff]
    %v6501 = vld [vmem:[#allocation25 + $0x300] sm:$0xff]
    %v6502 = vld [vmem:[#allocation25 + $0x308] sm:$0xff]
    %v6503 = vld [vmem:[#allocation25 + $0x310] sm:$0xff]
    %v6504 = vld [vmem:[#allocation25 + $0x318] sm:$0xff]
    %v6505 = vld [vmem:[#allocation25 + $0x320] sm:$0xff]
    %v6506 = vld [vmem:[#allocation25 + $0x328] sm:$0xff]
    %v6507 = vld [vmem:[#allocation25 + $0x330] sm:$0xff]
    %v6508 = vld [vmem:[#allocation25 + $0x338] sm:$0xff]
    %v6509 = vld [vmem:[#allocation25 + $0x340] sm:$0xff]
    %v6510 = vld [vmem:[#allocation25 + $0x348] sm:$0xff]
    %v6511 = vld [vmem:[#allocation25 + $0x350] sm:$0xff]
    %v6512 = vld [vmem:[#allocation25 + $0x358] sm:$0xff]
    %v6513 = vld [vmem:[#allocation25 + $0x360] sm:$0xff]
    %v6514 = vld [vmem:[#allocation25 + $0x368] sm:$0xff]
    %v6515 = vld [vmem:[#allocation25 + $0x370] sm:$0xff]
    %v6516 = vld [vmem:[#allocation25 + $0x378] sm:$0xff]
    %v6517 = vld [vmem:[#allocation25 + $0x380] sm:$0xff]
    %v6518 = vld [vmem:[#allocation25 + $0x388] sm:$0xff]
    %v6519 = vld [vmem:[#allocation25 + $0x390] sm:$0xff]
    %v6520 = vld [vmem:[#allocation25 + $0x398] sm:$0xff]
    %s6521 = scalar_lea.vmem [#allocation32], 1
    %v6522 = vld [vmem:[%s6521] ss:$2 sm:$0xff]
    %s6523 = scalar_lea.vmem [#allocation32], 17
    %v6524 = vld [vmem:[%s6523] ss:$2 sm:$0xff]
    %s6525 = scalar_lea.vmem [#allocation32], 33
    %v6526 = vld [vmem:[%s6525] ss:$2 sm:$0xff]
    %s6527 = scalar_lea.vmem [#allocation32], 49
    %v6528 = vld [vmem:[%s6527] ss:$2 sm:$0x1f]
    %v6529 = vpack.c.bf16 %v5248, %v5248
    %v6534 = vlaneseq
    %v6535 = vshrl.u32 %v6534, 7
    %v6536 = vsub.s32 0, %v6535
    %v6537 = vrot.slane %v6522, %v6536
    %v6538 = vlaneseq
    %v6539 = vshrl.u32 %v6538, 7
    %v6540 = vsub.s32 1, %v6539
    %v6541 = vrot.slane %v6522, %v6540
    %v6542 = vlaneseq
    %v6543 = vshrl.u32 %v6542, 7
    %v6544 = vsub.s32 2, %v6543
    %v6545 = vrot.slane %v6522, %v6544
    %v6546 = vlaneseq
    %v6547 = vshrl.u32 %v6546, 7
    %v6548 = vsub.s32 3, %v6547
    %v6549 = vrot.slane %v6522, %v6548
    %v6550 = vlaneseq
    %v6551 = vshrl.u32 %v6550, 7
    %v6552 = vsub.s32 4, %v6551
    %v6553 = vrot.slane %v6522, %v6552
    %v6554 = vlaneseq
    %v6555 = vshrl.u32 %v6554, 7
    %v6556 = vsub.s32 5, %v6555
    %v6557 = vrot.slane %v6522, %v6556
    %v6558 = vlaneseq
    %v6559 = vshrl.u32 %v6558, 7
    %v6560 = vsub.s32 6, %v6559
    %v6561 = vrot.slane %v6522, %v6560
    %v6562 = vlaneseq
    %v6563 = vshrl.u32 %v6562, 7
    %v6564 = vsub.s32 7, %v6563
    %v6565 = vrot.slane %v6522, %v6564
    %v6566 = vlaneseq
    %v6567 = vshrl.u32 %v6566, 7
    %v6568 = vsub.s32 0, %v6567
    %v6569 = vrot.slane %v6524, %v6568
    %v6570 = vlaneseq
    %v6571 = vshrl.u32 %v6570, 7
    %v6572 = vsub.s32 1, %v6571
    %v6573 = vrot.slane %v6524, %v6572
    %v6574 = vlaneseq
    %v6575 = vshrl.u32 %v6574, 7
    %v6576 = vsub.s32 2, %v6575
    %v6577 = vrot.slane %v6524, %v6576
    %v6578 = vlaneseq
    %v6579 = vshrl.u32 %v6578, 7
    %v6580 = vsub.s32 3, %v6579
    %v6581 = vrot.slane %v6524, %v6580
    %v6582 = vlaneseq
    %v6583 = vshrl.u32 %v6582, 7
    %v6584 = vsub.s32 4, %v6583
    %v6585 = vrot.slane %v6524, %v6584
    %v6586 = vlaneseq
    %v6587 = vshrl.u32 %v6586, 7
    %v6588 = vsub.s32 5, %v6587
    %v6589 = vrot.slane %v6524, %v6588
    %v6590 = vlaneseq
    %v6591 = vshrl.u32 %v6590, 7
    %v6592 = vsub.s32 6, %v6591
    %v6593 = vrot.slane %v6524, %v6592
    %v6594 = vlaneseq
    %v6595 = vshrl.u32 %v6594, 7
    %v6596 = vsub.s32 7, %v6595
    %v6597 = vrot.slane %v6524, %v6596
    %v6598 = vlaneseq
    %v6599 = vshrl.u32 %v6598, 7
    %v6600 = vsub.s32 0, %v6599
    %v6601 = vrot.slane %v6526, %v6600
    %v6602 = vlaneseq
    %v6603 = vshrl.u32 %v6602, 7
    %v6604 = vsub.s32 1, %v6603
    %v6605 = vrot.slane %v6526, %v6604
    %v6606 = vlaneseq
    %v6607 = vshrl.u32 %v6606, 7
    %v6608 = vsub.s32 2, %v6607
    %v6609 = vrot.slane %v6526, %v6608
    %v6610 = vlaneseq
    %v6611 = vshrl.u32 %v6610, 7
    %v6612 = vsub.s32 3, %v6611
    %v6613 = vrot.slane %v6526, %v6612
    %v6614 = vlaneseq
    %v6615 = vshrl.u32 %v6614, 7
    %v6616 = vsub.s32 4, %v6615
    %v6617 = vrot.slane %v6526, %v6616
    %v6618 = vlaneseq
    %v6619 = vshrl.u32 %v6618, 7
    %v6620 = vsub.s32 5, %v6619
    %v6621 = vrot.slane %v6526, %v6620
    %v6622 = vlaneseq
    %v6623 = vshrl.u32 %v6622, 7
    %v6624 = vsub.s32 6, %v6623
    %v6625 = vrot.slane %v6526, %v6624
    %v6626 = vlaneseq
    %v6627 = vshrl.u32 %v6626, 7
    %v6628 = vsub.s32 7, %v6627
    %v6629 = vrot.slane %v6526, %v6628
    %v6630 = vlaneseq
    %v6631 = vshrl.u32 %v6630, 7
    %v6632 = vsub.s32 0, %v6631
    %v6633 = vrot.slane %v6528, %v6632
    %v6634 = vlaneseq
    %v6635 = vshrl.u32 %v6634, 7
    %v6636 = vsub.s32 1, %v6635
    %v6637 = vrot.slane %v6528, %v6636
    %v6638 = vlaneseq
    %v6639 = vshrl.u32 %v6638, 7
    %v6640 = vsub.s32 2, %v6639
    %v6641 = vrot.slane %v6528, %v6640
    %v6642 = vlaneseq
    %v6643 = vshrl.u32 %v6642, 7
    %v6644 = vsub.s32 3, %v6643
    %v6645 = vrot.slane %v6528, %v6644
    %v6646 = vlaneseq
    %v6647 = vshrl.u32 %v6646, 7
    %v6648 = vsub.s32 4, %v6647
    %v6649 = vrot.slane %v6528, %v6648
    %v6680 = vsel %vm4209, %v6529, 0
    %6682 = vmatprep.subr.bf16.mxu0 %v6406
    %6683 = vmatpush1.bf16.msra.mxu0 %v6405
    %6684 = vmatprep.subr.bf16.mxu0 %v6435
    %6685 = vmatpush1.bf16.msra.mxu0 %v6434
    %6686 = vmatprep.subr.bf16.mxu0 %v6464
    %6687 = vmatpush1.bf16.msra.mxu0 %v6463
    %6688 = vmatprep.subr.bf16.mxu0 %v6493
    %6689 = vmatpush1.bf16.msra.mxu0 %v6492
    %6690 = vmatprep.subr.bf16.mxu0 0
    %6691 = vmatpush1.bf16.msra.mxu0 0
    %6692 = vmatprep.subr.bf16.mxu0 0
    %6693 = vmatpush1.bf16.msra.mxu0 0
    %6694 = vmatprep.subr.bf16.mxu0 0
    %6695 = vmatpush1.bf16.msra.mxu0 0
    %6696 = vmatprep.subr.bf16.mxu0 0
    %6697 = vmatpush1.bf16.msra.mxu0 0
    %6698 = vmatprep.subr.bf16.mxu0 0
    %6699 = vmatpush1.bf16.msra.mxu0 0
    %6700 = vmatprep.subr.bf16.mxu0 0
    %6701 = vmatpush1.bf16.msra.mxu0 0
    %6702 = vmatprep.subr.bf16.mxu0 0
    %6703 = vmatpush1.bf16.msra.mxu0 0
    %6704 = vmatprep.subr.bf16.mxu0 0
    %6705 = vmatpush1.bf16.msra.mxu0 0
    %6706 = vmatprep.subr.bf16.mxu0 0
    %6707 = vmatpush1.bf16.msra.mxu0 0
    %6708 = vmatprep.subr.bf16.mxu0 0
    %6709 = vmatpush1.bf16.msra.mxu0 0
    %6710 = vmatprep.subr.bf16.mxu0 0
    %6711 = vmatpush1.bf16.msra.mxu0 0
    %6712 = vmatprep.subr.bf16.mxu0 0
    %6713 = vmatpush1.bf16.msra.mxu0 0
    %6714 = vmatprep.mubr.bf16.mxu0 0
    %6715 = vmatmul.mubr.bf16.gmra.mrb[0].mxu0 %v6680
    %v6716 = vpop.f32.mrb[0].mxu0
    %v6717 = vadd.f32 %v6537, %v6716
    %v6718 = vpop.f32.mrb[0].mxu0
    %v6719 = vadd.f32 %v6541, %v6718
    %v6720 = vpop.f32.mrb[0].mxu0
    %v6721 = vpop.f32.mrb[0].mxu0
    %6722 = vdwg.mxu0
    %6723 = vmatprep.subr.bf16.mxu0 %v6408
    %6724 = vmatpush1.bf16.msra.mxu0 %v6407
    %6725 = vmatprep.subr.bf16.mxu0 %v6437
    %6726 = vmatpush1.bf16.msra.mxu0 %v6436
    %6727 = vmatprep.subr.bf16.mxu0 %v6466
    %6728 = vmatpush1.bf16.msra.mxu0 %v6465
    %6729 = vmatprep.subr.bf16.mxu0 %v6495
    %6730 = vmatpush1.bf16.msra.mxu0 %v6494
    %6731 = vmatprep.subr.bf16.mxu0 0
    %6732 = vmatpush1.bf16.msra.mxu0 0
    %6733 = vmatprep.subr.bf16.mxu0 0
    %6734 = vmatpush1.bf16.msra.mxu0 0
    %6735 = vmatprep.subr.bf16.mxu0 0
    %6736 = vmatpush1.bf16.msra.mxu0 0
    %6737 = vmatprep.subr.bf16.mxu0 0
    %6738 = vmatpush1.bf16.msra.mxu0 0
    %6739 = vmatprep.subr.bf16.mxu0 0
    %6740 = vmatpush1.bf16.msra.mxu0 0
    %6741 = vmatprep.subr.bf16.mxu0 0
    %6742 = vmatpush1.bf16.msra.mxu0 0
    %6743 = vmatprep.subr.bf16.mxu0 0
    %6744 = vmatpush1.bf16.msra.mxu0 0
    %6745 = vmatprep.subr.bf16.mxu0 0
    %6746 = vmatpush1.bf16.msra.mxu0 0
    %6747 = vmatprep.subr.bf16.mxu0 0
    %6748 = vmatpush1.bf16.msra.mxu0 0
    %6749 = vmatprep.subr.bf16.mxu0 0
    %6750 = vmatpush1.bf16.msra.mxu0 0
    %6751 = vmatprep.subr.bf16.mxu0 0
    %6752 = vmatpush1.bf16.msra.mxu0 0
    %6753 = vmatprep.subr.bf16.mxu0 0
    %6754 = vmatpush1.bf16.msra.mxu0 0
    %6755 = vmatprep.mubr.bf16.mxu0 0
    %6756 = vmatmul.mubr.bf16.gmra.mrb[0].mxu0 %v6680
    %v6757 = vpop.f32.mrb[0].mxu0
    %v6758 = vadd.f32 %v6545, %v6757
    %v6759 = vpop.f32.mrb[0].mxu0
    %v6760 = vadd.f32 %v6549, %v6759
    %v6761 = vpop.f32.mrb[0].mxu0
    %v6762 = vpop.f32.mrb[0].mxu0
    %6763 = vdwg.mxu0
    %6764 = vmatprep.subr.bf16.mxu0 %v6410
    %6765 = vmatpush1.bf16.msra.mxu0 %v6409
    %6766 = vmatprep.subr.bf16.mxu0 %v6439
    %6767 = vmatpush1.bf16.msra.mxu0 %v6438
    %6768 = vmatprep.subr.bf16.mxu0 %v6468
    %6769 = vmatpush1.bf16.msra.mxu0 %v6467
    %6770 = vmatprep.subr.bf16.mxu0 %v6497
    %6771 = vmatpush1.bf16.msra.mxu0 %v6496
    %6772 = vmatprep.subr.bf16.mxu0 0
    %6773 = vmatpush1.bf16.msra.mxu0 0
    %6774 = vmatprep.subr.bf16.mxu0 0
    %6775 = vmatpush1.bf16.msra.mxu0 0
    %6776 = vmatprep.subr.bf16.mxu0 0
    %6777 = vmatpush1.bf16.msra.mxu0 0
    %6778 = vmatprep.subr.bf16.mxu0 0
    %6779 = vmatpush1.bf16.msra.mxu0 0
    %6780 = vmatprep.subr.bf16.mxu0 0
    %6781 = vmatpush1.bf16.msra.mxu0 0
    %6782 = vmatprep.subr.bf16.mxu0 0
    %6783 = vmatpush1.bf16.msra.mxu0 0
    %6784 = vmatprep.subr.bf16.mxu0 0
    %6785 = vmatpush1.bf16.msra.mxu0 0
    %6786 = vmatprep.subr.bf16.mxu0 0
    %6787 = vmatpush1.bf16.msra.mxu0 0
    %6788 = vmatprep.subr.bf16.mxu0 0
    %6789 = vmatpush1.bf16.msra.mxu0 0
    %6790 = vmatprep.subr.bf16.mxu0 0
    %6791 = vmatpush1.bf16.msra.mxu0 0
    %6792 = vmatprep.subr.bf16.mxu0 0
    %6793 = vmatpush1.bf16.msra.mxu0 0
    %6794 = vmatprep.subr.bf16.mxu0 0
    %6795 = vmatpush1.bf16.msra.mxu0 0
    %6796 = vmatprep.mubr.bf16.mxu0 0
    %6797 = vmatmul.mubr.bf16.gmra.mrb[0].mxu0 %v6680
    %v6798 = vpop.f32.mrb[0].mxu0
    %v6799 = vadd.f32 %v6553, %v6798
    %v6800 = vpop.f32.mrb[0].mxu0
    %v6801 = vadd.f32 %v6557, %v6800
    %v6802 = vpop.f32.mrb[0].mxu0
    %v6803 = vpop.f32.mrb[0].mxu0
    %6804 = vdwg.mxu0
    %6805 = vmatprep.subr.bf16.mxu0 %v6412
    %6806 = vmatpush1.bf16.msra.mxu0 %v6411
    %6807 = vmatprep.subr.bf16.mxu0 %v6441
    %6808 = vmatpush1.bf16.msra.mxu0 %v6440
    %6809 = vmatprep.subr.bf16.mxu0 %v6470
    %6810 = vmatpush1.bf16.msra.mxu0 %v6469
    %6811 = vmatprep.subr.bf16.mxu0 %v6499
    %6812 = vmatpush1.bf16.msra.mxu0 %v6498
    %6813 = vmatprep.subr.bf16.mxu0 0
    %6814 = vmatpush1.bf16.msra.mxu0 0
    %6815 = vmatprep.subr.bf16.mxu0 0
    %6816 = vmatpush1.bf16.msra.mxu0 0
    %6817 = vmatprep.subr.bf16.mxu0 0
    %6818 = vmatpush1.bf16.msra.mxu0 0
    %6819 = vmatprep.subr.bf16.mxu0 0
    %6820 = vmatpush1.bf16.msra.mxu0 0
    %6821 = vmatprep.subr.bf16.mxu0 0
    %6822 = vmatpush1.bf16.msra.mxu0 0
    %6823 = vmatprep.subr.bf16.mxu0 0
    %6824 = vmatpush1.bf16.msra.mxu0 0
    %6825 = vmatprep.subr.bf16.mxu0 0
    %6826 = vmatpush1.bf16.msra.mxu0 0
    %6827 = vmatprep.subr.bf16.mxu0 0
    %6828 = vmatpush1.bf16.msra.mxu0 0
    %6829 = vmatprep.subr.bf16.mxu0 0
    %6830 = vmatpush1.bf16.msra.mxu0 0
    %6831 = vmatprep.subr.bf16.mxu0 0
    %6832 = vmatpush1.bf16.msra.mxu0 0
    %6833 = vmatprep.subr.bf16.mxu0 0
    %6834 = vmatpush1.bf16.msra.mxu0 0
    %6835 = vmatprep.subr.bf16.mxu0 0
    %6836 = vmatpush1.bf16.msra.mxu0 0
    %6837 = vmatprep.mubr.bf16.mxu0 0
    %6838 = vmatmul.mubr.bf16.gmra.mrb[0].mxu0 %v6680
    %v6839 = vpop.f32.mrb[0].mxu0
    %v6840 = vadd.f32 %v6561, %v6839
    %v6841 = vpop.f32.mrb[0].mxu0
    %v6842 = vadd.f32 %v6565, %v6841
    %v6843 = vpop.f32.mrb[0].mxu0
    %v6844 = vpop.f32.mrb[0].mxu0
    %6845 = vdwg.mxu0
    %6846 = vmatprep.subr.bf16.mxu0 %v6414
    %6847 = vmatpush1.bf16.msra.mxu0 %v6413
    %6848 = vmatprep.subr.bf16.mxu0 %v6443
    %6849 = vmatpush1.bf16.msra.mxu0 %v6442
    %6850 = vmatprep.subr.bf16.mxu0 %v6472
    %6851 = vmatpush1.bf16.msra.mxu0 %v6471
    %6852 = vmatprep.subr.bf16.mxu0 %v6501
    %6853 = vmatpush1.bf16.msra.mxu0 %v6500
    %6854 = vmatprep.subr.bf16.mxu0 0
    %6855 = vmatpush1.bf16.msra.mxu0 0
    %6856 = vmatprep.subr.bf16.mxu0 0
    %6857 = vmatpush1.bf16.msra.mxu0 0
    %6858 = vmatprep.subr.bf16.mxu0 0
    %6859 = vmatpush1.bf16.msra.mxu0 0
    %6860 = vmatprep.subr.bf16.mxu0 0
    %6861 = vmatpush1.bf16.msra.mxu0 0
    %6862 = vmatprep.subr.bf16.mxu0 0
    %6863 = vmatpush1.bf16.msra.mxu0 0
    %6864 = vmatprep.subr.bf16.mxu0 0
    %6865 = vmatpush1.bf16.msra.mxu0 0
    %6866 = vmatprep.subr.bf16.mxu0 0
    %6867 = vmatpush1.bf16.msra.mxu0 0
    %6868 = vmatprep.subr.bf16.mxu0 0
    %6869 = vmatpush1.bf16.msra.mxu0 0
    %6870 = vmatprep.subr.bf16.mxu0 0
    %6871 = vmatpush1.bf16.msra.mxu0 0
    %6872 = vmatprep.subr.bf16.mxu0 0
    %6873 = vmatpush1.bf16.msra.mxu0 0
    %6874 = vmatprep.subr.bf16.mxu0 0
    %6875 = vmatpush1.bf16.msra.mxu0 0
    %6876 = vmatprep.subr.bf16.mxu0 0
    %6877 = vmatpush1.bf16.msra.mxu0 0
    %6878 = vmatprep.mubr.bf16.mxu0 0
    %6879 = vmatmul.mubr.bf16.gmra.mrb[0].mxu0 %v6680
    %v6880 = vpop.f32.mrb[0].mxu0
    %v6881 = vadd.f32 %v6569, %v6880
    %v6882 = vpop.f32.mrb[0].mxu0
    %v6883 = vadd.f32 %v6573, %v6882
    %v6884 = vpop.f32.mrb[0].mxu0
    %v6885 = vpop.f32.mrb[0].mxu0
    %6886 = vdwg.mxu0
    %6887 = vmatprep.subr.bf16.mxu0 %v6416
    %6888 = vmatpush1.bf16.msra.mxu0 %v6415
    %6889 = vmatprep.subr.bf16.mxu0 %v6445
    %6890 = vmatpush1.bf16.msra.mxu0 %v6444
    %6891 = vmatprep.subr.bf16.mxu0 %v6474
    %6892 = vmatpush1.bf16.msra.mxu0 %v6473
    %6893 = vmatprep.subr.bf16.mxu0 %v6503
    %6894 = vmatpush1.bf16.msra.mxu0 %v6502
    %6895 = vmatprep.subr.bf16.mxu0 0
    %6896 = vmatpush1.bf16.msra.mxu0 0
    %6897 = vmatprep.subr.bf16.mxu0 0
    %6898 = vmatpush1.bf16.msra.mxu0 0
    %6899 = vmatprep.subr.bf16.mxu0 0
    %6900 = vmatpush1.bf16.msra.mxu0 0
    %6901 = vmatprep.subr.bf16.mxu0 0
    %6902 = vmatpush1.bf16.msra.mxu0 0
    %6903 = vmatprep.subr.bf16.mxu0 0
    %6904 = vmatpush1.bf16.msra.mxu0 0
    %6905 = vmatprep.subr.bf16.mxu0 0
    %6906 = vmatpush1.bf16.msra.mxu0 0
    %6907 = vmatprep.subr.bf16.mxu0 0
    %6908 = vmatpush1.bf16.msra.mxu0 0
    %6909 = vmatprep.subr.bf16.mxu0 0
    %6910 = vmatpush1.bf16.msra.mxu0 0
    %6911 = vmatprep.subr.bf16.mxu0 0
    %6912 = vmatpush1.bf16.msra.mxu0 0
    %6913 = vmatprep.subr.bf16.mxu0 0
    %6914 = vmatpush1.bf16.msra.mxu0 0
    %6915 = vmatprep.subr.bf16.mxu0 0
    %6916 = vmatpush1.bf16.msra.mxu0 0
    %6917 = vmatprep.subr.bf16.mxu0 0
    %6918 = vmatpush1.bf16.msra.mxu0 0
    %6919 = vmatprep.mubr.bf16.mxu0 0
    %6920 = vmatmul.mubr.bf16.gmra.mrb[0].mxu0 %v6680
    %v6921 = vpop.f32.mrb[0].mxu0
    %v6922 = vadd.f32 %v6577, %v6921
    %v6923 = vpop.f32.mrb[0].mxu0
    %v6924 = vadd.f32 %v6581, %v6923
    %v6925 = vpop.f32.mrb[0].mxu0
    %v6926 = vpop.f32.mrb[0].mxu0
    %6927 = vdwg.mxu0
    %6928 = vmatprep.subr.bf16.mxu0 %v6418
    %6929 = vmatpush1.bf16.msra.mxu0 %v6417
    %6930 = vmatprep.subr.bf16.mxu0 %v6447
    %6931 = vmatpush1.bf16.msra.mxu0 %v6446
    %6932 = vmatprep.subr.bf16.mxu0 %v6476
    %6933 = vmatpush1.bf16.msra.mxu0 %v6475
    %6934 = vmatprep.subr.bf16.mxu0 %v6505
    %6935 = vmatpush1.bf16.msra.mxu0 %v6504
    %6936 = vmatprep.subr.bf16.mxu0 0
    %6937 = vmatpush1.bf16.msra.mxu0 0
    %6938 = vmatprep.subr.bf16.mxu0 0
    %6939 = vmatpush1.bf16.msra.mxu0 0
    %6940 = vmatprep.subr.bf16.mxu0 0
    %6941 = vmatpush1.bf16.msra.mxu0 0
    %6942 = vmatprep.subr.bf16.mxu0 0
    %6943 = vmatpush1.bf16.msra.mxu0 0
    %6944 = vmatprep.subr.bf16.mxu0 0
    %6945 = vmatpush1.bf16.msra.mxu0 0
    %6946 = vmatprep.subr.bf16.mxu0 0
    %6947 = vmatpush1.bf16.msra.mxu0 0
    %6948 = vmatprep.subr.bf16.mxu0 0
    %6949 = vmatpush1.bf16.msra.mxu0 0
    %6950 = vmatprep.subr.bf16.mxu0 0
    %6951 = vmatpush1.bf16.msra.mxu0 0
    %6952 = vmatprep.subr.bf16.mxu0 0
    %6953 = vmatpush1.bf16.msra.mxu0 0
    %6954 = vmatprep.subr.bf16.mxu0 0
    %6955 = vmatpush1.bf16.msra.mxu0 0
    %6956 = vmatprep.subr.bf16.mxu0 0
    %6957 = vmatpush1.bf16.msra.mxu0 0
    %6958 = vmatprep.subr.bf16.mxu0 0
    %6959 = vmatpush1.bf16.msra.mxu0 0
    %6960 = vmatprep.mubr.bf16.mxu0 0
    %6961 = vmatmul.mubr.bf16.gmra.mrb[0].mxu0 %v6680
    %v6962 = vpop.f32.mrb[0].mxu0
    %v6963 = vadd.f32 %v6585, %v6962
    %v6964 = vpop.f32.mrb[0].mxu0
    %v6965 = vadd.f32 %v6589, %v6964
    %v6966 = vpop.f32.mrb[0].mxu0
    %v6967 = vpop.f32.mrb[0].mxu0
    %6968 = vdwg.mxu0
    %6969 = vmatprep.subr.bf16.mxu0 %v6420
    %6970 = vmatpush1.bf16.msra.mxu0 %v6419
    %6971 = vmatprep.subr.bf16.mxu0 %v6449
    %6972 = vmatpush1.bf16.msra.mxu0 %v6448
    %6973 = vmatprep.subr.bf16.mxu0 %v6478
    %6974 = vmatpush1.bf16.msra.mxu0 %v6477
    %6975 = vmatprep.subr.bf16.mxu0 %v6507
    %6976 = vmatpush1.bf16.msra.mxu0 %v6506
    %6977 = vmatprep.subr.bf16.mxu0 0
    %6978 = vmatpush1.bf16.msra.mxu0 0
    %6979 = vmatprep.subr.bf16.mxu0 0
    %6980 = vmatpush1.bf16.msra.mxu0 0
    %6981 = vmatprep.subr.bf16.mxu0 0
    %6982 = vmatpush1.bf16.msra.mxu0 0
    %6983 = vmatprep.subr.bf16.mxu0 0
    %6984 = vmatpush1.bf16.msra.mxu0 0
    %6985 = vmatprep.subr.bf16.mxu0 0
    %6986 = vmatpush1.bf16.msra.mxu0 0
    %6987 = vmatprep.subr.bf16.mxu0 0
    %6988 = vmatpush1.bf16.msra.mxu0 0
    %6989 = vmatprep.subr.bf16.mxu0 0
    %6990 = vmatpush1.bf16.msra.mxu0 0
    %6991 = vmatprep.subr.bf16.mxu0 0
    %6992 = vmatpush1.bf16.msra.mxu0 0
    %6993 = vmatprep.subr.bf16.mxu0 0
    %6994 = vmatpush1.bf16.msra.mxu0 0
    %6995 = vmatprep.subr.bf16.mxu0 0
    %6996 = vmatpush1.bf16.msra.mxu0 0
    %6997 = vmatprep.subr.bf16.mxu0 0
    %6998 = vmatpush1.bf16.msra.mxu0 0
    %6999 = vmatprep.subr.bf16.mxu0 0
    %7000 = vmatpush1.bf16.msra.mxu0 0
    %7001 = vmatprep.mubr.bf16.mxu0 0
    %7002 = vmatmul.mubr.bf16.gmra.mrb[0].mxu0 %v6680
    %v7003 = vpop.f32.mrb[0].mxu0
    %v7004 = vadd.f32 %v6593, %v7003
    %v7005 = vpop.f32.mrb[0].mxu0
    %v7006 = vadd.f32 %v6597, %v7005
    %v7007 = vpop.f32.mrb[0].mxu0
    %v7008 = vpop.f32.mrb[0].mxu0
    %7009 = vdwg.mxu0
    %7010 = vmatprep.subr.bf16.mxu0 %v6422
    %7011 = vmatpush1.bf16.msra.mxu0 %v6421
    %7012 = vmatprep.subr.bf16.mxu0 %v6451
    %7013 = vmatpush1.bf16.msra.mxu0 %v6450
    %7014 = vmatprep.subr.bf16.mxu0 %v6480
    %7015 = vmatpush1.bf16.msra.mxu0 %v6479
    %7016 = vmatprep.subr.bf16.mxu0 %v6509
    %7017 = vmatpush1.bf16.msra.mxu0 %v6508
    %7018 = vmatprep.subr.bf16.mxu0 0
    %7019 = vmatpush1.bf16.msra.mxu0 0
    %7020 = vmatprep.subr.bf16.mxu0 0
    %7021 = vmatpush1.bf16.msra.mxu0 0
    %7022 = vmatprep.subr.bf16.mxu0 0
    %7023 = vmatpush1.bf16.msra.mxu0 0
    %7024 = vmatprep.subr.bf16.mxu0 0
    %7025 = vmatpush1.bf16.msra.mxu0 0
    %7026 = vmatprep.subr.bf16.mxu0 0
    %7027 = vmatpush1.bf16.msra.mxu0 0
    %7028 = vmatprep.subr.bf16.mxu0 0
    %7029 = vmatpush1.bf16.msra.mxu0 0
    %7030 = vmatprep.subr.bf16.mxu0 0
    %7031 = vmatpush1.bf16.msra.mxu0 0
    %7032 = vmatprep.subr.bf16.mxu0 0
    %7033 = vmatpush1.bf16.msra.mxu0 0
    %7034 = vmatprep.subr.bf16.mxu0 0
    %7035 = vmatpush1.bf16.msra.mxu0 0
    %7036 = vmatprep.subr.bf16.mxu0 0
    %7037 = vmatpush1.bf16.msra.mxu0 0
    %7038 = vmatprep.subr.bf16.mxu0 0
    %7039 = vmatpush1.bf16.msra.mxu0 0
    %7040 = vmatprep.subr.bf16.mxu0 0
    %7041 = vmatpush1.bf16.msra.mxu0 0
    %7042 = vmatprep.mubr.bf16.mxu0 0
    %7043 = vmatmul.mubr.bf16.gmra.mrb[0].mxu0 %v6680
    %v7044 = vpop.f32.mrb[0].mxu0
    %v7045 = vadd.f32 %v6601, %v7044
    %v7046 = vpop.f32.mrb[0].mxu0
    %v7047 = vadd.f32 %v6605, %v7046
    %v7048 = vpop.f32.mrb[0].mxu0
    %v7049 = vpop.f32.mrb[0].mxu0
    %7050 = vdwg.mxu0
    %7051 = vmatprep.subr.bf16.mxu0 %v6424
    %7052 = vmatpush1.bf16.msra.mxu0 %v6423
    %7053 = vmatprep.subr.bf16.mxu0 %v6453
    %7054 = vmatpush1.bf16.msra.mxu0 %v6452
    %7055 = vmatprep.subr.bf16.mxu0 %v6482
    %7056 = vmatpush1.bf16.msra.mxu0 %v6481
    %7057 = vmatprep.subr.bf16.mxu0 %v6511
    %7058 = vmatpush1.bf16.msra.mxu0 %v6510
    %7059 = vmatprep.subr.bf16.mxu0 0
    %7060 = vmatpush1.bf16.msra.mxu0 0
    %7061 = vmatprep.subr.bf16.mxu0 0
    %7062 = vmatpush1.bf16.msra.mxu0 0
    %7063 = vmatprep.subr.bf16.mxu0 0
    %7064 = vmatpush1.bf16.msra.mxu0 0
    %7065 = vmatprep.subr.bf16.mxu0 0
    %7066 = vmatpush1.bf16.msra.mxu0 0
    %7067 = vmatprep.subr.bf16.mxu0 0
    %7068 = vmatpush1.bf16.msra.mxu0 0
    %7069 = vmatprep.subr.bf16.mxu0 0
    %7070 = vmatpush1.bf16.msra.mxu0 0
    %7071 = vmatprep.subr.bf16.mxu0 0
    %7072 = vmatpush1.bf16.msra.mxu0 0
    %7073 = vmatprep.subr.bf16.mxu0 0
    %7074 = vmatpush1.bf16.msra.mxu0 0
    %7075 = vmatprep.subr.bf16.mxu0 0
    %7076 = vmatpush1.bf16.msra.mxu0 0
    %7077 = vmatprep.subr.bf16.mxu0 0
    %7078 = vmatpush1.bf16.msra.mxu0 0
    %7079 = vmatprep.subr.bf16.mxu0 0
    %7080 = vmatpush1.bf16.msra.mxu0 0
    %7081 = vmatprep.subr.bf16.mxu0 0
    %7082 = vmatpush1.bf16.msra.mxu0 0
    %7083 = vmatprep.mubr.bf16.mxu0 0
    %7084 = vmatmul.mubr.bf16.gmra.mrb[0].mxu0 %v6680
    %v7085 = vpop.f32.mrb[0].mxu0
    %v7086 = vadd.f32 %v6609, %v7085
    %v7087 = vpop.f32.mrb[0].mxu0
    %v7088 = vadd.f32 %v6613, %v7087
    %v7089 = vpop.f32.mrb[0].mxu0
    %v7090 = vpop.f32.mrb[0].mxu0
    %7091 = vdwg.mxu0
    %7092 = vmatprep.subr.bf16.mxu0 %v6426
    %7093 = vmatpush1.bf16.msra.mxu0 %v6425
    %7094 = vmatprep.subr.bf16.mxu0 %v6455
    %7095 = vmatpush1.bf16.msra.mxu0 %v6454
    %7096 = vmatprep.subr.bf16.mxu0 %v6484
    %7097 = vmatpush1.bf16.msra.mxu0 %v6483
    %7098 = vmatprep.subr.bf16.mxu0 %v6513
    %7099 = vmatpush1.bf16.msra.mxu0 %v6512
    %7100 = vmatprep.subr.bf16.mxu0 0
    %7101 = vmatpush1.bf16.msra.mxu0 0
    %7102 = vmatprep.subr.bf16.mxu0 0
    %7103 = vmatpush1.bf16.msra.mxu0 0
    %7104 = vmatprep.subr.bf16.mxu0 0
    %7105 = vmatpush1.bf16.msra.mxu0 0
    %7106 = vmatprep.subr.bf16.mxu0 0
    %7107 = vmatpush1.bf16.msra.mxu0 0
    %7108 = vmatprep.subr.bf16.mxu0 0
    %7109 = vmatpush1.bf16.msra.mxu0 0
    %7110 = vmatprep.subr.bf16.mxu0 0
    %7111 = vmatpush1.bf16.msra.mxu0 0
    %7112 = vmatprep.subr.bf16.mxu0 0
    %7113 = vmatpush1.bf16.msra.mxu0 0
    %7114 = vmatprep.subr.bf16.mxu0 0
    %7115 = vmatpush1.bf16.msra.mxu0 0
    %7116 = vmatprep.subr.bf16.mxu0 0
    %7117 = vmatpush1.bf16.msra.mxu0 0
    %7118 = vmatprep.subr.bf16.mxu0 0
    %7119 = vmatpush1.bf16.msra.mxu0 0
    %7120 = vmatprep.subr.bf16.mxu0 0
    %7121 = vmatpush1.bf16.msra.mxu0 0
    %7122 = vmatprep.subr.bf16.mxu0 0
    %7123 = vmatpush1.bf16.msra.mxu0 0
    %7124 = vmatprep.mubr.bf16.mxu0 0
    %7125 = vmatmul.mubr.bf16.gmra.mrb[0].mxu0 %v6680
    %v7126 = vpop.f32.mrb[0].mxu0
    %v7127 = vadd.f32 %v6617, %v7126
    %v7128 = vpop.f32.mrb[0].mxu0
    %v7129 = vadd.f32 %v6621, %v7128
    %v7130 = vpop.f32.mrb[0].mxu0
    %v7131 = vpop.f32.mrb[0].mxu0
    %7132 = vdwg.mxu0
    %7133 = vmatprep.subr.bf16.mxu0 %v6428
    %7134 = vmatpush1.bf16.msra.mxu0 %v6427
    %7135 = vmatprep.subr.bf16.mxu0 %v6457
    %7136 = vmatpush1.bf16.msra.mxu0 %v6456
    %7137 = vmatprep.subr.bf16.mxu0 %v6486
    %7138 = vmatpush1.bf16.msra.mxu0 %v6485
    %7139 = vmatprep.subr.bf16.mxu0 %v6515
    %7140 = vmatpush1.bf16.msra.mxu0 %v6514
    %7141 = vmatprep.subr.bf16.mxu0 0
    %7142 = vmatpush1.bf16.msra.mxu0 0
    %7143 = vmatprep.subr.bf16.mxu0 0
    %7144 = vmatpush1.bf16.msra.mxu0 0
    %7145 = vmatprep.subr.bf16.mxu0 0
    %7146 = vmatpush1.bf16.msra.mxu0 0
    %7147 = vmatprep.subr.bf16.mxu0 0
    %7148 = vmatpush1.bf16.msra.mxu0 0
    %7149 = vmatprep.subr.bf16.mxu0 0
    %7150 = vmatpush1.bf16.msra.mxu0 0
    %7151 = vmatprep.subr.bf16.mxu0 0
    %7152 = vmatpush1.bf16.msra.mxu0 0
    %7153 = vmatprep.subr.bf16.mxu0 0
    %7154 = vmatpush1.bf16.msra.mxu0 0
    %7155 = vmatprep.subr.bf16.mxu0 0
    %7156 = vmatpush1.bf16.msra.mxu0 0
    %7157 = vmatprep.subr.bf16.mxu0 0
    %7158 = vmatpush1.bf16.msra.mxu0 0
    %7159 = vmatprep.subr.bf16.mxu0 0
    %7160 = vmatpush1.bf16.msra.mxu0 0
    %7161 = vmatprep.subr.bf16.mxu0 0
    %7162 = vmatpush1.bf16.msra.mxu0 0
    %7163 = vmatprep.subr.bf16.mxu0 0
    %7164 = vmatpush1.bf16.msra.mxu0 0
    %7165 = vmatprep.mubr.bf16.mxu0 0
    %7166 = vmatmul.mubr.bf16.gmra.mrb[0].mxu0 %v6680
    %v7167 = vpop.f32.mrb[0].mxu0
    %v7168 = vadd.f32 %v6625, %v7167
    %v7169 = vpop.f32.mrb[0].mxu0
    %v7170 = vadd.f32 %v6629, %v7169
    %v7171 = vpop.f32.mrb[0].mxu0
    %v7172 = vpop.f32.mrb[0].mxu0
    %7173 = vdwg.mxu0
    %7174 = vmatprep.subr.bf16.mxu0 %v6430
    %7175 = vmatpush1.bf16.msra.mxu0 %v6429
    %7176 = vmatprep.subr.bf16.mxu0 %v6459
    %7177 = vmatpush1.bf16.msra.mxu0 %v6458
    %7178 = vmatprep.subr.bf16.mxu0 %v6488
    %7179 = vmatpush1.bf16.msra.mxu0 %v6487
    %7180 = vmatprep.subr.bf16.mxu0 %v6517
    %7181 = vmatpush1.bf16.msra.mxu0 %v6516
    %7182 = vmatprep.subr.bf16.mxu0 0
    %7183 = vmatpush1.bf16.msra.mxu0 0
    %7184 = vmatprep.subr.bf16.mxu0 0
    %7185 = vmatpush1.bf16.msra.mxu0 0
    %7186 = vmatprep.subr.bf16.mxu0 0
    %7187 = vmatpush1.bf16.msra.mxu0 0
    %7188 = vmatprep.subr.bf16.mxu0 0
    %7189 = vmatpush1.bf16.msra.mxu0 0
    %7190 = vmatprep.subr.bf16.mxu0 0
    %7191 = vmatpush1.bf16.msra.mxu0 0
    %7192 = vmatprep.subr.bf16.mxu0 0
    %7193 = vmatpush1.bf16.msra.mxu0 0
    %7194 = vmatprep.subr.bf16.mxu0 0
    %7195 = vmatpush1.bf16.msra.mxu0 0
    %7196 = vmatprep.subr.bf16.mxu0 0
    %7197 = vmatpush1.bf16.msra.mxu0 0
    %7198 = vmatprep.subr.bf16.mxu0 0
    %7199 = vmatpush1.bf16.msra.mxu0 0
    %7200 = vmatprep.subr.bf16.mxu0 0
    %7201 = vmatpush1.bf16.msra.mxu0 0
    %7202 = vmatprep.subr.bf16.mxu0 0
    %7203 = vmatpush1.bf16.msra.mxu0 0
    %7204 = vmatprep.subr.bf16.mxu0 0
    %7205 = vmatpush1.bf16.msra.mxu0 0
    %7206 = vmatprep.mubr.bf16.mxu0 0
    %7207 = vmatmul.mubr.bf16.gmra.mrb[0].mxu0 %v6680
    %v7208 = vpop.f32.mrb[0].mxu0
    %v7209 = vadd.f32 %v6633, %v7208
    %v7210 = vpop.f32.mrb[0].mxu0
    %v7211 = vadd.f32 %v6637, %v7210
    %v7212 = vpop.f32.mrb[0].mxu0
    %v7213 = vpop.f32.mrb[0].mxu0
    %7214 = vdwg.mxu0
    %7215 = vmatprep.subr.bf16.mxu0 %v6432
    %7216 = vmatpush1.bf16.msra.mxu0 %v6431
    %7217 = vmatprep.subr.bf16.mxu0 %v6461
    %7218 = vmatpush1.bf16.msra.mxu0 %v6460
    %7219 = vmatprep.subr.bf16.mxu0 %v6490
    %7220 = vmatpush1.bf16.msra.mxu0 %v6489
    %7221 = vmatprep.subr.bf16.mxu0 %v6519
    %7222 = vmatpush1.bf16.msra.mxu0 %v6518
    %7223 = vmatprep.subr.bf16.mxu0 0
    %7224 = vmatpush1.bf16.msra.mxu0 0
    %7225 = vmatprep.subr.bf16.mxu0 0
    %7226 = vmatpush1.bf16.msra.mxu0 0
    %7227 = vmatprep.subr.bf16.mxu0 0
    %7228 = vmatpush1.bf16.msra.mxu0 0
    %7229 = vmatprep.subr.bf16.mxu0 0
    %7230 = vmatpush1.bf16.msra.mxu0 0
    %7231 = vmatprep.subr.bf16.mxu0 0
    %7232 = vmatpush1.bf16.msra.mxu0 0
    %7233 = vmatprep.subr.bf16.mxu0 0
    %7234 = vmatpush1.bf16.msra.mxu0 0
    %7235 = vmatprep.subr.bf16.mxu0 0
    %7236 = vmatpush1.bf16.msra.mxu0 0
    %7237 = vmatprep.subr.bf16.mxu0 0
    %7238 = vmatpush1.bf16.msra.mxu0 0
    %7239 = vmatprep.subr.bf16.mxu0 0
    %7240 = vmatpush1.bf16.msra.mxu0 0
    %7241 = vmatprep.subr.bf16.mxu0 0
    %7242 = vmatpush1.bf16.msra.mxu0 0
    %7243 = vmatprep.subr.bf16.mxu0 0
    %7244 = vmatpush1.bf16.msra.mxu0 0
    %7245 = vmatprep.subr.bf16.mxu0 0
    %7246 = vmatpush1.bf16.msra.mxu0 0
    %7247 = vmatprep.mubr.bf16.mxu0 0
    %7248 = vmatmul.mubr.bf16.gmra.mrb[0].mxu0 %v6680
    %v7249 = vpop.f32.mrb[0].mxu0
    %v7250 = vadd.f32 %v6641, %v7249
    %v7251 = vpop.f32.mrb[0].mxu0
    %v7252 = vadd.f32 %v6645, %v7251
    %v7253 = vpop.f32.mrb[0].mxu0
    %v7254 = vpop.f32.mrb[0].mxu0
    %7255 = vdwg.mxu0
    %7256 = vmatprep.subr.bf16.mxu0 0
    %7257 = vmatpush1.bf16.msra.mxu0 %v6433
    %7258 = vmatprep.subr.bf16.mxu0 0
    %7259 = vmatpush1.bf16.msra.mxu0 %v6462
    %7260 = vmatprep.subr.bf16.mxu0 0
    %7261 = vmatpush1.bf16.msra.mxu0 %v6491
    %7262 = vmatprep.subr.bf16.mxu0 0
    %7263 = vmatpush1.bf16.msra.mxu0 %v6520
    %7264 = vmatprep.subr.bf16.mxu0 0
    %7265 = vmatpush1.bf16.msra.mxu0 0
    %7266 = vmatprep.subr.bf16.mxu0 0
    %7267 = vmatpush1.bf16.msra.mxu0 0
    %7268 = vmatprep.subr.bf16.mxu0 0
    %7269 = vmatpush1.bf16.msra.mxu0 0
    %7270 = vmatprep.subr.bf16.mxu0 0
    %7271 = vmatpush1.bf16.msra.mxu0 0
    %7272 = vmatprep.subr.bf16.mxu0 0
    %7273 = vmatpush1.bf16.msra.mxu0 0
    %7274 = vmatprep.subr.bf16.mxu0 0
    %7275 = vmatpush1.bf16.msra.mxu0 0
    %7276 = vmatprep.subr.bf16.mxu0 0
    %7277 = vmatpush1.bf16.msra.mxu0 0
    %7278 = vmatprep.subr.bf16.mxu0 0
    %7279 = vmatpush1.bf16.msra.mxu0 0
    %7280 = vmatprep.subr.bf16.mxu0 0
    %7281 = vmatpush1.bf16.msra.mxu0 0
    %7282 = vmatprep.subr.bf16.mxu0 0
    %7283 = vmatpush1.bf16.msra.mxu0 0
    %7284 = vmatprep.subr.bf16.mxu0 0
    %7285 = vmatpush1.bf16.msra.mxu0 0
    %7286 = vmatprep.subr.bf16.mxu0 0
    %7287 = vmatpush1.bf16.msra.mxu0 0
    %7288 = vmatprep.mubr.bf16.mxu0 0
    %7289 = vmatmul.mubr.bf16.gmra.mrb[0].mxu0 %v6680
    %v7290 = vpop.f32.mrb[0].mxu0
    %v7291 = vadd.f32 %v6649, %v7290
    %v7292 = vpop.f32.mrb[0].mxu0
    %v7293 = vpop.f32.mrb[0].mxu0
    %v7294 = vpop.f32.mrb[0].mxu0
    %7295 = vdwg.mxu0
    %v7296 = vxor.u32 %v6717, 2147483648
    %v7297 = vxor.u32 %v6719, 2147483648
    %v7298 = vxor.u32 %v6758, 2147483648
    %v7299 = vxor.u32 %v6760, 2147483648
    %v7300 = vxor.u32 %v6799, 2147483648
    %v7301 = vxor.u32 %v6801, 2147483648
    %v7302 = vxor.u32 %v6840, 2147483648
    %v7303 = vxor.u32 %v6842, 2147483648
    %v7304 = vxor.u32 %v6881, 2147483648
    %v7305 = vxor.u32 %v6883, 2147483648
    %v7306 = vxor.u32 %v6922, 2147483648
    %v7307 = vxor.u32 %v6924, 2147483648
    %v7308 = vxor.u32 %v6963, 2147483648
    %v7309 = vxor.u32 %v6965, 2147483648
    %v7310 = vxor.u32 %v7004, 2147483648
    %v7311 = vxor.u32 %v7006, 2147483648
    %v7312 = vxor.u32 %v7045, 2147483648
    %v7313 = vxor.u32 %v7047, 2147483648
    %v7314 = vxor.u32 %v7086, 2147483648
    %v7315 = vxor.u32 %v7088, 2147483648
    %v7316 = vxor.u32 %v7127, 2147483648
    %v7317 = vxor.u32 %v7129, 2147483648
    %v7318 = vxor.u32 %v7168, 2147483648
    %v7319 = vxor.u32 %v7170, 2147483648
    %v7320 = vxor.u32 %v7209, 2147483648
    %v7321 = vxor.u32 %v7211, 2147483648
    %v7322 = vxor.u32 %v7250, 2147483648
    %v7323 = vxor.u32 %v7252, 2147483648
    %v7324 = vxor.u32 %v7291, 2147483648
    %v7325 = vmul.f32 %v7296, 1.442695
    %v7326 = vpow.pop %v7325
    %v7327 = vmul.f32 %v7297, 1.442695
    %v7328 = vpow.pop %v7327
    %v7329 = vmul.f32 %v7298, 1.442695
    %v7330 = vpow.pop %v7329
    %v7331 = vmul.f32 %v7299, 1.442695
    %v7332 = vpow.pop %v7331
    %v7333 = vmul.f32 %v7300, 1.442695
    %v7334 = vpow.pop %v7333
    %v7335 = vmul.f32 %v7301, 1.442695
    %v7336 = vpow.pop %v7335
    %v7337 = vmul.f32 %v7302, 1.442695
    %v7338 = vpow.pop %v7337
    %v7339 = vmul.f32 %v7303, 1.442695
    %v7340 = vpow.pop %v7339
    %v7341 = vmul.f32 %v7304, 1.442695
    %v7342 = vpow.pop %v7341
    %v7343 = vmul.f32 %v7305, 1.442695
    %v7344 = vpow.pop %v7343
    %v7345 = vmul.f32 %v7306, 1.442695
    %v7346 = vpow.pop %v7345
    %v7347 = vmul.f32 %v7307, 1.442695
    %v7348 = vpow.pop %v7347
    %v7349 = vmul.f32 %v7308, 1.442695
    %v7350 = vpow.pop %v7349
    %v7351 = vmul.f32 %v7309, 1.442695
    %v7352 = vpow.pop %v7351
    %v7353 = vmul.f32 %v7310, 1.442695
    %v7354 = vpow.pop %v7353
    %v7355 = vmul.f32 %v7311, 1.442695
    %v7356 = vpow.pop %v7355
    %v7357 = vmul.f32 %v7312, 1.442695
    %v7358 = vpow.pop %v7357
    %v7359 = vmul.f32 %v7313, 1.442695
    %v7360 = vpow.pop %v7359
    %v7361 = vmul.f32 %v7314, 1.442695
    %v7362 = vpow.pop %v7361
    %v7363 = vmul.f32 %v7315, 1.442695
    %v7364 = vpow.pop %v7363
    %v7365 = vmul.f32 %v7316, 1.442695
    %v7366 = vpow.pop %v7365
    %v7367 = vmul.f32 %v7317, 1.442695
    %v7368 = vpow.pop %v7367
    %v7369 = vmul.f32 %v7318, 1.442695
    %v7370 = vpow.pop %v7369
    %v7371 = vmul.f32 %v7319, 1.442695
    %v7372 = vpow.pop %v7371
    %v7373 = vmul.f32 %v7320, 1.442695
    %v7374 = vpow.pop %v7373
    %v7375 = vmul.f32 %v7321, 1.442695
    %v7376 = vpow.pop %v7375
    %v7377 = vmul.f32 %v7322, 1.442695
    %v7378 = vpow.pop %v7377
    %v7379 = vmul.f32 %v7323, 1.442695
    %v7380 = vpow.pop %v7379
    %v7381 = vmul.f32 %v7324, 1.442695
    %v7382 = vpow.pop %v7381
    %v7383 = vadd.f32 %v7326, 1.0
    %v7384 = vadd.f32 %v7328, 1.0
    %v7385 = vadd.f32 %v7330, 1.0
    %v7386 = vadd.f32 %v7332, 1.0
    %v7387 = vadd.f32 %v7334, 1.0
    %v7388 = vadd.f32 %v7336, 1.0
    %v7389 = vadd.f32 %v7338, 1.0
    %v7390 = vadd.f32 %v7340, 1.0
    %v7391 = vadd.f32 %v7342, 1.0
    %v7392 = vadd.f32 %v7344, 1.0
    %v7393 = vadd.f32 %v7346, 1.0
    %v7394 = vadd.f32 %v7348, 1.0
    %v7395 = vadd.f32 %v7350, 1.0
    %v7396 = vadd.f32 %v7352, 1.0
    %v7397 = vadd.f32 %v7354, 1.0
    %v7398 = vadd.f32 %v7356, 1.0
    %v7399 = vadd.f32 %v7358, 1.0
    %v7400 = vadd.f32 %v7360, 1.0
    %v7401 = vadd.f32 %v7362, 1.0
    %v7402 = vadd.f32 %v7364, 1.0
    %v7403 = vadd.f32 %v7366, 1.0
    %v7404 = vadd.f32 %v7368, 1.0
    %v7405 = vadd.f32 %v7370, 1.0
    %v7406 = vadd.f32 %v7372, 1.0
    %v7407 = vadd.f32 %v7374, 1.0
    %v7408 = vadd.f32 %v7376, 1.0
    %v7409 = vadd.f32 %v7378, 1.0
    %v7410 = vadd.f32 %v7380, 1.0
    %v7411 = vadd.f32 %v7382, 1.0
    %v7412 = vrcp.pop %v7383
    %v7413 = vmul.f32 1.0, %v7412
    %v7414 = vrcp.pop %v7384
    %v7415 = vmul.f32 1.0, %v7414
    %v7416 = vrcp.pop %v7385
    %v7417 = vmul.f32 1.0, %v7416
    %v7418 = vrcp.pop %v7386
    %v7419 = vmul.f32 1.0, %v7418
    %v7420 = vrcp.pop %v7387
    %v7421 = vmul.f32 1.0, %v7420
    %v7422 = vrcp.pop %v7388
    %v7423 = vmul.f32 1.0, %v7422
    %v7424 = vrcp.pop %v7389
    %v7425 = vmul.f32 1.0, %v7424
    %v7426 = vrcp.pop %v7390
    %v7427 = vmul.f32 1.0, %v7426
    %v7428 = vrcp.pop %v7391
    %v7429 = vmul.f32 1.0, %v7428
    %v7430 = vrcp.pop %v7392
    %v7431 = vmul.f32 1.0, %v7430
    %v7432 = vrcp.pop %v7393
    %v7433 = vmul.f32 1.0, %v7432
    %v7434 = vrcp.pop %v7394
    %v7435 = vmul.f32 1.0, %v7434
    %v7436 = vrcp.pop %v7395
    %v7437 = vmul.f32 1.0, %v7436
    %v7438 = vrcp.pop %v7396
    %v7439 = vmul.f32 1.0, %v7438
    %v7440 = vrcp.pop %v7397
    %v7441 = vmul.f32 1.0, %v7440
    %v7442 = vrcp.pop %v7398
    %v7443 = vmul.f32 1.0, %v7442
    %v7444 = vrcp.pop %v7399
    %v7445 = vmul.f32 1.0, %v7444
    %v7446 = vrcp.pop %v7400
    %v7447 = vmul.f32 1.0, %v7446
    %v7448 = vrcp.pop %v7401
    %v7449 = vmul.f32 1.0, %v7448
    %v7450 = vrcp.pop %v7402
    %v7451 = vmul.f32 1.0, %v7450
    %v7452 = vrcp.pop %v7403
    %v7453 = vmul.f32 1.0, %v7452
    %v7454 = vrcp.pop %v7404
    %v7455 = vmul.f32 1.0, %v7454
    %v7456 = vrcp.pop %v7405
    %v7457 = vmul.f32 1.0, %v7456
    %v7458 = vrcp.pop %v7406
    %v7459 = vmul.f32 1.0, %v7458
    %v7460 = vrcp.pop %v7407
    %v7461 = vmul.f32 1.0, %v7460
    %v7462 = vrcp.pop %v7408
    %v7463 = vmul.f32 1.0, %v7462
    %v7464 = vrcp.pop %v7409
    %v7465 = vmul.f32 1.0, %v7464
    %v7466 = vrcp.pop %v7410
    %v7467 = vmul.f32 1.0, %v7466
    %v7468 = vrcp.pop %v7411
    %v7469 = vmul.f32 1.0, %v7468
    %7470 = vst [vmem:[#allocation34] sm:$0xff] %v7413
    %7471 = vst [vmem:[#allocation34 + $0x8] sm:$0xff] %v7415
    %7472 = vst [vmem:[#allocation34 + $0x10] sm:$0xff] %v7417
    %7473 = vst [vmem:[#allocation34 + $0x18] sm:$0xff] %v7419
    %7474 = vst [vmem:[#allocation34 + $0x20] sm:$0xff] %v7421
    %7475 = vst [vmem:[#allocation34 + $0x28] sm:$0xff] %v7423
    %7476 = vst [vmem:[#allocation34 + $0x30] sm:$0xff] %v7425
    %7477 = vst [vmem:[#allocation34 + $0x38] sm:$0xff] %v7427
    %7478 = vst [vmem:[#allocation34 + $0x40] sm:$0xff] %v7429
    %7479 = vst [vmem:[#allocation34 + $0x48] sm:$0xff] %v7431
    %7480 = vst [vmem:[#allocation34 + $0x50] sm:$0xff] %v7433
    %7481 = vst [vmem:[#allocation34 + $0x58] sm:$0xff] %v7435
    %7482 = vst [vmem:[#allocation34 + $0x60] sm:$0xff] %v7437
    %7483 = vst [vmem:[#allocation34 + $0x68] sm:$0xff] %v7439
    %7484 = vst [vmem:[#allocation34 + $0x70] sm:$0xff] %v7441
    %7485 = vst [vmem:[#allocation34 + $0x78] sm:$0xff] %v7443
    %7486 = vst [vmem:[#allocation34 + $0x80] sm:$0xff] %v7445
    %7487 = vst [vmem:[#allocation34 + $0x88] sm:$0xff] %v7447
    %7488 = vst [vmem:[#allocation34 + $0x90] sm:$0xff] %v7449
    %7489 = vst [vmem:[#allocation34 + $0x98] sm:$0xff] %v7451
    %7490 = vst [vmem:[#allocation34 + $0xa0] sm:$0xff] %v7453
    %7491 = vst [vmem:[#allocation34 + $0xa8] sm:$0xff] %v7455
    %7492 = vst [vmem:[#allocation34 + $0xb0] sm:$0xff] %v7457
    %7493 = vst [vmem:[#allocation34 + $0xb8] sm:$0xff] %v7459
    %7494 = vst [vmem:[#allocation34 + $0xc0] sm:$0xff] %v7461
    %7495 = vst [vmem:[#allocation34 + $0xc8] sm:$0xff] %v7463
    %7496 = vst [vmem:[#allocation34 + $0xd0] sm:$0xff] %v7465
    %7497 = vst [vmem:[#allocation34 + $0xd8] sm:$0xff] %v7467
    %7498 = vst [vmem:[#allocation34 + $0xe0] sm:$0xff] %v7469
    // Predicated region
    $region88: #{g_forward.1} parent=1 // pred_check
      _
    $region89: #{g_forward.1} parent=1 // pred_check_branch
      %7500 = sbr.rel (0) target = $region91
    $region90: #{g_forward.1} parent=1 // pred_region
      %s7502 = ssub.s32 3712, 3712
      %7503 = vsyncadd [#allocation29], %s7502
      %s7505 = sshll.u32 [#allocation33], 4
      %s7506 = int_to_ptr.vmem [resolvable:$true] %s7505
      %7508 = dma.vmem_to_hbm [thread:$0]  %s7506, 3712, %s27, [#allocation29]
    $region91: #{g_forward.1} parent=1 // pred_fallthru
      _
    // Predicated region
    $region92: #{g_forward.1} parent=1 // pred_check
      _
    $region93: #{g_forward.1} parent=1 // pred_check_branch
      %7510 = sbr.rel (0) target = $region95
    $region94: #{g_forward.1} parent=1 // pred_region
      %s7512 = ssub.s32 3712, 3712
      %7513 = vsyncadd [#allocation35], %s7512
      %s7515 = sshll.u32 [#allocation34], 4
      %s7516 = int_to_ptr.vmem [resolvable:$true] %s7515
      %7518 = dma.vmem_to_hbm [thread:$0]  %s7516, 3712, %s28, [#allocation35]
    $region95: #{g_forward.1} parent=1 // pred_fallthru
      _
    // Predicated region
    $region96: #{g_forward.1} parent=1 // pred_check
      _
    $region97: #{g_forward.1} parent=1 // pred_check_branch
      %7520 = sbr.rel (0) target = $region99
    $region98: #{g_forward.1} parent=1 // pred_region
      %7521 = dma.done [#allocation29], 3712
    $region99: #{g_forward.1} parent=1 // pred_fallthru
      _
    // Predicated region
    $region100: #{g_forward.1} parent=1 // pred_check
      _
    $region101: #{g_forward.1} parent=1 // pred_check_branch
      %7523 = sbr.rel (0) target = $region103
    $region102: #{g_forward.1} parent=1 // pred_region
      %7524 = dma.done [#allocation35], 3712
    $region103: #{g_forward.1} parent=1 // pred_fallthru
      _
    %7525 = vsyncpa [#allocation28], 1
    %7526 = vsyncpa [#allocation31], 1
    %7527 = vsyncpa [#allocation29], 1
    %7528 = vsyncpa [#allocation35], 1
  %7529 = vsyncmov [#allocation26]
  %s7530 = vpop.sfrf %7529
  %p7531 = scmp.eq.s32.totalorder %s7530, 0
  %p7532 = pneg %p7531
  %7534 = shalt.err (%p7532)
  %s7535 = scalar_lea.sflag [#allocation26], 1
  %7536 = vsyncmov %s7535
  %s7537 = vpop.sfrf %7536
  %p7538 = scmp.eq.s32.totalorder %s7537, 0
  %p7539 = pneg %p7538
  %7541 = shalt.err (%p7539)
  %s7542 = scalar_lea.sflag [#allocation26], 2
  %7543 = vsyncmov %s7542
  %s7544 = vpop.sfrf %7543
  %p7545 = scmp.eq.s32.totalorder %s7544, 0
  %p7546 = pneg %p7545
  %7548 = shalt.err (%p7546)
  %s7549 = scalar_lea.sflag [#allocation26], 3
  %7550 = vsyncmov %s7549
  %s7551 = vpop.sfrf %7550
  %p7552 = scmp.eq.s32.totalorder %s7551, 0
  %p7553 = pneg %p7552
  %7555 = shalt.err (%p7553)
  %s7556 = scalar_lea.sflag [#allocation26], 4
  %7557 = vsyncmov %s7556
  %s7558 = vpop.sfrf %7557
  %p7559 = scmp.eq.s32.totalorder %s7558, 0
  %p7560 = pneg %p7559
  %7562 = shalt.err (%p7560)
  %s7563 = scalar_lea.sflag [#allocation26], 5
  %7564 = vsyncmov %s7563
  %s7565 = vpop.sfrf %7564
  %p7566 = scmp.eq.s32.totalorder %s7565, 0
  %p7567 = pneg %p7566
  %7569 = shalt.err (%p7567)
  %s7570 = scalar_lea.sflag [#allocation26], 6
  %7571 = vsyncmov %s7570
  %s7572 = vpop.sfrf %7571
  %p7573 = scmp.eq.s32.totalorder %s7572, 0
  %p7574 = pneg %p7573
  %7576 = shalt.err (%p7574)
  %s7577 = scalar_lea.sflag [#allocation26], 7
  %7578 = vsyncmov %s7577
  %s7579 = vpop.sfrf %7578
  %p7580 = scmp.eq.s32.totalorder %s7579, 0
  %p7581 = pneg %p7580
  %7583 = shalt.err (%p7581)
  %s7584 = scalar_lea.sflag [#allocation26], 8
  %7585 = vsyncmov %s7584
  %s7586 = vpop.sfrf %7585
  %p7587 = scmp.eq.s32.totalorder %s7586, 0
  %p7588 = pneg %p7587
  %7590 = shalt.err (%p7588)
  %s7591 = scalar_lea.sflag [#allocation26], 9
  %7592 = vsyncmov %s7591
  %s7593 = vpop.sfrf %7592
  %p7594 = scmp.eq.s32.totalorder %s7593, 0
  %p7595 = pneg %p7594
  %7597 = shalt.err (%p7595)
  %s7598 = scalar_lea.sflag [#allocation26], 10
  %7599 = vsyncmov %s7598
  %s7600 = vpop.sfrf %7599
  %p7601 = scmp.eq.s32.totalorder %s7600, 0
  %p7602 = pneg %p7601
  %7604 = shalt.err (%p7602)
  %s7605 = scalar_lea.sflag [#allocation26], 11
  %7606 = vsyncmov %s7605
  %s7607 = vpop.sfrf %7606
  %p7608 = scmp.eq.s32.totalorder %s7607, 0
  %p7609 = pneg %p7608
  %7611 = shalt.err (%p7609)
  %s7612 = scalar_lea.sflag [#allocation26], 12
  %7613 = vsyncmov %s7612
  %s7614 = vpop.sfrf %7613
  %p7615 = scmp.eq.s32.totalorder %s7614, 0
  %p7616 = pneg %p7615
  %7618 = shalt.err (%p7616)
  %s7619 = scalar_lea.sflag [#allocation26], 13
  %7620 = vsyncmov %s7619
  %s7621 = vpop.sfrf %7620
  %p7622 = scmp.eq.s32.totalorder %s7621, 0
  %p7623 = pneg %p7622
  %7625 = shalt.err (%p7623)
  %s7626 = scalar_lea.sflag [#allocation26], 14
  %7627 = vsyncmov %s7626
  %s7628 = vpop.sfrf %7627
  %p7629 = scmp.eq.s32.totalorder %s7628, 0
  %p7630 = pneg %p7629
  %7632 = shalt.err (%p7630)
  %s7633 = scalar_lea.sflag [#allocation26], 15
  %7634 = vsyncmov %s7633
  %s7635 = vpop.sfrf %7634
  %p7636 = scmp.eq.s32.totalorder %s7635, 0
  %p7637 = pneg %p7636
  %7639 = shalt.err (%p7637)
  %s7640 = scalar_lea.sflag [#allocation26], 16
  %7641 = vsyncmov %s7640
  %s7642 = vpop.sfrf %7641
  %p7643 = scmp.eq.s32.totalorder %s7642, 0
  %p7644 = pneg %p7643
  %7646 = shalt.err (%p7644)
  %s7647 = scalar_lea.sflag [#allocation26], 17
  %7648 = vsyncmov %s7647
  %s7649 = vpop.sfrf %7648
  %p7650 = scmp.eq.s32.totalorder %s7649, 0
  %p7651 = pneg %p7650
  %7653 = shalt.err (%p7651)
  %s7654 = scalar_lea.sflag [#allocation26], 18
  %7655 = vsyncmov %s7654
  %s7656 = vpop.sfrf %7655
  %p7657 = scmp.eq.s32.totalorder %s7656, 0
  %p7658 = pneg %p7657
  %7660 = shalt.err (%p7658)
  %s7661 = scalar_lea.sflag [#allocation26], 19
  %7662 = vsyncmov %s7661
  %s7663 = vpop.sfrf %7662
  %p7664 = scmp.eq.s32.totalorder %s7663, 0
  %p7665 = pneg %p7664
  %7667 = shalt.err (%p7665)
  %s7668 = scalar_lea.sflag [#allocation26], 20
  %7669 = vsyncmov %s7668
  %s7670 = vpop.sfrf %7669
  %p7671 = scmp.eq.s32.totalorder %s7670, 0
  %p7672 = pneg %p7671
  %7674 = shalt.err (%p7672)
  %s7675 = scalar_lea.sflag [#allocation26], 21
  %7676 = vsyncmov %s7675
  %s7677 = vpop.sfrf %7676
  %p7678 = scmp.eq.s32.totalorder %s7677, 0
  %p7679 = pneg %p7678
  %7681 = shalt.err (%p7679)
  %s7682 = scalar_lea.sflag [#allocation26], 22
  %7683 = vsyncmov %s7682
  %s7684 = vpop.sfrf %7683
  %p7685 = scmp.eq.s32.totalorder %s7684, 0
  %p7686 = pneg %p7685
  %7688 = shalt.err (%p7686)
  %s7689 = scalar_lea.sflag [#allocation26], 23
  %7690 = vsyncmov %s7689
  %s7691 = vpop.sfrf %7690
  %p7692 = scmp.eq.s32.totalorder %s7691, 0
  %p7693 = pneg %p7692
  %7695 = shalt.err (%p7693)

</llo_original>
